<compile_context>
chip_gen: v6e
topology: v6e:2x2x1
jax: 0.10.0
libtpu: 0.0.40
codegen_flags: <defaults>
</compile_context>

<pallas_src>
import jax
import jax.numpy as jnp
from jax.experimental import pallas as pl
from jax.experimental.pallas import tpu as pltpu

PAD = 0
INFINITY_NUMBER = 1e12


def _pad_to(x, axis, size, value=0.0):
    pad = size - x.shape[axis]
    if pad <= 0:
        return x
    widths = [(0, 0)] * x.ndim
    widths[axis] = (0, pad)
    return jnp.pad(x, widths, constant_values=value)


# --------------------------------------------------------------------------
# Kernel 1: single-layer GRU encoder, time-chunked (PyTorch gate order r, z, n).
#   x        : (T, B, In) time-major, one (TC, B, In) chunk per grid step
#   weights  : gate-major  W_ih (3, In, H), W_hh (3, H, H), biases (3, 1, H)
#   output M : (T, B, H) time-major
# Hidden state persists across chunks in a VMEM scratch; per-chunk input
# projection is a single MXU matmul per gate (bf16 inputs, f32 accumulation).
# --------------------------------------------------------------------------
def gru_seq_kernel(x_ref, wih_ref, whh_ref, bih_ref, bhh_ref, m_ref,
                   h_scr, gir_scr, giz_scr, gin_scr):
    TC, Bp, In = x_ref.shape
    H = h_scr.shape[-1]

    @pl.when(pl.program_id(0) == 0)
    def _init():
        h_scr[...] = jnp.zeros_like(h_scr)

    # Hoisted input projection: one chunk-wide matmul per gate.
    x2d = x_ref[...].astype(jnp.bfloat16).reshape(TC * Bp, In)
    gir_scr[...] = (jnp.dot(x2d, wih_ref[0], preferred_element_type=jnp.float32)
                    + bih_ref[0]).reshape(TC, Bp, H)
    giz_scr[...] = (jnp.dot(x2d, wih_ref[1], preferred_element_type=jnp.float32)
                    + bih_ref[1]).reshape(TC, Bp, H)
    gin_scr[...] = (jnp.dot(x2d, wih_ref[2], preferred_element_type=jnp.float32)
                    + bih_ref[2]).reshape(TC, Bp, H)

    whh_r, whh_z, whh_n = whh_ref[0], whh_ref[1], whh_ref[2]
    bhh_r, bhh_z, bhh_n = bhh_ref[0], bhh_ref[1], bhh_ref[2]

    def step(t, h):
        hb = h.astype(jnp.bfloat16)
        gh_r = jnp.dot(hb, whh_r, preferred_element_type=jnp.float32) + bhh_r
        gh_z = jnp.dot(hb, whh_z, preferred_element_type=jnp.float32) + bhh_z
        gh_n = jnp.dot(hb, whh_n, preferred_element_type=jnp.float32) + bhh_n
        r = jax.nn.sigmoid(gir_scr[t] + gh_r)
        z = jax.nn.sigmoid(giz_scr[t] + gh_z)
        n = jnp.tanh(gin_scr[t] + r * gh_n)
        h_new = (1.0 - z) * n + z * h
        m_ref[t] = h_new
        return h_new

    h_scr[...] = jax.lax.fori_loop(0, TC, step, h_scr[...], unroll=True)


def gru_encode_seq(x_tbi, wih, whh, bih, bhh, *, chunk=32):
    T, B, In = x_tbi.shape
    H = whh.shape[-1]
    TC = min(chunk, T)
    Tp = ((T + TC - 1) // TC) * TC
    Bp = ((B + 7) // 8) * 8                       # 8-aligned batch -> aligned reshapes
    x_p = _pad_to(_pad_to(x_tbi, 0, Tp), 1, Bp)
    nch = Tp // TC
    out = pl.pallas_call(
        gru_seq_kernel,
        out_shape=jax.ShapeDtypeStruct((Tp, Bp, H), jnp.float32),
        grid_spec=pltpu.PrefetchScalarGridSpec(
            num_scalar_prefetch=0,
            grid=(nch,),
            in_specs=[
                pl.BlockSpec((TC, Bp, In), lambda c: (c, 0, 0)),
                pl.BlockSpec((3, In, H), lambda c: (0, 0, 0)),
                pl.BlockSpec((3, H, H), lambda c: (0, 0, 0)),
                pl.BlockSpec((3, 1, H), lambda c: (0, 0, 0)),
                pl.BlockSpec((3, 1, H), lambda c: (0, 0, 0)),
            ],
            out_specs=pl.BlockSpec((TC, Bp, H), lambda c: (c, 0, 0)),
            scratch_shapes=[
                pltpu.VMEM((Bp, H), jnp.float32),
                pltpu.VMEM((TC, Bp, H), jnp.float32),
                pltpu.VMEM((TC, Bp, H), jnp.float32),
                pltpu.VMEM((TC, Bp, H), jnp.float32),
            ],
        ),
        compiler_params=pltpu.CompilerParams(dimension_semantics=("arbitrary",)),
    )(x_p, wih, whh, bih, bhh)
    return out[:T, :B]


# --------------------------------------------------------------------------
# Kernel 2: BiDAF attention flow (batch-major, grid over batch, "parallel").
#   S   = H W U^T            (MatrixAttention, bilinear form)
#   c2q = softmax(S, Q) @ U
#   b   = softmax(max(S, Q), P) ;  q2c = b @ H (broadcast over P)
#   G   = [H ; c2q ; H*c2q ; H*q2c]
# Row max is computed once and reused by both softmaxes; divides go to the EUP.
# --------------------------------------------------------------------------
def bidaf_attn_kernel(h_ref, u_ref, w_ref, g_ref):
    Hm = h_ref[0]                                                  # (P, D) f32
    Um = u_ref[0]                                                  # (Q, D) f32
    Hb = Hm.astype(jnp.bfloat16)
    Ub = Um.astype(jnp.bfloat16)

    HW = jnp.dot(Hb, w_ref[...], preferred_element_type=jnp.float32)          # (P, D)
    S = jnp.einsum('pd,qd->pq', HW.astype(jnp.bfloat16), Ub,
                   preferred_element_type=jnp.float32)                         # (P, Q)

    # softmax over Q (torch dim=2); row_max reused for q2c below.
    row_max = jnp.max(S, axis=1, keepdims=True)                                # (P, 1)
    e = jnp.exp(S - row_max)
    A = e * pl.reciprocal(jnp.sum(e, axis=1, keepdims=True), approx=True)      # (P, Q)
    c2q = jnp.dot(A.astype(jnp.bfloat16), Ub, preferred_element_type=jnp.float32)

    # q2c: softmax over P of the per-row max of S.
    m = jnp.max(row_max, axis=0, keepdims=True)                                # (1, 1)
    eb = jnp.exp(row_max - m)                                                  # (P, 1)
    bq = eb * pl.reciprocal(jnp.sum(eb, axis=0, keepdims=True), approx=True)   # (P, 1)
    q2c = jnp.sum(bq * Hm, axis=0, keepdims=True)                              # (1, D)

    g_ref[0] = jnp.concatenate([Hm, c2q, Hm * c2q, Hm * q2c], axis=1)          # (P, 4D)


def bidaf_attention(H, U, W):
    B, P, D = H.shape
    Q = U.shape[1]
    return pl.pallas_call(
        bidaf_attn_kernel,
        out_shape=jax.ShapeDtypeStruct((B, P, 4 * D), jnp.float32),
        grid_spec=pltpu.PrefetchScalarGridSpec(
            num_scalar_prefetch=0,
            grid=(B,),
            in_specs=[
                pl.BlockSpec((1, P, D), lambda b: (b, 0, 0)),
                pl.BlockSpec((1, Q, D), lambda b: (b, 0, 0)),
                pl.BlockSpec((D, D), lambda b: (0, 0)),
            ],
            out_specs=pl.BlockSpec((1, P, 4 * D), lambda b: (b, 0, 0)),
        ),
        compiler_params=pltpu.CompilerParams(dimension_semantics=("parallel",)),
    )(H, U, W)


# --------------------------------------------------------------------------
# Kernel 3: modeling GRU + fused masked max-pool of [G ; M] + bias-free classifier.
#   Per time chunk: pool G, run the GRU recurrence (hoisted input projection),
#   keep running masked max of hidden states; on the last chunk apply the
#   classifier split as  score = pool(G) @ Wg + pool(M) @ Wm.
# M and G_M never hit HBM.
# --------------------------------------------------------------------------
def bidaf_model_head_kernel(g_ref, mask_ref, wih_ref, whh_ref, bih_ref, bhh_ref,
                            wg_ref, wm_ref, score_ref,
                            h_scr, mxm_scr, mxg_scr, gir_scr, giz_scr, gin_scr):
    TC, Bp, In = g_ref.shape
    H = h_scr.shape[-1]

    @pl.when(pl.program_id(0) == 0)
    def _init():
        h_scr[...] = jnp.zeros_like(h_scr)
        mxm_scr[...] = jnp.full(mxm_scr.shape, -INFINITY_NUMBER, jnp.float32)
        mxg_scr[...] = jnp.full(mxg_scr.shape, -INFINITY_NUMBER, jnp.float32)

    g = g_ref[...]                                   # (TC, Bp, 4H) f32
    mask = mask_ref[...]                             # (TC, Bp, 1)  f32 (1.0 where PAD)

    # masked max-pool of G over this chunk (time is the reduction grid axis).
    g_masked = jnp.where(mask > 0.5, -INFINITY_NUMBER, g)
    mxg_scr[...] = jnp.maximum(mxg_scr[...], jnp.max(g_masked, axis=0))

    # Hoisted GRU input projection for the whole chunk (bf16 in, f32 acc).
    x2d = g.astype(jnp.bfloat16).reshape(TC * Bp, In)
    gir_scr[...] = (jnp.dot(x2d, wih_ref[0], preferred_element_type=jnp.float32)
                    + bih_ref[0]).reshape(TC, Bp, H)
    giz_scr[...] = (jnp.dot(x2d, wih_ref[1], preferred_element_type=jnp.float32)
                    + bih_ref[1]).reshape(TC, Bp, H)
    gin_scr[...] = (jnp.dot(x2d, wih_ref[2], preferred_element_type=jnp.float32)
                    + bih_ref[2]).reshape(TC, Bp, H)

    whh_r, whh_z, whh_n = whh_ref[0], whh_ref[1], whh_ref[2]
    bhh_r, bhh_z, bhh_n = bhh_ref[0], bhh_ref[1], bhh_ref[2]

    def step(t, carry):
        h, mxm = carry
        hb = h.astype(jnp.bfloat16)
        gh_r = jnp.dot(hb, whh_r, preferred_element_type=jnp.float32) + bhh_r
        gh_z = jnp.dot(hb, whh_z, preferred_element_type=jnp.float32) + bhh_z
        gh_n = jnp.dot(hb, whh_n, preferred_element_type=jnp.float32) + bhh_n
        r = jax.nn.sigmoid(gir_scr[t] + gh_r)
        z = jax.nn.sigmoid(giz_scr[t] + gh_z)
        n = jnp.tanh(gin_scr[t] + r * gh_n)
        h_new = (1.0 - z) * n + z * h
        mt = mask_ref[t]                             # (Bp, 1)
        mxm_new = jnp.maximum(mxm, jnp.where(mt > 0.5, -INFINITY_NUMBER, h_new))
        return (h_new, mxm_new)

    h_fin, mxm_fin = jax.lax.fori_loop(0, TC, step, (h_scr[...], mxm_scr[...]),
                                       unroll=True)
    h_scr[...] = h_fin
    mxm_scr[...] = mxm_fin

    @pl.when(pl.program_id(0) == pl.num_programs(0) - 1)
    def _finalize():
        score_ref[...] = (
            jnp.dot(mxg_scr[...], wg_ref[...], preferred_element_type=jnp.float32)
            + jnp.dot(mxm_scr[...], wm_ref[...], preferred_element_type=jnp.float32))


def bidaf_model_head(g_tbi, mask_tb1, gru_params, wg, wm, *, chunk=32):
    wih, whh, bih, bhh = gru_params
    T, B, In = g_tbi.shape
    H = whh.shape[-1]
    TC = min(chunk, T)
    Tp = ((T + TC - 1) // TC) * TC
    Bp = ((B + 7) // 8) * 8
    g_p = _pad_to(_pad_to(g_tbi, 0, Tp), 1, Bp)
    # padded time steps / batch rows are flagged PAD so they never win the max-pool
    m_p = _pad_to(_pad_to(mask_tb1, 0, Tp, value=1.0), 1, Bp, value=1.0)
    nch = Tp // TC
    score = pl.pallas_call(
        bidaf_model_head_kernel,
        out_shape=jax.ShapeDtypeStruct((Bp, 2), jnp.float32),
        grid_spec=pltpu.PrefetchScalarGridSpec(
            num_scalar_prefetch=0,
            grid=(nch,),
            in_specs=[
                pl.BlockSpec((TC, Bp, In), lambda c: (c, 0, 0)),
                pl.BlockSpec((TC, Bp, 1), lambda c: (c, 0, 0)),
                pl.BlockSpec((3, In, H), lambda c: (0, 0, 0)),
                pl.BlockSpec((3, H, H), lambda c: (0, 0, 0)),
                pl.BlockSpec((3, 1, H), lambda c: (0, 0, 0)),
                pl.BlockSpec((3, 1, H), lambda c: (0, 0, 0)),
                pl.BlockSpec((In, 2), lambda c: (0, 0)),
                pl.BlockSpec((H, 2), lambda c: (0, 0)),
            ],
            out_specs=pl.BlockSpec((Bp, 2), lambda c: (0, 0)),
            scratch_shapes=[
                pltpu.VMEM((Bp, H), jnp.float32),
                pltpu.VMEM((Bp, H), jnp.float32),
                pltpu.VMEM((Bp, In), jnp.float32),
                pltpu.VMEM((TC, Bp, H), jnp.float32),
                pltpu.VMEM((TC, Bp, H), jnp.float32),
                pltpu.VMEM((TC, Bp, H), jnp.float32),
            ],
        ),
        compiler_params=pltpu.CompilerParams(dimension_semantics=("arbitrary",)),
    )(g_p, m_p, wih, whh, bih, bhh, wg, wm)
    return score[:B]


# --------------------------------------------------------------------------
# Full BIDAF forward (glue in plain JAX, heavy math in the kernels above).
# --------------------------------------------------------------------------
def bidaf_forward(params, sent_ids, sent_len, ques_ids, ques_len):
    emb = params['emb']
    B, P = sent_ids.shape
    Q = ques_ids.shape[1]

    # Embedder (eval: dropout = identity); gather directly into time-major layout.
    Xp = emb[sent_ids.T]                            # (P, B, E)
    Xq = emb[ques_ids.T]                            # (Q, B, E)

    # Contextual embedding layer: passage + question fused into ONE GRU call
    # (question padded to the passage length, stacked along batch).
    Tmax = max(P, Q)
    Xc = jnp.concatenate([_pad_to(Xp, 0, Tmax), _pad_to(Xq, 0, Tmax)], axis=1)  # (Tmax, 2B, E)
    HU = gru_encode_seq(Xc, *params['ctx_gru'])                                  # (Tmax, 2B, D)
    H_t = HU[:P, :B]                                # (P, B, D) time-major
    U_t = HU[:Q, B:2 * B]                           # (Q, B, D)

    # Attention flow (batch-major per-example tiles).
    H = jnp.transpose(H_t, (1, 0, 2))               # (B, P, D)
    U = jnp.transpose(U_t, (1, 0, 2))               # (B, Q, D)
    G = bidaf_attention(H, U, params['attn_W'])     # (B, P, 4D)

    # Modeling GRU + masked max-pool of [G ; M] + bias-free classifier (fused).
    G_t = jnp.transpose(G, (1, 0, 2))               # (P, B, 4D) time-major
    pad_mask = (sent_ids == PAD).astype(jnp.float32).T[:, :, None]               # (P, B, 1)
    score = bidaf_model_head(G_t, pad_mask, params['mod_gru'],
                             params['cls_WgT'], params['cls_WmT'])               # (B, 2)
    return score


# --------------------------------------------------------------------------
# Deterministic parameter construction (gate-major GRU weights, bf16 MXU weights).
# --------------------------------------------------------------------------
def make_gru_params(key, in_size, hid):
    k1, k2, k3, k4 = jax.random.split(key, 4)
    wih = (0.1 * jax.random.normal(k1, (3, in_size, hid), jnp.float32)).astype(jnp.bfloat16)
    whh = (0.1 * jax.random.normal(k2, (3, hid, hid), jnp.float32)).astype(jnp.bfloat16)
    bih = 0.1 * jax.random.normal(k3, (3, 1, hid), jnp.float32)
    bhh = 0.1 * jax.random.normal(k4, (3, 1, hid), jnp.float32)
    return (wih, whh, bih, bhh)


def make_params(key, vocab_size, emsize, nhid):
    ks = jax.random.split(key, 6)
    emb = 0.1 * jax.random.normal(ks[0], (vocab_size, emsize), jnp.float32)
    emb = emb.at[PAD].set(0.0)  # padding_idx
    return {
        'emb': emb,
        'ctx_gru': make_gru_params(ks[1], emsize, nhid),
        'mod_gru': make_gru_params(ks[2], 4 * nhid, nhid),
        'attn_W': (0.1 * jax.random.normal(ks[3], (nhid, nhid), jnp.float32)
                   ).astype(jnp.bfloat16),
        # classifier Linear(5*nhid, 2, bias=False), weight pre-split for [G ; M]
        'cls_WgT': 0.1 * jax.random.normal(ks[4], (4 * nhid, 2), jnp.float32),
        'cls_WmT': 0.1 * jax.random.normal(ks[5], (nhid, 2), jnp.float32),
    }


if __name__ == "__main__":
    B, P, Q = 2, 16, 8
    vocab_size, emsize, nhid = 100, 32, 32

    key = jax.random.PRNGKey(0)
    kp, ks, kq = jax.random.split(key, 3)

    params = make_params(kp, vocab_size, emsize, nhid)

    sent_len = jnp.array([16, 11], dtype=jnp.int32)
    ques_len = jnp.array([8, 5], dtype=jnp.int32)

    sent_ids = jax.random.randint(ks, (B, P), 1, vocab_size, dtype=jnp.int32)
    ques_ids = jax.random.randint(kq, (B, Q), 1, vocab_size, dtype=jnp.int32)
    # zero (PAD) out positions past each sequence length
    sent_ids = jnp.where(jnp.arange(P)[None, :] < sent_len[:, None], sent_ids, PAD)
    ques_ids = jnp.where(jnp.arange(Q)[None, :] < ques_len[:, None], ques_ids, PAD)

    score = jax.jit(bidaf_forward)(params, sent_ids, sent_len, ques_ids, ques_len)
    jax.block_until_ready(score)
    assert score.shape == (B, 2)
    print("KERNEL_OK")
</pallas_src>

<mosaic_0001>
module attributes {stable_mosaic.version = 11 : i64} {
  func.func @bidaf_attn_kernel(%arg0: i32, %arg1: memref<1x16x32xf32, #tpu.memory_space<vmem>>, %arg2: memref<1x8x32xf32, #tpu.memory_space<vmem>>, %arg3: memref<32x32xbf16, #tpu.memory_space<vmem>>, %arg4: memref<1x16x128xf32, #tpu.memory_space<vmem>>) attributes {dimension_semantics = [#tpu.dimension_semantics<parallel>], iteration_bounds = array<i64: 2>, scalar_prefetch = 0 : i64, scratch_operands = 0 : i64, tpu.core_type = #tpu.core_type<tc>, window_params = [{transform_indices = @transform_0, window_bounds = array<i64: 1, 16, 32>}, {transform_indices = @transform_1, window_bounds = array<i64: 1, 8, 32>}, {pipeline_mode = #tpu.pipeline_mode<synchronous>, transform_indices = @transform_2, window_bounds = array<i64: 32, 32>}, {transform_indices = @transform_3, window_bounds = array<i64: 1, 16, 128>}]} {
    %c0 = arith.constant 0 : index
    %c0_0 = arith.constant 0 : index
    %c0_1 = arith.constant 0 : index
    %0 = vector.load %arg1[%c0, %c0_0, %c0_1] : memref<1x16x32xf32, #tpu.memory_space<vmem>>, vector<1x16x32xf32>
    %1 = vector.shape_cast %0 : vector<1x16x32xf32> to vector<16x32xf32>
    %c0_2 = arith.constant 0 : index
    %c0_3 = arith.constant 0 : index
    %c0_4 = arith.constant 0 : index
    %2 = vector.load %arg2[%c0_2, %c0_3, %c0_4] : memref<1x8x32xf32, #tpu.memory_space<vmem>>, vector<1x8x32xf32>
    %3 = vector.shape_cast %2 : vector<1x8x32xf32> to vector<8x32xf32>
    %4 = arith.truncf %1 : vector<16x32xf32> to vector<16x32xbf16>
    %5 = arith.truncf %3 : vector<8x32xf32> to vector<8x32xbf16>
    %c0_5 = arith.constant 0 : index
    %c0_6 = arith.constant 0 : index
    %6 = vector.load %arg3[%c0_5, %c0_6] : memref<32x32xbf16, #tpu.memory_space<vmem>>, vector<32x32xbf16>
    %cst = arith.constant dense<0.000000e+00> : vector<16x32xf32>
    %7 = tpu.matmul %4, %6, %cst {dimension_numbers = #tpu.dot_dimension_numbers<[1], [0], [0], [1], [0, 0, 1, 1], [], []>} : vector<16x32xbf16>, vector<32x32xbf16>, vector<16x32xf32> -> vector<16x32xf32>
    %8 = arith.truncf %7 : vector<16x32xf32> to vector<16x32xbf16>
    "tpu.trace_start"() <{level = 10 : i32, message = "pd,qd->pq"}> : () -> ()
    %cst_7 = arith.constant dense<0.000000e+00> : vector<16x8xf32>
    %9 = tpu.matmul %8, %5, %cst_7 {dimension_numbers = #tpu.dot_dimension_numbers<[1], [1], [0], [0], [0, 0, 1, 0], [], []>} : vector<16x32xbf16>, vector<8x32xbf16>, vector<16x8xf32> -> vector<16x8xf32>
    "tpu.trace_stop"() : () -> ()
    %cst_8 = arith.constant dense<0xFF800000> : vector<16xf32>
    %10 = vector.multi_reduction <maximumf>, %9, %cst_8 [1] : vector<16x8xf32> to vector<16xf32>
    %11 = vector.shape_cast %10 : vector<16xf32> to vector<16x1xf32>
    %12 = vector.broadcast %11 : vector<16x1xf32> to vector<16x8xf32>
    %13 = arith.subf %9, %12 : vector<16x8xf32>
    %14 = math.exp %13 : vector<16x8xf32>
    %cst_9 = arith.constant dense<0.000000e+00> : vector<16xf32>
    %15 = vector.multi_reduction <add>, %14, %cst_9 [1] : vector<16x8xf32> to vector<16xf32>
    %16 = vector.shape_cast %15 : vector<16xf32> to vector<16x1xf32>
    %17 = tpu.reciprocal %16 {approx = true} : vector<16x1xf32> -> vector<16x1xf32>
    %18 = vector.broadcast %17 : vector<16x1xf32> to vector<16x8xf32>
    %19 = arith.mulf %14, %18 : vector<16x8xf32>
    %20 = arith.truncf %19 : vector<16x8xf32> to vector<16x8xbf16>
    %cst_10 = arith.constant dense<0.000000e+00> : vector<16x32xf32>
    %21 = tpu.matmul %20, %5, %cst_10 {dimension_numbers = #tpu.dot_dimension_numbers<[1], [0], [0], [1], [0, 0, 1, 1], [], []>} : vector<16x8xbf16>, vector<8x32xbf16>, vector<16x32xf32> -> vector<16x32xf32>
    %cst_11 = arith.constant dense<0xFF800000> : vector<1xf32>
    %22 = vector.multi_reduction <maximumf>, %11, %cst_11 [0] : vector<16x1xf32> to vector<1xf32>
    %23 = vector.shape_cast %22 : vector<1xf32> to vector<1x1xf32>
    %24 = vector.broadcast %23 : vector<1x1xf32> to vector<16x1xf32>
    %25 = arith.subf %11, %24 : vector<16x1xf32>
    %26 = math.exp %25 : vector<16x1xf32>
    %cst_12 = arith.constant dense<0.000000e+00> : vector<1xf32>
    %27 = vector.multi_reduction <add>, %26, %cst_12 [0] : vector<16x1xf32> to vector<1xf32>
    %28 = vector.shape_cast %27 : vector<1xf32> to vector<1x1xf32>
    %29 = tpu.reciprocal %28 {approx = true} : vector<1x1xf32> -> vector<1x1xf32>
    %30 = vector.broadcast %29 : vector<1x1xf32> to vector<16x1xf32>
    %31 = arith.mulf %26, %30 : vector<16x1xf32>
    %32 = vector.broadcast %31 : vector<16x1xf32> to vector<16x32xf32>
    %33 = arith.mulf %32, %1 : vector<16x32xf32>
    %cst_13 = arith.constant dense<0.000000e+00> : vector<32xf32>
    %34 = vector.multi_reduction <add>, %33, %cst_13 [0] : vector<16x32xf32> to vector<32xf32>
    %35 = vector.shape_cast %34 : vector<32xf32> to vector<1x32xf32>
    %36 = arith.mulf %1, %21 : vector<16x32xf32>
    %37 = vector.broadcast %35 : vector<1x32xf32> to vector<16x32xf32>
    %38 = arith.mulf %1, %37 : vector<16x32xf32>
    %39 = tpu.concatenate %1, %21, %36, %38 in 1 : vector<16x32xf32>, vector<16x32xf32>, vector<16x32xf32>, vector<16x32xf32> -> vector<16x128xf32>
    %c0_14 = arith.constant 0 : index
    %c0_15 = arith.constant 0 : index
    %c0_16 = arith.constant 0 : index
    %40 = vector.load %arg4[%c0_14, %c0_15, %c0_16] : memref<1x16x128xf32, #tpu.memory_space<vmem>>, vector<1x16x128xf32>
    %41 = vector.shape_cast %40 : vector<1x16x128xf32> to vector<16x128xf32>
    %42 = vector.shape_cast %39 : vector<16x128xf32> to vector<1x16x128xf32>
    tpu.vector_store %arg4[%c0_14, %c0_15, %c0_16], %42 {strides = array<i32>} : memref<1x16x128xf32, #tpu.memory_space<vmem>>, vector<1x16x128xf32>,
    return
  }
  func.func @transform_0(%arg0: i32) -> (i32, i32, i32) {
    %c0_i32 = arith.constant 0 : i32
    %c0_i32_0 = arith.constant 0 : i32
    %c0_i32_1 = arith.constant 0 : i32
    return %arg0, %c0_i32, %c0_i32_0 : i32, i32, i32
  }
  func.func @transform_1(%arg0: i32) -> (i32, i32, i32) {
    %c0_i32 = arith.constant 0 : i32
    %c0_i32_0 = arith.constant 0 : i32
    %c0_i32_1 = arith.constant 0 : i32
    return %arg0, %c0_i32, %c0_i32_0 : i32, i32, i32
  }
  func.func @transform_2(%arg0: i32) -> (i32, i32) {
    %c0_i32 = arith.constant 0 : i32
    %c0_i32_0 = arith.constant 0 : i32
    %c0_i32_1 = arith.constant 0 : i32
    return %c0_i32, %c0_i32_0 : i32, i32
  }
  func.func @transform_3(%arg0: i32) -> (i32, i32, i32) {
    %c0_i32 = arith.constant 0 : i32
    %c0_i32_0 = arith.constant 0 : i32
    %c0_i32_1 = arith.constant 0 : i32
    return %arg0, %c0_i32, %c0_i32_0 : i32, i32, i32
  }
}

module attributes {stable_mosaic.version = 11 : i64} {
  func.func @gru_seq_kernel(%arg0: i32, %arg1: memref<16x8x32xf32, #tpu.memory_space<vmem>>, %arg2: memref<3x32x32xbf16, #tpu.memory_space<vmem>>, %arg3: memref<3x32x32xbf16, #tpu.memory_space<vmem>>, %arg4: memref<3x1x32xf32, #tpu.memory_space<vmem>>, %arg5: memref<3x1x32xf32, #tpu.memory_space<vmem>>, %arg6: memref<16x8x32xf32, #tpu.memory_space<vmem>>, %arg7: memref<8x32xf32, #tpu.memory_space<vmem>>, %arg8: memref<16x8x32xf32, #tpu.memory_space<vmem>>, %arg9: memref<16x8x32xf32, #tpu.memory_space<vmem>>, %arg10: memref<16x8x32xf32, #tpu.memory_space<vmem>>) attributes {dimension_semantics = [#tpu.dimension_semantics<arbitrary>], iteration_bounds = array<i64: 1>, scalar_prefetch = 0 : i64, scratch_operands = 4 : i64, tpu.core_type = #tpu.core_type<tc>, window_params = [{transform_indices = @transform_0, window_bounds = array<i64: 16, 8, 32>}, {pipeline_mode = #tpu.pipeline_mode<synchronous>, transform_indices = @transform_1, window_bounds = array<i64: 3, 32, 32>}, {pipeline_mode = #tpu.pipeline_mode<synchronous>, transform_indices = @transform_2, window_bounds = array<i64: 3, 32, 32>}, {pipeline_mode = #tpu.pipeline_mode<synchronous>, transform_indices = @transform_3, window_bounds = array<i64: 3, 1, 32>}, {pipeline_mode = #tpu.pipeline_mode<synchronous>, transform_indices = @transform_4, window_bounds = array<i64: 3, 1, 32>}, {transform_indices = @transform_5, window_bounds = array<i64: 16, 8, 32>}]} {
    %c0_i32 = arith.constant 0 : i32
    %0 = arith.cmpi eq, %arg0, %c0_i32 : i32
    %1 = arith.extui %0 : i1 to i32
    %c0_i32_0 = arith.constant 0 : i32
    %2 = arith.cmpi ne, %1, %c0_i32_0 : i32
    scf.if %2 {
      %cst_277 = arith.constant 0.000000e+00 : f32
      %735 = vector.broadcast %cst_277 : f32 to vector<8x32xf32>
      %c0_278 = arith.constant 0 : index
      %c0_279 = arith.constant 0 : index
      %736 = vector.load %arg7[%c0_278, %c0_279] : memref<8x32xf32, #tpu.memory_space<vmem>>, vector<8x32xf32>
      tpu.vector_store %arg7[%c0_278, %c0_279], %735 {strides = array<i32>} : memref<8x32xf32, #tpu.memory_space<vmem>>, vector<8x32xf32>,
    } else {
    }
    %c0 = arith.constant 0 : index
    %c0_1 = arith.constant 0 : index
    %c0_2 = arith.constant 0 : index
    %3 = vector.load %arg1[%c0, %c0_1, %c0_2] : memref<16x8x32xf32, #tpu.memory_space<vmem>>, vector<16x8x32xf32>
    %4 = arith.truncf %3 : vector<16x8x32xf32> to vector<16x8x32xbf16>
    %5 = vector.shape_cast %4 : vector<16x8x32xbf16> to vector<128x32xbf16>
    %c0_3 = arith.constant 0 : index
    %c0_4 = arith.constant 0 : index
    %c0_5 = arith.constant 0 : index
    %6 = vector.load %arg2[%c0_3, %c0_4, %c0_5] : memref<3x32x32xbf16, #tpu.memory_space<vmem>>, vector<1x32x32xbf16>
    %7 = vector.shape_cast %6 : vector<1x32x32xbf16> to vector<32x32xbf16>
    %cst = arith.constant dense<0.000000e+00> : vector<128x32xf32>
    %8 = tpu.matmul %5, %7, %cst {dimension_numbers = #tpu.dot_dimension_numbers<[1], [0], [0], [1], [0, 0, 1, 1], [], []>} : vector<128x32xbf16>, vector<32x32xbf16>, vector<128x32xf32> -> vector<128x32xf32>
    %c0_6 = arith.constant 0 : index
    %c0_7 = arith.constant 0 : index
    %c0_8 = arith.constant 0 : index
    %9 = vector.load %arg4[%c0_6, %c0_7, %c0_8] : memref<3x1x32xf32, #tpu.memory_space<vmem>>, vector<1x1x32xf32>
    %10 = vector.shape_cast %9 : vector<1x1x32xf32> to vector<1x32xf32>
    %11 = vector.broadcast %10 : vector<1x32xf32> to vector<128x32xf32>
    %12 = arith.addf %8, %11 : vector<128x32xf32>
    %13 = vector.shape_cast %12 : vector<128x32xf32> to vector<16x8x32xf32>
    %c0_9 = arith.constant 0 : index
    %c0_10 = arith.constant 0 : index
    %c0_11 = arith.constant 0 : index
    %14 = vector.load %arg8[%c0_9, %c0_10, %c0_11] : memref<16x8x32xf32, #tpu.memory_space<vmem>>, vector<16x8x32xf32>
    tpu.vector_store %arg8[%c0_9, %c0_10, %c0_11], %13 {strides = array<i32>} : memref<16x8x32xf32, #tpu.memory_space<vmem>>, vector<16x8x32xf32>,
    %c1 = arith.constant 1 : index
    %c0_12 = arith.constant 0 : index
    %c0_13 = arith.constant 0 : index
    %15 = vector.load %arg2[%c1, %c0_12, %c0_13] : memref<3x32x32xbf16, #tpu.memory_space<vmem>>, vector<1x32x32xbf16>
    %16 = vector.shape_cast %15 : vector<1x32x32xbf16> to vector<32x32xbf16>
    %cst_14 = arith.constant dense<0.000000e+00> : vector<128x32xf32>
    %17 = tpu.matmul %5, %16, %cst_14 {dimension_numbers = #tpu.dot_dimension_numbers<[1], [0], [0], [1], [0, 0, 1, 1], [], []>} : vector<128x32xbf16>, vector<32x32xbf16>, vector<128x32xf32> -> vector<128x32xf32>
    %c1_15 = arith.constant 1 : index
    %c0_16 = arith.constant 0 : index
    %c0_17 = arith.constant 0 : index
    %18 = vector.load %arg4[%c1_15, %c0_16, %c0_17] : memref<3x1x32xf32, #tpu.memory_space<vmem>>, vector<1x1x32xf32>
    %19 = vector.shape_cast %18 : vector<1x1x32xf32> to vector<1x32xf32>
    %20 = vector.broadcast %19 : vector<1x32xf32> to vector<128x32xf32>
    %21 = arith.addf %17, %20 : vector<128x32xf32>
    %22 = vector.shape_cast %21 : vector<128x32xf32> to vector<16x8x32xf32>
    %c0_18 = arith.constant 0 : index
    %c0_19 = arith.constant 0 : index
    %c0_20 = arith.constant 0 : index
    %23 = vector.load %arg9[%c0_18, %c0_19, %c0_20] : memref<16x8x32xf32, #tpu.memory_space<vmem>>, vector<16x8x32xf32>
    tpu.vector_store %arg9[%c0_18, %c0_19, %c0_20], %22 {strides = array<i32>} : memref<16x8x32xf32, #tpu.memory_space<vmem>>, vector<16x8x32xf32>,
    %c2 = arith.constant 2 : index
    %c0_21 = arith.constant 0 : index
    %c0_22 = arith.constant 0 : index
    %24 = vector.load %arg2[%c2, %c0_21, %c0_22] : memref<3x32x32xbf16, #tpu.memory_space<vmem>>, vector<1x32x32xbf16>
    %25 = vector.shape_cast %24 : vector<1x32x32xbf16> to vector<32x32xbf16>
    %cst_23 = arith.constant dense<0.000000e+00> : vector<128x32xf32>
    %26 = tpu.matmul %5, %25, %cst_23 {dimension_numbers = #tpu.dot_dimension_numbers<[1], [0], [0], [1], [0, 0, 1, 1], [], []>} : vector<128x32xbf16>, vector<32x32xbf16>, vector<128x32xf32> -> vector<128x32xf32>
    %c2_24 = arith.constant 2 : index
    %c0_25 = arith.constant 0 : index
    %c0_26 = arith.constant 0 : index
    %27 = vector.load %arg4[%c2_24, %c0_25, %c0_26] : memref<3x1x32xf32, #tpu.memory_space<vmem>>, vector<1x1x32xf32>
    %28 = vector.shape_cast %27 : vector<1x1x32xf32> to vector<1x32xf32>
    %29 = vector.broadcast %28 : vector<1x32xf32> to vector<128x32xf32>
    %30 = arith.addf %26, %29 : vector<128x32xf32>
    %31 = vector.shape_cast %30 : vector<128x32xf32> to vector<16x8x32xf32>
    %c0_27 = arith.constant 0 : index
    %c0_28 = arith.constant 0 : index
    %c0_29 = arith.constant 0 : index
    %32 = vector.load %arg10[%c0_27, %c0_28, %c0_29] : memref<16x8x32xf32, #tpu.memory_space<vmem>>, vector<16x8x32xf32>
    tpu.vector_store %arg10[%c0_27, %c0_28, %c0_29], %31 {strides = array<i32>} : memref<16x8x32xf32, #tpu.memory_space<vmem>>, vector<16x8x32xf32>,
    %c0_30 = arith.constant 0 : index
    %c0_31 = arith.constant 0 : index
    %c0_32 = arith.constant 0 : index
    %33 = vector.load %arg3[%c0_30, %c0_31, %c0_32] : memref<3x32x32xbf16, #tpu.memory_space<vmem>>, vector<1x32x32xbf16>
    %34 = vector.shape_cast %33 : vector<1x32x32xbf16> to vector<32x32xbf16>
    %c1_33 = arith.constant 1 : index
    %c0_34 = arith.constant 0 : index
    %c0_35 = arith.constant 0 : index
    %35 = vector.load %arg3[%c1_33, %c0_34, %c0_35] : memref<3x32x32xbf16, #tpu.memory_space<vmem>>, vector<1x32x32xbf16>
    %36 = vector.shape_cast %35 : vector<1x32x32xbf16> to vector<32x32xbf16>
    %c2_36 = arith.constant 2 : index
    %c0_37 = arith.constant 0 : index
    %c0_38 = arith.constant 0 : index
    %37 = vector.load %arg3[%c2_36, %c0_37, %c0_38] : memref<3x32x32xbf16, #tpu.memory_space<vmem>>, vector<1x32x32xbf16>
    %38 = vector.shape_cast %37 : vector<1x32x32xbf16> to vector<32x32xbf16>
    %c0_39 = arith.constant 0 : index
    %c0_40 = arith.constant 0 : index
    %c0_41 = arith.constant 0 : index
    %39 = vector.load %arg5[%c0_39, %c0_40, %c0_41] : memref<3x1x32xf32, #tpu.memory_space<vmem>>, vector<1x1x32xf32>
    %40 = vector.shape_cast %39 : vector<1x1x32xf32> to vector<1x32xf32>
    %c1_42 = arith.constant 1 : index
    %c0_43 = arith.constant 0 : index
    %c0_44 = arith.constant 0 : index
    %41 = vector.load %arg5[%c1_42, %c0_43, %c0_44] : memref<3x1x32xf32, #tpu.memory_space<vmem>>, vector<1x1x32xf32>
    %42 = vector.shape_cast %41 : vector<1x1x32xf32> to vector<1x32xf32>
    %c2_45 = arith.constant 2 : index
    %c0_46 = arith.constant 0 : index
    %c0_47 = arith.constant 0 : index
    %43 = vector.load %arg5[%c2_45, %c0_46, %c0_47] : memref<3x1x32xf32, #tpu.memory_space<vmem>>, vector<1x1x32xf32>
    %44 = vector.shape_cast %43 : vector<1x1x32xf32> to vector<1x32xf32>
    %c0_48 = arith.constant 0 : index
    %c0_49 = arith.constant 0 : index
    %45 = vector.load %arg7[%c0_48, %c0_49] : memref<8x32xf32, #tpu.memory_space<vmem>>, vector<8x32xf32>
    %c0_i32_50 = arith.constant 0 : i32
    %46 = arith.truncf %45 : vector<8x32xf32> to vector<8x32xbf16>
    %cst_51 = arith.constant dense<0.000000e+00> : vector<8x32xf32>
    %47 = tpu.matmul %46, %34, %cst_51 {dimension_numbers = #tpu.dot_dimension_numbers<[1], [0], [0], [1], [0, 0, 1, 1], [], []>} : vector<8x32xbf16>, vector<32x32xbf16>, vector<8x32xf32> -> vector<8x32xf32>
    %48 = vector.broadcast %40 : vector<1x32xf32> to vector<8x32xf32>
    %49 = arith.addf %47, %48 : vector<8x32xf32>
    %cst_52 = arith.constant dense<0.000000e+00> : vector<8x32xf32>
    %50 = tpu.matmul %46, %36, %cst_52 {dimension_numbers = #tpu.dot_dimension_numbers<[1], [0], [0], [1], [0, 0, 1, 1], [], []>} : vector<8x32xbf16>, vector<32x32xbf16>, vector<8x32xf32> -> vector<8x32xf32>
    %51 = vector.broadcast %42 : vector<1x32xf32> to vector<8x32xf32>
    %52 = arith.addf %50, %51 : vector<8x32xf32>
    %cst_53 = arith.constant dense<0.000000e+00> : vector<8x32xf32>
    %53 = tpu.matmul %46, %38, %cst_53 {dimension_numbers = #tpu.dot_dimension_numbers<[1], [0], [0], [1], [0, 0, 1, 1], [], []>} : vector<8x32xbf16>, vector<32x32xbf16>, vector<8x32xf32> -> vector<8x32xf32>
    %54 = vector.broadcast %44 : vector<1x32xf32> to vector<8x32xf32>
    %55 = arith.addf %53, %54 : vector<8x32xf32>
    %56 = arith.index_cast %c0_i32_50 : i32 to index
    %c0_54 = arith.constant 0 : index
    %c0_55 = arith.constant 0 : index
    %57 = vector.load %arg8[%56, %c0_54, %c0_55] : memref<16x8x32xf32, #tpu.memory_space<vmem>>, vector<1x8x32xf32>
    %58 = vector.shape_cast %57 : vector<1x8x32xf32> to vector<8x32xf32>
    %59 = arith.addf %58, %49 : vector<8x32xf32>
    %60 = arith.negf %59 : vector<8x32xf32>
    %61 = math.exp %60 : vector<8x32xf32>
    %cst_56 = arith.constant 1.000000e+00 : f32
    %62 = vector.broadcast %cst_56 : f32 to vector<8x32xf32>
    %63 = arith.addf %62, %61 : vector<8x32xf32>
    %64 = arith.divf %62, %63 : vector<8x32xf32>
    %65 = arith.index_cast %c0_i32_50 : i32 to index
    %c0_57 = arith.constant 0 : index
    %c0_58 = arith.constant 0 : index
    %66 = vector.load %arg9[%65, %c0_57, %c0_58] : memref<16x8x32xf32, #tpu.memory_space<vmem>>, vector<1x8x32xf32>
    %67 = vector.shape_cast %66 : vector<1x8x32xf32> to vector<8x32xf32>
    %68 = arith.addf %67, %52 : vector<8x32xf32>
    %69 = arith.negf %68 : vector<8x32xf32>
    %70 = math.exp %69 : vector<8x32xf32>
    %cst_59 = arith.constant 1.000000e+00 : f32
    %71 = vector.broadcast %cst_59 : f32 to vector<8x32xf32>
    %72 = arith.addf %71, %70 : vector<8x32xf32>
    %73 = arith.divf %71, %72 : vector<8x32xf32>
    %74 = arith.index_cast %c0_i32_50 : i32 to index
    %c0_60 = arith.constant 0 : index
    %c0_61 = arith.constant 0 : index
    %75 = vector.load %arg10[%74, %c0_60, %c0_61] : memref<16x8x32xf32, #tpu.memory_space<vmem>>, vector<1x8x32xf32>
    %76 = vector.shape_cast %75 : vector<1x8x32xf32> to vector<8x32xf32>
    %77 = arith.mulf %64, %55 : vector<8x32xf32>
    %78 = arith.addf %76, %77 : vector<8x32xf32>
    %79 = math.tanh %78 : vector<8x32xf32>
    %cst_62 = arith.constant 1.000000e+00 : f32
    %80 = vector.broadcast %cst_62 : f32 to vector<8x32xf32>
    %81 = arith.subf %80, %73 : vector<8x32xf32>
    %82 = arith.mulf %81, %79 : vector<8x32xf32>
    %83 = arith.mulf %73, %45 : vector<8x32xf32>
    %84 = arith.addf %82, %83 : vector<8x32xf32>
    %85 = arith.index_cast %c0_i32_50 : i32 to index
    %c0_63 = arith.constant 0 : index
    %c0_64 = arith.constant 0 : index
    %86 = vector.load %arg6[%85, %c0_63, %c0_64] : memref<16x8x32xf32, #tpu.memory_space<vmem>>, vector<1x8x32xf32>
    %87 = vector.shape_cast %86 : vector<1x8x32xf32> to vector<8x32xf32>
    %88 = vector.shape_cast %84 : vector<8x32xf32> to vector<1x8x32xf32>
    tpu.vector_store %arg6[%85, %c0_63, %c0_64], %88 {strides = array<i32>} : memref<16x8x32xf32, #tpu.memory_space<vmem>>, vector<1x8x32xf32>,
    %c1_i32 = arith.constant 1 : i32
    %89 = arith.truncf %84 : vector<8x32xf32> to vector<8x32xbf16>
    %cst_65 = arith.constant dense<0.000000e+00> : vector<8x32xf32>
    %90 = tpu.matmul %89, %34, %cst_65 {dimension_numbers = #tpu.dot_dimension_numbers<[1], [0], [0], [1], [0, 0, 1, 1], [], []>} : vector<8x32xbf16>, vector<32x32xbf16>, vector<8x32xf32> -> vector<8x32xf32>
    %91 = vector.broadcast %40 : vector<1x32xf32> to vector<8x32xf32>
    %92 = arith.addf %90, %91 : vector<8x32xf32>
    %cst_66 = arith.constant dense<0.000000e+00> : vector<8x32xf32>
    %93 = tpu.matmul %89, %36, %cst_66 {dimension_numbers = #tpu.dot_dimension_numbers<[1], [0], [0], [1], [0, 0, 1, 1], [], []>} : vector<8x32xbf16>, vector<32x32xbf16>, vector<8x32xf32> -> vector<8x32xf32>
    %94 = vector.broadcast %42 : vector<1x32xf32> to vector<8x32xf32>
    %95 = arith.addf %93, %94 : vector<8x32xf32>
    %cst_67 = arith.constant dense<0.000000e+00> : vector<8x32xf32>
    %96 = tpu.matmul %89, %38, %cst_67 {dimension_numbers = #tpu.dot_dimension_numbers<[1], [0], [0], [1], [0, 0, 1, 1], [], []>} : vector<8x32xbf16>, vector<32x32xbf16>, vector<8x32xf32> -> vector<8x32xf32>
    %97 = vector.broadcast %44 : vector<1x32xf32> to vector<8x32xf32>
    %98 = arith.addf %96, %97 : vector<8x32xf32>
    %99 = arith.index_cast %c1_i32 : i32 to index
    %c0_68 = arith.constant 0 : index
    %c0_69 = arith.constant 0 : index
    %100 = vector.load %arg8[%99, %c0_68, %c0_69] : memref<16x8x32xf32, #tpu.memory_space<vmem>>, vector<1x8x32xf32>
    %101 = vector.shape_cast %100 : vector<1x8x32xf32> to vector<8x32xf32>
    %102 = arith.addf %101, %92 : vector<8x32xf32>
    %103 = arith.negf %102 : vector<8x32xf32>
    %104 = math.exp %103 : vector<8x32xf32>
    %cst_70 = arith.constant 1.000000e+00 : f32
    %105 = vector.broadcast %cst_70 : f32 to vector<8x32xf32>
    %106 = arith.addf %105, %104 : vector<8x32xf32>
    %107 = arith.divf %105, %106 : vector<8x32xf32>
    %108 = arith.index_cast %c1_i32 : i32 to index
    %c0_71 = arith.constant 0 : index
    %c0_72 = arith.constant 0 : index
    %109 = vector.load %arg9[%108, %c0_71, %c0_72] : memref<16x8x32xf32, #tpu.memory_space<vmem>>, vector<1x8x32xf32>
    %110 = vector.shape_cast %109 : vector<1x8x32xf32> to vector<8x32xf32>
    %111 = arith.addf %110, %95 : vector<8x32xf32>
    %112 = arith.negf %111 : vector<8x32xf32>
    %113 = math.exp %112 : vector<8x32xf32>
    %cst_73 = arith.constant 1.000000e+00 : f32
    %114 = vector.broadcast %cst_73 : f32 to vector<8x32xf32>
    %115 = arith.addf %114, %113 : vector<8x32xf32>
    %116 = arith.divf %114, %115 : vector<8x32xf32>
    %117 = arith.index_cast %c1_i32 : i32 to index
    %c0_74 = arith.constant 0 : index
    %c0_75 = arith.constant 0 : index
    %118 = vector.load %arg10[%117, %c0_74, %c0_75] : memref<16x8x32xf32, #tpu.memory_space<vmem>>, vector<1x8x32xf32>
    %119 = vector.shape_cast %118 : vector<1x8x32xf32> to vector<8x32xf32>
    %120 = arith.mulf %107, %98 : vector<8x32xf32>
    %121 = arith.addf %119, %120 : vector<8x32xf32>
    %122 = math.tanh %121 : vector<8x32xf32>
    %cst_76 = arith.constant 1.000000e+00 : f32
    %123 = vector.broadcast %cst_76 : f32 to vector<8x32xf32>
    %124 = arith.subf %123, %116 : vector<8x32xf32>
    %125 = arith.mulf %124, %122 : vector<8x32xf32>
    %126 = arith.mulf %116, %84 : vector<8x32xf32>
    %127 = arith.addf %125, %126 : vector<8x32xf32>
    %128 = arith.index_cast %c1_i32 : i32 to index
    %c0_77 = arith.constant 0 : index
    %c0_78 = arith.constant 0 : index
    %129 = vector.load %arg6[%128, %c0_77, %c0_78] : memref<16x8x32xf32, #tpu.memory_space<vmem>>, vector<1x8x32xf32>
    %130 = vector.shape_cast %129 : vector<1x8x32xf32> to vector<8x32xf32>
    %131 = vector.shape_cast %127 : vector<8x32xf32> to vector<1x8x32xf32>
    tpu.vector_store %arg6[%128, %c0_77, %c0_78], %131 {strides = array<i32>} : memref<16x8x32xf32, #tpu.memory_space<vmem>>, vector<1x8x32xf32>,
    %c2_i32 = arith.constant 2 : i32
    %132 = arith.truncf %127 : vector<8x32xf32> to vector<8x32xbf16>
    %cst_79 = arith.constant dense<0.000000e+00> : vector<8x32xf32>
    %133 = tpu.matmul %132, %34, %cst_79 {dimension_numbers = #tpu.dot_dimension_numbers<[1], [0], [0], [1], [0, 0, 1, 1], [], []>} : vector<8x32xbf16>, vector<32x32xbf16>, vector<8x32xf32> -> vector<8x32xf32>
    %134 = vector.broadcast %40 : vector<1x32xf32> to vector<8x32xf32>
    %135 = arith.addf %133, %134 : vector<8x32xf32>
    %cst_80 = arith.constant dense<0.000000e+00> : vector<8x32xf32>
    %136 = tpu.matmul %132, %36, %cst_80 {dimension_numbers = #tpu.dot_dimension_numbers<[1], [0], [0], [1], [0, 0, 1, 1], [], []>} : vector<8x32xbf16>, vector<32x32xbf16>, vector<8x32xf32> -> vector<8x32xf32>
    %137 = vector.broadcast %42 : vector<1x32xf32> to vector<8x32xf32>
    %138 = arith.addf %136, %137 : vector<8x32xf32>
    %cst_81 = arith.constant dense<0.000000e+00> : vector<8x32xf32>
    %139 = tpu.matmul %132, %38, %cst_81 {dimension_numbers = #tpu.dot_dimension_numbers<[1], [0], [0], [1], [0, 0, 1, 1], [], []>} : vector<8x32xbf16>, vector<32x32xbf16>, vector<8x32xf32> -> vector<8x32xf32>
    %140 = vector.broadcast %44 : vector<1x32xf32> to vector<8x32xf32>
    %141 = arith.addf %139, %140 : vector<8x32xf32>
    %142 = arith.index_cast %c2_i32 : i32 to index
    %c0_82 = arith.constant 0 : index
    %c0_83 = arith.constant 0 : index
    %143 = vector.load %arg8[%142, %c0_82, %c0_83] : memref<16x8x32xf32, #tpu.memory_space<vmem>>, vector<1x8x32xf32>
    %144 = vector.shape_cast %143 : vector<1x8x32xf32> to vector<8x32xf32>
    %145 = arith.addf %144, %135 : vector<8x32xf32>
    %146 = arith.negf %145 : vector<8x32xf32>
    %147 = math.exp %146 : vector<8x32xf32>
    %cst_84 = arith.constant 1.000000e+00 : f32
    %148 = vector.broadcast %cst_84 : f32 to vector<8x32xf32>
    %149 = arith.addf %148, %147 : vector<8x32xf32>
    %150 = arith.divf %148, %149 : vector<8x32xf32>
    %151 = arith.index_cast %c2_i32 : i32 to index
    %c0_85 = arith.constant 0 : index
    %c0_86 = arith.constant 0 : index
    %152 = vector.load %arg9[%151, %c0_85, %c0_86] : memref<16x8x32xf32, #tpu.memory_space<vmem>>, vector<1x8x32xf32>
    %153 = vector.shape_cast %152 : vector<1x8x32xf32> to vector<8x32xf32>
    %154 = arith.addf %153, %138 : vector<8x32xf32>
    %155 = arith.negf %154 : vector<8x32xf32>
    %156 = math.exp %155 : vector<8x32xf32>
    %cst_87 = arith.constant 1.000000e+00 : f32
    %157 = vector.broadcast %cst_87 : f32 to vector<8x32xf32>
    %158 = arith.addf %157, %156 : vector<8x32xf32>
    %159 = arith.divf %157, %158 : vector<8x32xf32>
    %160 = arith.index_cast %c2_i32 : i32 to index
    %c0_88 = arith.constant 0 : index
    %c0_89 = arith.constant 0 : index
    %161 = vector.load %arg10[%160, %c0_88, %c0_89] : memref<16x8x32xf32, #tpu.memory_space<vmem>>, vector<1x8x32xf32>
    %162 = vector.shape_cast %161 : vector<1x8x32xf32> to vector<8x32xf32>
    %163 = arith.mulf %150, %141 : vector<8x32xf32>
    %164 = arith.addf %162, %163 : vector<8x32xf32>
    %165 = math.tanh %164 : vector<8x32xf32>
    %cst_90 = arith.constant 1.000000e+00 : f32
    %166 = vector.broadcast %cst_90 : f32 to vector<8x32xf32>
    %167 = arith.subf %166, %159 : vector<8x32xf32>
    %168 = arith.mulf %167, %165 : vector<8x32xf32>
    %169 = arith.mulf %159, %127 : vector<8x32xf32>
    %170 = arith.addf %168, %169 : vector<8x32xf32>
    %171 = arith.index_cast %c2_i32 : i32 to index
    %c0_91 = arith.constant 0 : index
    %c0_92 = arith.constant 0 : index
    %172 = vector.load %arg6[%171, %c0_91, %c0_92] : memref<16x8x32xf32, #tpu.memory_space<vmem>>, vector<1x8x32xf32>
    %173 = vector.shape_cast %172 : vector<1x8x32xf32> to vector<8x32xf32>
    %174 = vector.shape_cast %170 : vector<8x32xf32> to vector<1x8x32xf32>
    tpu.vector_store %arg6[%171, %c0_91, %c0_92], %174 {strides = array<i32>} : memref<16x8x32xf32, #tpu.memory_space<vmem>>, vector<1x8x32xf32>,
    %c3_i32 = arith.constant 3 : i32
    %175 = arith.truncf %170 : vector<8x32xf32> to vector<8x32xbf16>
    %cst_93 = arith.constant dense<0.000000e+00> : vector<8x32xf32>
    %176 = tpu.matmul %175, %34, %cst_93 {dimension_numbers = #tpu.dot_dimension_numbers<[1], [0], [0], [1], [0, 0, 1, 1], [], []>} : vector<8x32xbf16>, vector<32x32xbf16>, vector<8x32xf32> -> vector<8x32xf32>
    %177 = vector.broadcast %40 : vector<1x32xf32> to vector<8x32xf32>
    %178 = arith.addf %176, %177 : vector<8x32xf32>
    %cst_94 = arith.constant dense<0.000000e+00> : vector<8x32xf32>
    %179 = tpu.matmul %175, %36, %cst_94 {dimension_numbers = #tpu.dot_dimension_numbers<[1], [0], [0], [1], [0, 0, 1, 1], [], []>} : vector<8x32xbf16>, vector<32x32xbf16>, vector<8x32xf32> -> vector<8x32xf32>
    %180 = vector.broadcast %42 : vector<1x32xf32> to vector<8x32xf32>
    %181 = arith.addf %179, %180 : vector<8x32xf32>
    %cst_95 = arith.constant dense<0.000000e+00> : vector<8x32xf32>
    %182 = tpu.matmul %175, %38, %cst_95 {dimension_numbers = #tpu.dot_dimension_numbers<[1], [0], [0], [1], [0, 0, 1, 1], [], []>} : vector<8x32xbf16>, vector<32x32xbf16>, vector<8x32xf32> -> vector<8x32xf32>
    %183 = vector.broadcast %44 : vector<1x32xf32> to vector<8x32xf32>
    %184 = arith.addf %182, %183 : vector<8x32xf32>
    %185 = arith.index_cast %c3_i32 : i32 to index
    %c0_96 = arith.constant 0 : index
    %c0_97 = arith.constant 0 : index
    %186 = vector.load %arg8[%185, %c0_96, %c0_97] : memref<16x8x32xf32, #tpu.memory_space<vmem>>, vector<1x8x32xf32>
    %187 = vector.shape_cast %186 : vector<1x8x32xf32> to vector<8x32xf32>
    %188 = arith.addf %187, %178 : vector<8x32xf32>
    %189 = arith.negf %188 : vector<8x32xf32>
    %190 = math.exp %189 : vector<8x32xf32>
    %cst_98 = arith.constant 1.000000e+00 : f32
    %191 = vector.broadcast %cst_98 : f32 to vector<8x32xf32>
    %192 = arith.addf %191, %190 : vector<8x32xf32>
    %193 = arith.divf %191, %192 : vector<8x32xf32>
    %194 = arith.index_cast %c3_i32 : i32 to index
    %c0_99 = arith.constant 0 : index
    %c0_100 = arith.constant 0 : index
    %195 = vector.load %arg9[%194, %c0_99, %c0_100] : memref<16x8x32xf32, #tpu.memory_space<vmem>>, vector<1x8x32xf32>
    %196 = vector.shape_cast %195 : vector<1x8x32xf32> to vector<8x32xf32>
    %197 = arith.addf %196, %181 : vector<8x32xf32>
    %198 = arith.negf %197 : vector<8x32xf32>
    %199 = math.exp %198 : vector<8x32xf32>
    %cst_101 = arith.constant 1.000000e+00 : f32
    %200 = vector.broadcast %cst_101 : f32 to vector<8x32xf32>
    %201 = arith.addf %200, %199 : vector<8x32xf32>
    %202 = arith.divf %200, %201 : vector<8x32xf32>
    %203 = arith.index_cast %c3_i32 : i32 to index
    %c0_102 = arith.constant 0 : index
    %c0_103 = arith.constant 0 : index
    %204 = vector.load %arg10[%203, %c0_102, %c0_103] : memref<16x8x32xf32, #tpu.memory_space<vmem>>, vector<1x8x32xf32>
    %205 = vector.shape_cast %204 : vector<1x8x32xf32> to vector<8x32xf32>
    %206 = arith.mulf %193, %184 : vector<8x32xf32>
    %207 = arith.addf %205, %206 : vector<8x32xf32>
    %208 = math.tanh %207 : vector<8x32xf32>
    %cst_104 = arith.constant 1.000000e+00 : f32
    %209 = vector.broadcast %cst_104 : f32 to vector<8x32xf32>
    %210 = arith.subf %209, %202 : vector<8x32xf32>
    %211 = arith.mulf %210, %208 : vector<8x32xf32>
    %212 = arith.mulf %202, %170 : vector<8x32xf32>
    %213 = arith.addf %211, %212 : vector<8x32xf32>
    %214 = arith.index_cast %c3_i32 : i32 to index
    %c0_105 = arith.constant 0 : index
    %c0_106 = arith.constant 0 : index
    %215 = vector.load %arg6[%214, %c0_105, %c0_106] : memref<16x8x32xf32, #tpu.memory_space<vmem>>, vector<1x8x32xf32>
    %216 = vector.shape_cast %215 : vector<1x8x32xf32> to vector<8x32xf32>
    %217 = vector.shape_cast %213 : vector<8x32xf32> to vector<1x8x32xf32>
    tpu.vector_store %arg6[%214, %c0_105, %c0_106], %217 {strides = array<i32>} : memref<16x8x32xf32, #tpu.memory_space<vmem>>, vector<1x8x32xf32>,
    %c4_i32 = arith.constant 4 : i32
    %218 = arith.truncf %213 : vector<8x32xf32> to vector<8x32xbf16>
    %cst_107 = arith.constant dense<0.000000e+00> : vector<8x32xf32>
    %219 = tpu.matmul %218, %34, %cst_107 {dimension_numbers = #tpu.dot_dimension_numbers<[1], [0], [0], [1], [0, 0, 1, 1], [], []>} : vector<8x32xbf16>, vector<32x32xbf16>, vector<8x32xf32> -> vector<8x32xf32>
    %220 = vector.broadcast %40 : vector<1x32xf32> to vector<8x32xf32>
    %221 = arith.addf %219, %220 : vector<8x32xf32>
    %cst_108 = arith.constant dense<0.000000e+00> : vector<8x32xf32>
    %222 = tpu.matmul %218, %36, %cst_108 {dimension_numbers = #tpu.dot_dimension_numbers<[1], [0], [0], [1], [0, 0, 1, 1], [], []>} : vector<8x32xbf16>, vector<32x32xbf16>, vector<8x32xf32> -> vector<8x32xf32>
    %223 = vector.broadcast %42 : vector<1x32xf32> to vector<8x32xf32>
    %224 = arith.addf %222, %223 : vector<8x32xf32>
    %cst_109 = arith.constant dense<0.000000e+00> : vector<8x32xf32>
    %225 = tpu.matmul %218, %38, %cst_109 {dimension_numbers = #tpu.dot_dimension_numbers<[1], [0], [0], [1], [0, 0, 1, 1], [], []>} : vector<8x32xbf16>, vector<32x32xbf16>, vector<8x32xf32> -> vector<8x32xf32>
    %226 = vector.broadcast %44 : vector<1x32xf32> to vector<8x32xf32>
    %227 = arith.addf %225, %226 : vector<8x32xf32>
    %228 = arith.index_cast %c4_i32 : i32 to index
    %c0_110 = arith.constant 0 : index
    %c0_111 = arith.constant 0 : index
    %229 = vector.load %arg8[%228, %c0_110, %c0_111] : memref<16x8x32xf32, #tpu.memory_space<vmem>>, vector<1x8x32xf32>
    %230 = vector.shape_cast %229 : vector<1x8x32xf32> to vector<8x32xf32>
    %231 = arith.addf %230, %221 : vector<8x32xf32>
    %232 = arith.negf %231 : vector<8x32xf32>
    %233 = math.exp %232 : vector<8x32xf32>
    %cst_112 = arith.constant 1.000000e+00 : f32
    %234 = vector.broadcast %cst_112 : f32 to vector<8x32xf32>
    %235 = arith.addf %234, %233 : vector<8x32xf32>
    %236 = arith.divf %234, %235 : vector<8x32xf32>
    %237 = arith.index_cast %c4_i32 : i32 to index
    %c0_113 = arith.constant 0 : index
    %c0_114 = arith.constant 0 : index
    %238 = vector.load %arg9[%237, %c0_113, %c0_114] : memref<16x8x32xf32, #tpu.memory_space<vmem>>, vector<1x8x32xf32>
    %239 = vector.shape_cast %238 : vector<1x8x32xf32> to vector<8x32xf32>
    %240 = arith.addf %239, %224 : vector<8x32xf32>
    %241 = arith.negf %240 : vector<8x32xf32>
    %242 = math.exp %241 : vector<8x32xf32>
    %cst_115 = arith.constant 1.000000e+00 : f32
    %243 = vector.broadcast %cst_115 : f32 to vector<8x32xf32>
    %244 = arith.addf %243, %242 : vector<8x32xf32>
    %245 = arith.divf %243, %244 : vector<8x32xf32>
    %246 = arith.index_cast %c4_i32 : i32 to index
    %c0_116 = arith.constant 0 : index
    %c0_117 = arith.constant 0 : index
    %247 = vector.load %arg10[%246, %c0_116, %c0_117] : memref<16x8x32xf32, #tpu.memory_space<vmem>>, vector<1x8x32xf32>
    %248 = vector.shape_cast %247 : vector<1x8x32xf32> to vector<8x32xf32>
    %249 = arith.mulf %236, %227 : vector<8x32xf32>
    %250 = arith.addf %248, %249 : vector<8x32xf32>
    %251 = math.tanh %250 : vector<8x32xf32>
    %cst_118 = arith.constant 1.000000e+00 : f32
    %252 = vector.broadcast %cst_118 : f32 to vector<8x32xf32>
    %253 = arith.subf %252, %245 : vector<8x32xf32>
    %254 = arith.mulf %253, %251 : vector<8x32xf32>
    %255 = arith.mulf %245, %213 : vector<8x32xf32>
    %256 = arith.addf %254, %255 : vector<8x32xf32>
    %257 = arith.index_cast %c4_i32 : i32 to index
    %c0_119 = arith.constant 0 : index
    %c0_120 = arith.constant 0 : index
    %258 = vector.load %arg6[%257, %c0_119, %c0_120] : memref<16x8x32xf32, #tpu.memory_space<vmem>>, vector<1x8x32xf32>
    %259 = vector.shape_cast %258 : vector<1x8x32xf32> to vector<8x32xf32>
    %260 = vector.shape_cast %256 : vector<8x32xf32> to vector<1x8x32xf32>
    tpu.vector_store %arg6[%257, %c0_119, %c0_120], %260 {strides = array<i32>} : memref<16x8x32xf32, #tpu.memory_space<vmem>>, vector<1x8x32xf32>,
    %c5_i32 = arith.constant 5 : i32
    %261 = arith.truncf %256 : vector<8x32xf32> to vector<8x32xbf16>
    %cst_121 = arith.constant dense<0.000000e+00> : vector<8x32xf32>
    %262 = tpu.matmul %261, %34, %cst_121 {dimension_numbers = #tpu.dot_dimension_numbers<[1], [0], [0], [1], [0, 0, 1, 1], [], []>} : vector<8x32xbf16>, vector<32x32xbf16>, vector<8x32xf32> -> vector<8x32xf32>
    %263 = vector.broadcast %40 : vector<1x32xf32> to vector<8x32xf32>
    %264 = arith.addf %262, %263 : vector<8x32xf32>
    %cst_122 = arith.constant dense<0.000000e+00> : vector<8x32xf32>
    %265 = tpu.matmul %261, %36, %cst_122 {dimension_numbers = #tpu.dot_dimension_numbers<[1], [0], [0], [1], [0, 0, 1, 1], [], []>} : vector<8x32xbf16>, vector<32x32xbf16>, vector<8x32xf32> -> vector<8x32xf32>
    %266 = vector.broadcast %42 : vector<1x32xf32> to vector<8x32xf32>
    %267 = arith.addf %265, %266 : vector<8x32xf32>
    %cst_123 = arith.constant dense<0.000000e+00> : vector<8x32xf32>
    %268 = tpu.matmul %261, %38, %cst_123 {dimension_numbers = #tpu.dot_dimension_numbers<[1], [0], [0], [1], [0, 0, 1, 1], [], []>} : vector<8x32xbf16>, vector<32x32xbf16>, vector<8x32xf32> -> vector<8x32xf32>
    %269 = vector.broadcast %44 : vector<1x32xf32> to vector<8x32xf32>
    %270 = arith.addf %268, %269 : vector<8x32xf32>
    %271 = arith.index_cast %c5_i32 : i32 to index
    %c0_124 = arith.constant 0 : index
    %c0_125 = arith.constant 0 : index
    %272 = vector.load %arg8[%271, %c0_124, %c0_125] : memref<16x8x32xf32, #tpu.memory_space<vmem>>, vector<1x8x32xf32>
    %273 = vector.shape_cast %272 : vector<1x8x32xf32> to vector<8x32xf32>
    %274 = arith.addf %273, %264 : vector<8x32xf32>
    %275 = arith.negf %274 : vector<8x32xf32>
    %276 = math.exp %275 : vector<8x32xf32>
    %cst_126 = arith.constant 1.000000e+00 : f32
    %277 = vector.broadcast %cst_126 : f32 to vector<8x32xf32>
    %278 = arith.addf %277, %276 : vector<8x32xf32>
    %279 = arith.divf %277, %278 : vector<8x32xf32>
    %280 = arith.index_cast %c5_i32 : i32 to index
    %c0_127 = arith.constant 0 : index
    %c0_128 = arith.constant 0 : index
    %281 = vector.load %arg9[%280, %c0_127, %c0_128] : memref<16x8x32xf32, #tpu.memory_space<vmem>>, vector<1x8x32xf32>
    %282 = vector.shape_cast %281 : vector<1x8x32xf32> to vector<8x32xf32>
    %283 = arith.addf %282, %267 : vector<8x32xf32>
    %284 = arith.negf %283 : vector<8x32xf32>
    %285 = math.exp %284 : vector<8x32xf32>
    %cst_129 = arith.constant 1.000000e+00 : f32
    %286 = vector.broadcast %cst_129 : f32 to vector<8x32xf32>
    %287 = arith.addf %286, %285 : vector<8x32xf32>
    %288 = arith.divf %286, %287 : vector<8x32xf32>
    %289 = arith.index_cast %c5_i32 : i32 to index
    %c0_130 = arith.constant 0 : index
    %c0_131 = arith.constant 0 : index
    %290 = vector.load %arg10[%289, %c0_130, %c0_131] : memref<16x8x32xf32, #tpu.memory_space<vmem>>, vector<1x8x32xf32>
    %291 = vector.shape_cast %290 : vector<1x8x32xf32> to vector<8x32xf32>
    %292 = arith.mulf %279, %270 : vector<8x32xf32>
    %293 = arith.addf %291, %292 : vector<8x32xf32>
    %294 = math.tanh %293 : vector<8x32xf32>
    %cst_132 = arith.constant 1.000000e+00 : f32
    %295 = vector.broadcast %cst_132 : f32 to vector<8x32xf32>
    %296 = arith.subf %295, %288 : vector<8x32xf32>
    %297 = arith.mulf %296, %294 : vector<8x32xf32>
    %298 = arith.mulf %288, %256 : vector<8x32xf32>
    %299 = arith.addf %297, %298 : vector<8x32xf32>
    %300 = arith.index_cast %c5_i32 : i32 to index
    %c0_133 = arith.constant 0 : index
    %c0_134 = arith.constant 0 : index
    %301 = vector.load %arg6[%300, %c0_133, %c0_134] : memref<16x8x32xf32, #tpu.memory_space<vmem>>, vector<1x8x32xf32>
    %302 = vector.shape_cast %301 : vector<1x8x32xf32> to vector<8x32xf32>
    %303 = vector.shape_cast %299 : vector<8x32xf32> to vector<1x8x32xf32>
    tpu.vector_store %arg6[%300, %c0_133, %c0_134], %303 {strides = array<i32>} : memref<16x8x32xf32, #tpu.memory_space<vmem>>, vector<1x8x32xf32>,
    %c6_i32 = arith.constant 6 : i32
    %304 = arith.truncf %299 : vector<8x32xf32> to vector<8x32xbf16>
    %cst_135 = arith.constant dense<0.000000e+00> : vector<8x32xf32>
    %305 = tpu.matmul %304, %34, %cst_135 {dimension_numbers = #tpu.dot_dimension_numbers<[1], [0], [0], [1], [0, 0, 1, 1], [], []>} : vector<8x32xbf16>, vector<32x32xbf16>, vector<8x32xf32> -> vector<8x32xf32>
    %306 = vector.broadcast %40 : vector<1x32xf32> to vector<8x32xf32>
    %307 = arith.addf %305, %306 : vector<8x32xf32>
    %cst_136 = arith.constant dense<0.000000e+00> : vector<8x32xf32>
    %308 = tpu.matmul %304, %36, %cst_136 {dimension_numbers = #tpu.dot_dimension_numbers<[1], [0], [0], [1], [0, 0, 1, 1], [], []>} : vector<8x32xbf16>, vector<32x32xbf16>, vector<8x32xf32> -> vector<8x32xf32>
    %309 = vector.broadcast %42 : vector<1x32xf32> to vector<8x32xf32>
    %310 = arith.addf %308, %309 : vector<8x32xf32>
    %cst_137 = arith.constant dense<0.000000e+00> : vector<8x32xf32>
    %311 = tpu.matmul %304, %38, %cst_137 {dimension_numbers = #tpu.dot_dimension_numbers<[1], [0], [0], [1], [0, 0, 1, 1], [], []>} : vector<8x32xbf16>, vector<32x32xbf16>, vector<8x32xf32> -> vector<8x32xf32>
    %312 = vector.broadcast %44 : vector<1x32xf32> to vector<8x32xf32>
    %313 = arith.addf %311, %312 : vector<8x32xf32>
    %314 = arith.index_cast %c6_i32 : i32 to index
    %c0_138 = arith.constant 0 : index
    %c0_139 = arith.constant 0 : index
    %315 = vector.load %arg8[%314, %c0_138, %c0_139] : memref<16x8x32xf32, #tpu.memory_space<vmem>>, vector<1x8x32xf32>
    %316 = vector.shape_cast %315 : vector<1x8x32xf32> to vector<8x32xf32>
    %317 = arith.addf %316, %307 : vector<8x32xf32>
    %318 = arith.negf %317 : vector<8x32xf32>
    %319 = math.exp %318 : vector<8x32xf32>
    %cst_140 = arith.constant 1.000000e+00 : f32
    %320 = vector.broadcast %cst_140 : f32 to vector<8x32xf32>
    %321 = arith.addf %320, %319 : vector<8x32xf32>
    %322 = arith.divf %320, %321 : vector<8x32xf32>
    %323 = arith.index_cast %c6_i32 : i32 to index
    %c0_141 = arith.constant 0 : index
    %c0_142 = arith.constant 0 : index
    %324 = vector.load %arg9[%323, %c0_141, %c0_142] : memref<16x8x32xf32, #tpu.memory_space<vmem>>, vector<1x8x32xf32>
    %325 = vector.shape_cast %324 : vector<1x8x32xf32> to vector<8x32xf32>
    %326 = arith.addf %325, %310 : vector<8x32xf32>
    %327 = arith.negf %326 : vector<8x32xf32>
    %328 = math.exp %327 : vector<8x32xf32>
    %cst_143 = arith.constant 1.000000e+00 : f32
    %329 = vector.broadcast %cst_143 : f32 to vector<8x32xf32>
    %330 = arith.addf %329, %328 : vector<8x32xf32>
    %331 = arith.divf %329, %330 : vector<8x32xf32>
    %332 = arith.index_cast %c6_i32 : i32 to index
    %c0_144 = arith.constant 0 : index
    %c0_145 = arith.constant 0 : index
    %333 = vector.load %arg10[%332, %c0_144, %c0_145] : memref<16x8x32xf32, #tpu.memory_space<vmem>>, vector<1x8x32xf32>
    %334 = vector.shape_cast %333 : vector<1x8x32xf32> to vector<8x32xf32>
    %335 = arith.mulf %322, %313 : vector<8x32xf32>
    %336 = arith.addf %334, %335 : vector<8x32xf32>
    %337 = math.tanh %336 : vector<8x32xf32>
    %cst_146 = arith.constant 1.000000e+00 : f32
    %338 = vector.broadcast %cst_146 : f32 to vector<8x32xf32>
    %339 = arith.subf %338, %331 : vector<8x32xf32>
    %340 = arith.mulf %339, %337 : vector<8x32xf32>
    %341 = arith.mulf %331, %299 : vector<8x32xf32>
    %342 = arith.addf %340, %341 : vector<8x32xf32>
    %343 = arith.index_cast %c6_i32 : i32 to index
    %c0_147 = arith.constant 0 : index
    %c0_148 = arith.constant 0 : index
    %344 = vector.load %arg6[%343, %c0_147, %c0_148] : memref<16x8x32xf32, #tpu.memory_space<vmem>>, vector<1x8x32xf32>
    %345 = vector.shape_cast %344 : vector<1x8x32xf32> to vector<8x32xf32>
    %346 = vector.shape_cast %342 : vector<8x32xf32> to vector<1x8x32xf32>
    tpu.vector_store %arg6[%343, %c0_147, %c0_148], %346 {strides = array<i32>} : memref<16x8x32xf32, #tpu.memory_space<vmem>>, vector<1x8x32xf32>,
    %c7_i32 = arith.constant 7 : i32
    %347 = arith.truncf %342 : vector<8x32xf32> to vector<8x32xbf16>
    %cst_149 = arith.constant dense<0.000000e+00> : vector<8x32xf32>
    %348 = tpu.matmul %347, %34, %cst_149 {dimension_numbers = #tpu.dot_dimension_numbers<[1], [0], [0], [1], [0, 0, 1, 1], [], []>} : vector<8x32xbf16>, vector<32x32xbf16>, vector<8x32xf32> -> vector<8x32xf32>
    %349 = vector.broadcast %40 : vector<1x32xf32> to vector<8x32xf32>
    %350 = arith.addf %348, %349 : vector<8x32xf32>
    %cst_150 = arith.constant dense<0.000000e+00> : vector<8x32xf32>
    %351 = tpu.matmul %347, %36, %cst_150 {dimension_numbers = #tpu.dot_dimension_numbers<[1], [0], [0], [1], [0, 0, 1, 1], [], []>} : vector<8x32xbf16>, vector<32x32xbf16>, vector<8x32xf32> -> vector<8x32xf32>
    %352 = vector.broadcast %42 : vector<1x32xf32> to vector<8x32xf32>
    %353 = arith.addf %351, %352 : vector<8x32xf32>
    %cst_151 = arith.constant dense<0.000000e+00> : vector<8x32xf32>
    %354 = tpu.matmul %347, %38, %cst_151 {dimension_numbers = #tpu.dot_dimension_numbers<[1], [0], [0], [1], [0, 0, 1, 1], [], []>} : vector<8x32xbf16>, vector<32x32xbf16>, vector<8x32xf32> -> vector<8x32xf32>
    %355 = vector.broadcast %44 : vector<1x32xf32> to vector<8x32xf32>
    %356 = arith.addf %354, %355 : vector<8x32xf32>
    %357 = arith.index_cast %c7_i32 : i32 to index
    %c0_152 = arith.constant 0 : index
    %c0_153 = arith.constant 0 : index
    %358 = vector.load %arg8[%357, %c0_152, %c0_153] : memref<16x8x32xf32, #tpu.memory_space<vmem>>, vector<1x8x32xf32>
    %359 = vector.shape_cast %358 : vector<1x8x32xf32> to vector<8x32xf32>
    %360 = arith.addf %359, %350 : vector<8x32xf32>
    %361 = arith.negf %360 : vector<8x32xf32>
    %362 = math.exp %361 : vector<8x32xf32>
    %cst_154 = arith.constant 1.000000e+00 : f32
    %363 = vector.broadcast %cst_154 : f32 to vector<8x32xf32>
    %364 = arith.addf %363, %362 : vector<8x32xf32>
    %365 = arith.divf %363, %364 : vector<8x32xf32>
    %366 = arith.index_cast %c7_i32 : i32 to index
    %c0_155 = arith.constant 0 : index
    %c0_156 = arith.constant 0 : index
    %367 = vector.load %arg9[%366, %c0_155, %c0_156] : memref<16x8x32xf32, #tpu.memory_space<vmem>>, vector<1x8x32xf32>
    %368 = vector.shape_cast %367 : vector<1x8x32xf32> to vector<8x32xf32>
    %369 = arith.addf %368, %353 : vector<8x32xf32>
    %370 = arith.negf %369 : vector<8x32xf32>
    %371 = math.exp %370 : vector<8x32xf32>
    %cst_157 = arith.constant 1.000000e+00 : f32
    %372 = vector.broadcast %cst_157 : f32 to vector<8x32xf32>
    %373 = arith.addf %372, %371 : vector<8x32xf32>
    %374 = arith.divf %372, %373 : vector<8x32xf32>
    %375 = arith.index_cast %c7_i32 : i32 to index
    %c0_158 = arith.constant 0 : index
    %c0_159 = arith.constant 0 : index
    %376 = vector.load %arg10[%375, %c0_158, %c0_159] : memref<16x8x32xf32, #tpu.memory_space<vmem>>, vector<1x8x32xf32>
    %377 = vector.shape_cast %376 : vector<1x8x32xf32> to vector<8x32xf32>
    %378 = arith.mulf %365, %356 : vector<8x32xf32>
    %379 = arith.addf %377, %378 : vector<8x32xf32>
    %380 = math.tanh %379 : vector<8x32xf32>
    %cst_160 = arith.constant 1.000000e+00 : f32
    %381 = vector.broadcast %cst_160 : f32 to vector<8x32xf32>
    %382 = arith.subf %381, %374 : vector<8x32xf32>
    %383 = arith.mulf %382, %380 : vector<8x32xf32>
    %384 = arith.mulf %374, %342 : vector<8x32xf32>
    %385 = arith.addf %383, %384 : vector<8x32xf32>
    %386 = arith.index_cast %c7_i32 : i32 to index
    %c0_161 = arith.constant 0 : index
    %c0_162 = arith.constant 0 : index
    %387 = vector.load %arg6[%386, %c0_161, %c0_162] : memref<16x8x32xf32, #tpu.memory_space<vmem>>, vector<1x8x32xf32>
    %388 = vector.shape_cast %387 : vector<1x8x32xf32> to vector<8x32xf32>
    %389 = vector.shape_cast %385 : vector<8x32xf32> to vector<1x8x32xf32>
    tpu.vector_store %arg6[%386, %c0_161, %c0_162], %389 {strides = array<i32>} : memref<16x8x32xf32, #tpu.memory_space<vmem>>, vector<1x8x32xf32>,
    %c8_i32 = arith.constant 8 : i32
    %390 = arith.truncf %385 : vector<8x32xf32> to vector<8x32xbf16>
    %cst_163 = arith.constant dense<0.000000e+00> : vector<8x32xf32>
    %391 = tpu.matmul %390, %34, %cst_163 {dimension_numbers = #tpu.dot_dimension_numbers<[1], [0], [0], [1], [0, 0, 1, 1], [], []>} : vector<8x32xbf16>, vector<32x32xbf16>, vector<8x32xf32> -> vector<8x32xf32>
    %392 = vector.broadcast %40 : vector<1x32xf32> to vector<8x32xf32>
    %393 = arith.addf %391, %392 : vector<8x32xf32>
    %cst_164 = arith.constant dense<0.000000e+00> : vector<8x32xf32>
    %394 = tpu.matmul %390, %36, %cst_164 {dimension_numbers = #tpu.dot_dimension_numbers<[1], [0], [0], [1], [0, 0, 1, 1], [], []>} : vector<8x32xbf16>, vector<32x32xbf16>, vector<8x32xf32> -> vector<8x32xf32>
    %395 = vector.broadcast %42 : vector<1x32xf32> to vector<8x32xf32>
    %396 = arith.addf %394, %395 : vector<8x32xf32>
    %cst_165 = arith.constant dense<0.000000e+00> : vector<8x32xf32>
    %397 = tpu.matmul %390, %38, %cst_165 {dimension_numbers = #tpu.dot_dimension_numbers<[1], [0], [0], [1], [0, 0, 1, 1], [], []>} : vector<8x32xbf16>, vector<32x32xbf16>, vector<8x32xf32> -> vector<8x32xf32>
    %398 = vector.broadcast %44 : vector<1x32xf32> to vector<8x32xf32>
    %399 = arith.addf %397, %398 : vector<8x32xf32>
    %400 = arith.index_cast %c8_i32 : i32 to index
    %c0_166 = arith.constant 0 : index
    %c0_167 = arith.constant 0 : index
    %401 = vector.load %arg8[%400, %c0_166, %c0_167] : memref<16x8x32xf32, #tpu.memory_space<vmem>>, vector<1x8x32xf32>
    %402 = vector.shape_cast %401 : vector<1x8x32xf32> to vector<8x32xf32>
    %403 = arith.addf %402, %393 : vector<8x32xf32>
    %404 = arith.negf %403 : vector<8x32xf32>
    %405 = math.exp %404 : vector<8x32xf32>
    %cst_168 = arith.constant 1.000000e+00 : f32
    %406 = vector.broadcast %cst_168 : f32 to vector<8x32xf32>
    %407 = arith.addf %406, %405 : vector<8x32xf32>
    %408 = arith.divf %406, %407 : vector<8x32xf32>
    %409 = arith.index_cast %c8_i32 : i32 to index
    %c0_169 = arith.constant 0 : index
    %c0_170 = arith.constant 0 : index
    %410 = vector.load %arg9[%409, %c0_169, %c0_170] : memref<16x8x32xf32, #tpu.memory_space<vmem>>, vector<1x8x32xf32>
    %411 = vector.shape_cast %410 : vector<1x8x32xf32> to vector<8x32xf32>
    %412 = arith.addf %411, %396 : vector<8x32xf32>
    %413 = arith.negf %412 : vector<8x32xf32>
    %414 = math.exp %413 : vector<8x32xf32>
    %cst_171 = arith.constant 1.000000e+00 : f32
    %415 = vector.broadcast %cst_171 : f32 to vector<8x32xf32>
    %416 = arith.addf %415, %414 : vector<8x32xf32>
    %417 = arith.divf %415, %416 : vector<8x32xf32>
    %418 = arith.index_cast %c8_i32 : i32 to index
    %c0_172 = arith.constant 0 : index
    %c0_173 = arith.constant 0 : index
    %419 = vector.load %arg10[%418, %c0_172, %c0_173] : memref<16x8x32xf32, #tpu.memory_space<vmem>>, vector<1x8x32xf32>
    %420 = vector.shape_cast %419 : vector<1x8x32xf32> to vector<8x32xf32>
    %421 = arith.mulf %408, %399 : vector<8x32xf32>
    %422 = arith.addf %420, %421 : vector<8x32xf32>
    %423 = math.tanh %422 : vector<8x32xf32>
    %cst_174 = arith.constant 1.000000e+00 : f32
    %424 = vector.broadcast %cst_174 : f32 to vector<8x32xf32>
    %425 = arith.subf %424, %417 : vector<8x32xf32>
    %426 = arith.mulf %425, %423 : vector<8x32xf32>
    %427 = arith.mulf %417, %385 : vector<8x32xf32>
    %428 = arith.addf %426, %427 : vector<8x32xf32>
    %429 = arith.index_cast %c8_i32 : i32 to index
    %c0_175 = arith.constant 0 : index
    %c0_176 = arith.constant 0 : index
    %430 = vector.load %arg6[%429, %c0_175, %c0_176] : memref<16x8x32xf32, #tpu.memory_space<vmem>>, vector<1x8x32xf32>
    %431 = vector.shape_cast %430 : vector<1x8x32xf32> to vector<8x32xf32>
    %432 = vector.shape_cast %428 : vector<8x32xf32> to vector<1x8x32xf32>
    tpu.vector_store %arg6[%429, %c0_175, %c0_176], %432 {strides = array<i32>} : memref<16x8x32xf32, #tpu.memory_space<vmem>>, vector<1x8x32xf32>,
    %c9_i32 = arith.constant 9 : i32
    %433 = arith.truncf %428 : vector<8x32xf32> to vector<8x32xbf16>
    %cst_177 = arith.constant dense<0.000000e+00> : vector<8x32xf32>
    %434 = tpu.matmul %433, %34, %cst_177 {dimension_numbers = #tpu.dot_dimension_numbers<[1], [0], [0], [1], [0, 0, 1, 1], [], []>} : vector<8x32xbf16>, vector<32x32xbf16>, vector<8x32xf32> -> vector<8x32xf32>
    %435 = vector.broadcast %40 : vector<1x32xf32> to vector<8x32xf32>
    %436 = arith.addf %434, %435 : vector<8x32xf32>
    %cst_178 = arith.constant dense<0.000000e+00> : vector<8x32xf32>
    %437 = tpu.matmul %433, %36, %cst_178 {dimension_numbers = #tpu.dot_dimension_numbers<[1], [0], [0], [1], [0, 0, 1, 1], [], []>} : vector<8x32xbf16>, vector<32x32xbf16>, vector<8x32xf32> -> vector<8x32xf32>
    %438 = vector.broadcast %42 : vector<1x32xf32> to vector<8x32xf32>
    %439 = arith.addf %437, %438 : vector<8x32xf32>
    %cst_179 = arith.constant dense<0.000000e+00> : vector<8x32xf32>
    %440 = tpu.matmul %433, %38, %cst_179 {dimension_numbers = #tpu.dot_dimension_numbers<[1], [0], [0], [1], [0, 0, 1, 1], [], []>} : vector<8x32xbf16>, vector<32x32xbf16>, vector<8x32xf32> -> vector<8x32xf32>
    %441 = vector.broadcast %44 : vector<1x32xf32> to vector<8x32xf32>
    %442 = arith.addf %440, %441 : vector<8x32xf32>
    %443 = arith.index_cast %c9_i32 : i32 to index
    %c0_180 = arith.constant 0 : index
    %c0_181 = arith.constant 0 : index
    %444 = vector.load %arg8[%443, %c0_180, %c0_181] : memref<16x8x32xf32, #tpu.memory_space<vmem>>, vector<1x8x32xf32>
    %445 = vector.shape_cast %444 : vector<1x8x32xf32> to vector<8x32xf32>
    %446 = arith.addf %445, %436 : vector<8x32xf32>
    %447 = arith.negf %446 : vector<8x32xf32>
    %448 = math.exp %447 : vector<8x32xf32>
    %cst_182 = arith.constant 1.000000e+00 : f32
    %449 = vector.broadcast %cst_182 : f32 to vector<8x32xf32>
    %450 = arith.addf %449, %448 : vector<8x32xf32>
    %451 = arith.divf %449, %450 : vector<8x32xf32>
    %452 = arith.index_cast %c9_i32 : i32 to index
    %c0_183 = arith.constant 0 : index
    %c0_184 = arith.constant 0 : index
    %453 = vector.load %arg9[%452, %c0_183, %c0_184] : memref<16x8x32xf32, #tpu.memory_space<vmem>>, vector<1x8x32xf32>
    %454 = vector.shape_cast %453 : vector<1x8x32xf32> to vector<8x32xf32>
    %455 = arith.addf %454, %439 : vector<8x32xf32>
    %456 = arith.negf %455 : vector<8x32xf32>
    %457 = math.exp %456 : vector<8x32xf32>
    %cst_185 = arith.constant 1.000000e+00 : f32
    %458 = vector.broadcast %cst_185 : f32 to vector<8x32xf32>
    %459 = arith.addf %458, %457 : vector<8x32xf32>
    %460 = arith.divf %458, %459 : vector<8x32xf32>
    %461 = arith.index_cast %c9_i32 : i32 to index
    %c0_186 = arith.constant 0 : index
    %c0_187 = arith.constant 0 : index
    %462 = vector.load %arg10[%461, %c0_186, %c0_187] : memref<16x8x32xf32, #tpu.memory_space<vmem>>, vector<1x8x32xf32>
    %463 = vector.shape_cast %462 : vector<1x8x32xf32> to vector<8x32xf32>
    %464 = arith.mulf %451, %442 : vector<8x32xf32>
    %465 = arith.addf %463, %464 : vector<8x32xf32>
    %466 = math.tanh %465 : vector<8x32xf32>
    %cst_188 = arith.constant 1.000000e+00 : f32
    %467 = vector.broadcast %cst_188 : f32 to vector<8x32xf32>
    %468 = arith.subf %467, %460 : vector<8x32xf32>
    %469 = arith.mulf %468, %466 : vector<8x32xf32>
    %470 = arith.mulf %460, %428 : vector<8x32xf32>
    %471 = arith.addf %469, %470 : vector<8x32xf32>
    %472 = arith.index_cast %c9_i32 : i32 to index
    %c0_189 = arith.constant 0 : index
    %c0_190 = arith.constant 0 : index
    %473 = vector.load %arg6[%472, %c0_189, %c0_190] : memref<16x8x32xf32, #tpu.memory_space<vmem>>, vector<1x8x32xf32>
    %474 = vector.shape_cast %473 : vector<1x8x32xf32> to vector<8x32xf32>
    %475 = vector.shape_cast %471 : vector<8x32xf32> to vector<1x8x32xf32>
    tpu.vector_store %arg6[%472, %c0_189, %c0_190], %475 {strides = array<i32>} : memref<16x8x32xf32, #tpu.memory_space<vmem>>, vector<1x8x32xf32>,
    %c10_i32 = arith.constant 10 : i32
    %476 = arith.truncf %471 : vector<8x32xf32> to vector<8x32xbf16>
    %cst_191 = arith.constant dense<0.000000e+00> : vector<8x32xf32>
    %477 = tpu.matmul %476, %34, %cst_191 {dimension_numbers = #tpu.dot_dimension_numbers<[1], [0], [0], [1], [0, 0, 1, 1], [], []>} : vector<8x32xbf16>, vector<32x32xbf16>, vector<8x32xf32> -> vector<8x32xf32>
    %478 = vector.broadcast %40 : vector<1x32xf32> to vector<8x32xf32>
    %479 = arith.addf %477, %478 : vector<8x32xf32>
    %cst_192 = arith.constant dense<0.000000e+00> : vector<8x32xf32>
    %480 = tpu.matmul %476, %36, %cst_192 {dimension_numbers = #tpu.dot_dimension_numbers<[1], [0], [0], [1], [0, 0, 1, 1], [], []>} : vector<8x32xbf16>, vector<32x32xbf16>, vector<8x32xf32> -> vector<8x32xf32>
    %481 = vector.broadcast %42 : vector<1x32xf32> to vector<8x32xf32>
    %482 = arith.addf %480, %481 : vector<8x32xf32>
    %cst_193 = arith.constant dense<0.000000e+00> : vector<8x32xf32>
    %483 = tpu.matmul %476, %38, %cst_193 {dimension_numbers = #tpu.dot_dimension_numbers<[1], [0], [0], [1], [0, 0, 1, 1], [], []>} : vector<8x32xbf16>, vector<32x32xbf16>, vector<8x32xf32> -> vector<8x32xf32>
    %484 = vector.broadcast %44 : vector<1x32xf32> to vector<8x32xf32>
    %485 = arith.addf %483, %484 : vector<8x32xf32>
    %486 = arith.index_cast %c10_i32 : i32 to index
    %c0_194 = arith.constant 0 : index
    %c0_195 = arith.constant 0 : index
    %487 = vector.load %arg8[%486, %c0_194, %c0_195] : memref<16x8x32xf32, #tpu.memory_space<vmem>>, vector<1x8x32xf32>
    %488 = vector.shape_cast %487 : vector<1x8x32xf32> to vector<8x32xf32>
    %489 = arith.addf %488, %479 : vector<8x32xf32>
    %490 = arith.negf %489 : vector<8x32xf32>
    %491 = math.exp %490 : vector<8x32xf32>
    %cst_196 = arith.constant 1.000000e+00 : f32
    %492 = vector.broadcast %cst_196 : f32 to vector<8x32xf32>
    %493 = arith.addf %492, %491 : vector<8x32xf32>
    %494 = arith.divf %492, %493 : vector<8x32xf32>
    %495 = arith.index_cast %c10_i32 : i32 to index
    %c0_197 = arith.constant 0 : index
    %c0_198 = arith.constant 0 : index
    %496 = vector.load %arg9[%495, %c0_197, %c0_198] : memref<16x8x32xf32, #tpu.memory_space<vmem>>, vector<1x8x32xf32>
    %497 = vector.shape_cast %496 : vector<1x8x32xf32> to vector<8x32xf32>
    %498 = arith.addf %497, %482 : vector<8x32xf32>
    %499 = arith.negf %498 : vector<8x32xf32>
    %500 = math.exp %499 : vector<8x32xf32>
    %cst_199 = arith.constant 1.000000e+00 : f32
    %501 = vector.broadcast %cst_199 : f32 to vector<8x32xf32>
    %502 = arith.addf %501, %500 : vector<8x32xf32>
    %503 = arith.divf %501, %502 : vector<8x32xf32>
    %504 = arith.index_cast %c10_i32 : i32 to index
    %c0_200 = arith.constant 0 : index
    %c0_201 = arith.constant 0 : index
    %505 = vector.load %arg10[%504, %c0_200, %c0_201] : memref<16x8x32xf32, #tpu.memory_space<vmem>>, vector<1x8x32xf32>
    %506 = vector.shape_cast %505 : vector<1x8x32xf32> to vector<8x32xf32>
    %507 = arith.mulf %494, %485 : vector<8x32xf32>
    %508 = arith.addf %506, %507 : vector<8x32xf32>
    %509 = math.tanh %508 : vector<8x32xf32>
    %cst_202 = arith.constant 1.000000e+00 : f32
    %510 = vector.broadcast %cst_202 : f32 to vector<8x32xf32>
    %511 = arith.subf %510, %503 : vector<8x32xf32>
    %512 = arith.mulf %511, %509 : vector<8x32xf32>
    %513 = arith.mulf %503, %471 : vector<8x32xf32>
    %514 = arith.addf %512, %513 : vector<8x32xf32>
    %515 = arith.index_cast %c10_i32 : i32 to index
    %c0_203 = arith.constant 0 : index
    %c0_204 = arith.constant 0 : index
    %516 = vector.load %arg6[%515, %c0_203, %c0_204] : memref<16x8x32xf32, #tpu.memory_space<vmem>>, vector<1x8x32xf32>
    %517 = vector.shape_cast %516 : vector<1x8x32xf32> to vector<8x32xf32>
    %518 = vector.shape_cast %514 : vector<8x32xf32> to vector<1x8x32xf32>
    tpu.vector_store %arg6[%515, %c0_203, %c0_204], %518 {strides = array<i32>} : memref<16x8x32xf32, #tpu.memory_space<vmem>>, vector<1x8x32xf32>,
    %c11_i32 = arith.constant 11 : i32
    %519 = arith.truncf %514 : vector<8x32xf32> to vector<8x32xbf16>
    %cst_205 = arith.constant dense<0.000000e+00> : vector<8x32xf32>
    %520 = tpu.matmul %519, %34, %cst_205 {dimension_numbers = #tpu.dot_dimension_numbers<[1], [0], [0], [1], [0, 0, 1, 1], [], []>} : vector<8x32xbf16>, vector<32x32xbf16>, vector<8x32xf32> -> vector<8x32xf32>
    %521 = vector.broadcast %40 : vector<1x32xf32> to vector<8x32xf32>
    %522 = arith.addf %520, %521 : vector<8x32xf32>
    %cst_206 = arith.constant dense<0.000000e+00> : vector<8x32xf32>
    %523 = tpu.matmul %519, %36, %cst_206 {dimension_numbers = #tpu.dot_dimension_numbers<[1], [0], [0], [1], [0, 0, 1, 1], [], []>} : vector<8x32xbf16>, vector<32x32xbf16>, vector<8x32xf32> -> vector<8x32xf32>
    %524 = vector.broadcast %42 : vector<1x32xf32> to vector<8x32xf32>
    %525 = arith.addf %523, %524 : vector<8x32xf32>
    %cst_207 = arith.constant dense<0.000000e+00> : vector<8x32xf32>
    %526 = tpu.matmul %519, %38, %cst_207 {dimension_numbers = #tpu.dot_dimension_numbers<[1], [0], [0], [1], [0, 0, 1, 1], [], []>} : vector<8x32xbf16>, vector<32x32xbf16>, vector<8x32xf32> -> vector<8x32xf32>
    %527 = vector.broadcast %44 : vector<1x32xf32> to vector<8x32xf32>
    %528 = arith.addf %526, %527 : vector<8x32xf32>
    %529 = arith.index_cast %c11_i32 : i32 to index
    %c0_208 = arith.constant 0 : index
    %c0_209 = arith.constant 0 : index
    %530 = vector.load %arg8[%529, %c0_208, %c0_209] : memref<16x8x32xf32, #tpu.memory_space<vmem>>, vector<1x8x32xf32>
    %531 = vector.shape_cast %530 : vector<1x8x32xf32> to vector<8x32xf32>
    %532 = arith.addf %531, %522 : vector<8x32xf32>
    %533 = arith.negf %532 : vector<8x32xf32>
    %534 = math.exp %533 : vector<8x32xf32>
    %cst_210 = arith.constant 1.000000e+00 : f32
    %535 = vector.broadcast %cst_210 : f32 to vector<8x32xf32>
    %536 = arith.addf %535, %534 : vector<8x32xf32>
    %537 = arith.divf %535, %536 : vector<8x32xf32>
    %538 = arith.index_cast %c11_i32 : i32 to index
    %c0_211 = arith.constant 0 : index
    %c0_212 = arith.constant 0 : index
    %539 = vector.load %arg9[%538, %c0_211, %c0_212] : memref<16x8x32xf32, #tpu.memory_space<vmem>>, vector<1x8x32xf32>
    %540 = vector.shape_cast %539 : vector<1x8x32xf32> to vector<8x32xf32>
    %541 = arith.addf %540, %525 : vector<8x32xf32>
    %542 = arith.negf %541 : vector<8x32xf32>
    %543 = math.exp %542 : vector<8x32xf32>
    %cst_213 = arith.constant 1.000000e+00 : f32
    %544 = vector.broadcast %cst_213 : f32 to vector<8x32xf32>
    %545 = arith.addf %544, %543 : vector<8x32xf32>
    %546 = arith.divf %544, %545 : vector<8x32xf32>
    %547 = arith.index_cast %c11_i32 : i32 to index
    %c0_214 = arith.constant 0 : index
    %c0_215 = arith.constant 0 : index
    %548 = vector.load %arg10[%547, %c0_214, %c0_215] : memref<16x8x32xf32, #tpu.memory_space<vmem>>, vector<1x8x32xf32>
    %549 = vector.shape_cast %548 : vector<1x8x32xf32> to vector<8x32xf32>
    %550 = arith.mulf %537, %528 : vector<8x32xf32>
    %551 = arith.addf %549, %550 : vector<8x32xf32>
    %552 = math.tanh %551 : vector<8x32xf32>
    %cst_216 = arith.constant 1.000000e+00 : f32
    %553 = vector.broadcast %cst_216 : f32 to vector<8x32xf32>
    %554 = arith.subf %553, %546 : vector<8x32xf32>
    %555 = arith.mulf %554, %552 : vector<8x32xf32>
    %556 = arith.mulf %546, %514 : vector<8x32xf32>
    %557 = arith.addf %555, %556 : vector<8x32xf32>
    %558 = arith.index_cast %c11_i32 : i32 to index
    %c0_217 = arith.constant 0 : index
    %c0_218 = arith.constant 0 : index
    %559 = vector.load %arg6[%558, %c0_217, %c0_218] : memref<16x8x32xf32, #tpu.memory_space<vmem>>, vector<1x8x32xf32>
    %560 = vector.shape_cast %559 : vector<1x8x32xf32> to vector<8x32xf32>
    %561 = vector.shape_cast %557 : vector<8x32xf32> to vector<1x8x32xf32>
    tpu.vector_store %arg6[%558, %c0_217, %c0_218], %561 {strides = array<i32>} : memref<16x8x32xf32, #tpu.memory_space<vmem>>, vector<1x8x32xf32>,
    %c12_i32 = arith.constant 12 : i32
    %562 = arith.truncf %557 : vector<8x32xf32> to vector<8x32xbf16>
    %cst_219 = arith.constant dense<0.000000e+00> : vector<8x32xf32>
    %563 = tpu.matmul %562, %34, %cst_219 {dimension_numbers = #tpu.dot_dimension_numbers<[1], [0], [0], [1], [0, 0, 1, 1], [], []>} : vector<8x32xbf16>, vector<32x32xbf16>, vector<8x32xf32> -> vector<8x32xf32>
    %564 = vector.broadcast %40 : vector<1x32xf32> to vector<8x32xf32>
    %565 = arith.addf %563, %564 : vector<8x32xf32>
    %cst_220 = arith.constant dense<0.000000e+00> : vector<8x32xf32>
    %566 = tpu.matmul %562, %36, %cst_220 {dimension_numbers = #tpu.dot_dimension_numbers<[1], [0], [0], [1], [0, 0, 1, 1], [], []>} : vector<8x32xbf16>, vector<32x32xbf16>, vector<8x32xf32> -> vector<8x32xf32>
    %567 = vector.broadcast %42 : vector<1x32xf32> to vector<8x32xf32>
    %568 = arith.addf %566, %567 : vector<8x32xf32>
    %cst_221 = arith.constant dense<0.000000e+00> : vector<8x32xf32>
    %569 = tpu.matmul %562, %38, %cst_221 {dimension_numbers = #tpu.dot_dimension_numbers<[1], [0], [0], [1], [0, 0, 1, 1], [], []>} : vector<8x32xbf16>, vector<32x32xbf16>, vector<8x32xf32> -> vector<8x32xf32>
    %570 = vector.broadcast %44 : vector<1x32xf32> to vector<8x32xf32>
    %571 = arith.addf %569, %570 : vector<8x32xf32>
    %572 = arith.index_cast %c12_i32 : i32 to index
    %c0_222 = arith.constant 0 : index
    %c0_223 = arith.constant 0 : index
    %573 = vector.load %arg8[%572, %c0_222, %c0_223] : memref<16x8x32xf32, #tpu.memory_space<vmem>>, vector<1x8x32xf32>
    %574 = vector.shape_cast %573 : vector<1x8x32xf32> to vector<8x32xf32>
    %575 = arith.addf %574, %565 : vector<8x32xf32>
    %576 = arith.negf %575 : vector<8x32xf32>
    %577 = math.exp %576 : vector<8x32xf32>
    %cst_224 = arith.constant 1.000000e+00 : f32
    %578 = vector.broadcast %cst_224 : f32 to vector<8x32xf32>
    %579 = arith.addf %578, %577 : vector<8x32xf32>
    %580 = arith.divf %578, %579 : vector<8x32xf32>
    %581 = arith.index_cast %c12_i32 : i32 to index
    %c0_225 = arith.constant 0 : index
    %c0_226 = arith.constant 0 : index
    %582 = vector.load %arg9[%581, %c0_225, %c0_226] : memref<16x8x32xf32, #tpu.memory_space<vmem>>, vector<1x8x32xf32>
    %583 = vector.shape_cast %582 : vector<1x8x32xf32> to vector<8x32xf32>
    %584 = arith.addf %583, %568 : vector<8x32xf32>
    %585 = arith.negf %584 : vector<8x32xf32>
    %586 = math.exp %585 : vector<8x32xf32>
    %cst_227 = arith.constant 1.000000e+00 : f32
    %587 = vector.broadcast %cst_227 : f32 to vector<8x32xf32>
    %588 = arith.addf %587, %586 : vector<8x32xf32>
    %589 = arith.divf %587, %588 : vector<8x32xf32>
    %590 = arith.index_cast %c12_i32 : i32 to index
    %c0_228 = arith.constant 0 : index
    %c0_229 = arith.constant 0 : index
    %591 = vector.load %arg10[%590, %c0_228, %c0_229] : memref<16x8x32xf32, #tpu.memory_space<vmem>>, vector<1x8x32xf32>
    %592 = vector.shape_cast %591 : vector<1x8x32xf32> to vector<8x32xf32>
    %593 = arith.mulf %580, %571 : vector<8x32xf32>
    %594 = arith.addf %592, %593 : vector<8x32xf32>
    %595 = math.tanh %594 : vector<8x32xf32>
    %cst_230 = arith.constant 1.000000e+00 : f32
    %596 = vector.broadcast %cst_230 : f32 to vector<8x32xf32>
    %597 = arith.subf %596, %589 : vector<8x32xf32>
    %598 = arith.mulf %597, %595 : vector<8x32xf32>
    %599 = arith.mulf %589, %557 : vector<8x32xf32>
    %600 = arith.addf %598, %599 : vector<8x32xf32>
    %601 = arith.index_cast %c12_i32 : i32 to index
    %c0_231 = arith.constant 0 : index
    %c0_232 = arith.constant 0 : index
    %602 = vector.load %arg6[%601, %c0_231, %c0_232] : memref<16x8x32xf32, #tpu.memory_space<vmem>>, vector<1x8x32xf32>
    %603 = vector.shape_cast %602 : vector<1x8x32xf32> to vector<8x32xf32>
    %604 = vector.shape_cast %600 : vector<8x32xf32> to vector<1x8x32xf32>
    tpu.vector_store %arg6[%601, %c0_231, %c0_232], %604 {strides = array<i32>} : memref<16x8x32xf32, #tpu.memory_space<vmem>>, vector<1x8x32xf32>,
    %c13_i32 = arith.constant 13 : i32
    %605 = arith.truncf %600 : vector<8x32xf32> to vector<8x32xbf16>
    %cst_233 = arith.constant dense<0.000000e+00> : vector<8x32xf32>
    %606 = tpu.matmul %605, %34, %cst_233 {dimension_numbers = #tpu.dot_dimension_numbers<[1], [0], [0], [1], [0, 0, 1, 1], [], []>} : vector<8x32xbf16>, vector<32x32xbf16>, vector<8x32xf32> -> vector<8x32xf32>
    %607 = vector.broadcast %40 : vector<1x32xf32> to vector<8x32xf32>
    %608 = arith.addf %606, %607 : vector<8x32xf32>
    %cst_234 = arith.constant dense<0.000000e+00> : vector<8x32xf32>
    %609 = tpu.matmul %605, %36, %cst_234 {dimension_numbers = #tpu.dot_dimension_numbers<[1], [0], [0], [1], [0, 0, 1, 1], [], []>} : vector<8x32xbf16>, vector<32x32xbf16>, vector<8x32xf32> -> vector<8x32xf32>
    %610 = vector.broadcast %42 : vector<1x32xf32> to vector<8x32xf32>
    %611 = arith.addf %609, %610 : vector<8x32xf32>
    %cst_235 = arith.constant dense<0.000000e+00> : vector<8x32xf32>
    %612 = tpu.matmul %605, %38, %cst_235 {dimension_numbers = #tpu.dot_dimension_numbers<[1], [0], [0], [1], [0, 0, 1, 1], [], []>} : vector<8x32xbf16>, vector<32x32xbf16>, vector<8x32xf32> -> vector<8x32xf32>
    %613 = vector.broadcast %44 : vector<1x32xf32> to vector<8x32xf32>
    %614 = arith.addf %612, %613 : vector<8x32xf32>
    %615 = arith.index_cast %c13_i32 : i32 to index
    %c0_236 = arith.constant 0 : index
    %c0_237 = arith.constant 0 : index
    %616 = vector.load %arg8[%615, %c0_236, %c0_237] : memref<16x8x32xf32, #tpu.memory_space<vmem>>, vector<1x8x32xf32>
    %617 = vector.shape_cast %616 : vector<1x8x32xf32> to vector<8x32xf32>
    %618 = arith.addf %617, %608 : vector<8x32xf32>
    %619 = arith.negf %618 : vector<8x32xf32>
    %620 = math.exp %619 : vector<8x32xf32>
    %cst_238 = arith.constant 1.000000e+00 : f32
    %621 = vector.broadcast %cst_238 : f32 to vector<8x32xf32>
    %622 = arith.addf %621, %620 : vector<8x32xf32>
    %623 = arith.divf %621, %622 : vector<8x32xf32>
    %624 = arith.index_cast %c13_i32 : i32 to index
    %c0_239 = arith.constant 0 : index
    %c0_240 = arith.constant 0 : index
    %625 = vector.load %arg9[%624, %c0_239, %c0_240] : memref<16x8x32xf32, #tpu.memory_space<vmem>>, vector<1x8x32xf32>
    %626 = vector.shape_cast %625 : vector<1x8x32xf32> to vector<8x32xf32>
    %627 = arith.addf %626, %611 : vector<8x32xf32>
    %628 = arith.negf %627 : vector<8x32xf32>
    %629 = math.exp %628 : vector<8x32xf32>
    %cst_241 = arith.constant 1.000000e+00 : f32
    %630 = vector.broadcast %cst_241 : f32 to vector<8x32xf32>
    %631 = arith.addf %630, %629 : vector<8x32xf32>
    %632 = arith.divf %630, %631 : vector<8x32xf32>
    %633 = arith.index_cast %c13_i32 : i32 to index
    %c0_242 = arith.constant 0 : index
    %c0_243 = arith.constant 0 : index
    %634 = vector.load %arg10[%633, %c0_242, %c0_243] : memref<16x8x32xf32, #tpu.memory_space<vmem>>, vector<1x8x32xf32>
    %635 = vector.shape_cast %634 : vector<1x8x32xf32> to vector<8x32xf32>
    %636 = arith.mulf %623, %614 : vector<8x32xf32>
    %637 = arith.addf %635, %636 : vector<8x32xf32>
    %638 = math.tanh %637 : vector<8x32xf32>
    %cst_244 = arith.constant 1.000000e+00 : f32
    %639 = vector.broadcast %cst_244 : f32 to vector<8x32xf32>
    %640 = arith.subf %639, %632 : vector<8x32xf32>
    %641 = arith.mulf %640, %638 : vector<8x32xf32>
    %642 = arith.mulf %632, %600 : vector<8x32xf32>
    %643 = arith.addf %641, %642 : vector<8x32xf32>
    %644 = arith.index_cast %c13_i32 : i32 to index
    %c0_245 = arith.constant 0 : index
    %c0_246 = arith.constant 0 : index
    %645 = vector.load %arg6[%644, %c0_245, %c0_246] : memref<16x8x32xf32, #tpu.memory_space<vmem>>, vector<1x8x32xf32>
    %646 = vector.shape_cast %645 : vector<1x8x32xf32> to vector<8x32xf32>
    %647 = vector.shape_cast %643 : vector<8x32xf32> to vector<1x8x32xf32>
    tpu.vector_store %arg6[%644, %c0_245, %c0_246], %647 {strides = array<i32>} : memref<16x8x32xf32, #tpu.memory_space<vmem>>, vector<1x8x32xf32>,
    %c14_i32 = arith.constant 14 : i32
    %648 = arith.truncf %643 : vector<8x32xf32> to vector<8x32xbf16>
    %cst_247 = arith.constant dense<0.000000e+00> : vector<8x32xf32>
    %649 = tpu.matmul %648, %34, %cst_247 {dimension_numbers = #tpu.dot_dimension_numbers<[1], [0], [0], [1], [0, 0, 1, 1], [], []>} : vector<8x32xbf16>, vector<32x32xbf16>, vector<8x32xf32> -> vector<8x32xf32>
    %650 = vector.broadcast %40 : vector<1x32xf32> to vector<8x32xf32>
    %651 = arith.addf %649, %650 : vector<8x32xf32>
    %cst_248 = arith.constant dense<0.000000e+00> : vector<8x32xf32>
    %652 = tpu.matmul %648, %36, %cst_248 {dimension_numbers = #tpu.dot_dimension_numbers<[1], [0], [0], [1], [0, 0, 1, 1], [], []>} : vector<8x32xbf16>, vector<32x32xbf16>, vector<8x32xf32> -> vector<8x32xf32>
    %653 = vector.broadcast %42 : vector<1x32xf32> to vector<8x32xf32>
    %654 = arith.addf %652, %653 : vector<8x32xf32>
    %cst_249 = arith.constant dense<0.000000e+00> : vector<8x32xf32>
    %655 = tpu.matmul %648, %38, %cst_249 {dimension_numbers = #tpu.dot_dimension_numbers<[1], [0], [0], [1], [0, 0, 1, 1], [], []>} : vector<8x32xbf16>, vector<32x32xbf16>, vector<8x32xf32> -> vector<8x32xf32>
    %656 = vector.broadcast %44 : vector<1x32xf32> to vector<8x32xf32>
    %657 = arith.addf %655, %656 : vector<8x32xf32>
    %658 = arith.index_cast %c14_i32 : i32 to index
    %c0_250 = arith.constant 0 : index
    %c0_251 = arith.constant 0 : index
    %659 = vector.load %arg8[%658, %c0_250, %c0_251] : memref<16x8x32xf32, #tpu.memory_space<vmem>>, vector<1x8x32xf32>
    %660 = vector.shape_cast %659 : vector<1x8x32xf32> to vector<8x32xf32>
    %661 = arith.addf %660, %651 : vector<8x32xf32>
    %662 = arith.negf %661 : vector<8x32xf32>
    %663 = math.exp %662 : vector<8x32xf32>
    %cst_252 = arith.constant 1.000000e+00 : f32
    %664 = vector.broadcast %cst_252 : f32 to vector<8x32xf32>
    %665 = arith.addf %664, %663 : vector<8x32xf32>
    %666 = arith.divf %664, %665 : vector<8x32xf32>
    %667 = arith.index_cast %c14_i32 : i32 to index
    %c0_253 = arith.constant 0 : index
    %c0_254 = arith.constant 0 : index
    %668 = vector.load %arg9[%667, %c0_253, %c0_254] : memref<16x8x32xf32, #tpu.memory_space<vmem>>, vector<1x8x32xf32>
    %669 = vector.shape_cast %668 : vector<1x8x32xf32> to vector<8x32xf32>
    %670 = arith.addf %669, %654 : vector<8x32xf32>
    %671 = arith.negf %670 : vector<8x32xf32>
    %672 = math.exp %671 : vector<8x32xf32>
    %cst_255 = arith.constant 1.000000e+00 : f32
    %673 = vector.broadcast %cst_255 : f32 to vector<8x32xf32>
    %674 = arith.addf %673, %672 : vector<8x32xf32>
    %675 = arith.divf %673, %674 : vector<8x32xf32>
    %676 = arith.index_cast %c14_i32 : i32 to index
    %c0_256 = arith.constant 0 : index
    %c0_257 = arith.constant 0 : index
    %677 = vector.load %arg10[%676, %c0_256, %c0_257] : memref<16x8x32xf32, #tpu.memory_space<vmem>>, vector<1x8x32xf32>
    %678 = vector.shape_cast %677 : vector<1x8x32xf32> to vector<8x32xf32>
    %679 = arith.mulf %666, %657 : vector<8x32xf32>
    %680 = arith.addf %678, %679 : vector<8x32xf32>
    %681 = math.tanh %680 : vector<8x32xf32>
    %cst_258 = arith.constant 1.000000e+00 : f32
    %682 = vector.broadcast %cst_258 : f32 to vector<8x32xf32>
    %683 = arith.subf %682, %675 : vector<8x32xf32>
    %684 = arith.mulf %683, %681 : vector<8x32xf32>
    %685 = arith.mulf %675, %643 : vector<8x32xf32>
    %686 = arith.addf %684, %685 : vector<8x32xf32>
    %687 = arith.index_cast %c14_i32 : i32 to index
    %c0_259 = arith.constant 0 : index
    %c0_260 = arith.constant 0 : index
    %688 = vector.load %arg6[%687, %c0_259, %c0_260] : memref<16x8x32xf32, #tpu.memory_space<vmem>>, vector<1x8x32xf32>
    %689 = vector.shape_cast %688 : vector<1x8x32xf32> to vector<8x32xf32>
    %690 = vector.shape_cast %686 : vector<8x32xf32> to vector<1x8x32xf32>
    tpu.vector_store %arg6[%687, %c0_259, %c0_260], %690 {strides = array<i32>} : memref<16x8x32xf32, #tpu.memory_space<vmem>>, vector<1x8x32xf32>,
    %c15_i32 = arith.constant 15 : i32
    %691 = arith.truncf %686 : vector<8x32xf32> to vector<8x32xbf16>
    %cst_261 = arith.constant dense<0.000000e+00> : vector<8x32xf32>
    %692 = tpu.matmul %691, %34, %cst_261 {dimension_numbers = #tpu.dot_dimension_numbers<[1], [0], [0], [1], [0, 0, 1, 1], [], []>} : vector<8x32xbf16>, vector<32x32xbf16>, vector<8x32xf32> -> vector<8x32xf32>
    %693 = vector.broadcast %40 : vector<1x32xf32> to vector<8x32xf32>
    %694 = arith.addf %692, %693 : vector<8x32xf32>
    %cst_262 = arith.constant dense<0.000000e+00> : vector<8x32xf32>
    %695 = tpu.matmul %691, %36, %cst_262 {dimension_numbers = #tpu.dot_dimension_numbers<[1], [0], [0], [1], [0, 0, 1, 1], [], []>} : vector<8x32xbf16>, vector<32x32xbf16>, vector<8x32xf32> -> vector<8x32xf32>
    %696 = vector.broadcast %42 : vector<1x32xf32> to vector<8x32xf32>
    %697 = arith.addf %695, %696 : vector<8x32xf32>
    %cst_263 = arith.constant dense<0.000000e+00> : vector<8x32xf32>
    %698 = tpu.matmul %691, %38, %cst_263 {dimension_numbers = #tpu.dot_dimension_numbers<[1], [0], [0], [1], [0, 0, 1, 1], [], []>} : vector<8x32xbf16>, vector<32x32xbf16>, vector<8x32xf32> -> vector<8x32xf32>
    %699 = vector.broadcast %44 : vector<1x32xf32> to vector<8x32xf32>
    %700 = arith.addf %698, %699 : vector<8x32xf32>
    %701 = arith.index_cast %c15_i32 : i32 to index
    %c0_264 = arith.constant 0 : index
    %c0_265 = arith.constant 0 : index
    %702 = vector.load %arg8[%701, %c0_264, %c0_265] : memref<16x8x32xf32, #tpu.memory_space<vmem>>, vector<1x8x32xf32>
    %703 = vector.shape_cast %702 : vector<1x8x32xf32> to vector<8x32xf32>
    %704 = arith.addf %703, %694 : vector<8x32xf32>
    %705 = arith.negf %704 : vector<8x32xf32>
    %706 = math.exp %705 : vector<8x32xf32>
    %cst_266 = arith.constant 1.000000e+00 : f32
    %707 = vector.broadcast %cst_266 : f32 to vector<8x32xf32>
    %708 = arith.addf %707, %706 : vector<8x32xf32>
    %709 = arith.divf %707, %708 : vector<8x32xf32>
    %710 = arith.index_cast %c15_i32 : i32 to index
    %c0_267 = arith.constant 0 : index
    %c0_268 = arith.constant 0 : index
    %711 = vector.load %arg9[%710, %c0_267, %c0_268] : memref<16x8x32xf32, #tpu.memory_space<vmem>>, vector<1x8x32xf32>
    %712 = vector.shape_cast %711 : vector<1x8x32xf32> to vector<8x32xf32>
    %713 = arith.addf %712, %697 : vector<8x32xf32>
    %714 = arith.negf %713 : vector<8x32xf32>
    %715 = math.exp %714 : vector<8x32xf32>
    %cst_269 = arith.constant 1.000000e+00 : f32
    %716 = vector.broadcast %cst_269 : f32 to vector<8x32xf32>
    %717 = arith.addf %716, %715 : vector<8x32xf32>
    %718 = arith.divf %716, %717 : vector<8x32xf32>
    %719 = arith.index_cast %c15_i32 : i32 to index
    %c0_270 = arith.constant 0 : index
    %c0_271 = arith.constant 0 : index
    %720 = vector.load %arg10[%719, %c0_270, %c0_271] : memref<16x8x32xf32, #tpu.memory_space<vmem>>, vector<1x8x32xf32>
    %721 = vector.shape_cast %720 : vector<1x8x32xf32> to vector<8x32xf32>
    %722 = arith.mulf %709, %700 : vector<8x32xf32>
    %723 = arith.addf %721, %722 : vector<8x32xf32>
    %724 = math.tanh %723 : vector<8x32xf32>
    %cst_272 = arith.constant 1.000000e+00 : f32
    %725 = vector.broadcast %cst_272 : f32 to vector<8x32xf32>
    %726 = arith.subf %725, %718 : vector<8x32xf32>
    %727 = arith.mulf %726, %724 : vector<8x32xf32>
    %728 = arith.mulf %718, %686 : vector<8x32xf32>
    %729 = arith.addf %727, %728 : vector<8x32xf32>
    %730 = arith.index_cast %c15_i32 : i32 to index
    %c0_273 = arith.constant 0 : index
    %c0_274 = arith.constant 0 : index
    %731 = vector.load %arg6[%730, %c0_273, %c0_274] : memref<16x8x32xf32, #tpu.memory_space<vmem>>, vector<1x8x32xf32>
    %732 = vector.shape_cast %731 : vector<1x8x32xf32> to vector<8x32xf32>
    %733 = vector.shape_cast %729 : vector<8x32xf32> to vector<1x8x32xf32>
    tpu.vector_store %arg6[%730, %c0_273, %c0_274], %733 {strides = array<i32>} : memref<16x8x32xf32, #tpu.memory_space<vmem>>, vector<1x8x32xf32>,
    %c16_i32 = arith.constant 16 : i32
    %c0_275 = arith.constant 0 : index
    %c0_276 = arith.constant 0 : index
    %734 = vector.load %arg7[%c0_275, %c0_276] : memref<8x32xf32, #tpu.memory_space<vmem>>, vector<8x32xf32>
    tpu.vector_store %arg7[%c0_275, %c0_276], %729 {strides = array<i32>} : memref<8x32xf32, #tpu.memory_space<vmem>>, vector<8x32xf32>,
    return
  }
  func.func @transform_0(%arg0: i32) -> (i32, i32, i32) {
    %c0_i32 = arith.constant 0 : i32
    %c0_i32_0 = arith.constant 0 : i32
    %c0_i32_1 = arith.constant 0 : i32
    return %arg0, %c0_i32, %c0_i32_0 : i32, i32, i32
  }
  func.func @transform_1(%arg0: i32) -> (i32, i32, i32) {
    %c0_i32 = arith.constant 0 : i32
    %c0_i32_0 = arith.constant 0 : i32
    %c0_i32_1 = arith.constant 0 : i32
    %c0_i32_2 = arith.constant 0 : i32
    return %c0_i32, %c0_i32_0, %c0_i32_1 : i32, i32, i32
  }
  func.func @transform_2(%arg0: i32) -> (i32, i32, i32) {
    %c0_i32 = arith.constant 0 : i32
    %c0_i32_0 = arith.constant 0 : i32
    %c0_i32_1 = arith.constant 0 : i32
    %c0_i32_2 = arith.constant 0 : i32
    return %c0_i32, %c0_i32_0, %c0_i32_1 : i32, i32, i32
  }
  func.func @transform_3(%arg0: i32) -> (i32, i32, i32) {
    %c0_i32 = arith.constant 0 : i32
    %c0_i32_0 = arith.constant 0 : i32
    %c0_i32_1 = arith.constant 0 : i32
    %c0_i32_2 = arith.constant 0 : i32
    return %c0_i32, %c0_i32_0, %c0_i32_1 : i32, i32, i32
  }
  func.func @transform_4(%arg0: i32) -> (i32, i32, i32) {
    %c0_i32 = arith.constant 0 : i32
    %c0_i32_0 = arith.constant 0 : i32
    %c0_i32_1 = arith.constant 0 : i32
    %c0_i32_2 = arith.constant 0 : i32
    return %c0_i32, %c0_i32_0, %c0_i32_1 : i32, i32, i32
  }
  func.func @transform_5(%arg0: i32) -> (i32, i32, i32) {
    %c0_i32 = arith.constant 0 : i32
    %c0_i32_0 = arith.constant 0 : i32
    %c0_i32_1 = arith.constant 0 : i32
    return %arg0, %c0_i32, %c0_i32_0 : i32, i32, i32
  }
}

module attributes {stable_mosaic.version = 11 : i64} {
  func.func @bidaf_model_head_kernel(%arg0: i32, %arg1: memref<16x8x128xf32, #tpu.memory_space<vmem>>, %arg2: memref<16x8x1xf32, #tpu.memory_space<vmem>>, %arg3: memref<3x128x32xbf16, #tpu.memory_space<vmem>>, %arg4: memref<3x32x32xbf16, #tpu.memory_space<vmem>>, %arg5: memref<3x1x32xf32, #tpu.memory_space<vmem>>, %arg6: memref<3x1x32xf32, #tpu.memory_space<vmem>>, %arg7: memref<128x2xf32, #tpu.memory_space<vmem>>, %arg8: memref<32x2xf32, #tpu.memory_space<vmem>>, %arg9: memref<8x2xf32, #tpu.memory_space<vmem>>, %arg10: memref<8x32xf32, #tpu.memory_space<vmem>>, %arg11: memref<8x32xf32, #tpu.memory_space<vmem>>, %arg12: memref<8x128xf32, #tpu.memory_space<vmem>>, %arg13: memref<16x8x32xf32, #tpu.memory_space<vmem>>, %arg14: memref<16x8x32xf32, #tpu.memory_space<vmem>>, %arg15: memref<16x8x32xf32, #tpu.memory_space<vmem>>) attributes {dimension_semantics = [#tpu.dimension_semantics<arbitrary>], iteration_bounds = array<i64: 1>, scalar_prefetch = 0 : i64, scratch_operands = 6 : i64, tpu.core_type = #tpu.core_type<tc>, window_params = [{transform_indices = @transform_0, window_bounds = array<i64: 16, 8, 128>}, {transform_indices = @transform_1, window_bounds = array<i64: 16, 8, 1>}, {pipeline_mode = #tpu.pipeline_mode<synchronous>, transform_indices = @transform_2, window_bounds = array<i64: 3, 128, 32>}, {pipeline_mode = #tpu.pipeline_mode<synchronous>, transform_indices = @transform_3, window_bounds = array<i64: 3, 32, 32>}, {pipeline_mode = #tpu.pipeline_mode<synchronous>, transform_indices = @transform_4, window_bounds = array<i64: 3, 1, 32>}, {pipeline_mode = #tpu.pipeline_mode<synchronous>, transform_indices = @transform_5, window_bounds = array<i64: 3, 1, 32>}, {pipeline_mode = #tpu.pipeline_mode<synchronous>, transform_indices = @transform_6, window_bounds = array<i64: 128, 2>}, {pipeline_mode = #tpu.pipeline_mode<synchronous>, transform_indices = @transform_7, window_bounds = array<i64: 32, 2>}, {pipeline_mode = #tpu.pipeline_mode<synchronous>, transform_indices = @transform_8, window_bounds = array<i64: 8, 2>}]} {
    %c0_i32 = arith.constant 0 : i32
    %0 = arith.cmpi eq, %arg0, %c0_i32 : i32
    %1 = arith.extui %0 : i1 to i32
    %c0_i32_0 = arith.constant 0 : i32
    %2 = arith.cmpi ne, %1, %c0_i32_0 : i32
    scf.if %2 {
      %cst_325 = arith.constant 0.000000e+00 : f32
      %847 = vector.broadcast %cst_325 : f32 to vector<8x32xf32>
      %c0_326 = arith.constant 0 : index
      %c0_327 = arith.constant 0 : index
      %848 = vector.load %arg10[%c0_326, %c0_327] : memref<8x32xf32, #tpu.memory_space<vmem>>, vector<8x32xf32>
      tpu.vector_store %arg10[%c0_326, %c0_327], %847 {strides = array<i32>} : memref<8x32xf32, #tpu.memory_space<vmem>>, vector<8x32xf32>,
      %cst_328 = arith.constant -9.99999995E+11 : f32
      %849 = vector.broadcast %cst_328 : f32 to vector<8x32xf32>
      %c0_329 = arith.constant 0 : index
      %c0_330 = arith.constant 0 : index
      %850 = vector.load %arg11[%c0_329, %c0_330] : memref<8x32xf32, #tpu.memory_space<vmem>>, vector<8x32xf32>
      tpu.vector_store %arg11[%c0_329, %c0_330], %849 {strides = array<i32>} : memref<8x32xf32, #tpu.memory_space<vmem>>, vector<8x32xf32>,
      %cst_331 = arith.constant -9.99999995E+11 : f32
      %851 = vector.broadcast %cst_331 : f32 to vector<8x128xf32>
      %c0_332 = arith.constant 0 : index
      %c0_333 = arith.constant 0 : index
      %852 = vector.load %arg12[%c0_332, %c0_333] : memref<8x128xf32, #tpu.memory_space<vmem>>, vector<8x128xf32>
      tpu.vector_store %arg12[%c0_332, %c0_333], %851 {strides = array<i32>} : memref<8x128xf32, #tpu.memory_space<vmem>>, vector<8x128xf32>,
    } else {
    }
    %c0 = arith.constant 0 : index
    %c0_1 = arith.constant 0 : index
    %c0_2 = arith.constant 0 : index
    %3 = vector.load %arg1[%c0, %c0_1, %c0_2] : memref<16x8x128xf32, #tpu.memory_space<vmem>>, vector<16x8x128xf32>
    %c0_3 = arith.constant 0 : index
    %c0_4 = arith.constant 0 : index
    %c0_5 = arith.constant 0 : index
    %4 = vector.load %arg2[%c0_3, %c0_4, %c0_5] : memref<16x8x1xf32, #tpu.memory_space<vmem>>, vector<16x8x1xf32>
    %cst = arith.constant 5.000000e-01 : f32
    %5 = vector.broadcast %cst : f32 to vector<16x8x1xf32>
    %6 = arith.cmpf ogt, %4, %5 : vector<16x8x1xf32>
    %cst_6 = arith.constant -9.99999995E+11 : f32
    %7 = vector.shape_cast %6 : vector<16x8x1xi1> to vector<16x8x1xi1>
    %8 = vector.broadcast %7 : vector<16x8x1xi1> to vector<16x8x128xi1>
    %9 = vector.broadcast %cst_6 : f32 to vector<16x8x128xf32>
    %10 = arith.select %8, %9, %3 : vector<16x8x128xi1>, vector<16x8x128xf32>
    %c0_7 = arith.constant 0 : index
    %c0_8 = arith.constant 0 : index
    %11 = vector.load %arg12[%c0_7, %c0_8] : memref<8x128xf32, #tpu.memory_space<vmem>>, vector<8x128xf32>
    %cst_9 = arith.constant dense<0xFF800000> : vector<8x128xf32>
    %12 = vector.multi_reduction <maximumf>, %10, %cst_9 [0] : vector<16x8x128xf32> to vector<8x128xf32>
    %13 = arith.maximumf %11, %12 : vector<8x128xf32>
    %c0_10 = arith.constant 0 : index
    %c0_11 = arith.constant 0 : index
    %14 = vector.load %arg12[%c0_10, %c0_11] : memref<8x128xf32, #tpu.memory_space<vmem>>, vector<8x128xf32>
    tpu.vector_store %arg12[%c0_10, %c0_11], %13 {strides = array<i32>} : memref<8x128xf32, #tpu.memory_space<vmem>>, vector<8x128xf32>,
    %15 = arith.truncf %3 : vector<16x8x128xf32> to vector<16x8x128xbf16>
    %16 = vector.shape_cast %15 : vector<16x8x128xbf16> to vector<128x128xbf16>
    %c0_12 = arith.constant 0 : index
    %c0_13 = arith.constant 0 : index
    %c0_14 = arith.constant 0 : index
    %17 = vector.load %arg3[%c0_12, %c0_13, %c0_14] : memref<3x128x32xbf16, #tpu.memory_space<vmem>>, vector<1x128x32xbf16>
    %18 = vector.shape_cast %17 : vector<1x128x32xbf16> to vector<128x32xbf16>
    %cst_15 = arith.constant dense<0.000000e+00> : vector<128x32xf32>
    %19 = tpu.matmul %16, %18, %cst_15 {dimension_numbers = #tpu.dot_dimension_numbers<[1], [0], [0], [1], [0, 0, 1, 1], [], []>} : vector<128x128xbf16>, vector<128x32xbf16>, vector<128x32xf32> -> vector<128x32xf32>
    %c0_16 = arith.constant 0 : index
    %c0_17 = arith.constant 0 : index
    %c0_18 = arith.constant 0 : index
    %20 = vector.load %arg5[%c0_16, %c0_17, %c0_18] : memref<3x1x32xf32, #tpu.memory_space<vmem>>, vector<1x1x32xf32>
    %21 = vector.shape_cast %20 : vector<1x1x32xf32> to vector<1x32xf32>
    %22 = vector.broadcast %21 : vector<1x32xf32> to vector<128x32xf32>
    %23 = arith.addf %19, %22 : vector<128x32xf32>
    %24 = vector.shape_cast %23 : vector<128x32xf32> to vector<16x8x32xf32>
    %c0_19 = arith.constant 0 : index
    %c0_20 = arith.constant 0 : index
    %c0_21 = arith.constant 0 : index
    %25 = vector.load %arg13[%c0_19, %c0_20, %c0_21] : memref<16x8x32xf32, #tpu.memory_space<vmem>>, vector<16x8x32xf32>
    tpu.vector_store %arg13[%c0_19, %c0_20, %c0_21], %24 {strides = array<i32>} : memref<16x8x32xf32, #tpu.memory_space<vmem>>, vector<16x8x32xf32>,
    %c1 = arith.constant 1 : index
    %c0_22 = arith.constant 0 : index
    %c0_23 = arith.constant 0 : index
    %26 = vector.load %arg3[%c1, %c0_22, %c0_23] : memref<3x128x32xbf16, #tpu.memory_space<vmem>>, vector<1x128x32xbf16>
    %27 = vector.shape_cast %26 : vector<1x128x32xbf16> to vector<128x32xbf16>
    %cst_24 = arith.constant dense<0.000000e+00> : vector<128x32xf32>
    %28 = tpu.matmul %16, %27, %cst_24 {dimension_numbers = #tpu.dot_dimension_numbers<[1], [0], [0], [1], [0, 0, 1, 1], [], []>} : vector<128x128xbf16>, vector<128x32xbf16>, vector<128x32xf32> -> vector<128x32xf32>
    %c1_25 = arith.constant 1 : index
    %c0_26 = arith.constant 0 : index
    %c0_27 = arith.constant 0 : index
    %29 = vector.load %arg5[%c1_25, %c0_26, %c0_27] : memref<3x1x32xf32, #tpu.memory_space<vmem>>, vector<1x1x32xf32>
    %30 = vector.shape_cast %29 : vector<1x1x32xf32> to vector<1x32xf32>
    %31 = vector.broadcast %30 : vector<1x32xf32> to vector<128x32xf32>
    %32 = arith.addf %28, %31 : vector<128x32xf32>
    %33 = vector.shape_cast %32 : vector<128x32xf32> to vector<16x8x32xf32>
    %c0_28 = arith.constant 0 : index
    %c0_29 = arith.constant 0 : index
    %c0_30 = arith.constant 0 : index
    %34 = vector.load %arg14[%c0_28, %c0_29, %c0_30] : memref<16x8x32xf32, #tpu.memory_space<vmem>>, vector<16x8x32xf32>
    tpu.vector_store %arg14[%c0_28, %c0_29, %c0_30], %33 {strides = array<i32>} : memref<16x8x32xf32, #tpu.memory_space<vmem>>, vector<16x8x32xf32>,
    %c2 = arith.constant 2 : index
    %c0_31 = arith.constant 0 : index
    %c0_32 = arith.constant 0 : index
    %35 = vector.load %arg3[%c2, %c0_31, %c0_32] : memref<3x128x32xbf16, #tpu.memory_space<vmem>>, vector<1x128x32xbf16>
    %36 = vector.shape_cast %35 : vector<1x128x32xbf16> to vector<128x32xbf16>
    %cst_33 = arith.constant dense<0.000000e+00> : vector<128x32xf32>
    %37 = tpu.matmul %16, %36, %cst_33 {dimension_numbers = #tpu.dot_dimension_numbers<[1], [0], [0], [1], [0, 0, 1, 1], [], []>} : vector<128x128xbf16>, vector<128x32xbf16>, vector<128x32xf32> -> vector<128x32xf32>
    %c2_34 = arith.constant 2 : index
    %c0_35 = arith.constant 0 : index
    %c0_36 = arith.constant 0 : index
    %38 = vector.load %arg5[%c2_34, %c0_35, %c0_36] : memref<3x1x32xf32, #tpu.memory_space<vmem>>, vector<1x1x32xf32>
    %39 = vector.shape_cast %38 : vector<1x1x32xf32> to vector<1x32xf32>
    %40 = vector.broadcast %39 : vector<1x32xf32> to vector<128x32xf32>
    %41 = arith.addf %37, %40 : vector<128x32xf32>
    %42 = vector.shape_cast %41 : vector<128x32xf32> to vector<16x8x32xf32>
    %c0_37 = arith.constant 0 : index
    %c0_38 = arith.constant 0 : index
    %c0_39 = arith.constant 0 : index
    %43 = vector.load %arg15[%c0_37, %c0_38, %c0_39] : memref<16x8x32xf32, #tpu.memory_space<vmem>>, vector<16x8x32xf32>
    tpu.vector_store %arg15[%c0_37, %c0_38, %c0_39], %42 {strides = array<i32>} : memref<16x8x32xf32, #tpu.memory_space<vmem>>, vector<16x8x32xf32>,
    %c0_40 = arith.constant 0 : index
    %c0_41 = arith.constant 0 : index
    %c0_42 = arith.constant 0 : index
    %44 = vector.load %arg4[%c0_40, %c0_41, %c0_42] : memref<3x32x32xbf16, #tpu.memory_space<vmem>>, vector<1x32x32xbf16>
    %45 = vector.shape_cast %44 : vector<1x32x32xbf16> to vector<32x32xbf16>
    %c1_43 = arith.constant 1 : index
    %c0_44 = arith.constant 0 : index
    %c0_45 = arith.constant 0 : index
    %46 = vector.load %arg4[%c1_43, %c0_44, %c0_45] : memref<3x32x32xbf16, #tpu.memory_space<vmem>>, vector<1x32x32xbf16>
    %47 = vector.shape_cast %46 : vector<1x32x32xbf16> to vector<32x32xbf16>
    %c2_46 = arith.constant 2 : index
    %c0_47 = arith.constant 0 : index
    %c0_48 = arith.constant 0 : index
    %48 = vector.load %arg4[%c2_46, %c0_47, %c0_48] : memref<3x32x32xbf16, #tpu.memory_space<vmem>>, vector<1x32x32xbf16>
    %49 = vector.shape_cast %48 : vector<1x32x32xbf16> to vector<32x32xbf16>
    %c0_49 = arith.constant 0 : index
    %c0_50 = arith.constant 0 : index
    %c0_51 = arith.constant 0 : index
    %50 = vector.load %arg6[%c0_49, %c0_50, %c0_51] : memref<3x1x32xf32, #tpu.memory_space<vmem>>, vector<1x1x32xf32>
    %51 = vector.shape_cast %50 : vector<1x1x32xf32> to vector<1x32xf32>
    %c1_52 = arith.constant 1 : index
    %c0_53 = arith.constant 0 : index
    %c0_54 = arith.constant 0 : index
    %52 = vector.load %arg6[%c1_52, %c0_53, %c0_54] : memref<3x1x32xf32, #tpu.memory_space<vmem>>, vector<1x1x32xf32>
    %53 = vector.shape_cast %52 : vector<1x1x32xf32> to vector<1x32xf32>
    %c2_55 = arith.constant 2 : index
    %c0_56 = arith.constant 0 : index
    %c0_57 = arith.constant 0 : index
    %54 = vector.load %arg6[%c2_55, %c0_56, %c0_57] : memref<3x1x32xf32, #tpu.memory_space<vmem>>, vector<1x1x32xf32>
    %55 = vector.shape_cast %54 : vector<1x1x32xf32> to vector<1x32xf32>
    %c0_58 = arith.constant 0 : index
    %c0_59 = arith.constant 0 : index
    %56 = vector.load %arg10[%c0_58, %c0_59] : memref<8x32xf32, #tpu.memory_space<vmem>>, vector<8x32xf32>
    %c0_60 = arith.constant 0 : index
    %c0_61 = arith.constant 0 : index
    %57 = vector.load %arg11[%c0_60, %c0_61] : memref<8x32xf32, #tpu.memory_space<vmem>>, vector<8x32xf32>
    %c0_i32_62 = arith.constant 0 : i32
    %58 = arith.truncf %56 : vector<8x32xf32> to vector<8x32xbf16>
    %cst_63 = arith.constant dense<0.000000e+00> : vector<8x32xf32>
    %59 = tpu.matmul %58, %45, %cst_63 {dimension_numbers = #tpu.dot_dimension_numbers<[1], [0], [0], [1], [0, 0, 1, 1], [], []>} : vector<8x32xbf16>, vector<32x32xbf16>, vector<8x32xf32> -> vector<8x32xf32>
    %60 = vector.broadcast %51 : vector<1x32xf32> to vector<8x32xf32>
    %61 = arith.addf %59, %60 : vector<8x32xf32>
    %cst_64 = arith.constant dense<0.000000e+00> : vector<8x32xf32>
    %62 = tpu.matmul %58, %47, %cst_64 {dimension_numbers = #tpu.dot_dimension_numbers<[1], [0], [0], [1], [0, 0, 1, 1], [], []>} : vector<8x32xbf16>, vector<32x32xbf16>, vector<8x32xf32> -> vector<8x32xf32>
    %63 = vector.broadcast %53 : vector<1x32xf32> to vector<8x32xf32>
    %64 = arith.addf %62, %63 : vector<8x32xf32>
    %cst_65 = arith.constant dense<0.000000e+00> : vector<8x32xf32>
    %65 = tpu.matmul %58, %49, %cst_65 {dimension_numbers = #tpu.dot_dimension_numbers<[1], [0], [0], [1], [0, 0, 1, 1], [], []>} : vector<8x32xbf16>, vector<32x32xbf16>, vector<8x32xf32> -> vector<8x32xf32>
    %66 = vector.broadcast %55 : vector<1x32xf32> to vector<8x32xf32>
    %67 = arith.addf %65, %66 : vector<8x32xf32>
    %68 = arith.index_cast %c0_i32_62 : i32 to index
    %c0_66 = arith.constant 0 : index
    %c0_67 = arith.constant 0 : index
    %69 = vector.load %arg13[%68, %c0_66, %c0_67] : memref<16x8x32xf32, #tpu.memory_space<vmem>>, vector<1x8x32xf32>
    %70 = vector.shape_cast %69 : vector<1x8x32xf32> to vector<8x32xf32>
    %71 = arith.addf %70, %61 : vector<8x32xf32>
    %72 = arith.negf %71 : vector<8x32xf32>
    %73 = math.exp %72 : vector<8x32xf32>
    %cst_68 = arith.constant 1.000000e+00 : f32
    %74 = vector.broadcast %cst_68 : f32 to vector<8x32xf32>
    %75 = arith.addf %74, %73 : vector<8x32xf32>
    %76 = arith.divf %74, %75 : vector<8x32xf32>
    %77 = arith.index_cast %c0_i32_62 : i32 to index
    %c0_69 = arith.constant 0 : index
    %c0_70 = arith.constant 0 : index
    %78 = vector.load %arg14[%77, %c0_69, %c0_70] : memref<16x8x32xf32, #tpu.memory_space<vmem>>, vector<1x8x32xf32>
    %79 = vector.shape_cast %78 : vector<1x8x32xf32> to vector<8x32xf32>
    %80 = arith.addf %79, %64 : vector<8x32xf32>
    %81 = arith.negf %80 : vector<8x32xf32>
    %82 = math.exp %81 : vector<8x32xf32>
    %cst_71 = arith.constant 1.000000e+00 : f32
    %83 = vector.broadcast %cst_71 : f32 to vector<8x32xf32>
    %84 = arith.addf %83, %82 : vector<8x32xf32>
    %85 = arith.divf %83, %84 : vector<8x32xf32>
    %86 = arith.index_cast %c0_i32_62 : i32 to index
    %c0_72 = arith.constant 0 : index
    %c0_73 = arith.constant 0 : index
    %87 = vector.load %arg15[%86, %c0_72, %c0_73] : memref<16x8x32xf32, #tpu.memory_space<vmem>>, vector<1x8x32xf32>
    %88 = vector.shape_cast %87 : vector<1x8x32xf32> to vector<8x32xf32>
    %89 = arith.mulf %76, %67 : vector<8x32xf32>
    %90 = arith.addf %88, %89 : vector<8x32xf32>
    %91 = math.tanh %90 : vector<8x32xf32>
    %cst_74 = arith.constant 1.000000e+00 : f32
    %92 = vector.broadcast %cst_74 : f32 to vector<8x32xf32>
    %93 = arith.subf %92, %85 : vector<8x32xf32>
    %94 = arith.mulf %93, %91 : vector<8x32xf32>
    %95 = arith.mulf %85, %56 : vector<8x32xf32>
    %96 = arith.addf %94, %95 : vector<8x32xf32>
    %97 = arith.index_cast %c0_i32_62 : i32 to index
    %c0_75 = arith.constant 0 : index
    %c0_76 = arith.constant 0 : index
    %98 = vector.load %arg2[%97, %c0_75, %c0_76] : memref<16x8x1xf32, #tpu.memory_space<vmem>>, vector<1x8x1xf32>
    %99 = vector.shape_cast %98 : vector<1x8x1xf32> to vector<8x1xf32>
    %cst_77 = arith.constant 5.000000e-01 : f32
    %100 = vector.broadcast %cst_77 : f32 to vector<8x1xf32>
    %101 = arith.cmpf ogt, %99, %100 : vector<8x1xf32>
    %cst_78 = arith.constant -9.99999995E+11 : f32
    %102 = vector.shape_cast %101 : vector<8x1xi1> to vector<8x1xi1>
    %103 = vector.broadcast %102 : vector<8x1xi1> to vector<8x32xi1>
    %104 = vector.broadcast %cst_78 : f32 to vector<8x32xf32>
    %105 = arith.select %103, %104, %96 : vector<8x32xi1>, vector<8x32xf32>
    %106 = arith.maximumf %57, %105 : vector<8x32xf32>
    %c1_i32 = arith.constant 1 : i32
    %107 = arith.truncf %96 : vector<8x32xf32> to vector<8x32xbf16>
    %cst_79 = arith.constant dense<0.000000e+00> : vector<8x32xf32>
    %108 = tpu.matmul %107, %45, %cst_79 {dimension_numbers = #tpu.dot_dimension_numbers<[1], [0], [0], [1], [0, 0, 1, 1], [], []>} : vector<8x32xbf16>, vector<32x32xbf16>, vector<8x32xf32> -> vector<8x32xf32>
    %109 = vector.broadcast %51 : vector<1x32xf32> to vector<8x32xf32>
    %110 = arith.addf %108, %109 : vector<8x32xf32>
    %cst_80 = arith.constant dense<0.000000e+00> : vector<8x32xf32>
    %111 = tpu.matmul %107, %47, %cst_80 {dimension_numbers = #tpu.dot_dimension_numbers<[1], [0], [0], [1], [0, 0, 1, 1], [], []>} : vector<8x32xbf16>, vector<32x32xbf16>, vector<8x32xf32> -> vector<8x32xf32>
    %112 = vector.broadcast %53 : vector<1x32xf32> to vector<8x32xf32>
    %113 = arith.addf %111, %112 : vector<8x32xf32>
    %cst_81 = arith.constant dense<0.000000e+00> : vector<8x32xf32>
    %114 = tpu.matmul %107, %49, %cst_81 {dimension_numbers = #tpu.dot_dimension_numbers<[1], [0], [0], [1], [0, 0, 1, 1], [], []>} : vector<8x32xbf16>, vector<32x32xbf16>, vector<8x32xf32> -> vector<8x32xf32>
    %115 = vector.broadcast %55 : vector<1x32xf32> to vector<8x32xf32>
    %116 = arith.addf %114, %115 : vector<8x32xf32>
    %117 = arith.index_cast %c1_i32 : i32 to index
    %c0_82 = arith.constant 0 : index
    %c0_83 = arith.constant 0 : index
    %118 = vector.load %arg13[%117, %c0_82, %c0_83] : memref<16x8x32xf32, #tpu.memory_space<vmem>>, vector<1x8x32xf32>
    %119 = vector.shape_cast %118 : vector<1x8x32xf32> to vector<8x32xf32>
    %120 = arith.addf %119, %110 : vector<8x32xf32>
    %121 = arith.negf %120 : vector<8x32xf32>
    %122 = math.exp %121 : vector<8x32xf32>
    %cst_84 = arith.constant 1.000000e+00 : f32
    %123 = vector.broadcast %cst_84 : f32 to vector<8x32xf32>
    %124 = arith.addf %123, %122 : vector<8x32xf32>
    %125 = arith.divf %123, %124 : vector<8x32xf32>
    %126 = arith.index_cast %c1_i32 : i32 to index
    %c0_85 = arith.constant 0 : index
    %c0_86 = arith.constant 0 : index
    %127 = vector.load %arg14[%126, %c0_85, %c0_86] : memref<16x8x32xf32, #tpu.memory_space<vmem>>, vector<1x8x32xf32>
    %128 = vector.shape_cast %127 : vector<1x8x32xf32> to vector<8x32xf32>
    %129 = arith.addf %128, %113 : vector<8x32xf32>
    %130 = arith.negf %129 : vector<8x32xf32>
    %131 = math.exp %130 : vector<8x32xf32>
    %cst_87 = arith.constant 1.000000e+00 : f32
    %132 = vector.broadcast %cst_87 : f32 to vector<8x32xf32>
    %133 = arith.addf %132, %131 : vector<8x32xf32>
    %134 = arith.divf %132, %133 : vector<8x32xf32>
    %135 = arith.index_cast %c1_i32 : i32 to index
    %c0_88 = arith.constant 0 : index
    %c0_89 = arith.constant 0 : index
    %136 = vector.load %arg15[%135, %c0_88, %c0_89] : memref<16x8x32xf32, #tpu.memory_space<vmem>>, vector<1x8x32xf32>
    %137 = vector.shape_cast %136 : vector<1x8x32xf32> to vector<8x32xf32>
    %138 = arith.mulf %125, %116 : vector<8x32xf32>
    %139 = arith.addf %137, %138 : vector<8x32xf32>
    %140 = math.tanh %139 : vector<8x32xf32>
    %cst_90 = arith.constant 1.000000e+00 : f32
    %141 = vector.broadcast %cst_90 : f32 to vector<8x32xf32>
    %142 = arith.subf %141, %134 : vector<8x32xf32>
    %143 = arith.mulf %142, %140 : vector<8x32xf32>
    %144 = arith.mulf %134, %96 : vector<8x32xf32>
    %145 = arith.addf %143, %144 : vector<8x32xf32>
    %146 = arith.index_cast %c1_i32 : i32 to index
    %c0_91 = arith.constant 0 : index
    %c0_92 = arith.constant 0 : index
    %147 = vector.load %arg2[%146, %c0_91, %c0_92] : memref<16x8x1xf32, #tpu.memory_space<vmem>>, vector<1x8x1xf32>
    %148 = vector.shape_cast %147 : vector<1x8x1xf32> to vector<8x1xf32>
    %cst_93 = arith.constant 5.000000e-01 : f32
    %149 = vector.broadcast %cst_93 : f32 to vector<8x1xf32>
    %150 = arith.cmpf ogt, %148, %149 : vector<8x1xf32>
    %cst_94 = arith.constant -9.99999995E+11 : f32
    %151 = vector.shape_cast %150 : vector<8x1xi1> to vector<8x1xi1>
    %152 = vector.broadcast %151 : vector<8x1xi1> to vector<8x32xi1>
    %153 = vector.broadcast %cst_94 : f32 to vector<8x32xf32>
    %154 = arith.select %152, %153, %145 : vector<8x32xi1>, vector<8x32xf32>
    %155 = arith.maximumf %106, %154 : vector<8x32xf32>
    %c2_i32 = arith.constant 2 : i32
    %156 = arith.truncf %145 : vector<8x32xf32> to vector<8x32xbf16>
    %cst_95 = arith.constant dense<0.000000e+00> : vector<8x32xf32>
    %157 = tpu.matmul %156, %45, %cst_95 {dimension_numbers = #tpu.dot_dimension_numbers<[1], [0], [0], [1], [0, 0, 1, 1], [], []>} : vector<8x32xbf16>, vector<32x32xbf16>, vector<8x32xf32> -> vector<8x32xf32>
    %158 = vector.broadcast %51 : vector<1x32xf32> to vector<8x32xf32>
    %159 = arith.addf %157, %158 : vector<8x32xf32>
    %cst_96 = arith.constant dense<0.000000e+00> : vector<8x32xf32>
    %160 = tpu.matmul %156, %47, %cst_96 {dimension_numbers = #tpu.dot_dimension_numbers<[1], [0], [0], [1], [0, 0, 1, 1], [], []>} : vector<8x32xbf16>, vector<32x32xbf16>, vector<8x32xf32> -> vector<8x32xf32>
    %161 = vector.broadcast %53 : vector<1x32xf32> to vector<8x32xf32>
    %162 = arith.addf %160, %161 : vector<8x32xf32>
    %cst_97 = arith.constant dense<0.000000e+00> : vector<8x32xf32>
    %163 = tpu.matmul %156, %49, %cst_97 {dimension_numbers = #tpu.dot_dimension_numbers<[1], [0], [0], [1], [0, 0, 1, 1], [], []>} : vector<8x32xbf16>, vector<32x32xbf16>, vector<8x32xf32> -> vector<8x32xf32>
    %164 = vector.broadcast %55 : vector<1x32xf32> to vector<8x32xf32>
    %165 = arith.addf %163, %164 : vector<8x32xf32>
    %166 = arith.index_cast %c2_i32 : i32 to index
    %c0_98 = arith.constant 0 : index
    %c0_99 = arith.constant 0 : index
    %167 = vector.load %arg13[%166, %c0_98, %c0_99] : memref<16x8x32xf32, #tpu.memory_space<vmem>>, vector<1x8x32xf32>
    %168 = vector.shape_cast %167 : vector<1x8x32xf32> to vector<8x32xf32>
    %169 = arith.addf %168, %159 : vector<8x32xf32>
    %170 = arith.negf %169 : vector<8x32xf32>
    %171 = math.exp %170 : vector<8x32xf32>
    %cst_100 = arith.constant 1.000000e+00 : f32
    %172 = vector.broadcast %cst_100 : f32 to vector<8x32xf32>
    %173 = arith.addf %172, %171 : vector<8x32xf32>
    %174 = arith.divf %172, %173 : vector<8x32xf32>
    %175 = arith.index_cast %c2_i32 : i32 to index
    %c0_101 = arith.constant 0 : index
    %c0_102 = arith.constant 0 : index
    %176 = vector.load %arg14[%175, %c0_101, %c0_102] : memref<16x8x32xf32, #tpu.memory_space<vmem>>, vector<1x8x32xf32>
    %177 = vector.shape_cast %176 : vector<1x8x32xf32> to vector<8x32xf32>
    %178 = arith.addf %177, %162 : vector<8x32xf32>
    %179 = arith.negf %178 : vector<8x32xf32>
    %180 = math.exp %179 : vector<8x32xf32>
    %cst_103 = arith.constant 1.000000e+00 : f32
    %181 = vector.broadcast %cst_103 : f32 to vector<8x32xf32>
    %182 = arith.addf %181, %180 : vector<8x32xf32>
    %183 = arith.divf %181, %182 : vector<8x32xf32>
    %184 = arith.index_cast %c2_i32 : i32 to index
    %c0_104 = arith.constant 0 : index
    %c0_105 = arith.constant 0 : index
    %185 = vector.load %arg15[%184, %c0_104, %c0_105] : memref<16x8x32xf32, #tpu.memory_space<vmem>>, vector<1x8x32xf32>
    %186 = vector.shape_cast %185 : vector<1x8x32xf32> to vector<8x32xf32>
    %187 = arith.mulf %174, %165 : vector<8x32xf32>
    %188 = arith.addf %186, %187 : vector<8x32xf32>
    %189 = math.tanh %188 : vector<8x32xf32>
    %cst_106 = arith.constant 1.000000e+00 : f32
    %190 = vector.broadcast %cst_106 : f32 to vector<8x32xf32>
    %191 = arith.subf %190, %183 : vector<8x32xf32>
    %192 = arith.mulf %191, %189 : vector<8x32xf32>
    %193 = arith.mulf %183, %145 : vector<8x32xf32>
    %194 = arith.addf %192, %193 : vector<8x32xf32>
    %195 = arith.index_cast %c2_i32 : i32 to index
    %c0_107 = arith.constant 0 : index
    %c0_108 = arith.constant 0 : index
    %196 = vector.load %arg2[%195, %c0_107, %c0_108] : memref<16x8x1xf32, #tpu.memory_space<vmem>>, vector<1x8x1xf32>
    %197 = vector.shape_cast %196 : vector<1x8x1xf32> to vector<8x1xf32>
    %cst_109 = arith.constant 5.000000e-01 : f32
    %198 = vector.broadcast %cst_109 : f32 to vector<8x1xf32>
    %199 = arith.cmpf ogt, %197, %198 : vector<8x1xf32>
    %cst_110 = arith.constant -9.99999995E+11 : f32
    %200 = vector.shape_cast %199 : vector<8x1xi1> to vector<8x1xi1>
    %201 = vector.broadcast %200 : vector<8x1xi1> to vector<8x32xi1>
    %202 = vector.broadcast %cst_110 : f32 to vector<8x32xf32>
    %203 = arith.select %201, %202, %194 : vector<8x32xi1>, vector<8x32xf32>
    %204 = arith.maximumf %155, %203 : vector<8x32xf32>
    %c3_i32 = arith.constant 3 : i32
    %205 = arith.truncf %194 : vector<8x32xf32> to vector<8x32xbf16>
    %cst_111 = arith.constant dense<0.000000e+00> : vector<8x32xf32>
    %206 = tpu.matmul %205, %45, %cst_111 {dimension_numbers = #tpu.dot_dimension_numbers<[1], [0], [0], [1], [0, 0, 1, 1], [], []>} : vector<8x32xbf16>, vector<32x32xbf16>, vector<8x32xf32> -> vector<8x32xf32>
    %207 = vector.broadcast %51 : vector<1x32xf32> to vector<8x32xf32>
    %208 = arith.addf %206, %207 : vector<8x32xf32>
    %cst_112 = arith.constant dense<0.000000e+00> : vector<8x32xf32>
    %209 = tpu.matmul %205, %47, %cst_112 {dimension_numbers = #tpu.dot_dimension_numbers<[1], [0], [0], [1], [0, 0, 1, 1], [], []>} : vector<8x32xbf16>, vector<32x32xbf16>, vector<8x32xf32> -> vector<8x32xf32>
    %210 = vector.broadcast %53 : vector<1x32xf32> to vector<8x32xf32>
    %211 = arith.addf %209, %210 : vector<8x32xf32>
    %cst_113 = arith.constant dense<0.000000e+00> : vector<8x32xf32>
    %212 = tpu.matmul %205, %49, %cst_113 {dimension_numbers = #tpu.dot_dimension_numbers<[1], [0], [0], [1], [0, 0, 1, 1], [], []>} : vector<8x32xbf16>, vector<32x32xbf16>, vector<8x32xf32> -> vector<8x32xf32>
    %213 = vector.broadcast %55 : vector<1x32xf32> to vector<8x32xf32>
    %214 = arith.addf %212, %213 : vector<8x32xf32>
    %215 = arith.index_cast %c3_i32 : i32 to index
    %c0_114 = arith.constant 0 : index
    %c0_115 = arith.constant 0 : index
    %216 = vector.load %arg13[%215, %c0_114, %c0_115] : memref<16x8x32xf32, #tpu.memory_space<vmem>>, vector<1x8x32xf32>
    %217 = vector.shape_cast %216 : vector<1x8x32xf32> to vector<8x32xf32>
    %218 = arith.addf %217, %208 : vector<8x32xf32>
    %219 = arith.negf %218 : vector<8x32xf32>
    %220 = math.exp %219 : vector<8x32xf32>
    %cst_116 = arith.constant 1.000000e+00 : f32
    %221 = vector.broadcast %cst_116 : f32 to vector<8x32xf32>
    %222 = arith.addf %221, %220 : vector<8x32xf32>
    %223 = arith.divf %221, %222 : vector<8x32xf32>
    %224 = arith.index_cast %c3_i32 : i32 to index
    %c0_117 = arith.constant 0 : index
    %c0_118 = arith.constant 0 : index
    %225 = vector.load %arg14[%224, %c0_117, %c0_118] : memref<16x8x32xf32, #tpu.memory_space<vmem>>, vector<1x8x32xf32>
    %226 = vector.shape_cast %225 : vector<1x8x32xf32> to vector<8x32xf32>
    %227 = arith.addf %226, %211 : vector<8x32xf32>
    %228 = arith.negf %227 : vector<8x32xf32>
    %229 = math.exp %228 : vector<8x32xf32>
    %cst_119 = arith.constant 1.000000e+00 : f32
    %230 = vector.broadcast %cst_119 : f32 to vector<8x32xf32>
    %231 = arith.addf %230, %229 : vector<8x32xf32>
    %232 = arith.divf %230, %231 : vector<8x32xf32>
    %233 = arith.index_cast %c3_i32 : i32 to index
    %c0_120 = arith.constant 0 : index
    %c0_121 = arith.constant 0 : index
    %234 = vector.load %arg15[%233, %c0_120, %c0_121] : memref<16x8x32xf32, #tpu.memory_space<vmem>>, vector<1x8x32xf32>
    %235 = vector.shape_cast %234 : vector<1x8x32xf32> to vector<8x32xf32>
    %236 = arith.mulf %223, %214 : vector<8x32xf32>
    %237 = arith.addf %235, %236 : vector<8x32xf32>
    %238 = math.tanh %237 : vector<8x32xf32>
    %cst_122 = arith.constant 1.000000e+00 : f32
    %239 = vector.broadcast %cst_122 : f32 to vector<8x32xf32>
    %240 = arith.subf %239, %232 : vector<8x32xf32>
    %241 = arith.mulf %240, %238 : vector<8x32xf32>
    %242 = arith.mulf %232, %194 : vector<8x32xf32>
    %243 = arith.addf %241, %242 : vector<8x32xf32>
    %244 = arith.index_cast %c3_i32 : i32 to index
    %c0_123 = arith.constant 0 : index
    %c0_124 = arith.constant 0 : index
    %245 = vector.load %arg2[%244, %c0_123, %c0_124] : memref<16x8x1xf32, #tpu.memory_space<vmem>>, vector<1x8x1xf32>
    %246 = vector.shape_cast %245 : vector<1x8x1xf32> to vector<8x1xf32>
    %cst_125 = arith.constant 5.000000e-01 : f32
    %247 = vector.broadcast %cst_125 : f32 to vector<8x1xf32>
    %248 = arith.cmpf ogt, %246, %247 : vector<8x1xf32>
    %cst_126 = arith.constant -9.99999995E+11 : f32
    %249 = vector.shape_cast %248 : vector<8x1xi1> to vector<8x1xi1>
    %250 = vector.broadcast %249 : vector<8x1xi1> to vector<8x32xi1>
    %251 = vector.broadcast %cst_126 : f32 to vector<8x32xf32>
    %252 = arith.select %250, %251, %243 : vector<8x32xi1>, vector<8x32xf32>
    %253 = arith.maximumf %204, %252 : vector<8x32xf32>
    %c4_i32 = arith.constant 4 : i32
    %254 = arith.truncf %243 : vector<8x32xf32> to vector<8x32xbf16>
    %cst_127 = arith.constant dense<0.000000e+00> : vector<8x32xf32>
    %255 = tpu.matmul %254, %45, %cst_127 {dimension_numbers = #tpu.dot_dimension_numbers<[1], [0], [0], [1], [0, 0, 1, 1], [], []>} : vector<8x32xbf16>, vector<32x32xbf16>, vector<8x32xf32> -> vector<8x32xf32>
    %256 = vector.broadcast %51 : vector<1x32xf32> to vector<8x32xf32>
    %257 = arith.addf %255, %256 : vector<8x32xf32>
    %cst_128 = arith.constant dense<0.000000e+00> : vector<8x32xf32>
    %258 = tpu.matmul %254, %47, %cst_128 {dimension_numbers = #tpu.dot_dimension_numbers<[1], [0], [0], [1], [0, 0, 1, 1], [], []>} : vector<8x32xbf16>, vector<32x32xbf16>, vector<8x32xf32> -> vector<8x32xf32>
    %259 = vector.broadcast %53 : vector<1x32xf32> to vector<8x32xf32>
    %260 = arith.addf %258, %259 : vector<8x32xf32>
    %cst_129 = arith.constant dense<0.000000e+00> : vector<8x32xf32>
    %261 = tpu.matmul %254, %49, %cst_129 {dimension_numbers = #tpu.dot_dimension_numbers<[1], [0], [0], [1], [0, 0, 1, 1], [], []>} : vector<8x32xbf16>, vector<32x32xbf16>, vector<8x32xf32> -> vector<8x32xf32>
    %262 = vector.broadcast %55 : vector<1x32xf32> to vector<8x32xf32>
    %263 = arith.addf %261, %262 : vector<8x32xf32>
    %264 = arith.index_cast %c4_i32 : i32 to index
    %c0_130 = arith.constant 0 : index
    %c0_131 = arith.constant 0 : index
    %265 = vector.load %arg13[%264, %c0_130, %c0_131] : memref<16x8x32xf32, #tpu.memory_space<vmem>>, vector<1x8x32xf32>
    %266 = vector.shape_cast %265 : vector<1x8x32xf32> to vector<8x32xf32>
    %267 = arith.addf %266, %257 : vector<8x32xf32>
    %268 = arith.negf %267 : vector<8x32xf32>
    %269 = math.exp %268 : vector<8x32xf32>
    %cst_132 = arith.constant 1.000000e+00 : f32
    %270 = vector.broadcast %cst_132 : f32 to vector<8x32xf32>
    %271 = arith.addf %270, %269 : vector<8x32xf32>
    %272 = arith.divf %270, %271 : vector<8x32xf32>
    %273 = arith.index_cast %c4_i32 : i32 to index
    %c0_133 = arith.constant 0 : index
    %c0_134 = arith.constant 0 : index
    %274 = vector.load %arg14[%273, %c0_133, %c0_134] : memref<16x8x32xf32, #tpu.memory_space<vmem>>, vector<1x8x32xf32>
    %275 = vector.shape_cast %274 : vector<1x8x32xf32> to vector<8x32xf32>
    %276 = arith.addf %275, %260 : vector<8x32xf32>
    %277 = arith.negf %276 : vector<8x32xf32>
    %278 = math.exp %277 : vector<8x32xf32>
    %cst_135 = arith.constant 1.000000e+00 : f32
    %279 = vector.broadcast %cst_135 : f32 to vector<8x32xf32>
    %280 = arith.addf %279, %278 : vector<8x32xf32>
    %281 = arith.divf %279, %280 : vector<8x32xf32>
    %282 = arith.index_cast %c4_i32 : i32 to index
    %c0_136 = arith.constant 0 : index
    %c0_137 = arith.constant 0 : index
    %283 = vector.load %arg15[%282, %c0_136, %c0_137] : memref<16x8x32xf32, #tpu.memory_space<vmem>>, vector<1x8x32xf32>
    %284 = vector.shape_cast %283 : vector<1x8x32xf32> to vector<8x32xf32>
    %285 = arith.mulf %272, %263 : vector<8x32xf32>
    %286 = arith.addf %284, %285 : vector<8x32xf32>
    %287 = math.tanh %286 : vector<8x32xf32>
    %cst_138 = arith.constant 1.000000e+00 : f32
    %288 = vector.broadcast %cst_138 : f32 to vector<8x32xf32>
    %289 = arith.subf %288, %281 : vector<8x32xf32>
    %290 = arith.mulf %289, %287 : vector<8x32xf32>
    %291 = arith.mulf %281, %243 : vector<8x32xf32>
    %292 = arith.addf %290, %291 : vector<8x32xf32>
    %293 = arith.index_cast %c4_i32 : i32 to index
    %c0_139 = arith.constant 0 : index
    %c0_140 = arith.constant 0 : index
    %294 = vector.load %arg2[%293, %c0_139, %c0_140] : memref<16x8x1xf32, #tpu.memory_space<vmem>>, vector<1x8x1xf32>
    %295 = vector.shape_cast %294 : vector<1x8x1xf32> to vector<8x1xf32>
    %cst_141 = arith.constant 5.000000e-01 : f32
    %296 = vector.broadcast %cst_141 : f32 to vector<8x1xf32>
    %297 = arith.cmpf ogt, %295, %296 : vector<8x1xf32>
    %cst_142 = arith.constant -9.99999995E+11 : f32
    %298 = vector.shape_cast %297 : vector<8x1xi1> to vector<8x1xi1>
    %299 = vector.broadcast %298 : vector<8x1xi1> to vector<8x32xi1>
    %300 = vector.broadcast %cst_142 : f32 to vector<8x32xf32>
    %301 = arith.select %299, %300, %292 : vector<8x32xi1>, vector<8x32xf32>
    %302 = arith.maximumf %253, %301 : vector<8x32xf32>
    %c5_i32 = arith.constant 5 : i32
    %303 = arith.truncf %292 : vector<8x32xf32> to vector<8x32xbf16>
    %cst_143 = arith.constant dense<0.000000e+00> : vector<8x32xf32>
    %304 = tpu.matmul %303, %45, %cst_143 {dimension_numbers = #tpu.dot_dimension_numbers<[1], [0], [0], [1], [0, 0, 1, 1], [], []>} : vector<8x32xbf16>, vector<32x32xbf16>, vector<8x32xf32> -> vector<8x32xf32>
    %305 = vector.broadcast %51 : vector<1x32xf32> to vector<8x32xf32>
    %306 = arith.addf %304, %305 : vector<8x32xf32>
    %cst_144 = arith.constant dense<0.000000e+00> : vector<8x32xf32>
    %307 = tpu.matmul %303, %47, %cst_144 {dimension_numbers = #tpu.dot_dimension_numbers<[1], [0], [0], [1], [0, 0, 1, 1], [], []>} : vector<8x32xbf16>, vector<32x32xbf16>, vector<8x32xf32> -> vector<8x32xf32>
    %308 = vector.broadcast %53 : vector<1x32xf32> to vector<8x32xf32>
    %309 = arith.addf %307, %308 : vector<8x32xf32>
    %cst_145 = arith.constant dense<0.000000e+00> : vector<8x32xf32>
    %310 = tpu.matmul %303, %49, %cst_145 {dimension_numbers = #tpu.dot_dimension_numbers<[1], [0], [0], [1], [0, 0, 1, 1], [], []>} : vector<8x32xbf16>, vector<32x32xbf16>, vector<8x32xf32> -> vector<8x32xf32>
    %311 = vector.broadcast %55 : vector<1x32xf32> to vector<8x32xf32>
    %312 = arith.addf %310, %311 : vector<8x32xf32>
    %313 = arith.index_cast %c5_i32 : i32 to index
    %c0_146 = arith.constant 0 : index
    %c0_147 = arith.constant 0 : index
    %314 = vector.load %arg13[%313, %c0_146, %c0_147] : memref<16x8x32xf32, #tpu.memory_space<vmem>>, vector<1x8x32xf32>
    %315 = vector.shape_cast %314 : vector<1x8x32xf32> to vector<8x32xf32>
    %316 = arith.addf %315, %306 : vector<8x32xf32>
    %317 = arith.negf %316 : vector<8x32xf32>
    %318 = math.exp %317 : vector<8x32xf32>
    %cst_148 = arith.constant 1.000000e+00 : f32
    %319 = vector.broadcast %cst_148 : f32 to vector<8x32xf32>
    %320 = arith.addf %319, %318 : vector<8x32xf32>
    %321 = arith.divf %319, %320 : vector<8x32xf32>
    %322 = arith.index_cast %c5_i32 : i32 to index
    %c0_149 = arith.constant 0 : index
    %c0_150 = arith.constant 0 : index
    %323 = vector.load %arg14[%322, %c0_149, %c0_150] : memref<16x8x32xf32, #tpu.memory_space<vmem>>, vector<1x8x32xf32>
    %324 = vector.shape_cast %323 : vector<1x8x32xf32> to vector<8x32xf32>
    %325 = arith.addf %324, %309 : vector<8x32xf32>
    %326 = arith.negf %325 : vector<8x32xf32>
    %327 = math.exp %326 : vector<8x32xf32>
    %cst_151 = arith.constant 1.000000e+00 : f32
    %328 = vector.broadcast %cst_151 : f32 to vector<8x32xf32>
    %329 = arith.addf %328, %327 : vector<8x32xf32>
    %330 = arith.divf %328, %329 : vector<8x32xf32>
    %331 = arith.index_cast %c5_i32 : i32 to index
    %c0_152 = arith.constant 0 : index
    %c0_153 = arith.constant 0 : index
    %332 = vector.load %arg15[%331, %c0_152, %c0_153] : memref<16x8x32xf32, #tpu.memory_space<vmem>>, vector<1x8x32xf32>
    %333 = vector.shape_cast %332 : vector<1x8x32xf32> to vector<8x32xf32>
    %334 = arith.mulf %321, %312 : vector<8x32xf32>
    %335 = arith.addf %333, %334 : vector<8x32xf32>
    %336 = math.tanh %335 : vector<8x32xf32>
    %cst_154 = arith.constant 1.000000e+00 : f32
    %337 = vector.broadcast %cst_154 : f32 to vector<8x32xf32>
    %338 = arith.subf %337, %330 : vector<8x32xf32>
    %339 = arith.mulf %338, %336 : vector<8x32xf32>
    %340 = arith.mulf %330, %292 : vector<8x32xf32>
    %341 = arith.addf %339, %340 : vector<8x32xf32>
    %342 = arith.index_cast %c5_i32 : i32 to index
    %c0_155 = arith.constant 0 : index
    %c0_156 = arith.constant 0 : index
    %343 = vector.load %arg2[%342, %c0_155, %c0_156] : memref<16x8x1xf32, #tpu.memory_space<vmem>>, vector<1x8x1xf32>
    %344 = vector.shape_cast %343 : vector<1x8x1xf32> to vector<8x1xf32>
    %cst_157 = arith.constant 5.000000e-01 : f32
    %345 = vector.broadcast %cst_157 : f32 to vector<8x1xf32>
    %346 = arith.cmpf ogt, %344, %345 : vector<8x1xf32>
    %cst_158 = arith.constant -9.99999995E+11 : f32
    %347 = vector.shape_cast %346 : vector<8x1xi1> to vector<8x1xi1>
    %348 = vector.broadcast %347 : vector<8x1xi1> to vector<8x32xi1>
    %349 = vector.broadcast %cst_158 : f32 to vector<8x32xf32>
    %350 = arith.select %348, %349, %341 : vector<8x32xi1>, vector<8x32xf32>
    %351 = arith.maximumf %302, %350 : vector<8x32xf32>
    %c6_i32 = arith.constant 6 : i32
    %352 = arith.truncf %341 : vector<8x32xf32> to vector<8x32xbf16>
    %cst_159 = arith.constant dense<0.000000e+00> : vector<8x32xf32>
    %353 = tpu.matmul %352, %45, %cst_159 {dimension_numbers = #tpu.dot_dimension_numbers<[1], [0], [0], [1], [0, 0, 1, 1], [], []>} : vector<8x32xbf16>, vector<32x32xbf16>, vector<8x32xf32> -> vector<8x32xf32>
    %354 = vector.broadcast %51 : vector<1x32xf32> to vector<8x32xf32>
    %355 = arith.addf %353, %354 : vector<8x32xf32>
    %cst_160 = arith.constant dense<0.000000e+00> : vector<8x32xf32>
    %356 = tpu.matmul %352, %47, %cst_160 {dimension_numbers = #tpu.dot_dimension_numbers<[1], [0], [0], [1], [0, 0, 1, 1], [], []>} : vector<8x32xbf16>, vector<32x32xbf16>, vector<8x32xf32> -> vector<8x32xf32>
    %357 = vector.broadcast %53 : vector<1x32xf32> to vector<8x32xf32>
    %358 = arith.addf %356, %357 : vector<8x32xf32>
    %cst_161 = arith.constant dense<0.000000e+00> : vector<8x32xf32>
    %359 = tpu.matmul %352, %49, %cst_161 {dimension_numbers = #tpu.dot_dimension_numbers<[1], [0], [0], [1], [0, 0, 1, 1], [], []>} : vector<8x32xbf16>, vector<32x32xbf16>, vector<8x32xf32> -> vector<8x32xf32>
    %360 = vector.broadcast %55 : vector<1x32xf32> to vector<8x32xf32>
    %361 = arith.addf %359, %360 : vector<8x32xf32>
    %362 = arith.index_cast %c6_i32 : i32 to index
    %c0_162 = arith.constant 0 : index
    %c0_163 = arith.constant 0 : index
    %363 = vector.load %arg13[%362, %c0_162, %c0_163] : memref<16x8x32xf32, #tpu.memory_space<vmem>>, vector<1x8x32xf32>
    %364 = vector.shape_cast %363 : vector<1x8x32xf32> to vector<8x32xf32>
    %365 = arith.addf %364, %355 : vector<8x32xf32>
    %366 = arith.negf %365 : vector<8x32xf32>
    %367 = math.exp %366 : vector<8x32xf32>
    %cst_164 = arith.constant 1.000000e+00 : f32
    %368 = vector.broadcast %cst_164 : f32 to vector<8x32xf32>
    %369 = arith.addf %368, %367 : vector<8x32xf32>
    %370 = arith.divf %368, %369 : vector<8x32xf32>
    %371 = arith.index_cast %c6_i32 : i32 to index
    %c0_165 = arith.constant 0 : index
    %c0_166 = arith.constant 0 : index
    %372 = vector.load %arg14[%371, %c0_165, %c0_166] : memref<16x8x32xf32, #tpu.memory_space<vmem>>, vector<1x8x32xf32>
    %373 = vector.shape_cast %372 : vector<1x8x32xf32> to vector<8x32xf32>
    %374 = arith.addf %373, %358 : vector<8x32xf32>
    %375 = arith.negf %374 : vector<8x32xf32>
    %376 = math.exp %375 : vector<8x32xf32>
    %cst_167 = arith.constant 1.000000e+00 : f32
    %377 = vector.broadcast %cst_167 : f32 to vector<8x32xf32>
    %378 = arith.addf %377, %376 : vector<8x32xf32>
    %379 = arith.divf %377, %378 : vector<8x32xf32>
    %380 = arith.index_cast %c6_i32 : i32 to index
    %c0_168 = arith.constant 0 : index
    %c0_169 = arith.constant 0 : index
    %381 = vector.load %arg15[%380, %c0_168, %c0_169] : memref<16x8x32xf32, #tpu.memory_space<vmem>>, vector<1x8x32xf32>
    %382 = vector.shape_cast %381 : vector<1x8x32xf32> to vector<8x32xf32>
    %383 = arith.mulf %370, %361 : vector<8x32xf32>
    %384 = arith.addf %382, %383 : vector<8x32xf32>
    %385 = math.tanh %384 : vector<8x32xf32>
    %cst_170 = arith.constant 1.000000e+00 : f32
    %386 = vector.broadcast %cst_170 : f32 to vector<8x32xf32>
    %387 = arith.subf %386, %379 : vector<8x32xf32>
    %388 = arith.mulf %387, %385 : vector<8x32xf32>
    %389 = arith.mulf %379, %341 : vector<8x32xf32>
    %390 = arith.addf %388, %389 : vector<8x32xf32>
    %391 = arith.index_cast %c6_i32 : i32 to index
    %c0_171 = arith.constant 0 : index
    %c0_172 = arith.constant 0 : index
    %392 = vector.load %arg2[%391, %c0_171, %c0_172] : memref<16x8x1xf32, #tpu.memory_space<vmem>>, vector<1x8x1xf32>
    %393 = vector.shape_cast %392 : vector<1x8x1xf32> to vector<8x1xf32>
    %cst_173 = arith.constant 5.000000e-01 : f32
    %394 = vector.broadcast %cst_173 : f32 to vector<8x1xf32>
    %395 = arith.cmpf ogt, %393, %394 : vector<8x1xf32>
    %cst_174 = arith.constant -9.99999995E+11 : f32
    %396 = vector.shape_cast %395 : vector<8x1xi1> to vector<8x1xi1>
    %397 = vector.broadcast %396 : vector<8x1xi1> to vector<8x32xi1>
    %398 = vector.broadcast %cst_174 : f32 to vector<8x32xf32>
    %399 = arith.select %397, %398, %390 : vector<8x32xi1>, vector<8x32xf32>
    %400 = arith.maximumf %351, %399 : vector<8x32xf32>
    %c7_i32 = arith.constant 7 : i32
    %401 = arith.truncf %390 : vector<8x32xf32> to vector<8x32xbf16>
    %cst_175 = arith.constant dense<0.000000e+00> : vector<8x32xf32>
    %402 = tpu.matmul %401, %45, %cst_175 {dimension_numbers = #tpu.dot_dimension_numbers<[1], [0], [0], [1], [0, 0, 1, 1], [], []>} : vector<8x32xbf16>, vector<32x32xbf16>, vector<8x32xf32> -> vector<8x32xf32>
    %403 = vector.broadcast %51 : vector<1x32xf32> to vector<8x32xf32>
    %404 = arith.addf %402, %403 : vector<8x32xf32>
    %cst_176 = arith.constant dense<0.000000e+00> : vector<8x32xf32>
    %405 = tpu.matmul %401, %47, %cst_176 {dimension_numbers = #tpu.dot_dimension_numbers<[1], [0], [0], [1], [0, 0, 1, 1], [], []>} : vector<8x32xbf16>, vector<32x32xbf16>, vector<8x32xf32> -> vector<8x32xf32>
    %406 = vector.broadcast %53 : vector<1x32xf32> to vector<8x32xf32>
    %407 = arith.addf %405, %406 : vector<8x32xf32>
    %cst_177 = arith.constant dense<0.000000e+00> : vector<8x32xf32>
    %408 = tpu.matmul %401, %49, %cst_177 {dimension_numbers = #tpu.dot_dimension_numbers<[1], [0], [0], [1], [0, 0, 1, 1], [], []>} : vector<8x32xbf16>, vector<32x32xbf16>, vector<8x32xf32> -> vector<8x32xf32>
    %409 = vector.broadcast %55 : vector<1x32xf32> to vector<8x32xf32>
    %410 = arith.addf %408, %409 : vector<8x32xf32>
    %411 = arith.index_cast %c7_i32 : i32 to index
    %c0_178 = arith.constant 0 : index
    %c0_179 = arith.constant 0 : index
    %412 = vector.load %arg13[%411, %c0_178, %c0_179] : memref<16x8x32xf32, #tpu.memory_space<vmem>>, vector<1x8x32xf32>
    %413 = vector.shape_cast %412 : vector<1x8x32xf32> to vector<8x32xf32>
    %414 = arith.addf %413, %404 : vector<8x32xf32>
    %415 = arith.negf %414 : vector<8x32xf32>
    %416 = math.exp %415 : vector<8x32xf32>
    %cst_180 = arith.constant 1.000000e+00 : f32
    %417 = vector.broadcast %cst_180 : f32 to vector<8x32xf32>
    %418 = arith.addf %417, %416 : vector<8x32xf32>
    %419 = arith.divf %417, %418 : vector<8x32xf32>
    %420 = arith.index_cast %c7_i32 : i32 to index
    %c0_181 = arith.constant 0 : index
    %c0_182 = arith.constant 0 : index
    %421 = vector.load %arg14[%420, %c0_181, %c0_182] : memref<16x8x32xf32, #tpu.memory_space<vmem>>, vector<1x8x32xf32>
    %422 = vector.shape_cast %421 : vector<1x8x32xf32> to vector<8x32xf32>
    %423 = arith.addf %422, %407 : vector<8x32xf32>
    %424 = arith.negf %423 : vector<8x32xf32>
    %425 = math.exp %424 : vector<8x32xf32>
    %cst_183 = arith.constant 1.000000e+00 : f32
    %426 = vector.broadcast %cst_183 : f32 to vector<8x32xf32>
    %427 = arith.addf %426, %425 : vector<8x32xf32>
    %428 = arith.divf %426, %427 : vector<8x32xf32>
    %429 = arith.index_cast %c7_i32 : i32 to index
    %c0_184 = arith.constant 0 : index
    %c0_185 = arith.constant 0 : index
    %430 = vector.load %arg15[%429, %c0_184, %c0_185] : memref<16x8x32xf32, #tpu.memory_space<vmem>>, vector<1x8x32xf32>
    %431 = vector.shape_cast %430 : vector<1x8x32xf32> to vector<8x32xf32>
    %432 = arith.mulf %419, %410 : vector<8x32xf32>
    %433 = arith.addf %431, %432 : vector<8x32xf32>
    %434 = math.tanh %433 : vector<8x32xf32>
    %cst_186 = arith.constant 1.000000e+00 : f32
    %435 = vector.broadcast %cst_186 : f32 to vector<8x32xf32>
    %436 = arith.subf %435, %428 : vector<8x32xf32>
    %437 = arith.mulf %436, %434 : vector<8x32xf32>
    %438 = arith.mulf %428, %390 : vector<8x32xf32>
    %439 = arith.addf %437, %438 : vector<8x32xf32>
    %440 = arith.index_cast %c7_i32 : i32 to index
    %c0_187 = arith.constant 0 : index
    %c0_188 = arith.constant 0 : index
    %441 = vector.load %arg2[%440, %c0_187, %c0_188] : memref<16x8x1xf32, #tpu.memory_space<vmem>>, vector<1x8x1xf32>
    %442 = vector.shape_cast %441 : vector<1x8x1xf32> to vector<8x1xf32>
    %cst_189 = arith.constant 5.000000e-01 : f32
    %443 = vector.broadcast %cst_189 : f32 to vector<8x1xf32>
    %444 = arith.cmpf ogt, %442, %443 : vector<8x1xf32>
    %cst_190 = arith.constant -9.99999995E+11 : f32
    %445 = vector.shape_cast %444 : vector<8x1xi1> to vector<8x1xi1>
    %446 = vector.broadcast %445 : vector<8x1xi1> to vector<8x32xi1>
    %447 = vector.broadcast %cst_190 : f32 to vector<8x32xf32>
    %448 = arith.select %446, %447, %439 : vector<8x32xi1>, vector<8x32xf32>
    %449 = arith.maximumf %400, %448 : vector<8x32xf32>
    %c8_i32 = arith.constant 8 : i32
    %450 = arith.truncf %439 : vector<8x32xf32> to vector<8x32xbf16>
    %cst_191 = arith.constant dense<0.000000e+00> : vector<8x32xf32>
    %451 = tpu.matmul %450, %45, %cst_191 {dimension_numbers = #tpu.dot_dimension_numbers<[1], [0], [0], [1], [0, 0, 1, 1], [], []>} : vector<8x32xbf16>, vector<32x32xbf16>, vector<8x32xf32> -> vector<8x32xf32>
    %452 = vector.broadcast %51 : vector<1x32xf32> to vector<8x32xf32>
    %453 = arith.addf %451, %452 : vector<8x32xf32>
    %cst_192 = arith.constant dense<0.000000e+00> : vector<8x32xf32>
    %454 = tpu.matmul %450, %47, %cst_192 {dimension_numbers = #tpu.dot_dimension_numbers<[1], [0], [0], [1], [0, 0, 1, 1], [], []>} : vector<8x32xbf16>, vector<32x32xbf16>, vector<8x32xf32> -> vector<8x32xf32>
    %455 = vector.broadcast %53 : vector<1x32xf32> to vector<8x32xf32>
    %456 = arith.addf %454, %455 : vector<8x32xf32>
    %cst_193 = arith.constant dense<0.000000e+00> : vector<8x32xf32>
    %457 = tpu.matmul %450, %49, %cst_193 {dimension_numbers = #tpu.dot_dimension_numbers<[1], [0], [0], [1], [0, 0, 1, 1], [], []>} : vector<8x32xbf16>, vector<32x32xbf16>, vector<8x32xf32> -> vector<8x32xf32>
    %458 = vector.broadcast %55 : vector<1x32xf32> to vector<8x32xf32>
    %459 = arith.addf %457, %458 : vector<8x32xf32>
    %460 = arith.index_cast %c8_i32 : i32 to index
    %c0_194 = arith.constant 0 : index
    %c0_195 = arith.constant 0 : index
    %461 = vector.load %arg13[%460, %c0_194, %c0_195] : memref<16x8x32xf32, #tpu.memory_space<vmem>>, vector<1x8x32xf32>
    %462 = vector.shape_cast %461 : vector<1x8x32xf32> to vector<8x32xf32>
    %463 = arith.addf %462, %453 : vector<8x32xf32>
    %464 = arith.negf %463 : vector<8x32xf32>
    %465 = math.exp %464 : vector<8x32xf32>
    %cst_196 = arith.constant 1.000000e+00 : f32
    %466 = vector.broadcast %cst_196 : f32 to vector<8x32xf32>
    %467 = arith.addf %466, %465 : vector<8x32xf32>
    %468 = arith.divf %466, %467 : vector<8x32xf32>
    %469 = arith.index_cast %c8_i32 : i32 to index
    %c0_197 = arith.constant 0 : index
    %c0_198 = arith.constant 0 : index
    %470 = vector.load %arg14[%469, %c0_197, %c0_198] : memref<16x8x32xf32, #tpu.memory_space<vmem>>, vector<1x8x32xf32>
    %471 = vector.shape_cast %470 : vector<1x8x32xf32> to vector<8x32xf32>
    %472 = arith.addf %471, %456 : vector<8x32xf32>
    %473 = arith.negf %472 : vector<8x32xf32>
    %474 = math.exp %473 : vector<8x32xf32>
    %cst_199 = arith.constant 1.000000e+00 : f32
    %475 = vector.broadcast %cst_199 : f32 to vector<8x32xf32>
    %476 = arith.addf %475, %474 : vector<8x32xf32>
    %477 = arith.divf %475, %476 : vector<8x32xf32>
    %478 = arith.index_cast %c8_i32 : i32 to index
    %c0_200 = arith.constant 0 : index
    %c0_201 = arith.constant 0 : index
    %479 = vector.load %arg15[%478, %c0_200, %c0_201] : memref<16x8x32xf32, #tpu.memory_space<vmem>>, vector<1x8x32xf32>
    %480 = vector.shape_cast %479 : vector<1x8x32xf32> to vector<8x32xf32>
    %481 = arith.mulf %468, %459 : vector<8x32xf32>
    %482 = arith.addf %480, %481 : vector<8x32xf32>
    %483 = math.tanh %482 : vector<8x32xf32>
    %cst_202 = arith.constant 1.000000e+00 : f32
    %484 = vector.broadcast %cst_202 : f32 to vector<8x32xf32>
    %485 = arith.subf %484, %477 : vector<8x32xf32>
    %486 = arith.mulf %485, %483 : vector<8x32xf32>
    %487 = arith.mulf %477, %439 : vector<8x32xf32>
    %488 = arith.addf %486, %487 : vector<8x32xf32>
    %489 = arith.index_cast %c8_i32 : i32 to index
    %c0_203 = arith.constant 0 : index
    %c0_204 = arith.constant 0 : index
    %490 = vector.load %arg2[%489, %c0_203, %c0_204] : memref<16x8x1xf32, #tpu.memory_space<vmem>>, vector<1x8x1xf32>
    %491 = vector.shape_cast %490 : vector<1x8x1xf32> to vector<8x1xf32>
    %cst_205 = arith.constant 5.000000e-01 : f32
    %492 = vector.broadcast %cst_205 : f32 to vector<8x1xf32>
    %493 = arith.cmpf ogt, %491, %492 : vector<8x1xf32>
    %cst_206 = arith.constant -9.99999995E+11 : f32
    %494 = vector.shape_cast %493 : vector<8x1xi1> to vector<8x1xi1>
    %495 = vector.broadcast %494 : vector<8x1xi1> to vector<8x32xi1>
    %496 = vector.broadcast %cst_206 : f32 to vector<8x32xf32>
    %497 = arith.select %495, %496, %488 : vector<8x32xi1>, vector<8x32xf32>
    %498 = arith.maximumf %449, %497 : vector<8x32xf32>
    %c9_i32 = arith.constant 9 : i32
    %499 = arith.truncf %488 : vector<8x32xf32> to vector<8x32xbf16>
    %cst_207 = arith.constant dense<0.000000e+00> : vector<8x32xf32>
    %500 = tpu.matmul %499, %45, %cst_207 {dimension_numbers = #tpu.dot_dimension_numbers<[1], [0], [0], [1], [0, 0, 1, 1], [], []>} : vector<8x32xbf16>, vector<32x32xbf16>, vector<8x32xf32> -> vector<8x32xf32>
    %501 = vector.broadcast %51 : vector<1x32xf32> to vector<8x32xf32>
    %502 = arith.addf %500, %501 : vector<8x32xf32>
    %cst_208 = arith.constant dense<0.000000e+00> : vector<8x32xf32>
    %503 = tpu.matmul %499, %47, %cst_208 {dimension_numbers = #tpu.dot_dimension_numbers<[1], [0], [0], [1], [0, 0, 1, 1], [], []>} : vector<8x32xbf16>, vector<32x32xbf16>, vector<8x32xf32> -> vector<8x32xf32>
    %504 = vector.broadcast %53 : vector<1x32xf32> to vector<8x32xf32>
    %505 = arith.addf %503, %504 : vector<8x32xf32>
    %cst_209 = arith.constant dense<0.000000e+00> : vector<8x32xf32>
    %506 = tpu.matmul %499, %49, %cst_209 {dimension_numbers = #tpu.dot_dimension_numbers<[1], [0], [0], [1], [0, 0, 1, 1], [], []>} : vector<8x32xbf16>, vector<32x32xbf16>, vector<8x32xf32> -> vector<8x32xf32>
    %507 = vector.broadcast %55 : vector<1x32xf32> to vector<8x32xf32>
    %508 = arith.addf %506, %507 : vector<8x32xf32>
    %509 = arith.index_cast %c9_i32 : i32 to index
    %c0_210 = arith.constant 0 : index
    %c0_211 = arith.constant 0 : index
    %510 = vector.load %arg13[%509, %c0_210, %c0_211] : memref<16x8x32xf32, #tpu.memory_space<vmem>>, vector<1x8x32xf32>
    %511 = vector.shape_cast %510 : vector<1x8x32xf32> to vector<8x32xf32>
    %512 = arith.addf %511, %502 : vector<8x32xf32>
    %513 = arith.negf %512 : vector<8x32xf32>
    %514 = math.exp %513 : vector<8x32xf32>
    %cst_212 = arith.constant 1.000000e+00 : f32
    %515 = vector.broadcast %cst_212 : f32 to vector<8x32xf32>
    %516 = arith.addf %515, %514 : vector<8x32xf32>
    %517 = arith.divf %515, %516 : vector<8x32xf32>
    %518 = arith.index_cast %c9_i32 : i32 to index
    %c0_213 = arith.constant 0 : index
    %c0_214 = arith.constant 0 : index
    %519 = vector.load %arg14[%518, %c0_213, %c0_214] : memref<16x8x32xf32, #tpu.memory_space<vmem>>, vector<1x8x32xf32>
    %520 = vector.shape_cast %519 : vector<1x8x32xf32> to vector<8x32xf32>
    %521 = arith.addf %520, %505 : vector<8x32xf32>
    %522 = arith.negf %521 : vector<8x32xf32>
    %523 = math.exp %522 : vector<8x32xf32>
    %cst_215 = arith.constant 1.000000e+00 : f32
    %524 = vector.broadcast %cst_215 : f32 to vector<8x32xf32>
    %525 = arith.addf %524, %523 : vector<8x32xf32>
    %526 = arith.divf %524, %525 : vector<8x32xf32>
    %527 = arith.index_cast %c9_i32 : i32 to index
    %c0_216 = arith.constant 0 : index
    %c0_217 = arith.constant 0 : index
    %528 = vector.load %arg15[%527, %c0_216, %c0_217] : memref<16x8x32xf32, #tpu.memory_space<vmem>>, vector<1x8x32xf32>
    %529 = vector.shape_cast %528 : vector<1x8x32xf32> to vector<8x32xf32>
    %530 = arith.mulf %517, %508 : vector<8x32xf32>
    %531 = arith.addf %529, %530 : vector<8x32xf32>
    %532 = math.tanh %531 : vector<8x32xf32>
    %cst_218 = arith.constant 1.000000e+00 : f32
    %533 = vector.broadcast %cst_218 : f32 to vector<8x32xf32>
    %534 = arith.subf %533, %526 : vector<8x32xf32>
    %535 = arith.mulf %534, %532 : vector<8x32xf32>
    %536 = arith.mulf %526, %488 : vector<8x32xf32>
    %537 = arith.addf %535, %536 : vector<8x32xf32>
    %538 = arith.index_cast %c9_i32 : i32 to index
    %c0_219 = arith.constant 0 : index
    %c0_220 = arith.constant 0 : index
    %539 = vector.load %arg2[%538, %c0_219, %c0_220] : memref<16x8x1xf32, #tpu.memory_space<vmem>>, vector<1x8x1xf32>
    %540 = vector.shape_cast %539 : vector<1x8x1xf32> to vector<8x1xf32>
    %cst_221 = arith.constant 5.000000e-01 : f32
    %541 = vector.broadcast %cst_221 : f32 to vector<8x1xf32>
    %542 = arith.cmpf ogt, %540, %541 : vector<8x1xf32>
    %cst_222 = arith.constant -9.99999995E+11 : f32
    %543 = vector.shape_cast %542 : vector<8x1xi1> to vector<8x1xi1>
    %544 = vector.broadcast %543 : vector<8x1xi1> to vector<8x32xi1>
    %545 = vector.broadcast %cst_222 : f32 to vector<8x32xf32>
    %546 = arith.select %544, %545, %537 : vector<8x32xi1>, vector<8x32xf32>
    %547 = arith.maximumf %498, %546 : vector<8x32xf32>
    %c10_i32 = arith.constant 10 : i32
    %548 = arith.truncf %537 : vector<8x32xf32> to vector<8x32xbf16>
    %cst_223 = arith.constant dense<0.000000e+00> : vector<8x32xf32>
    %549 = tpu.matmul %548, %45, %cst_223 {dimension_numbers = #tpu.dot_dimension_numbers<[1], [0], [0], [1], [0, 0, 1, 1], [], []>} : vector<8x32xbf16>, vector<32x32xbf16>, vector<8x32xf32> -> vector<8x32xf32>
    %550 = vector.broadcast %51 : vector<1x32xf32> to vector<8x32xf32>
    %551 = arith.addf %549, %550 : vector<8x32xf32>
    %cst_224 = arith.constant dense<0.000000e+00> : vector<8x32xf32>
    %552 = tpu.matmul %548, %47, %cst_224 {dimension_numbers = #tpu.dot_dimension_numbers<[1], [0], [0], [1], [0, 0, 1, 1], [], []>} : vector<8x32xbf16>, vector<32x32xbf16>, vector<8x32xf32> -> vector<8x32xf32>
    %553 = vector.broadcast %53 : vector<1x32xf32> to vector<8x32xf32>
    %554 = arith.addf %552, %553 : vector<8x32xf32>
    %cst_225 = arith.constant dense<0.000000e+00> : vector<8x32xf32>
    %555 = tpu.matmul %548, %49, %cst_225 {dimension_numbers = #tpu.dot_dimension_numbers<[1], [0], [0], [1], [0, 0, 1, 1], [], []>} : vector<8x32xbf16>, vector<32x32xbf16>, vector<8x32xf32> -> vector<8x32xf32>
    %556 = vector.broadcast %55 : vector<1x32xf32> to vector<8x32xf32>
    %557 = arith.addf %555, %556 : vector<8x32xf32>
    %558 = arith.index_cast %c10_i32 : i32 to index
    %c0_226 = arith.constant 0 : index
    %c0_227 = arith.constant 0 : index
    %559 = vector.load %arg13[%558, %c0_226, %c0_227] : memref<16x8x32xf32, #tpu.memory_space<vmem>>, vector<1x8x32xf32>
    %560 = vector.shape_cast %559 : vector<1x8x32xf32> to vector<8x32xf32>
    %561 = arith.addf %560, %551 : vector<8x32xf32>
    %562 = arith.negf %561 : vector<8x32xf32>
    %563 = math.exp %562 : vector<8x32xf32>
    %cst_228 = arith.constant 1.000000e+00 : f32
    %564 = vector.broadcast %cst_228 : f32 to vector<8x32xf32>
    %565 = arith.addf %564, %563 : vector<8x32xf32>
    %566 = arith.divf %564, %565 : vector<8x32xf32>
    %567 = arith.index_cast %c10_i32 : i32 to index
    %c0_229 = arith.constant 0 : index
    %c0_230 = arith.constant 0 : index
    %568 = vector.load %arg14[%567, %c0_229, %c0_230] : memref<16x8x32xf32, #tpu.memory_space<vmem>>, vector<1x8x32xf32>
    %569 = vector.shape_cast %568 : vector<1x8x32xf32> to vector<8x32xf32>
    %570 = arith.addf %569, %554 : vector<8x32xf32>
    %571 = arith.negf %570 : vector<8x32xf32>
    %572 = math.exp %571 : vector<8x32xf32>
    %cst_231 = arith.constant 1.000000e+00 : f32
    %573 = vector.broadcast %cst_231 : f32 to vector<8x32xf32>
    %574 = arith.addf %573, %572 : vector<8x32xf32>
    %575 = arith.divf %573, %574 : vector<8x32xf32>
    %576 = arith.index_cast %c10_i32 : i32 to index
    %c0_232 = arith.constant 0 : index
    %c0_233 = arith.constant 0 : index
    %577 = vector.load %arg15[%576, %c0_232, %c0_233] : memref<16x8x32xf32, #tpu.memory_space<vmem>>, vector<1x8x32xf32>
    %578 = vector.shape_cast %577 : vector<1x8x32xf32> to vector<8x32xf32>
    %579 = arith.mulf %566, %557 : vector<8x32xf32>
    %580 = arith.addf %578, %579 : vector<8x32xf32>
    %581 = math.tanh %580 : vector<8x32xf32>
    %cst_234 = arith.constant 1.000000e+00 : f32
    %582 = vector.broadcast %cst_234 : f32 to vector<8x32xf32>
    %583 = arith.subf %582, %575 : vector<8x32xf32>
    %584 = arith.mulf %583, %581 : vector<8x32xf32>
    %585 = arith.mulf %575, %537 : vector<8x32xf32>
    %586 = arith.addf %584, %585 : vector<8x32xf32>
    %587 = arith.index_cast %c10_i32 : i32 to index
    %c0_235 = arith.constant 0 : index
    %c0_236 = arith.constant 0 : index
    %588 = vector.load %arg2[%587, %c0_235, %c0_236] : memref<16x8x1xf32, #tpu.memory_space<vmem>>, vector<1x8x1xf32>
    %589 = vector.shape_cast %588 : vector<1x8x1xf32> to vector<8x1xf32>
    %cst_237 = arith.constant 5.000000e-01 : f32
    %590 = vector.broadcast %cst_237 : f32 to vector<8x1xf32>
    %591 = arith.cmpf ogt, %589, %590 : vector<8x1xf32>
    %cst_238 = arith.constant -9.99999995E+11 : f32
    %592 = vector.shape_cast %591 : vector<8x1xi1> to vector<8x1xi1>
    %593 = vector.broadcast %592 : vector<8x1xi1> to vector<8x32xi1>
    %594 = vector.broadcast %cst_238 : f32 to vector<8x32xf32>
    %595 = arith.select %593, %594, %586 : vector<8x32xi1>, vector<8x32xf32>
    %596 = arith.maximumf %547, %595 : vector<8x32xf32>
    %c11_i32 = arith.constant 11 : i32
    %597 = arith.truncf %586 : vector<8x32xf32> to vector<8x32xbf16>
    %cst_239 = arith.constant dense<0.000000e+00> : vector<8x32xf32>
    %598 = tpu.matmul %597, %45, %cst_239 {dimension_numbers = #tpu.dot_dimension_numbers<[1], [0], [0], [1], [0, 0, 1, 1], [], []>} : vector<8x32xbf16>, vector<32x32xbf16>, vector<8x32xf32> -> vector<8x32xf32>
    %599 = vector.broadcast %51 : vector<1x32xf32> to vector<8x32xf32>
    %600 = arith.addf %598, %599 : vector<8x32xf32>
    %cst_240 = arith.constant dense<0.000000e+00> : vector<8x32xf32>
    %601 = tpu.matmul %597, %47, %cst_240 {dimension_numbers = #tpu.dot_dimension_numbers<[1], [0], [0], [1], [0, 0, 1, 1], [], []>} : vector<8x32xbf16>, vector<32x32xbf16>, vector<8x32xf32> -> vector<8x32xf32>
    %602 = vector.broadcast %53 : vector<1x32xf32> to vector<8x32xf32>
    %603 = arith.addf %601, %602 : vector<8x32xf32>
    %cst_241 = arith.constant dense<0.000000e+00> : vector<8x32xf32>
    %604 = tpu.matmul %597, %49, %cst_241 {dimension_numbers = #tpu.dot_dimension_numbers<[1], [0], [0], [1], [0, 0, 1, 1], [], []>} : vector<8x32xbf16>, vector<32x32xbf16>, vector<8x32xf32> -> vector<8x32xf32>
    %605 = vector.broadcast %55 : vector<1x32xf32> to vector<8x32xf32>
    %606 = arith.addf %604, %605 : vector<8x32xf32>
    %607 = arith.index_cast %c11_i32 : i32 to index
    %c0_242 = arith.constant 0 : index
    %c0_243 = arith.constant 0 : index
    %608 = vector.load %arg13[%607, %c0_242, %c0_243] : memref<16x8x32xf32, #tpu.memory_space<vmem>>, vector<1x8x32xf32>
    %609 = vector.shape_cast %608 : vector<1x8x32xf32> to vector<8x32xf32>
    %610 = arith.addf %609, %600 : vector<8x32xf32>
    %611 = arith.negf %610 : vector<8x32xf32>
    %612 = math.exp %611 : vector<8x32xf32>
    %cst_244 = arith.constant 1.000000e+00 : f32
    %613 = vector.broadcast %cst_244 : f32 to vector<8x32xf32>
    %614 = arith.addf %613, %612 : vector<8x32xf32>
    %615 = arith.divf %613, %614 : vector<8x32xf32>
    %616 = arith.index_cast %c11_i32 : i32 to index
    %c0_245 = arith.constant 0 : index
    %c0_246 = arith.constant 0 : index
    %617 = vector.load %arg14[%616, %c0_245, %c0_246] : memref<16x8x32xf32, #tpu.memory_space<vmem>>, vector<1x8x32xf32>
    %618 = vector.shape_cast %617 : vector<1x8x32xf32> to vector<8x32xf32>
    %619 = arith.addf %618, %603 : vector<8x32xf32>
    %620 = arith.negf %619 : vector<8x32xf32>
    %621 = math.exp %620 : vector<8x32xf32>
    %cst_247 = arith.constant 1.000000e+00 : f32
    %622 = vector.broadcast %cst_247 : f32 to vector<8x32xf32>
    %623 = arith.addf %622, %621 : vector<8x32xf32>
    %624 = arith.divf %622, %623 : vector<8x32xf32>
    %625 = arith.index_cast %c11_i32 : i32 to index
    %c0_248 = arith.constant 0 : index
    %c0_249 = arith.constant 0 : index
    %626 = vector.load %arg15[%625, %c0_248, %c0_249] : memref<16x8x32xf32, #tpu.memory_space<vmem>>, vector<1x8x32xf32>
    %627 = vector.shape_cast %626 : vector<1x8x32xf32> to vector<8x32xf32>
    %628 = arith.mulf %615, %606 : vector<8x32xf32>
    %629 = arith.addf %627, %628 : vector<8x32xf32>
    %630 = math.tanh %629 : vector<8x32xf32>
    %cst_250 = arith.constant 1.000000e+00 : f32
    %631 = vector.broadcast %cst_250 : f32 to vector<8x32xf32>
    %632 = arith.subf %631, %624 : vector<8x32xf32>
    %633 = arith.mulf %632, %630 : vector<8x32xf32>
    %634 = arith.mulf %624, %586 : vector<8x32xf32>
    %635 = arith.addf %633, %634 : vector<8x32xf32>
    %636 = arith.index_cast %c11_i32 : i32 to index
    %c0_251 = arith.constant 0 : index
    %c0_252 = arith.constant 0 : index
    %637 = vector.load %arg2[%636, %c0_251, %c0_252] : memref<16x8x1xf32, #tpu.memory_space<vmem>>, vector<1x8x1xf32>
    %638 = vector.shape_cast %637 : vector<1x8x1xf32> to vector<8x1xf32>
    %cst_253 = arith.constant 5.000000e-01 : f32
    %639 = vector.broadcast %cst_253 : f32 to vector<8x1xf32>
    %640 = arith.cmpf ogt, %638, %639 : vector<8x1xf32>
    %cst_254 = arith.constant -9.99999995E+11 : f32
    %641 = vector.shape_cast %640 : vector<8x1xi1> to vector<8x1xi1>
    %642 = vector.broadcast %641 : vector<8x1xi1> to vector<8x32xi1>
    %643 = vector.broadcast %cst_254 : f32 to vector<8x32xf32>
    %644 = arith.select %642, %643, %635 : vector<8x32xi1>, vector<8x32xf32>
    %645 = arith.maximumf %596, %644 : vector<8x32xf32>
    %c12_i32 = arith.constant 12 : i32
    %646 = arith.truncf %635 : vector<8x32xf32> to vector<8x32xbf16>
    %cst_255 = arith.constant dense<0.000000e+00> : vector<8x32xf32>
    %647 = tpu.matmul %646, %45, %cst_255 {dimension_numbers = #tpu.dot_dimension_numbers<[1], [0], [0], [1], [0, 0, 1, 1], [], []>} : vector<8x32xbf16>, vector<32x32xbf16>, vector<8x32xf32> -> vector<8x32xf32>
    %648 = vector.broadcast %51 : vector<1x32xf32> to vector<8x32xf32>
    %649 = arith.addf %647, %648 : vector<8x32xf32>
    %cst_256 = arith.constant dense<0.000000e+00> : vector<8x32xf32>
    %650 = tpu.matmul %646, %47, %cst_256 {dimension_numbers = #tpu.dot_dimension_numbers<[1], [0], [0], [1], [0, 0, 1, 1], [], []>} : vector<8x32xbf16>, vector<32x32xbf16>, vector<8x32xf32> -> vector<8x32xf32>
    %651 = vector.broadcast %53 : vector<1x32xf32> to vector<8x32xf32>
    %652 = arith.addf %650, %651 : vector<8x32xf32>
    %cst_257 = arith.constant dense<0.000000e+00> : vector<8x32xf32>
    %653 = tpu.matmul %646, %49, %cst_257 {dimension_numbers = #tpu.dot_dimension_numbers<[1], [0], [0], [1], [0, 0, 1, 1], [], []>} : vector<8x32xbf16>, vector<32x32xbf16>, vector<8x32xf32> -> vector<8x32xf32>
    %654 = vector.broadcast %55 : vector<1x32xf32> to vector<8x32xf32>
    %655 = arith.addf %653, %654 : vector<8x32xf32>
    %656 = arith.index_cast %c12_i32 : i32 to index
    %c0_258 = arith.constant 0 : index
    %c0_259 = arith.constant 0 : index
    %657 = vector.load %arg13[%656, %c0_258, %c0_259] : memref<16x8x32xf32, #tpu.memory_space<vmem>>, vector<1x8x32xf32>
    %658 = vector.shape_cast %657 : vector<1x8x32xf32> to vector<8x32xf32>
    %659 = arith.addf %658, %649 : vector<8x32xf32>
    %660 = arith.negf %659 : vector<8x32xf32>
    %661 = math.exp %660 : vector<8x32xf32>
    %cst_260 = arith.constant 1.000000e+00 : f32
    %662 = vector.broadcast %cst_260 : f32 to vector<8x32xf32>
    %663 = arith.addf %662, %661 : vector<8x32xf32>
    %664 = arith.divf %662, %663 : vector<8x32xf32>
    %665 = arith.index_cast %c12_i32 : i32 to index
    %c0_261 = arith.constant 0 : index
    %c0_262 = arith.constant 0 : index
    %666 = vector.load %arg14[%665, %c0_261, %c0_262] : memref<16x8x32xf32, #tpu.memory_space<vmem>>, vector<1x8x32xf32>
    %667 = vector.shape_cast %666 : vector<1x8x32xf32> to vector<8x32xf32>
    %668 = arith.addf %667, %652 : vector<8x32xf32>
    %669 = arith.negf %668 : vector<8x32xf32>
    %670 = math.exp %669 : vector<8x32xf32>
    %cst_263 = arith.constant 1.000000e+00 : f32
    %671 = vector.broadcast %cst_263 : f32 to vector<8x32xf32>
    %672 = arith.addf %671, %670 : vector<8x32xf32>
    %673 = arith.divf %671, %672 : vector<8x32xf32>
    %674 = arith.index_cast %c12_i32 : i32 to index
    %c0_264 = arith.constant 0 : index
    %c0_265 = arith.constant 0 : index
    %675 = vector.load %arg15[%674, %c0_264, %c0_265] : memref<16x8x32xf32, #tpu.memory_space<vmem>>, vector<1x8x32xf32>
    %676 = vector.shape_cast %675 : vector<1x8x32xf32> to vector<8x32xf32>
    %677 = arith.mulf %664, %655 : vector<8x32xf32>
    %678 = arith.addf %676, %677 : vector<8x32xf32>
    %679 = math.tanh %678 : vector<8x32xf32>
    %cst_266 = arith.constant 1.000000e+00 : f32
    %680 = vector.broadcast %cst_266 : f32 to vector<8x32xf32>
    %681 = arith.subf %680, %673 : vector<8x32xf32>
    %682 = arith.mulf %681, %679 : vector<8x32xf32>
    %683 = arith.mulf %673, %635 : vector<8x32xf32>
    %684 = arith.addf %682, %683 : vector<8x32xf32>
    %685 = arith.index_cast %c12_i32 : i32 to index
    %c0_267 = arith.constant 0 : index
    %c0_268 = arith.constant 0 : index
    %686 = vector.load %arg2[%685, %c0_267, %c0_268] : memref<16x8x1xf32, #tpu.memory_space<vmem>>, vector<1x8x1xf32>
    %687 = vector.shape_cast %686 : vector<1x8x1xf32> to vector<8x1xf32>
    %cst_269 = arith.constant 5.000000e-01 : f32
    %688 = vector.broadcast %cst_269 : f32 to vector<8x1xf32>
    %689 = arith.cmpf ogt, %687, %688 : vector<8x1xf32>
    %cst_270 = arith.constant -9.99999995E+11 : f32
    %690 = vector.shape_cast %689 : vector<8x1xi1> to vector<8x1xi1>
    %691 = vector.broadcast %690 : vector<8x1xi1> to vector<8x32xi1>
    %692 = vector.broadcast %cst_270 : f32 to vector<8x32xf32>
    %693 = arith.select %691, %692, %684 : vector<8x32xi1>, vector<8x32xf32>
    %694 = arith.maximumf %645, %693 : vector<8x32xf32>
    %c13_i32 = arith.constant 13 : i32
    %695 = arith.truncf %684 : vector<8x32xf32> to vector<8x32xbf16>
    %cst_271 = arith.constant dense<0.000000e+00> : vector<8x32xf32>
    %696 = tpu.matmul %695, %45, %cst_271 {dimension_numbers = #tpu.dot_dimension_numbers<[1], [0], [0], [1], [0, 0, 1, 1], [], []>} : vector<8x32xbf16>, vector<32x32xbf16>, vector<8x32xf32> -> vector<8x32xf32>
    %697 = vector.broadcast %51 : vector<1x32xf32> to vector<8x32xf32>
    %698 = arith.addf %696, %697 : vector<8x32xf32>
    %cst_272 = arith.constant dense<0.000000e+00> : vector<8x32xf32>
    %699 = tpu.matmul %695, %47, %cst_272 {dimension_numbers = #tpu.dot_dimension_numbers<[1], [0], [0], [1], [0, 0, 1, 1], [], []>} : vector<8x32xbf16>, vector<32x32xbf16>, vector<8x32xf32> -> vector<8x32xf32>
    %700 = vector.broadcast %53 : vector<1x32xf32> to vector<8x32xf32>
    %701 = arith.addf %699, %700 : vector<8x32xf32>
    %cst_273 = arith.constant dense<0.000000e+00> : vector<8x32xf32>
    %702 = tpu.matmul %695, %49, %cst_273 {dimension_numbers = #tpu.dot_dimension_numbers<[1], [0], [0], [1], [0, 0, 1, 1], [], []>} : vector<8x32xbf16>, vector<32x32xbf16>, vector<8x32xf32> -> vector<8x32xf32>
    %703 = vector.broadcast %55 : vector<1x32xf32> to vector<8x32xf32>
    %704 = arith.addf %702, %703 : vector<8x32xf32>
    %705 = arith.index_cast %c13_i32 : i32 to index
    %c0_274 = arith.constant 0 : index
    %c0_275 = arith.constant 0 : index
    %706 = vector.load %arg13[%705, %c0_274, %c0_275] : memref<16x8x32xf32, #tpu.memory_space<vmem>>, vector<1x8x32xf32>
    %707 = vector.shape_cast %706 : vector<1x8x32xf32> to vector<8x32xf32>
    %708 = arith.addf %707, %698 : vector<8x32xf32>
    %709 = arith.negf %708 : vector<8x32xf32>
    %710 = math.exp %709 : vector<8x32xf32>
    %cst_276 = arith.constant 1.000000e+00 : f32
    %711 = vector.broadcast %cst_276 : f32 to vector<8x32xf32>
    %712 = arith.addf %711, %710 : vector<8x32xf32>
    %713 = arith.divf %711, %712 : vector<8x32xf32>
    %714 = arith.index_cast %c13_i32 : i32 to index
    %c0_277 = arith.constant 0 : index
    %c0_278 = arith.constant 0 : index
    %715 = vector.load %arg14[%714, %c0_277, %c0_278] : memref<16x8x32xf32, #tpu.memory_space<vmem>>, vector<1x8x32xf32>
    %716 = vector.shape_cast %715 : vector<1x8x32xf32> to vector<8x32xf32>
    %717 = arith.addf %716, %701 : vector<8x32xf32>
    %718 = arith.negf %717 : vector<8x32xf32>
    %719 = math.exp %718 : vector<8x32xf32>
    %cst_279 = arith.constant 1.000000e+00 : f32
    %720 = vector.broadcast %cst_279 : f32 to vector<8x32xf32>
    %721 = arith.addf %720, %719 : vector<8x32xf32>
    %722 = arith.divf %720, %721 : vector<8x32xf32>
    %723 = arith.index_cast %c13_i32 : i32 to index
    %c0_280 = arith.constant 0 : index
    %c0_281 = arith.constant 0 : index
    %724 = vector.load %arg15[%723, %c0_280, %c0_281] : memref<16x8x32xf32, #tpu.memory_space<vmem>>, vector<1x8x32xf32>
    %725 = vector.shape_cast %724 : vector<1x8x32xf32> to vector<8x32xf32>
    %726 = arith.mulf %713, %704 : vector<8x32xf32>
    %727 = arith.addf %725, %726 : vector<8x32xf32>
    %728 = math.tanh %727 : vector<8x32xf32>
    %cst_282 = arith.constant 1.000000e+00 : f32
    %729 = vector.broadcast %cst_282 : f32 to vector<8x32xf32>
    %730 = arith.subf %729, %722 : vector<8x32xf32>
    %731 = arith.mulf %730, %728 : vector<8x32xf32>
    %732 = arith.mulf %722, %684 : vector<8x32xf32>
    %733 = arith.addf %731, %732 : vector<8x32xf32>
    %734 = arith.index_cast %c13_i32 : i32 to index
    %c0_283 = arith.constant 0 : index
    %c0_284 = arith.constant 0 : index
    %735 = vector.load %arg2[%734, %c0_283, %c0_284] : memref<16x8x1xf32, #tpu.memory_space<vmem>>, vector<1x8x1xf32>
    %736 = vector.shape_cast %735 : vector<1x8x1xf32> to vector<8x1xf32>
    %cst_285 = arith.constant 5.000000e-01 : f32
    %737 = vector.broadcast %cst_285 : f32 to vector<8x1xf32>
    %738 = arith.cmpf ogt, %736, %737 : vector<8x1xf32>
    %cst_286 = arith.constant -9.99999995E+11 : f32
    %739 = vector.shape_cast %738 : vector<8x1xi1> to vector<8x1xi1>
    %740 = vector.broadcast %739 : vector<8x1xi1> to vector<8x32xi1>
    %741 = vector.broadcast %cst_286 : f32 to vector<8x32xf32>
    %742 = arith.select %740, %741, %733 : vector<8x32xi1>, vector<8x32xf32>
    %743 = arith.maximumf %694, %742 : vector<8x32xf32>
    %c14_i32 = arith.constant 14 : i32
    %744 = arith.truncf %733 : vector<8x32xf32> to vector<8x32xbf16>
    %cst_287 = arith.constant dense<0.000000e+00> : vector<8x32xf32>
    %745 = tpu.matmul %744, %45, %cst_287 {dimension_numbers = #tpu.dot_dimension_numbers<[1], [0], [0], [1], [0, 0, 1, 1], [], []>} : vector<8x32xbf16>, vector<32x32xbf16>, vector<8x32xf32> -> vector<8x32xf32>
    %746 = vector.broadcast %51 : vector<1x32xf32> to vector<8x32xf32>
    %747 = arith.addf %745, %746 : vector<8x32xf32>
    %cst_288 = arith.constant dense<0.000000e+00> : vector<8x32xf32>
    %748 = tpu.matmul %744, %47, %cst_288 {dimension_numbers = #tpu.dot_dimension_numbers<[1], [0], [0], [1], [0, 0, 1, 1], [], []>} : vector<8x32xbf16>, vector<32x32xbf16>, vector<8x32xf32> -> vector<8x32xf32>
    %749 = vector.broadcast %53 : vector<1x32xf32> to vector<8x32xf32>
    %750 = arith.addf %748, %749 : vector<8x32xf32>
    %cst_289 = arith.constant dense<0.000000e+00> : vector<8x32xf32>
    %751 = tpu.matmul %744, %49, %cst_289 {dimension_numbers = #tpu.dot_dimension_numbers<[1], [0], [0], [1], [0, 0, 1, 1], [], []>} : vector<8x32xbf16>, vector<32x32xbf16>, vector<8x32xf32> -> vector<8x32xf32>
    %752 = vector.broadcast %55 : vector<1x32xf32> to vector<8x32xf32>
    %753 = arith.addf %751, %752 : vector<8x32xf32>
    %754 = arith.index_cast %c14_i32 : i32 to index
    %c0_290 = arith.constant 0 : index
    %c0_291 = arith.constant 0 : index
    %755 = vector.load %arg13[%754, %c0_290, %c0_291] : memref<16x8x32xf32, #tpu.memory_space<vmem>>, vector<1x8x32xf32>
    %756 = vector.shape_cast %755 : vector<1x8x32xf32> to vector<8x32xf32>
    %757 = arith.addf %756, %747 : vector<8x32xf32>
    %758 = arith.negf %757 : vector<8x32xf32>
    %759 = math.exp %758 : vector<8x32xf32>
    %cst_292 = arith.constant 1.000000e+00 : f32
    %760 = vector.broadcast %cst_292 : f32 to vector<8x32xf32>
    %761 = arith.addf %760, %759 : vector<8x32xf32>
    %762 = arith.divf %760, %761 : vector<8x32xf32>
    %763 = arith.index_cast %c14_i32 : i32 to index
    %c0_293 = arith.constant 0 : index
    %c0_294 = arith.constant 0 : index
    %764 = vector.load %arg14[%763, %c0_293, %c0_294] : memref<16x8x32xf32, #tpu.memory_space<vmem>>, vector<1x8x32xf32>
    %765 = vector.shape_cast %764 : vector<1x8x32xf32> to vector<8x32xf32>
    %766 = arith.addf %765, %750 : vector<8x32xf32>
    %767 = arith.negf %766 : vector<8x32xf32>
    %768 = math.exp %767 : vector<8x32xf32>
    %cst_295 = arith.constant 1.000000e+00 : f32
    %769 = vector.broadcast %cst_295 : f32 to vector<8x32xf32>
    %770 = arith.addf %769, %768 : vector<8x32xf32>
    %771 = arith.divf %769, %770 : vector<8x32xf32>
    %772 = arith.index_cast %c14_i32 : i32 to index
    %c0_296 = arith.constant 0 : index
    %c0_297 = arith.constant 0 : index
    %773 = vector.load %arg15[%772, %c0_296, %c0_297] : memref<16x8x32xf32, #tpu.memory_space<vmem>>, vector<1x8x32xf32>
    %774 = vector.shape_cast %773 : vector<1x8x32xf32> to vector<8x32xf32>
    %775 = arith.mulf %762, %753 : vector<8x32xf32>
    %776 = arith.addf %774, %775 : vector<8x32xf32>
    %777 = math.tanh %776 : vector<8x32xf32>
    %cst_298 = arith.constant 1.000000e+00 : f32
    %778 = vector.broadcast %cst_298 : f32 to vector<8x32xf32>
    %779 = arith.subf %778, %771 : vector<8x32xf32>
    %780 = arith.mulf %779, %777 : vector<8x32xf32>
    %781 = arith.mulf %771, %733 : vector<8x32xf32>
    %782 = arith.addf %780, %781 : vector<8x32xf32>
    %783 = arith.index_cast %c14_i32 : i32 to index
    %c0_299 = arith.constant 0 : index
    %c0_300 = arith.constant 0 : index
    %784 = vector.load %arg2[%783, %c0_299, %c0_300] : memref<16x8x1xf32, #tpu.memory_space<vmem>>, vector<1x8x1xf32>
    %785 = vector.shape_cast %784 : vector<1x8x1xf32> to vector<8x1xf32>
    %cst_301 = arith.constant 5.000000e-01 : f32
    %786 = vector.broadcast %cst_301 : f32 to vector<8x1xf32>
    %787 = arith.cmpf ogt, %785, %786 : vector<8x1xf32>
    %cst_302 = arith.constant -9.99999995E+11 : f32
    %788 = vector.shape_cast %787 : vector<8x1xi1> to vector<8x1xi1>
    %789 = vector.broadcast %788 : vector<8x1xi1> to vector<8x32xi1>
    %790 = vector.broadcast %cst_302 : f32 to vector<8x32xf32>
    %791 = arith.select %789, %790, %782 : vector<8x32xi1>, vector<8x32xf32>
    %792 = arith.maximumf %743, %791 : vector<8x32xf32>
    %c15_i32 = arith.constant 15 : i32
    %793 = arith.truncf %782 : vector<8x32xf32> to vector<8x32xbf16>
    %cst_303 = arith.constant dense<0.000000e+00> : vector<8x32xf32>
    %794 = tpu.matmul %793, %45, %cst_303 {dimension_numbers = #tpu.dot_dimension_numbers<[1], [0], [0], [1], [0, 0, 1, 1], [], []>} : vector<8x32xbf16>, vector<32x32xbf16>, vector<8x32xf32> -> vector<8x32xf32>
    %795 = vector.broadcast %51 : vector<1x32xf32> to vector<8x32xf32>
    %796 = arith.addf %794, %795 : vector<8x32xf32>
    %cst_304 = arith.constant dense<0.000000e+00> : vector<8x32xf32>
    %797 = tpu.matmul %793, %47, %cst_304 {dimension_numbers = #tpu.dot_dimension_numbers<[1], [0], [0], [1], [0, 0, 1, 1], [], []>} : vector<8x32xbf16>, vector<32x32xbf16>, vector<8x32xf32> -> vector<8x32xf32>
    %798 = vector.broadcast %53 : vector<1x32xf32> to vector<8x32xf32>
    %799 = arith.addf %797, %798 : vector<8x32xf32>
    %cst_305 = arith.constant dense<0.000000e+00> : vector<8x32xf32>
    %800 = tpu.matmul %793, %49, %cst_305 {dimension_numbers = #tpu.dot_dimension_numbers<[1], [0], [0], [1], [0, 0, 1, 1], [], []>} : vector<8x32xbf16>, vector<32x32xbf16>, vector<8x32xf32> -> vector<8x32xf32>
    %801 = vector.broadcast %55 : vector<1x32xf32> to vector<8x32xf32>
    %802 = arith.addf %800, %801 : vector<8x32xf32>
    %803 = arith.index_cast %c15_i32 : i32 to index
    %c0_306 = arith.constant 0 : index
    %c0_307 = arith.constant 0 : index
    %804 = vector.load %arg13[%803, %c0_306, %c0_307] : memref<16x8x32xf32, #tpu.memory_space<vmem>>, vector<1x8x32xf32>
    %805 = vector.shape_cast %804 : vector<1x8x32xf32> to vector<8x32xf32>
    %806 = arith.addf %805, %796 : vector<8x32xf32>
    %807 = arith.negf %806 : vector<8x32xf32>
    %808 = math.exp %807 : vector<8x32xf32>
    %cst_308 = arith.constant 1.000000e+00 : f32
    %809 = vector.broadcast %cst_308 : f32 to vector<8x32xf32>
    %810 = arith.addf %809, %808 : vector<8x32xf32>
    %811 = arith.divf %809, %810 : vector<8x32xf32>
    %812 = arith.index_cast %c15_i32 : i32 to index
    %c0_309 = arith.constant 0 : index
    %c0_310 = arith.constant 0 : index
    %813 = vector.load %arg14[%812, %c0_309, %c0_310] : memref<16x8x32xf32, #tpu.memory_space<vmem>>, vector<1x8x32xf32>
    %814 = vector.shape_cast %813 : vector<1x8x32xf32> to vector<8x32xf32>
    %815 = arith.addf %814, %799 : vector<8x32xf32>
    %816 = arith.negf %815 : vector<8x32xf32>
    %817 = math.exp %816 : vector<8x32xf32>
    %cst_311 = arith.constant 1.000000e+00 : f32
    %818 = vector.broadcast %cst_311 : f32 to vector<8x32xf32>
    %819 = arith.addf %818, %817 : vector<8x32xf32>
    %820 = arith.divf %818, %819 : vector<8x32xf32>
    %821 = arith.index_cast %c15_i32 : i32 to index
    %c0_312 = arith.constant 0 : index
    %c0_313 = arith.constant 0 : index
    %822 = vector.load %arg15[%821, %c0_312, %c0_313] : memref<16x8x32xf32, #tpu.memory_space<vmem>>, vector<1x8x32xf32>
    %823 = vector.shape_cast %822 : vector<1x8x32xf32> to vector<8x32xf32>
    %824 = arith.mulf %811, %802 : vector<8x32xf32>
    %825 = arith.addf %823, %824 : vector<8x32xf32>
    %826 = math.tanh %825 : vector<8x32xf32>
    %cst_314 = arith.constant 1.000000e+00 : f32
    %827 = vector.broadcast %cst_314 : f32 to vector<8x32xf32>
    %828 = arith.subf %827, %820 : vector<8x32xf32>
    %829 = arith.mulf %828, %826 : vector<8x32xf32>
    %830 = arith.mulf %820, %782 : vector<8x32xf32>
    %831 = arith.addf %829, %830 : vector<8x32xf32>
    %832 = arith.index_cast %c15_i32 : i32 to index
    %c0_315 = arith.constant 0 : index
    %c0_316 = arith.constant 0 : index
    %833 = vector.load %arg2[%832, %c0_315, %c0_316] : memref<16x8x1xf32, #tpu.memory_space<vmem>>, vector<1x8x1xf32>
    %834 = vector.shape_cast %833 : vector<1x8x1xf32> to vector<8x1xf32>
    %cst_317 = arith.constant 5.000000e-01 : f32
    %835 = vector.broadcast %cst_317 : f32 to vector<8x1xf32>
    %836 = arith.cmpf ogt, %834, %835 : vector<8x1xf32>
    %cst_318 = arith.constant -9.99999995E+11 : f32
    %837 = vector.shape_cast %836 : vector<8x1xi1> to vector<8x1xi1>
    %838 = vector.broadcast %837 : vector<8x1xi1> to vector<8x32xi1>
    %839 = vector.broadcast %cst_318 : f32 to vector<8x32xf32>
    %840 = arith.select %838, %839, %831 : vector<8x32xi1>, vector<8x32xf32>
    %841 = arith.maximumf %792, %840 : vector<8x32xf32>
    %c16_i32 = arith.constant 16 : i32
    %c0_319 = arith.constant 0 : index
    %c0_320 = arith.constant 0 : index
    %842 = vector.load %arg10[%c0_319, %c0_320] : memref<8x32xf32, #tpu.memory_space<vmem>>, vector<8x32xf32>
    tpu.vector_store %arg10[%c0_319, %c0_320], %831 {strides = array<i32>} : memref<8x32xf32, #tpu.memory_space<vmem>>, vector<8x32xf32>,
    %c0_321 = arith.constant 0 : index
    %c0_322 = arith.constant 0 : index
    %843 = vector.load %arg11[%c0_321, %c0_322] : memref<8x32xf32, #tpu.memory_space<vmem>>, vector<8x32xf32>
    tpu.vector_store %arg11[%c0_321, %c0_322], %841 {strides = array<i32>} : memref<8x32xf32, #tpu.memory_space<vmem>>, vector<8x32xf32>,
    %c0_i32_323 = arith.constant 0 : i32
    %844 = arith.cmpi eq, %arg0, %c0_i32_323 : i32
    %845 = arith.extui %844 : i1 to i32
    %c0_i32_324 = arith.constant 0 : i32
    %846 = arith.cmpi ne, %845, %c0_i32_324 : i32
    scf.if %846 {
      %c0_325 = arith.constant 0 : index
      %c0_326 = arith.constant 0 : index
      %847 = vector.load %arg12[%c0_325, %c0_326] : memref<8x128xf32, #tpu.memory_space<vmem>>, vector<8x128xf32>
      %c0_327 = arith.constant 0 : index
      %c0_328 = arith.constant 0 : index
      %848 = vector.load %arg7[%c0_327, %c0_328] : memref<128x2xf32, #tpu.memory_space<vmem>>, vector<128x2xf32>
      %cst_329 = arith.constant dense<0.000000e+00> : vector<8x2xf32>
      %849 = tpu.matmul %847, %848, %cst_329 {dimension_numbers = #tpu.dot_dimension_numbers<[1], [0], [0], [1], [0, 0, 1, 1], [], []>} : vector<8x128xf32>, vector<128x2xf32>, vector<8x2xf32> -> vector<8x2xf32>
      %c0_330 = arith.constant 0 : index
      %c0_331 = arith.constant 0 : index
      %850 = vector.load %arg11[%c0_330, %c0_331] : memref<8x32xf32, #tpu.memory_space<vmem>>, vector<8x32xf32>
      %c0_332 = arith.constant 0 : index
      %c0_333 = arith.constant 0 : index
      %851 = vector.load %arg8[%c0_332, %c0_333] : memref<32x2xf32, #tpu.memory_space<vmem>>, vector<32x2xf32>
      %cst_334 = arith.constant dense<0.000000e+00> : vector<8x2xf32>
      %852 = tpu.matmul %850, %851, %cst_334 {dimension_numbers = #tpu.dot_dimension_numbers<[1], [0], [0], [1], [0, 0, 1, 1], [], []>} : vector<8x32xf32>, vector<32x2xf32>, vector<8x2xf32> -> vector<8x2xf32>
      %853 = arith.addf %849, %852 : vector<8x2xf32>
      %c0_335 = arith.constant 0 : index
      %c0_336 = arith.constant 0 : index
      %854 = vector.load %arg9[%c0_335, %c0_336] : memref<8x2xf32, #tpu.memory_space<vmem>>, vector<8x2xf32>
      tpu.vector_store %arg9[%c0_335, %c0_336], %853 {strides = array<i32>} : memref<8x2xf32, #tpu.memory_space<vmem>>, vector<8x2xf32>,
    } else {
    }
    return
  }
  func.func @transform_0(%arg0: i32) -> (i32, i32, i32) {
    %c0_i32 = arith.constant 0 : i32
    %c0_i32_0 = arith.constant 0 : i32
    %c0_i32_1 = arith.constant 0 : i32
    return %arg0, %c0_i32, %c0_i32_0 : i32, i32, i32
  }
  func.func @transform_1(%arg0: i32) -> (i32, i32, i32) {
    %c0_i32 = arith.constant 0 : i32
    %c0_i32_0 = arith.constant 0 : i32
    %c0_i32_1 = arith.constant 0 : i32
    return %arg0, %c0_i32, %c0_i32_0 : i32, i32, i32
  }
  func.func @transform_2(%arg0: i32) -> (i32, i32, i32) {
    %c0_i32 = arith.constant 0 : i32
    %c0_i32_0 = arith.constant 0 : i32
    %c0_i32_1 = arith.constant 0 : i32
    %c0_i32_2 = arith.constant 0 : i32
    return %c0_i32, %c0_i32_0, %c0_i32_1 : i32, i32, i32
  }
  func.func @transform_3(%arg0: i32) -> (i32, i32, i32) {
    %c0_i32 = arith.constant 0 : i32
    %c0_i32_0 = arith.constant 0 : i32
    %c0_i32_1 = arith.constant 0 : i32
    %c0_i32_2 = arith.constant 0 : i32
    return %c0_i32, %c0_i32_0, %c0_i32_1 : i32, i32, i32
  }
  func.func @transform_4(%arg0: i32) -> (i32, i32, i32) {
    %c0_i32 = arith.constant 0 : i32
    %c0_i32_0 = arith.constant 0 : i32
    %c0_i32_1 = arith.constant 0 : i32
    %c0_i32_2 = arith.constant 0 : i32
    return %c0_i32, %c0_i32_0, %c0_i32_1 : i32, i32, i32
  }
  func.func @transform_5(%arg0: i32) -> (i32, i32, i32) {
    %c0_i32 = arith.constant 0 : i32
    %c0_i32_0 = arith.constant 0 : i32
    %c0_i32_1 = arith.constant 0 : i32
    %c0_i32_2 = arith.constant 0 : i32
    return %c0_i32, %c0_i32_0, %c0_i32_1 : i32, i32, i32
  }
  func.func @transform_6(%arg0: i32) -> (i32, i32) {
    %c0_i32 = arith.constant 0 : i32
    %c0_i32_0 = arith.constant 0 : i32
    %c0_i32_1 = arith.constant 0 : i32
    return %c0_i32, %c0_i32_0 : i32, i32
  }
  func.func @transform_7(%arg0: i32) -> (i32, i32) {
    %c0_i32 = arith.constant 0 : i32
    %c0_i32_0 = arith.constant 0 : i32
    %c0_i32_1 = arith.constant 0 : i32
    return %c0_i32, %c0_i32_0 : i32, i32
  }
  func.func @transform_8(%arg0: i32) -> (i32, i32) {
    %c0_i32 = arith.constant 0 : i32
    %c0_i32_0 = arith.constant 0 : i32
    %c0_i32_1 = arith.constant 0 : i32
    return %c0_i32, %c0_i32_0 : i32, i32
  }
}

</mosaic_0001>

<llo_original>
// kernel: bidaf_forward.4
$region0: #{bidaf_forward.4}
  #allocation0 [shape = 'u32[]', space=smem, size = 0x4, offset = 0x4, fixed_abs, tag = 'smem constant byte address 0x4 - core index']
  #allocation1 [shape = 'u32[144,128]{1,0:T(1,128)}', space=vmem, size = 0x12000, scoped, tag = 'internal scratch']
  %s0 = inlined_call_operand.vmem [shape: f32[2,16,32], index: 0, kind: input, shape index: {}]
  %s1 = inlined_call_operand.vmem [shape: f32[2,8,32], index: 1, kind: input, shape index: {}]
  %s2 = inlined_call_operand.vmem [shape: bf16[32,32], index: 2, kind: input, shape index: {}]
  %s3 = inlined_call_operand.vmem [shape: f32[2,16,128], index: 3, kind: output, shape index: {}]
  %s4 = sld [smem:[#allocation0]]
  $region45: #{bidaf_forward.4} parent=0
    _
  %s6 = ssub.s32 1, %s4
  %s7 = scalar_select 0, %s6, %s4
  loop: start=0, step=1, limit=4
  $region2: #{bidaf_forward.4} parent=0 // loop_pre_header
    _
  $region3: #{bidaf_forward.4} parent=0 // loop_header
    %s9 = sphi 0, %s13
    %p10 = scmp.ge.s32.totalorder %s9, 4
    %s19 = sphi 0, %s21
    %s22 = sphi 0, %s19
    %s23 = sphi 0, %s22
    %s39 = sphi 0, %s23
    %s45 = sphi 0, %s47
    %s48 = sphi 0, %s45
    %s49 = sphi 0, %s48
    %s65 = sphi 0, %s49
    %s69 = sphi 0, %s69
    %s71 = sphi 0, %s69
    %s72 = sphi 0, %s71
    %s86 = sphi 0, %s72
    %s92 = sphi 0, %s94
    %s95 = sphi 0, %s92
    %s96 = sphi 0, %s95
    %s112 = sphi 0, %s96
  $region4: #{bidaf_forward.4} parent=0 // loop_header_branch
    %12 = sbr.rel (%p10) target = $region8
  $region5: #{bidaf_forward.4} parent=0 // loop_body
    %s14 = ssub.s32 %s9, 1
    %s15 = ssub.s32 %s9, 2
    %s16 = sadd.s32 %s9, 1
    %s17 = ssub.s32 %s9, %s16
    %p18 = scmp.eq.s32.totalorder %s17, 0
    %s20 = sadd.s32 %s19, 1
    %s21 = scalar_select %p18, %s19, %s20
    %p24 = pneg %p18
    %p25 = scmp.eq.s32.totalorder %s9, 1
    %p26 = por %p24, %p25
    %p27 = scmp.ne.s32.totalorder %s19, %s22
    %p28 = scmp.eq.s32.totalorder %s9, 0
    %p29 = por %p27, %p28
    %p30 = scmp.ne.s32.totalorder %s19, %s22
    %p31 = scmp.eq.s32.totalorder %s14, 1
    %p32 = por %p30, %p31
    %p33 = scmp.ne.s32.totalorder %s22, %s23
    %p34 = scmp.eq.s32.totalorder %s14, 0
    %p35 = por %p33, %p34
    %p36 = scmp.ne.s32.totalorder %s22, %s23
    %p37 = scmp.eq.s32.totalorder %s15, 1
    %p38 = por %p36, %p37
    %p40 = scmp.ne.s32.totalorder %s23, %s39
    %p41 = scmp.eq.s32.totalorder %s15, 0
    %p42 = por %p40, %p41
    %s43 = ssub.s32 %s9, %s16
    %p44 = scmp.eq.s32.totalorder %s43, 0
    %s46 = sadd.s32 %s45, 1
    %s47 = scalar_select %p44, %s45, %s46
    %p50 = pneg %p44
    %p51 = scmp.eq.s32.totalorder %s9, 1
    %p52 = por %p50, %p51
    %p53 = scmp.ne.s32.totalorder %s45, %s48
    %p54 = scmp.eq.s32.totalorder %s9, 0
    %p55 = por %p53, %p54
    %p56 = scmp.ne.s32.totalorder %s45, %s48
    %p57 = scmp.eq.s32.totalorder %s14, 1
    %p58 = por %p56, %p57
    %p59 = scmp.ne.s32.totalorder %s48, %s49
    %p60 = scmp.eq.s32.totalorder %s14, 0
    %p61 = por %p59, %p60
    %p62 = scmp.ne.s32.totalorder %s48, %s49
    %p63 = scmp.eq.s32.totalorder %s15, 1
    %p64 = por %p62, %p63
    %p66 = scmp.ne.s32.totalorder %s49, %s65
    %p67 = scmp.eq.s32.totalorder %s15, 0
    %p68 = por %p66, %p67
    %s70 = sadd.s32 %s69, 1
    %p73 = scmp.eq.s32.totalorder %s9, 1
    %p74 = scmp.ne.s32.totalorder %s69, %s71
    %p75 = scmp.eq.s32.totalorder %s9, 0
    %p76 = por %p74, %p75
    %p77 = scmp.ne.s32.totalorder %s69, %s71
    %p78 = scmp.eq.s32.totalorder %s14, 1
    %p79 = por %p77, %p78
    %p80 = scmp.ne.s32.totalorder %s71, %s72
    %p81 = scmp.eq.s32.totalorder %s14, 0
    %p82 = por %p80, %p81
    %p83 = scmp.ne.s32.totalorder %s71, %s72
    %p84 = scmp.eq.s32.totalorder %s15, 1
    %p85 = por %p83, %p84
    %p87 = scmp.ne.s32.totalorder %s72, %s86
    %p88 = scmp.eq.s32.totalorder %s15, 0
    %p89 = por %p87, %p88
    %s90 = ssub.s32 %s9, %s16
    %p91 = scmp.eq.s32.totalorder %s90, 0
    %s93 = sadd.s32 %s92, 1
    %s94 = scalar_select %p91, %s92, %s93
    %p97 = pneg %p91
    %p98 = scmp.eq.s32.totalorder %s9, 1
    %p99 = por %p97, %p98
    %p100 = scmp.ne.s32.totalorder %s92, %s95
    %p101 = scmp.eq.s32.totalorder %s9, 0
    %p102 = por %p100, %p101
    %p103 = scmp.ne.s32.totalorder %s92, %s95
    %p104 = scmp.eq.s32.totalorder %s14, 1
    %p105 = por %p103, %p104
    %p106 = scmp.ne.s32.totalorder %s95, %s96
    %p107 = scmp.eq.s32.totalorder %s14, 0
    %p108 = por %p106, %p107
    %p109 = scmp.ne.s32.totalorder %s95, %s96
    %p110 = scmp.eq.s32.totalorder %s15, 1
    %p111 = por %p109, %p110
    %p113 = scmp.ne.s32.totalorder %s96, %s112
    %p114 = scmp.eq.s32.totalorder %s15, 0
    %p115 = por %p113, %p114
    %p116 = scmp.le.s32.totalorder 1, %s9
    %p117 = scmp.lt.s32.totalorder %s9, 3
    %p118 = pnand %p116, %p117
    %p119 = pneg %p118
    // Predicated region
    $region9: #{bidaf_forward.4} parent=5 // pred_check
      _
    $region10: #{bidaf_forward.4} parent=5 // pred_check_branch
      %121 = sbr.rel (%p118) target = $region12
    $region11: #{bidaf_forward.4} parent=5 // pred_region
      %s122 = ssub.s32 %s9, 1
      // Predicated region
      $region13: #{bidaf_forward.4} parent=11 // pred_check
        %p123 = pneg %p82
      $region14: #{bidaf_forward.4} parent=11 // pred_check_branch
        %125 = sbr.rel (%p123) target = $region16
      $region15: #{bidaf_forward.4} parent=11 // pred_region
        _
      $region16: #{bidaf_forward.4} parent=11 // pred_fallthru
        _
    $region12: #{bidaf_forward.4} parent=5 // pred_fallthru
      _
    %p126 = scmp.lt.s32.totalorder %s9, 2
    // Predicated region
    $region17: #{bidaf_forward.4} parent=5 // pred_check
      %p127 = pneg %p126
    $region18: #{bidaf_forward.4} parent=5 // pred_check_branch
      %129 = sbr.rel (%p127) target = $region20
    $region19: #{bidaf_forward.4} parent=5 // pred_region
      // Predicated region
      $region21: #{bidaf_forward.4} parent=19 // pred_check
        %p130 = pneg %p29
      $region22: #{bidaf_forward.4} parent=19 // pred_check_branch
        %132 = sbr.rel (%p130) target = $region24
      $region23: #{bidaf_forward.4} parent=19 // pred_region
        %p133 = scmp.lt.s32.totalorder %s9, 1
        %s134 = scalar_select %p133, %s9, 1
        %s135 = smul.addr %s134, 2
        %s136 = smul.addr %s135, 8
        %s137 = scalar_lea.vmem %s0, %s136
      $region24: #{bidaf_forward.4} parent=19 // pred_fallthru
        _
      // Predicated region
      $region25: #{bidaf_forward.4} parent=19 // pred_check
        %p138 = pneg %p55
      $region26: #{bidaf_forward.4} parent=19 // pred_check_branch
        %140 = sbr.rel (%p138) target = $region28
      $region27: #{bidaf_forward.4} parent=19 // pred_region
        %p141 = scmp.lt.s32.totalorder %s9, 1
        %s142 = scalar_select %p141, %s9, 1
        %s143 = smul.addr %s142, 8
        %s144 = scalar_lea.vmem %s1, %s143
      $region28: #{bidaf_forward.4} parent=19 // pred_fallthru
        _
    $region20: #{bidaf_forward.4} parent=5 // pred_fallthru
      _
    %p145 = scmp.le.s32.totalorder 1, %s9
    %p146 = scmp.lt.s32.totalorder %s9, 3
    %p147 = pnand %p145, %p146
    %p148 = pneg %p147
    // Predicated region
    $region29: #{bidaf_forward.4} parent=5 // pred_check
      _
    $region30: #{bidaf_forward.4} parent=5 // pred_check_branch
      %150 = sbr.rel (%p147) target = $region32
    $region31: #{bidaf_forward.4} parent=5 // pred_region
      %s151 = ssub.s32 %s9, 1
      %p152 = scmp.lt.s32.totalorder %s14, 1
      %s153 = scalar_select %p152, %s14, 1
      %s154 = smul.addr %s153, 2
      %s155 = smul.addr %s154, 8
      %s156 = scalar_lea.vmem %s0, %s155
      %p157 = pneg %p35
      %p158 = pneg %p32
      %p159 = scmp.lt.s32.totalorder %s14, 1
      %s160 = scalar_select %p159, %s14, 1
      %s161 = smul.addr %s160, 8
      %s162 = scalar_lea.vmem %s1, %s161
      %p163 = pneg %p61
      %p164 = pneg %p58
      %p165 = pneg %p82
      %p166 = pneg %p79
      %p167 = pneg %p108
      %p168 = pneg %p105
      %p169 = scmp.lt.s32.totalorder %s14, 1
      %s170 = scalar_select %p169, %s14, 1
      %s171 = smul.addr %s170, 2
      %s172 = smul.addr %s171, 8
      %s173 = scalar_lea.vmem %s3, %s172
      %p174 = scmp.lt.s32.totalorder %s14, 1
      %s175 = scalar_select %p174, %s14, 1
      %s176 = smul.addr %s175, 2
      %s177 = smul.addr %s176, 8
      %s178 = scalar_lea.vmem %s0, %s177
      %p179 = scmp.lt.s32.totalorder %s14, 1
      %s180 = scalar_select %p179, %s14, 1
      %s181 = smul.addr %s180, 8
      %s182 = scalar_lea.vmem %s1, %s181
      %p183 = scmp.lt.s32.totalorder %s14, 1
      %s184 = scalar_select %p183, %s14, 1
      %s185 = smul.addr %s184, 2
      %s186 = smul.addr %s185, 8
      %s187 = scalar_lea.vmem %s3, %s186
      %v189 = vld [vmem:[%s178] sm:$0xff]
      %v190 = vld [vmem:[%s178 + $0x8] sm:$0xff]
      %v191 = vld [vmem:[%s182] sm:$0xff]
      %v192 = vpack.c.bf16 %v190, %v189
      %v193 = vpack.c.bf16 %v191, %v191
      %v194 = vld [vmem:[%s2] sm:$0xf]
      %v195 = vld [vmem:[%s2 + $0x4] sm:$0xf]
      %v196 = vld [vmem:[%s2 + $0x8] sm:$0xf]
      %v197 = vld [vmem:[%s2 + $0xc] sm:$0xf]
      %v202 = vunpack.c.l.b16 %v194
      %v203 = vunpack.c.l.b16 %v195
      %v204 = vunpack.c.l.b16 %v196
      %v205 = vunpack.c.l.b16 %v197
      %v206 = vpack.c.b16 %v203, %v202
      %v207 = vpack.c.b16 %v205, %v204
      %vm210 = vcmask 261120
      %v212 = vsel %vm210, %v192, 0
      %214 = vmatprep.subr.bf16.mxu0 0
      %215 = vmatpush1.bf16.msra.mxu0 0
      %216 = vmatprep.subr.bf16.mxu0 0
      %217 = vmatpush1.bf16.msra.mxu0 0
      %218 = vmatprep.subr.bf16.mxu0 0
      %219 = vmatpush1.bf16.msra.mxu0 0
      %220 = vmatprep.subr.bf16.mxu0 0
      %221 = vmatpush1.bf16.msra.mxu0 0
      %222 = vmatprep.subr.bf16.mxu0 0
      %223 = vmatpush1.bf16.msra.mxu0 0
      %224 = vmatprep.subr.bf16.mxu0 0
      %225 = vmatpush1.bf16.msra.mxu0 0
      %226 = vmatprep.subr.bf16.mxu0 0
      %227 = vmatpush1.bf16.msra.mxu0 %v207
      %228 = vmatprep.subr.bf16.mxu0 0
      %229 = vmatpush1.bf16.msra.mxu0 %v206
      %230 = vmatprep.subr.bf16.mxu0 0
      %231 = vmatpush2.bf16.msra.mxu0 0
      %232 = vmatprep.subr.bf16.mxu0 0
      %233 = vmatpush2.bf16.msra.mxu0 0
      %234 = vmatprep.subr.bf16.mxu0 0
      %235 = vmatpush2.bf16.msra.mxu0 0
      %236 = vmatprep.subr.bf16.mxu0 0
      %237 = vmatpush2.bf16.msra.mxu0 0
      %238 = vmatprep.subr.bf16.mxu0 0
      %239 = vmatpush2.bf16.msra.mxu0 0
      %240 = vmatprep.subr.bf16.mxu0 0
      %241 = vmatpush2.bf16.msra.mxu0 0
      %242 = vmatprep.subr.bf16.mxu0 0
      %243 = vmatpush2.bf16.msra.mxu0 0
      %244 = vmatprep.subr.bf16.mxu0 0
      %245 = vmatpush2.bf16.msra.mxu0 0
      %246 = vmatprep.mubr.bf16.mxu0 0
      %247 = vmatmul.mubr.bf16.gmra.mxu0 %v212
      %v248 = vpop.f32.mrf.mxu0
      %v249 = vadd.f32 0.0, %v248
      %v250 = vpop.f32.mrf.mxu0
      %v251 = vpop.f32.mrf.mxu0
      %v252 = vadd.f32 0.0, %v251
      %v253 = vpop.f32.mrf.mxu0
      %254 = vdwg.mxu0
      %v255 = vpack.c.bf16 %v252, %v249
      %v257 = vsel %vm210, %v255, 0
      %v260 = vsel %vm210, %v193, 0
      %262 = vmatprep.subr.bf16.mxu0 0
      %263 = vmatpush1.bf16.xpose.msra.mxu0 0
      %264 = vmatprep.subr.bf16.mxu0 0
      %265 = vmatpush1.bf16.xpose.msra.mxu0 0
      %266 = vmatprep.subr.bf16.mxu0 0
      %267 = vmatpush1.bf16.xpose.msra.mxu0 0
      %268 = vmatprep.subr.bf16.mxu0 0
      %269 = vmatpush1.bf16.xpose.msra.mxu0 0
      %270 = vmatprep.subr.bf16.mxu0 0
      %271 = vmatpush1.bf16.xpose.msra.mxu0 0
      %272 = vmatprep.subr.bf16.mxu0 0
      %273 = vmatpush1.bf16.xpose.msra.mxu0 0
      %274 = vmatprep.subr.bf16.mxu0 0
      %275 = vmatpush1.bf16.xpose.msra.mxu0 0
      %276 = vmatprep.subr.bf16.mxu0 0
      %277 = vmatpush1.bf16.xpose.msra.mxu0 %v260
      %278 = vmatprep.subr.bf16.mxu0 0
      %279 = vmatpush2.bf16.xpose.msra.mxu0 0
      %280 = vmatprep.subr.bf16.mxu0 0
      %281 = vmatpush2.bf16.xpose.msra.mxu0 0
      %282 = vmatprep.subr.bf16.mxu0 0
      %283 = vmatpush2.bf16.xpose.msra.mxu0 0
      %284 = vmatprep.subr.bf16.mxu0 0
      %285 = vmatpush2.bf16.xpose.msra.mxu0 0
      %286 = vmatprep.subr.bf16.mxu0 0
      %287 = vmatpush2.bf16.xpose.msra.mxu0 0
      %288 = vmatprep.subr.bf16.mxu0 0
      %289 = vmatpush2.bf16.xpose.msra.mxu0 0
      %290 = vmatprep.subr.bf16.mxu0 0
      %291 = vmatpush2.bf16.xpose.msra.mxu0 0
      %292 = vmatprep.subr.bf16.mxu0 0
      %293 = vmatpush2.bf16.xpose.msra.mxu0 0
      %294 = vmatprep.mubr.bf16.mxu0 0
      %295 = vmatmul.mubr.bf16.gmra.mxu0 %v257
      %v296 = vpop.f32.mrf.mxu0
      %v297 = vadd.f32 0.0, %v296
      %v298 = vpop.f32.mrf.mxu0
      %v299 = vpop.f32.mrf.mxu0
      %v300 = vadd.f32 0.0, %v299
      %v301 = vpop.f32.mrf.mxu0
      %302 = vdwg.mxu0
      %vm303 = vcmask 64512
      %v304 = vsel %vm303, %v297, -inf
      %305 = vmax.xlane.f32.xlu0 %v304
      %v306 = vpop.xlane.xlu0 %305
      %v307 = vsel %vm303, %v300, -inf
      %308 = vmax.xlane.f32.xlu0 %v307
      %v309 = vpop.xlane.xlu0 %308
      %v310 = vsub.f32 %v297, %v306
      %v311 = vsub.f32 %v300, %v309
      %v312 = vmul.f32 %v310, 1.442695
      %v313 = vpow.pop %v312
      %v314 = vmul.f32 %v311, 1.442695
      %v315 = vpow.pop %v314
      %v316 = vsel %vm303, %v313, 0.0
      %317 = vadd.xlane.f32.xlu0 %v316
      %v318 = vpop.xlane.xlu0 %317
      %v319 = vsel %vm303, %v315, 0.0
      %320 = vadd.xlane.f32.xlu0 %v319
      %v321 = vpop.xlane.xlu0 %320
      %v322 = vrcp.pop %v318
      %v323 = vrcp.pop %v321
      %v324 = vmul.f32 %v313, %v322
      %v325 = vmul.f32 %v315, %v323
      %v326 = vpack.c.bf16 %v325, %v324
      %v328 = vsel %vm303, %v326, 0
      %vm330 = vcmask 1043456
      %v331 = vsel %vm330, %v193, 0
      %333 = vmatprep.subr.bf16.mxu0 0
      %334 = vmatpush1.bf16.msra.mxu0 0
      %335 = vmatprep.subr.bf16.mxu0 0
      %336 = vmatpush1.bf16.msra.mxu0 0
      %337 = vmatprep.subr.bf16.mxu0 0
      %338 = vmatpush1.bf16.msra.mxu0 0
      %339 = vmatprep.subr.bf16.mxu0 0
      %340 = vmatpush1.bf16.msra.mxu0 0
      %341 = vmatprep.subr.bf16.mxu0 0
      %342 = vmatpush1.bf16.msra.mxu0 0
      %343 = vmatprep.subr.bf16.mxu0 0
      %344 = vmatpush1.bf16.msra.mxu0 0
      %345 = vmatprep.subr.bf16.mxu0 0
      %346 = vmatpush1.bf16.msra.mxu0 0
      %347 = vmatprep.subr.bf16.mxu0 0
      %348 = vmatpush1.bf16.msra.mxu0 %v331
      %349 = vmatprep.subr.bf16.mxu0 0
      %350 = vmatpush2.bf16.msra.mxu0 0
      %351 = vmatprep.subr.bf16.mxu0 0
      %352 = vmatpush2.bf16.msra.mxu0 0
      %353 = vmatprep.subr.bf16.mxu0 0
      %354 = vmatpush2.bf16.msra.mxu0 0
      %355 = vmatprep.subr.bf16.mxu0 0
      %356 = vmatpush2.bf16.msra.mxu0 0
      %357 = vmatprep.subr.bf16.mxu0 0
      %358 = vmatpush2.bf16.msra.mxu0 0
      %359 = vmatprep.subr.bf16.mxu0 0
      %360 = vmatpush2.bf16.msra.mxu0 0
      %361 = vmatprep.subr.bf16.mxu0 0
      %362 = vmatpush2.bf16.msra.mxu0 0
      %363 = vmatprep.subr.bf16.mxu0 0
      %364 = vmatpush2.bf16.msra.mxu0 0
      %365 = vmatprep.mubr.bf16.mxu0 0
      %366 = vmatmul.mubr.bf16.gmra.mxu0 %v328
      %v367 = vpop.f32.mrf.mxu0
      %v368 = vadd.f32 0.0, %v367
      %v369 = vpop.f32.mrf.mxu0
      %v370 = vpop.f32.mrf.mxu0
      %v371 = vadd.f32 0.0, %v370
      %v372 = vpop.f32.mrf.mxu0
      %373 = vdwg.mxu0
      %v374 = vmax.f32 %v306, %v309
      %v375 = vrot.slane %v374, 4
      %v376 = vmax.f32 %v374, %v375
      %v377 = vrot.slane %v376, 2
      %v378 = vmax.f32 %v376, %v377
      %v379 = vrot.slane %v378, 1
      %v380 = vmax.f32 %v378, %v379
      %v381 = vsub.f32 %v306, %v380
      %v382 = vsub.f32 %v309, %v380
      %v383 = vmul.f32 %v381, 1.442695
      %v384 = vpow.pop %v383
      %v385 = vmul.f32 %v382, 1.442695
      %v386 = vpow.pop %v385
      %v387 = vadd.f32 %v384, %v386
      %v388 = vrot.slane %v387, 4
      %v389 = vadd.f32 %v387, %v388
      %v390 = vrot.slane %v389, 2
      %v391 = vadd.f32 %v389, %v390
      %v392 = vrot.slane %v391, 1
      %v393 = vadd.f32 %v391, %v392
      %v394 = vrcp.pop %v393
      %v395 = vmul.f32 %v384, %v394
      %v396 = vmul.f32 %v386, %v394
      %v397 = vmul.f32 %v395, %v189
      %v398 = vmul.f32 %v396, %v190
      %v399 = vsel %vm210, %v397, 0.0
      %v400 = vsel %vm210, %v398, 0.0
      %v401 = vadd.f32 %v399, %v400
      %v402 = vrot.slane %v401, 4
      %v403 = vadd.f32 %v401, %v402
      %v404 = vrot.slane %v403, 2
      %v405 = vadd.f32 %v403, %v404
      %v406 = vrot.slane %v405, 1
      %v407 = vadd.f32 %v405, %v406
      %v408 = vmul.f32 %v189, %v368
      %v409 = vmul.f32 %v190, %v371
      %v410 = vmul.f32 %v189, %v407
      %v411 = vmul.f32 %v190, %v407
      %414 = vrot.lane.b32.xlu0 %v368, 32
      %v415 = vpop.permute.xlu0 %414
      %416 = vrot.lane.b32.xlu0 %v371, 32
      %v417 = vpop.permute.xlu0 %416
      %422 = vrot.lane.b32.xlu0 %v408, 64
      %v423 = vpop.permute.xlu0 %422
      %424 = vrot.lane.b32.xlu0 %v409, 64
      %v425 = vpop.permute.xlu0 %424
      %430 = vrot.lane.b32.xlu0 %v410, 96
      %v431 = vpop.permute.xlu0 %430
      %432 = vrot.lane.b32.xlu0 %v411, 96
      %v433 = vpop.permute.xlu0 %432
      %v436 = vsel %vm210, %v189, %v415
      %v437 = vsel %vm210, %v190, %v417
      %vm438 = vcmask 523264
      %v439 = vsel %vm438, %v436, %v423
      %v440 = vsel %vm438, %v437, %v425
      %vm441 = vcmask 785408
      %v442 = vsel %vm441, %v439, %v431
      %v443 = vsel %vm441, %v440, %v433
      %444 = vst [vmem:[%s187] sm:$0xff] %v442
      %445 = vst [vmem:[%s187 + $0x8] sm:$0xff] %v443
      %p446 = scmp.lt.s32.totalorder %s14, 1
      %s447 = scalar_select %p446, %s14, 1
      %s448 = smul.addr %s447, 2
      %s449 = smul.addr %s448, 8
      %s450 = scalar_lea.vmem %s3, %s449
      // Predicated region
      $region33: #{bidaf_forward.4} parent=31 // pred_check
        %p451 = pneg %p105
      $region34: #{bidaf_forward.4} parent=31 // pred_check_branch
        %453 = sbr.rel (%p451) target = $region36
      $region35: #{bidaf_forward.4} parent=31 // pred_region
        _
      $region36: #{bidaf_forward.4} parent=31 // pred_fallthru
        _
    $region32: #{bidaf_forward.4} parent=5 // pred_fallthru
      _
    %p454 = scmp.le.s32.totalorder 2, %s9
    // Predicated region
    $region37: #{bidaf_forward.4} parent=5 // pred_check
      %p455 = pneg %p454
    $region38: #{bidaf_forward.4} parent=5 // pred_check_branch
      %457 = sbr.rel (%p455) target = $region40
    $region39: #{bidaf_forward.4} parent=5 // pred_region
      %s458 = ssub.s32 %s9, 2
      // Predicated region
      $region41: #{bidaf_forward.4} parent=39 // pred_check
        %p459 = pneg %p111
      $region42: #{bidaf_forward.4} parent=39 // pred_check_branch
        %461 = sbr.rel (%p459) target = $region44
      $region43: #{bidaf_forward.4} parent=39 // pred_region
        %p462 = scmp.lt.s32.totalorder %s15, 1
        %s463 = scalar_select %p462, %s15, 1
        %s464 = smul.addr %s463, 2
        %s465 = smul.addr %s464, 8
        %s466 = scalar_lea.vmem %s3, %s465
      $region44: #{bidaf_forward.4} parent=39 // pred_fallthru
        _
    $region40: #{bidaf_forward.4} parent=5 // pred_fallthru
      _
  $region6: #{bidaf_forward.4} parent=0 // loop_footer
    %s13 = sadd.s32 1, %s9
  $region7: #{bidaf_forward.4} parent=0 // loop_footer_branch
    %8 = sbr.rel target = $region3
  $region8: #{bidaf_forward.4} parent=0 // loop_exit
    _

// kernel: bidaf_forward.3
$region0: #{bidaf_forward.3}
  #allocation0 [shape = 'u32[]', space=smem, size = 0x4, offset = 0x4, fixed_abs, tag = 'smem constant byte address 0x4 - core index']
  #allocation1 [shape = 'u32[144,128]{1,0:T(1,128)}', space=vmem, size = 0x12000, scoped, tag = 'internal scratch']
  #allocation2 [shape = 'f32[8,32]{1,0:T(8,128)}', space=vmem, size = 0x1000, scoped, tag = 'scratch operand']
  #allocation3 [shape = 'f32[16,8,32]{2,1,0:T(8,128)}', space=vmem, size = 0x10000, scoped, tag = 'scratch operand']
  #allocation4 [shape = 'f32[16,8,32]{2,1,0:T(8,128)}', space=vmem, size = 0x10000, scoped, tag = 'scratch operand']
  #allocation5 [shape = 'f32[16,8,32]{2,1,0:T(8,128)}', space=vmem, size = 0x10000, scoped, tag = 'scratch operand']
  %s0 = inlined_call_operand.vmem [shape: f32[16,8,32], index: 0, kind: input, shape index: {}]
  %s1 = inlined_call_operand.vmem [shape: bf16[3,32,32], index: 1, kind: input, shape index: {}]
  %s2 = inlined_call_operand.vmem [shape: bf16[3,32,32], index: 2, kind: input, shape index: {}]
  %s3 = inlined_call_operand.vmem [shape: f32[3,1,32], index: 3, kind: input, shape index: {}]
  %s4 = inlined_call_operand.vmem [shape: f32[3,1,32], index: 4, kind: input, shape index: {}]
  %s5 = inlined_call_operand.vmem [shape: f32[16,8,32], index: 5, kind: output, shape index: {}]
  %s6 = sld [smem:[#allocation0]]
  $region34: #{bidaf_forward.3} parent=0
    _
  %s8 = ssub.s32 1, %s6
  %s9 = scalar_select 0, %s8, %s6
  // Predicated region
  $region2: #{bidaf_forward.3} parent=0 // pred_check
    _
  $region3: #{bidaf_forward.3} parent=0 // pred_check_branch
    %11 = sbr.rel (0) target = $region5
  $region4: #{bidaf_forward.3} parent=0 // pred_region
    _
  $region5: #{bidaf_forward.3} parent=0 // pred_fallthru
    _
  // Predicated region
  $region6: #{bidaf_forward.3} parent=0 // pred_check
    _
  $region7: #{bidaf_forward.3} parent=0 // pred_check_branch
    %13 = sbr.rel (0) target = $region9
  $region8: #{bidaf_forward.3} parent=0 // pred_region
    _
  $region9: #{bidaf_forward.3} parent=0 // pred_fallthru
    _
  // Predicated region
  $region10: #{bidaf_forward.3} parent=0 // pred_check
    _
  $region11: #{bidaf_forward.3} parent=0 // pred_check_branch
    %15 = sbr.rel (0) target = $region13
  $region12: #{bidaf_forward.3} parent=0 // pred_region
    _
  $region13: #{bidaf_forward.3} parent=0 // pred_fallthru
    _
  // Predicated region
  $region14: #{bidaf_forward.3} parent=0 // pred_check
    _
  $region15: #{bidaf_forward.3} parent=0 // pred_check_branch
    %17 = sbr.rel (0) target = $region17
  $region16: #{bidaf_forward.3} parent=0 // pred_region
    _
  $region17: #{bidaf_forward.3} parent=0 // pred_fallthru
    _
  // Predicated region
  $region18: #{bidaf_forward.3} parent=0 // pred_check
    _
  $region19: #{bidaf_forward.3} parent=0 // pred_check_branch
    %19 = sbr.rel (0) target = $region21
  $region20: #{bidaf_forward.3} parent=0 // pred_region
    _
  $region21: #{bidaf_forward.3} parent=0 // pred_fallthru
    _
  %p21 = scmp.eq.s32.totalorder 0, 0
  // Predicated region
  $region22: #{bidaf_forward.3} parent=0 // pred_check
    %p22 = pneg %p21
  $region23: #{bidaf_forward.3} parent=0 // pred_check_branch
    %24 = sbr.rel (%p22) target = $region25
  $region24: #{bidaf_forward.3} parent=0 // pred_region
    %vm25 = vcmask 261120
    %26 = vst.msk [vmem:[#allocation2] sm:$0xff] %vm25, 0.0
  $region25: #{bidaf_forward.3} parent=0 // pred_fallthru
    _
  %v27 = vld [vmem:[%s0] sm:$0xff]
  %v28 = vld [vmem:[%s0 + $0x8] sm:$0xff]
  %v29 = vld [vmem:[%s0 + $0x10] sm:$0xff]
  %v30 = vld [vmem:[%s0 + $0x18] sm:$0xff]
  %v31 = vld [vmem:[%s0 + $0x20] sm:$0xff]
  %v32 = vld [vmem:[%s0 + $0x28] sm:$0xff]
  %v33 = vld [vmem:[%s0 + $0x30] sm:$0xff]
  %v34 = vld [vmem:[%s0 + $0x38] sm:$0xff]
  %v35 = vld [vmem:[%s0 + $0x40] sm:$0xff]
  %v36 = vld [vmem:[%s0 + $0x48] sm:$0xff]
  %v37 = vld [vmem:[%s0 + $0x50] sm:$0xff]
  %v38 = vld [vmem:[%s0 + $0x58] sm:$0xff]
  %v39 = vld [vmem:[%s0 + $0x60] sm:$0xff]
  %v40 = vld [vmem:[%s0 + $0x68] sm:$0xff]
  %v41 = vld [vmem:[%s0 + $0x70] sm:$0xff]
  %v42 = vld [vmem:[%s0 + $0x78] sm:$0xff]
  %v43 = vpack.c.bf16 %v27, %v27
  %v44 = vpack.c.bf16 %v28, %v28
  %v45 = vpack.c.bf16 %v29, %v29
  %v46 = vpack.c.bf16 %v30, %v30
  %v47 = vpack.c.bf16 %v31, %v31
  %v48 = vpack.c.bf16 %v32, %v32
  %v49 = vpack.c.bf16 %v33, %v33
  %v50 = vpack.c.bf16 %v34, %v34
  %v51 = vpack.c.bf16 %v35, %v35
  %v52 = vpack.c.bf16 %v36, %v36
  %v53 = vpack.c.bf16 %v37, %v37
  %v54 = vpack.c.bf16 %v38, %v38
  %v55 = vpack.c.bf16 %v39, %v39
  %v56 = vpack.c.bf16 %v40, %v40
  %v57 = vpack.c.bf16 %v41, %v41
  %v58 = vpack.c.bf16 %v42, %v42
  %v59 = vld [vmem:[%s1] sm:$0xf]
  %v60 = vld [vmem:[%s1 + $0x4] sm:$0xf]
  %v61 = vld [vmem:[%s1 + $0x8] sm:$0xf]
  %v62 = vld [vmem:[%s1 + $0xc] sm:$0xf]
  %v63 = vld [vmem:[%s3] sm:$0x1]
  %v65 = vlaneseq
  %v66 = vshrl.u32 %v65, 7
  %v67 = vsub.s32 0, %v66
  %v68 = vrot.slane %v63, %v67
  %v86 = vunpack.c.l.b16 %v43
  %v87 = vunpack.c.l.b16 %v44
  %v88 = vunpack.c.l.b16 %v45
  %v89 = vunpack.c.l.b16 %v46
  %v90 = vunpack.c.l.b16 %v47
  %v91 = vunpack.c.l.b16 %v48
  %v92 = vunpack.c.l.b16 %v49
  %v93 = vunpack.c.l.b16 %v50
  %v94 = vunpack.c.l.b16 %v51
  %v95 = vunpack.c.l.b16 %v52
  %v96 = vunpack.c.l.b16 %v53
  %v97 = vunpack.c.l.b16 %v54
  %v98 = vunpack.c.l.b16 %v55
  %v99 = vunpack.c.l.b16 %v56
  %v100 = vunpack.c.l.b16 %v57
  %v101 = vunpack.c.l.b16 %v58
  %v102 = vpack.c.b16 %v87, %v86
  %v103 = vpack.c.b16 %v89, %v88
  %v104 = vpack.c.b16 %v91, %v90
  %v105 = vpack.c.b16 %v93, %v92
  %v106 = vpack.c.b16 %v95, %v94
  %v107 = vpack.c.b16 %v97, %v96
  %v108 = vpack.c.b16 %v99, %v98
  %v109 = vpack.c.b16 %v101, %v100
  %v114 = vunpack.c.l.b16 %v59
  %v115 = vunpack.c.l.b16 %v60
  %v116 = vunpack.c.l.b16 %v61
  %v117 = vunpack.c.l.b16 %v62
  %v118 = vpack.c.b16 %v115, %v114
  %v119 = vpack.c.b16 %v117, %v116
  %vm122 = vcmask 261120
  %v124 = vsel %vm122, %v102, 0
  %v127 = vsel %vm122, %v103, 0
  %v130 = vsel %vm122, %v104, 0
  %v133 = vsel %vm122, %v105, 0
  %v136 = vsel %vm122, %v106, 0
  %v139 = vsel %vm122, %v107, 0
  %v142 = vsel %vm122, %v108, 0
  %v145 = vsel %vm122, %v109, 0
  %147 = vmatprep.subr.bf16.mxu0 0
  %148 = vmatpush1.bf16.msra.mxu0 0
  %149 = vmatprep.subr.bf16.mxu0 0
  %150 = vmatpush1.bf16.msra.mxu0 0
  %151 = vmatprep.subr.bf16.mxu0 0
  %152 = vmatpush1.bf16.msra.mxu0 0
  %153 = vmatprep.subr.bf16.mxu0 0
  %154 = vmatpush1.bf16.msra.mxu0 0
  %155 = vmatprep.subr.bf16.mxu0 0
  %156 = vmatpush1.bf16.msra.mxu0 0
  %157 = vmatprep.subr.bf16.mxu0 0
  %158 = vmatpush1.bf16.msra.mxu0 0
  %159 = vmatprep.subr.bf16.mxu0 0
  %160 = vmatpush1.bf16.msra.mxu0 %v119
  %161 = vmatprep.subr.bf16.mxu0 0
  %162 = vmatpush1.bf16.msra.mxu0 %v118
  %163 = vmatprep.subr.bf16.mxu0 0
  %164 = vmatpush2.bf16.msra.mxu0 0
  %165 = vmatprep.subr.bf16.mxu0 0
  %166 = vmatpush2.bf16.msra.mxu0 0
  %167 = vmatprep.subr.bf16.mxu0 0
  %168 = vmatpush2.bf16.msra.mxu0 0
  %169 = vmatprep.subr.bf16.mxu0 0
  %170 = vmatpush2.bf16.msra.mxu0 0
  %171 = vmatprep.subr.bf16.mxu0 0
  %172 = vmatpush2.bf16.msra.mxu0 0
  %173 = vmatprep.subr.bf16.mxu0 0
  %174 = vmatpush2.bf16.msra.mxu0 0
  %175 = vmatprep.subr.bf16.mxu0 0
  %176 = vmatpush2.bf16.msra.mxu0 0
  %177 = vmatprep.subr.bf16.mxu0 0
  %178 = vmatpush2.bf16.msra.mxu0 0
  %179 = vmatprep.mubr.bf16.mxu0 0
  %180 = vmatmul.mubr.bf16.gmra.mxu0 %v124
  %v181 = vpop.f32.mrf.mxu0
  %v182 = vadd.f32 %v68, %v181
  %v183 = vpop.f32.mrf.mxu0
  %v184 = vpop.f32.mrf.mxu0
  %v185 = vadd.f32 %v68, %v184
  %v186 = vpop.f32.mrf.mxu0
  %187 = vmatprep.mubr.bf16.mxu0 0
  %188 = vmatmul.mubr.bf16.gmra.mxu0 %v127
  %v189 = vpop.f32.mrf.mxu0
  %v190 = vadd.f32 %v68, %v189
  %v191 = vpop.f32.mrf.mxu0
  %v192 = vpop.f32.mrf.mxu0
  %v193 = vadd.f32 %v68, %v192
  %v194 = vpop.f32.mrf.mxu0
  %195 = vmatprep.mubr.bf16.mxu0 0
  %196 = vmatmul.mubr.bf16.gmra.mxu0 %v130
  %v197 = vpop.f32.mrf.mxu0
  %v198 = vadd.f32 %v68, %v197
  %v199 = vpop.f32.mrf.mxu0
  %v200 = vpop.f32.mrf.mxu0
  %v201 = vadd.f32 %v68, %v200
  %v202 = vpop.f32.mrf.mxu0
  %203 = vmatprep.mubr.bf16.mxu0 0
  %204 = vmatmul.mubr.bf16.gmra.mxu0 %v133
  %v205 = vpop.f32.mrf.mxu0
  %v206 = vadd.f32 %v68, %v205
  %v207 = vpop.f32.mrf.mxu0
  %v208 = vpop.f32.mrf.mxu0
  %v209 = vadd.f32 %v68, %v208
  %v210 = vpop.f32.mrf.mxu0
  %211 = vmatprep.mubr.bf16.mxu0 0
  %212 = vmatmul.mubr.bf16.gmra.mxu0 %v136
  %v213 = vpop.f32.mrf.mxu0
  %v214 = vadd.f32 %v68, %v213
  %v215 = vpop.f32.mrf.mxu0
  %v216 = vpop.f32.mrf.mxu0
  %v217 = vadd.f32 %v68, %v216
  %v218 = vpop.f32.mrf.mxu0
  %219 = vmatprep.mubr.bf16.mxu0 0
  %220 = vmatmul.mubr.bf16.gmra.mxu0 %v139
  %v221 = vpop.f32.mrf.mxu0
  %v222 = vadd.f32 %v68, %v221
  %v223 = vpop.f32.mrf.mxu0
  %v224 = vpop.f32.mrf.mxu0
  %v225 = vadd.f32 %v68, %v224
  %v226 = vpop.f32.mrf.mxu0
  %227 = vmatprep.mubr.bf16.mxu0 0
  %228 = vmatmul.mubr.bf16.gmra.mxu0 %v142
  %v229 = vpop.f32.mrf.mxu0
  %v230 = vadd.f32 %v68, %v229
  %v231 = vpop.f32.mrf.mxu0
  %v232 = vpop.f32.mrf.mxu0
  %v233 = vadd.f32 %v68, %v232
  %v234 = vpop.f32.mrf.mxu0
  %235 = vmatprep.mubr.bf16.mxu0 0
  %236 = vmatmul.mubr.bf16.gmra.mxu0 %v145
  %v237 = vpop.f32.mrf.mxu0
  %v238 = vadd.f32 %v68, %v237
  %v239 = vpop.f32.mrf.mxu0
  %v240 = vpop.f32.mrf.mxu0
  %v241 = vadd.f32 %v68, %v240
  %v242 = vpop.f32.mrf.mxu0
  %243 = vdwg.mxu0
  %244 = vst.msk [vmem:[#allocation3] sm:$0xff] %vm122, %v182
  %245 = vst.msk [vmem:[#allocation3 + $0x8] sm:$0xff] %vm122, %v185
  %246 = vst.msk [vmem:[#allocation3 + $0x10] sm:$0xff] %vm122, %v190
  %247 = vst.msk [vmem:[#allocation3 + $0x18] sm:$0xff] %vm122, %v193
  %248 = vst.msk [vmem:[#allocation3 + $0x20] sm:$0xff] %vm122, %v198
  %249 = vst.msk [vmem:[#allocation3 + $0x28] sm:$0xff] %vm122, %v201
  %250 = vst.msk [vmem:[#allocation3 + $0x30] sm:$0xff] %vm122, %v206
  %251 = vst.msk [vmem:[#allocation3 + $0x38] sm:$0xff] %vm122, %v209
  %252 = vst.msk [vmem:[#allocation3 + $0x40] sm:$0xff] %vm122, %v214
  %253 = vst.msk [vmem:[#allocation3 + $0x48] sm:$0xff] %vm122, %v217
  %254 = vst.msk [vmem:[#allocation3 + $0x50] sm:$0xff] %vm122, %v222
  %255 = vst.msk [vmem:[#allocation3 + $0x58] sm:$0xff] %vm122, %v225
  %256 = vst.msk [vmem:[#allocation3 + $0x60] sm:$0xff] %vm122, %v230
  %257 = vst.msk [vmem:[#allocation3 + $0x68] sm:$0xff] %vm122, %v233
  %258 = vst.msk [vmem:[#allocation3 + $0x70] sm:$0xff] %vm122, %v238
  %259 = vst.msk [vmem:[#allocation3 + $0x78] sm:$0xff] %vm122, %v241
  %s260 = scalar_lea.vmem %s1, 16
  %v261 = vld [vmem:[%s260] sm:$0xf]
  %v262 = vld [vmem:[%s260 + $0x4] sm:$0xf]
  %v263 = vld [vmem:[%s260 + $0x8] sm:$0xf]
  %v264 = vld [vmem:[%s260 + $0xc] sm:$0xf]
  %s265 = scalar_lea.vmem %s3, 1
  %v266 = vld [vmem:[%s265] sm:$0x1]
  %v268 = vlaneseq
  %v269 = vshrl.u32 %v268, 7
  %v270 = vsub.s32 0, %v269
  %v271 = vrot.slane %v266, %v270
  %v277 = vunpack.c.l.b16 %v261
  %v278 = vunpack.c.l.b16 %v262
  %v279 = vunpack.c.l.b16 %v263
  %v280 = vunpack.c.l.b16 %v264
  %v281 = vpack.c.b16 %v278, %v277
  %v282 = vpack.c.b16 %v280, %v279
  %285 = vmatprep.subr.bf16.mxu0 0
  %286 = vmatpush1.bf16.msra.mxu0 0
  %287 = vmatprep.subr.bf16.mxu0 0
  %288 = vmatpush1.bf16.msra.mxu0 0
  %289 = vmatprep.subr.bf16.mxu0 0
  %290 = vmatpush1.bf16.msra.mxu0 0
  %291 = vmatprep.subr.bf16.mxu0 0
  %292 = vmatpush1.bf16.msra.mxu0 0
  %293 = vmatprep.subr.bf16.mxu0 0
  %294 = vmatpush1.bf16.msra.mxu0 0
  %295 = vmatprep.subr.bf16.mxu0 0
  %296 = vmatpush1.bf16.msra.mxu0 0
  %297 = vmatprep.subr.bf16.mxu0 0
  %298 = vmatpush1.bf16.msra.mxu0 %v282
  %299 = vmatprep.subr.bf16.mxu0 0
  %300 = vmatpush1.bf16.msra.mxu0 %v281
  %301 = vmatprep.subr.bf16.mxu0 0
  %302 = vmatpush2.bf16.msra.mxu0 0
  %303 = vmatprep.subr.bf16.mxu0 0
  %304 = vmatpush2.bf16.msra.mxu0 0
  %305 = vmatprep.subr.bf16.mxu0 0
  %306 = vmatpush2.bf16.msra.mxu0 0
  %307 = vmatprep.subr.bf16.mxu0 0
  %308 = vmatpush2.bf16.msra.mxu0 0
  %309 = vmatprep.subr.bf16.mxu0 0
  %310 = vmatpush2.bf16.msra.mxu0 0
  %311 = vmatprep.subr.bf16.mxu0 0
  %312 = vmatpush2.bf16.msra.mxu0 0
  %313 = vmatprep.subr.bf16.mxu0 0
  %314 = vmatpush2.bf16.msra.mxu0 0
  %315 = vmatprep.subr.bf16.mxu0 0
  %316 = vmatpush2.bf16.msra.mxu0 0
  %317 = vmatprep.mubr.bf16.mxu0 0
  %318 = vmatmul.mubr.bf16.gmra.mxu0 %v124
  %v319 = vpop.f32.mrf.mxu0
  %v320 = vadd.f32 %v271, %v319
  %v321 = vpop.f32.mrf.mxu0
  %v322 = vpop.f32.mrf.mxu0
  %v323 = vadd.f32 %v271, %v322
  %v324 = vpop.f32.mrf.mxu0
  %325 = vmatprep.mubr.bf16.mxu0 0
  %326 = vmatmul.mubr.bf16.gmra.mxu0 %v127
  %v327 = vpop.f32.mrf.mxu0
  %v328 = vadd.f32 %v271, %v327
  %v329 = vpop.f32.mrf.mxu0
  %v330 = vpop.f32.mrf.mxu0
  %v331 = vadd.f32 %v271, %v330
  %v332 = vpop.f32.mrf.mxu0
  %333 = vmatprep.mubr.bf16.mxu0 0
  %334 = vmatmul.mubr.bf16.gmra.mxu0 %v130
  %v335 = vpop.f32.mrf.mxu0
  %v336 = vadd.f32 %v271, %v335
  %v337 = vpop.f32.mrf.mxu0
  %v338 = vpop.f32.mrf.mxu0
  %v339 = vadd.f32 %v271, %v338
  %v340 = vpop.f32.mrf.mxu0
  %341 = vmatprep.mubr.bf16.mxu0 0
  %342 = vmatmul.mubr.bf16.gmra.mxu0 %v133
  %v343 = vpop.f32.mrf.mxu0
  %v344 = vadd.f32 %v271, %v343
  %v345 = vpop.f32.mrf.mxu0
  %v346 = vpop.f32.mrf.mxu0
  %v347 = vadd.f32 %v271, %v346
  %v348 = vpop.f32.mrf.mxu0
  %349 = vmatprep.mubr.bf16.mxu0 0
  %350 = vmatmul.mubr.bf16.gmra.mxu0 %v136
  %v351 = vpop.f32.mrf.mxu0
  %v352 = vadd.f32 %v271, %v351
  %v353 = vpop.f32.mrf.mxu0
  %v354 = vpop.f32.mrf.mxu0
  %v355 = vadd.f32 %v271, %v354
  %v356 = vpop.f32.mrf.mxu0
  %357 = vmatprep.mubr.bf16.mxu0 0
  %358 = vmatmul.mubr.bf16.gmra.mxu0 %v139
  %v359 = vpop.f32.mrf.mxu0
  %v360 = vadd.f32 %v271, %v359
  %v361 = vpop.f32.mrf.mxu0
  %v362 = vpop.f32.mrf.mxu0
  %v363 = vadd.f32 %v271, %v362
  %v364 = vpop.f32.mrf.mxu0
  %365 = vmatprep.mubr.bf16.mxu0 0
  %366 = vmatmul.mubr.bf16.gmra.mxu0 %v142
  %v367 = vpop.f32.mrf.mxu0
  %v368 = vadd.f32 %v271, %v367
  %v369 = vpop.f32.mrf.mxu0
  %v370 = vpop.f32.mrf.mxu0
  %v371 = vadd.f32 %v271, %v370
  %v372 = vpop.f32.mrf.mxu0
  %373 = vmatprep.mubr.bf16.mxu0 0
  %374 = vmatmul.mubr.bf16.gmra.mxu0 %v145
  %v375 = vpop.f32.mrf.mxu0
  %v376 = vadd.f32 %v271, %v375
  %v377 = vpop.f32.mrf.mxu0
  %v378 = vpop.f32.mrf.mxu0
  %v379 = vadd.f32 %v271, %v378
  %v380 = vpop.f32.mrf.mxu0
  %381 = vdwg.mxu0
  %382 = vst.msk [vmem:[#allocation4] sm:$0xff] %vm122, %v320
  %383 = vst.msk [vmem:[#allocation4 + $0x8] sm:$0xff] %vm122, %v323
  %384 = vst.msk [vmem:[#allocation4 + $0x10] sm:$0xff] %vm122, %v328
  %385 = vst.msk [vmem:[#allocation4 + $0x18] sm:$0xff] %vm122, %v331
  %386 = vst.msk [vmem:[#allocation4 + $0x20] sm:$0xff] %vm122, %v336
  %387 = vst.msk [vmem:[#allocation4 + $0x28] sm:$0xff] %vm122, %v339
  %388 = vst.msk [vmem:[#allocation4 + $0x30] sm:$0xff] %vm122, %v344
  %389 = vst.msk [vmem:[#allocation4 + $0x38] sm:$0xff] %vm122, %v347
  %390 = vst.msk [vmem:[#allocation4 + $0x40] sm:$0xff] %vm122, %v352
  %391 = vst.msk [vmem:[#allocation4 + $0x48] sm:$0xff] %vm122, %v355
  %392 = vst.msk [vmem:[#allocation4 + $0x50] sm:$0xff] %vm122, %v360
  %393 = vst.msk [vmem:[#allocation4 + $0x58] sm:$0xff] %vm122, %v363
  %394 = vst.msk [vmem:[#allocation4 + $0x60] sm:$0xff] %vm122, %v368
  %395 = vst.msk [vmem:[#allocation4 + $0x68] sm:$0xff] %vm122, %v371
  %396 = vst.msk [vmem:[#allocation4 + $0x70] sm:$0xff] %vm122, %v376
  %397 = vst.msk [vmem:[#allocation4 + $0x78] sm:$0xff] %vm122, %v379
  %s398 = scalar_lea.vmem %s1, 32
  %v399 = vld [vmem:[%s398] sm:$0xf]
  %v400 = vld [vmem:[%s398 + $0x4] sm:$0xf]
  %v401 = vld [vmem:[%s398 + $0x8] sm:$0xf]
  %v402 = vld [vmem:[%s398 + $0xc] sm:$0xf]
  %s403 = scalar_lea.vmem %s3, 2
  %v404 = vld [vmem:[%s403] sm:$0x1]
  %v406 = vlaneseq
  %v407 = vshrl.u32 %v406, 7
  %v408 = vsub.s32 0, %v407
  %v409 = vrot.slane %v404, %v408
  %v415 = vunpack.c.l.b16 %v399
  %v416 = vunpack.c.l.b16 %v400
  %v417 = vunpack.c.l.b16 %v401
  %v418 = vunpack.c.l.b16 %v402
  %v419 = vpack.c.b16 %v416, %v415
  %v420 = vpack.c.b16 %v418, %v417
  %423 = vmatprep.subr.bf16.mxu0 0
  %424 = vmatpush1.bf16.msra.mxu0 0
  %425 = vmatprep.subr.bf16.mxu0 0
  %426 = vmatpush1.bf16.msra.mxu0 0
  %427 = vmatprep.subr.bf16.mxu0 0
  %428 = vmatpush1.bf16.msra.mxu0 0
  %429 = vmatprep.subr.bf16.mxu0 0
  %430 = vmatpush1.bf16.msra.mxu0 0
  %431 = vmatprep.subr.bf16.mxu0 0
  %432 = vmatpush1.bf16.msra.mxu0 0
  %433 = vmatprep.subr.bf16.mxu0 0
  %434 = vmatpush1.bf16.msra.mxu0 0
  %435 = vmatprep.subr.bf16.mxu0 0
  %436 = vmatpush1.bf16.msra.mxu0 %v420
  %437 = vmatprep.subr.bf16.mxu0 0
  %438 = vmatpush1.bf16.msra.mxu0 %v419
  %439 = vmatprep.subr.bf16.mxu0 0
  %440 = vmatpush2.bf16.msra.mxu0 0
  %441 = vmatprep.subr.bf16.mxu0 0
  %442 = vmatpush2.bf16.msra.mxu0 0
  %443 = vmatprep.subr.bf16.mxu0 0
  %444 = vmatpush2.bf16.msra.mxu0 0
  %445 = vmatprep.subr.bf16.mxu0 0
  %446 = vmatpush2.bf16.msra.mxu0 0
  %447 = vmatprep.subr.bf16.mxu0 0
  %448 = vmatpush2.bf16.msra.mxu0 0
  %449 = vmatprep.subr.bf16.mxu0 0
  %450 = vmatpush2.bf16.msra.mxu0 0
  %451 = vmatprep.subr.bf16.mxu0 0
  %452 = vmatpush2.bf16.msra.mxu0 0
  %453 = vmatprep.subr.bf16.mxu0 0
  %454 = vmatpush2.bf16.msra.mxu0 0
  %455 = vmatprep.mubr.bf16.mxu0 0
  %456 = vmatmul.mubr.bf16.gmra.mxu0 %v124
  %v457 = vpop.f32.mrf.mxu0
  %v458 = vadd.f32 %v409, %v457
  %v459 = vpop.f32.mrf.mxu0
  %v460 = vpop.f32.mrf.mxu0
  %v461 = vadd.f32 %v409, %v460
  %v462 = vpop.f32.mrf.mxu0
  %463 = vmatprep.mubr.bf16.mxu0 0
  %464 = vmatmul.mubr.bf16.gmra.mxu0 %v127
  %v465 = vpop.f32.mrf.mxu0
  %v466 = vadd.f32 %v409, %v465
  %v467 = vpop.f32.mrf.mxu0
  %v468 = vpop.f32.mrf.mxu0
  %v469 = vadd.f32 %v409, %v468
  %v470 = vpop.f32.mrf.mxu0
  %471 = vmatprep.mubr.bf16.mxu0 0
  %472 = vmatmul.mubr.bf16.gmra.mxu0 %v130
  %v473 = vpop.f32.mrf.mxu0
  %v474 = vadd.f32 %v409, %v473
  %v475 = vpop.f32.mrf.mxu0
  %v476 = vpop.f32.mrf.mxu0
  %v477 = vadd.f32 %v409, %v476
  %v478 = vpop.f32.mrf.mxu0
  %479 = vmatprep.mubr.bf16.mxu0 0
  %480 = vmatmul.mubr.bf16.gmra.mxu0 %v133
  %v481 = vpop.f32.mrf.mxu0
  %v482 = vadd.f32 %v409, %v481
  %v483 = vpop.f32.mrf.mxu0
  %v484 = vpop.f32.mrf.mxu0
  %v485 = vadd.f32 %v409, %v484
  %v486 = vpop.f32.mrf.mxu0
  %487 = vmatprep.mubr.bf16.mxu0 0
  %488 = vmatmul.mubr.bf16.gmra.mxu0 %v136
  %v489 = vpop.f32.mrf.mxu0
  %v490 = vadd.f32 %v409, %v489
  %v491 = vpop.f32.mrf.mxu0
  %v492 = vpop.f32.mrf.mxu0
  %v493 = vadd.f32 %v409, %v492
  %v494 = vpop.f32.mrf.mxu0
  %495 = vmatprep.mubr.bf16.mxu0 0
  %496 = vmatmul.mubr.bf16.gmra.mxu0 %v139
  %v497 = vpop.f32.mrf.mxu0
  %v498 = vadd.f32 %v409, %v497
  %v499 = vpop.f32.mrf.mxu0
  %v500 = vpop.f32.mrf.mxu0
  %v501 = vadd.f32 %v409, %v500
  %v502 = vpop.f32.mrf.mxu0
  %503 = vmatprep.mubr.bf16.mxu0 0
  %504 = vmatmul.mubr.bf16.gmra.mxu0 %v142
  %v505 = vpop.f32.mrf.mxu0
  %v506 = vadd.f32 %v409, %v505
  %v507 = vpop.f32.mrf.mxu0
  %v508 = vpop.f32.mrf.mxu0
  %v509 = vadd.f32 %v409, %v508
  %v510 = vpop.f32.mrf.mxu0
  %511 = vmatprep.mubr.bf16.mxu0 0
  %512 = vmatmul.mubr.bf16.gmra.mxu0 %v145
  %v513 = vpop.f32.mrf.mxu0
  %v514 = vadd.f32 %v409, %v513
  %v515 = vpop.f32.mrf.mxu0
  %v516 = vpop.f32.mrf.mxu0
  %v517 = vadd.f32 %v409, %v516
  %v518 = vpop.f32.mrf.mxu0
  %519 = vdwg.mxu0
  %520 = vst.msk [vmem:[#allocation5] sm:$0xff] %vm122, %v458
  %521 = vst.msk [vmem:[#allocation5 + $0x8] sm:$0xff] %vm122, %v461
  %522 = vst.msk [vmem:[#allocation5 + $0x10] sm:$0xff] %vm122, %v466
  %523 = vst.msk [vmem:[#allocation5 + $0x18] sm:$0xff] %vm122, %v469
  %524 = vst.msk [vmem:[#allocation5 + $0x20] sm:$0xff] %vm122, %v474
  %525 = vst.msk [vmem:[#allocation5 + $0x28] sm:$0xff] %vm122, %v477
  %526 = vst.msk [vmem:[#allocation5 + $0x30] sm:$0xff] %vm122, %v482
  %527 = vst.msk [vmem:[#allocation5 + $0x38] sm:$0xff] %vm122, %v485
  %528 = vst.msk [vmem:[#allocation5 + $0x40] sm:$0xff] %vm122, %v490
  %529 = vst.msk [vmem:[#allocation5 + $0x48] sm:$0xff] %vm122, %v493
  %530 = vst.msk [vmem:[#allocation5 + $0x50] sm:$0xff] %vm122, %v498
  %531 = vst.msk [vmem:[#allocation5 + $0x58] sm:$0xff] %vm122, %v501
  %532 = vst.msk [vmem:[#allocation5 + $0x60] sm:$0xff] %vm122, %v506
  %533 = vst.msk [vmem:[#allocation5 + $0x68] sm:$0xff] %vm122, %v509
  %534 = vst.msk [vmem:[#allocation5 + $0x70] sm:$0xff] %vm122, %v514
  %535 = vst.msk [vmem:[#allocation5 + $0x78] sm:$0xff] %vm122, %v517
  %v536 = vld [vmem:[%s2] sm:$0xf]
  %v537 = vld [vmem:[%s2 + $0x4] sm:$0xf]
  %v538 = vld [vmem:[%s2 + $0x8] sm:$0xf]
  %v539 = vld [vmem:[%s2 + $0xc] sm:$0xf]
  %s540 = scalar_lea.vmem %s2, 16
  %v541 = vld [vmem:[%s540] sm:$0xf]
  %v542 = vld [vmem:[%s540 + $0x4] sm:$0xf]
  %v543 = vld [vmem:[%s540 + $0x8] sm:$0xf]
  %v544 = vld [vmem:[%s540 + $0xc] sm:$0xf]
  %s545 = scalar_lea.vmem %s2, 32
  %v546 = vld [vmem:[%s545] sm:$0xf]
  %v547 = vld [vmem:[%s545 + $0x4] sm:$0xf]
  %v548 = vld [vmem:[%s545 + $0x8] sm:$0xf]
  %v549 = vld [vmem:[%s545 + $0xc] sm:$0xf]
  %v550 = vld [vmem:[%s4] sm:$0x1]
  %s551 = scalar_lea.vmem %s4, 1
  %v552 = vld [vmem:[%s551] sm:$0x1]
  %s553 = scalar_lea.vmem %s4, 2
  %v554 = vld [vmem:[%s553] sm:$0x1]
  %v555 = vld [vmem:[#allocation2] sm:$0xff]
  %v556 = vpack.c.bf16 %v555, %v555
  %v558 = vlaneseq
  %v559 = vshrl.u32 %v558, 7
  %v560 = vsub.s32 0, %v559
  %v561 = vrot.slane %v550, %v560
  %v567 = vunpack.c.l.b16 %v536
  %v568 = vunpack.c.l.b16 %v537
  %v569 = vunpack.c.l.b16 %v538
  %v570 = vunpack.c.l.b16 %v539
  %v571 = vpack.c.b16 %v568, %v567
  %v572 = vpack.c.b16 %v570, %v569
  %v576 = vsel %vm122, %v556, 0
  %578 = vmatprep.subr.bf16.mxu0 0
  %579 = vmatpush1.bf16.msra.mxu0 0
  %580 = vmatprep.subr.bf16.mxu0 0
  %581 = vmatpush1.bf16.msra.mxu0 0
  %582 = vmatprep.subr.bf16.mxu0 0
  %583 = vmatpush1.bf16.msra.mxu0 0
  %584 = vmatprep.subr.bf16.mxu0 0
  %585 = vmatpush1.bf16.msra.mxu0 0
  %586 = vmatprep.subr.bf16.mxu0 0
  %587 = vmatpush1.bf16.msra.mxu0 0
  %588 = vmatprep.subr.bf16.mxu0 0
  %589 = vmatpush1.bf16.msra.mxu0 0
  %590 = vmatprep.subr.bf16.mxu0 0
  %591 = vmatpush1.bf16.msra.mxu0 %v572
  %592 = vmatprep.subr.bf16.mxu0 0
  %593 = vmatpush1.bf16.msra.mxu0 %v571
  %594 = vmatprep.subr.bf16.mxu0 0
  %595 = vmatpush2.bf16.msra.mxu0 0
  %596 = vmatprep.subr.bf16.mxu0 0
  %597 = vmatpush2.bf16.msra.mxu0 0
  %598 = vmatprep.subr.bf16.mxu0 0
  %599 = vmatpush2.bf16.msra.mxu0 0
  %600 = vmatprep.subr.bf16.mxu0 0
  %601 = vmatpush2.bf16.msra.mxu0 0
  %602 = vmatprep.subr.bf16.mxu0 0
  %603 = vmatpush2.bf16.msra.mxu0 0
  %604 = vmatprep.subr.bf16.mxu0 0
  %605 = vmatpush2.bf16.msra.mxu0 0
  %606 = vmatprep.subr.bf16.mxu0 0
  %607 = vmatpush2.bf16.msra.mxu0 0
  %608 = vmatprep.subr.bf16.mxu0 0
  %609 = vmatpush2.bf16.msra.mxu0 0
  %610 = vmatprep.mubr.bf16.mxu0 0
  %611 = vmatmul.mubr.bf16.gmra.mxu0 %v576
  %v612 = vpop.f32.mrf.mxu0
  %v613 = vadd.f32 %v561, %v612
  %v614 = vpop.f32.mrf.mxu0
  %v615 = vpop.f32.mrf.mxu0
  %v616 = vpop.f32.mrf.mxu0
  %617 = vdwg.mxu0
  %v619 = vlaneseq
  %v620 = vshrl.u32 %v619, 7
  %v621 = vsub.s32 0, %v620
  %v622 = vrot.slane %v552, %v621
  %v628 = vunpack.c.l.b16 %v541
  %v629 = vunpack.c.l.b16 %v542
  %v630 = vunpack.c.l.b16 %v543
  %v631 = vunpack.c.l.b16 %v544
  %v632 = vpack.c.b16 %v629, %v628
  %v633 = vpack.c.b16 %v631, %v630
  %636 = vmatprep.subr.bf16.mxu0 0
  %637 = vmatpush1.bf16.msra.mxu0 0
  %638 = vmatprep.subr.bf16.mxu0 0
  %639 = vmatpush1.bf16.msra.mxu0 0
  %640 = vmatprep.subr.bf16.mxu0 0
  %641 = vmatpush1.bf16.msra.mxu0 0
  %642 = vmatprep.subr.bf16.mxu0 0
  %643 = vmatpush1.bf16.msra.mxu0 0
  %644 = vmatprep.subr.bf16.mxu0 0
  %645 = vmatpush1.bf16.msra.mxu0 0
  %646 = vmatprep.subr.bf16.mxu0 0
  %647 = vmatpush1.bf16.msra.mxu0 0
  %648 = vmatprep.subr.bf16.mxu0 0
  %649 = vmatpush1.bf16.msra.mxu0 %v633
  %650 = vmatprep.subr.bf16.mxu0 0
  %651 = vmatpush1.bf16.msra.mxu0 %v632
  %652 = vmatprep.subr.bf16.mxu0 0
  %653 = vmatpush2.bf16.msra.mxu0 0
  %654 = vmatprep.subr.bf16.mxu0 0
  %655 = vmatpush2.bf16.msra.mxu0 0
  %656 = vmatprep.subr.bf16.mxu0 0
  %657 = vmatpush2.bf16.msra.mxu0 0
  %658 = vmatprep.subr.bf16.mxu0 0
  %659 = vmatpush2.bf16.msra.mxu0 0
  %660 = vmatprep.subr.bf16.mxu0 0
  %661 = vmatpush2.bf16.msra.mxu0 0
  %662 = vmatprep.subr.bf16.mxu0 0
  %663 = vmatpush2.bf16.msra.mxu0 0
  %664 = vmatprep.subr.bf16.mxu0 0
  %665 = vmatpush2.bf16.msra.mxu0 0
  %666 = vmatprep.subr.bf16.mxu0 0
  %667 = vmatpush2.bf16.msra.mxu0 0
  %668 = vmatprep.mubr.bf16.mxu0 0
  %669 = vmatmul.mubr.bf16.gmra.mxu0 %v576
  %v670 = vpop.f32.mrf.mxu0
  %v671 = vadd.f32 %v622, %v670
  %v672 = vpop.f32.mrf.mxu0
  %v673 = vpop.f32.mrf.mxu0
  %v674 = vpop.f32.mrf.mxu0
  %675 = vdwg.mxu0
  %v677 = vlaneseq
  %v678 = vshrl.u32 %v677, 7
  %v679 = vsub.s32 0, %v678
  %v680 = vrot.slane %v554, %v679
  %v686 = vunpack.c.l.b16 %v546
  %v687 = vunpack.c.l.b16 %v547
  %v688 = vunpack.c.l.b16 %v548
  %v689 = vunpack.c.l.b16 %v549
  %v690 = vpack.c.b16 %v687, %v686
  %v691 = vpack.c.b16 %v689, %v688
  %694 = vmatprep.subr.bf16.mxu0 0
  %695 = vmatpush1.bf16.msra.mxu0 0
  %696 = vmatprep.subr.bf16.mxu0 0
  %697 = vmatpush1.bf16.msra.mxu0 0
  %698 = vmatprep.subr.bf16.mxu0 0
  %699 = vmatpush1.bf16.msra.mxu0 0
  %700 = vmatprep.subr.bf16.mxu0 0
  %701 = vmatpush1.bf16.msra.mxu0 0
  %702 = vmatprep.subr.bf16.mxu0 0
  %703 = vmatpush1.bf16.msra.mxu0 0
  %704 = vmatprep.subr.bf16.mxu0 0
  %705 = vmatpush1.bf16.msra.mxu0 0
  %706 = vmatprep.subr.bf16.mxu0 0
  %707 = vmatpush1.bf16.msra.mxu0 %v691
  %708 = vmatprep.subr.bf16.mxu0 0
  %709 = vmatpush1.bf16.msra.mxu0 %v690
  %710 = vmatprep.subr.bf16.mxu0 0
  %711 = vmatpush2.bf16.msra.mxu0 0
  %712 = vmatprep.subr.bf16.mxu0 0
  %713 = vmatpush2.bf16.msra.mxu0 0
  %714 = vmatprep.subr.bf16.mxu0 0
  %715 = vmatpush2.bf16.msra.mxu0 0
  %716 = vmatprep.subr.bf16.mxu0 0
  %717 = vmatpush2.bf16.msra.mxu0 0
  %718 = vmatprep.subr.bf16.mxu0 0
  %719 = vmatpush2.bf16.msra.mxu0 0
  %720 = vmatprep.subr.bf16.mxu0 0
  %721 = vmatpush2.bf16.msra.mxu0 0
  %722 = vmatprep.subr.bf16.mxu0 0
  %723 = vmatpush2.bf16.msra.mxu0 0
  %724 = vmatprep.subr.bf16.mxu0 0
  %725 = vmatpush2.bf16.msra.mxu0 0
  %726 = vmatprep.mubr.bf16.mxu0 0
  %727 = vmatmul.mubr.bf16.gmra.mxu0 %v576
  %v728 = vpop.f32.mrf.mxu0
  %v729 = vadd.f32 %v680, %v728
  %v730 = vpop.f32.mrf.mxu0
  %v731 = vpop.f32.mrf.mxu0
  %v732 = vpop.f32.mrf.mxu0
  %733 = vdwg.mxu0
  %v734 = vld [vmem:[#allocation3] sm:$0xff]
  %v735 = vadd.f32 %v734, %v613
  %v736 = vxor.u32 %v735, 2147483648
  %v737 = vmul.f32 %v736, 1.442695
  %v738 = vpow.pop %v737
  %v739 = vadd.f32 %v738, 1.0
  %v740 = vrcp.pop %v739
  %v741 = vmul.f32 1.0, %v740
  %v742 = vld [vmem:[#allocation4] sm:$0xff]
  %v743 = vadd.f32 %v742, %v671
  %v744 = vxor.u32 %v743, 2147483648
  %v745 = vmul.f32 %v744, 1.442695
  %v746 = vpow.pop %v745
  %v747 = vadd.f32 %v746, 1.0
  %v748 = vrcp.pop %v747
  %v749 = vmul.f32 1.0, %v748
  %v750 = vld [vmem:[#allocation5] sm:$0xff]
  %v751 = vmul.f32 %v741, %v729
  %v752 = vadd.f32 %v750, %v751
  %v753 = vtanh.pop %v752
  %v754 = vsub.f32 1.0, %v749
  %v755 = vmul.f32 %v754, %v753
  %v756 = vmul.f32 %v749, %v555
  %v757 = vadd.f32 %v755, %v756
  %758 = vst.msk [vmem:[%s5] sm:$0xff] %vm122, %v757
  %v759 = vpack.c.bf16 %v757, %v757
  %v761 = vsel %vm122, %v759, 0
  %763 = vmatprep.subr.bf16.mxu0 0
  %764 = vmatpush1.bf16.msra.mxu0 0
  %765 = vmatprep.subr.bf16.mxu0 0
  %766 = vmatpush1.bf16.msra.mxu0 0
  %767 = vmatprep.subr.bf16.mxu0 0
  %768 = vmatpush1.bf16.msra.mxu0 0
  %769 = vmatprep.subr.bf16.mxu0 0
  %770 = vmatpush1.bf16.msra.mxu0 0
  %771 = vmatprep.subr.bf16.mxu0 0
  %772 = vmatpush1.bf16.msra.mxu0 0
  %773 = vmatprep.subr.bf16.mxu0 0
  %774 = vmatpush1.bf16.msra.mxu0 0
  %775 = vmatprep.subr.bf16.mxu0 0
  %776 = vmatpush1.bf16.msra.mxu0 %v572
  %777 = vmatprep.subr.bf16.mxu0 0
  %778 = vmatpush1.bf16.msra.mxu0 %v571
  %779 = vmatprep.subr.bf16.mxu0 0
  %780 = vmatpush2.bf16.msra.mxu0 0
  %781 = vmatprep.subr.bf16.mxu0 0
  %782 = vmatpush2.bf16.msra.mxu0 0
  %783 = vmatprep.subr.bf16.mxu0 0
  %784 = vmatpush2.bf16.msra.mxu0 0
  %785 = vmatprep.subr.bf16.mxu0 0
  %786 = vmatpush2.bf16.msra.mxu0 0
  %787 = vmatprep.subr.bf16.mxu0 0
  %788 = vmatpush2.bf16.msra.mxu0 0
  %789 = vmatprep.subr.bf16.mxu0 0
  %790 = vmatpush2.bf16.msra.mxu0 0
  %791 = vmatprep.subr.bf16.mxu0 0
  %792 = vmatpush2.bf16.msra.mxu0 0
  %793 = vmatprep.subr.bf16.mxu0 0
  %794 = vmatpush2.bf16.msra.mxu0 0
  %795 = vmatprep.mubr.bf16.mxu0 0
  %796 = vmatmul.mubr.bf16.gmra.mxu0 %v761
  %v797 = vpop.f32.mrf.mxu0
  %v798 = vadd.f32 %v561, %v797
  %v799 = vpop.f32.mrf.mxu0
  %v800 = vpop.f32.mrf.mxu0
  %v801 = vpop.f32.mrf.mxu0
  %802 = vdwg.mxu0
  %803 = vmatprep.subr.bf16.mxu0 0
  %804 = vmatpush1.bf16.msra.mxu0 0
  %805 = vmatprep.subr.bf16.mxu0 0
  %806 = vmatpush1.bf16.msra.mxu0 0
  %807 = vmatprep.subr.bf16.mxu0 0
  %808 = vmatpush1.bf16.msra.mxu0 0
  %809 = vmatprep.subr.bf16.mxu0 0
  %810 = vmatpush1.bf16.msra.mxu0 0
  %811 = vmatprep.subr.bf16.mxu0 0
  %812 = vmatpush1.bf16.msra.mxu0 0
  %813 = vmatprep.subr.bf16.mxu0 0
  %814 = vmatpush1.bf16.msra.mxu0 0
  %815 = vmatprep.subr.bf16.mxu0 0
  %816 = vmatpush1.bf16.msra.mxu0 %v633
  %817 = vmatprep.subr.bf16.mxu0 0
  %818 = vmatpush1.bf16.msra.mxu0 %v632
  %819 = vmatprep.subr.bf16.mxu0 0
  %820 = vmatpush2.bf16.msra.mxu0 0
  %821 = vmatprep.subr.bf16.mxu0 0
  %822 = vmatpush2.bf16.msra.mxu0 0
  %823 = vmatprep.subr.bf16.mxu0 0
  %824 = vmatpush2.bf16.msra.mxu0 0
  %825 = vmatprep.subr.bf16.mxu0 0
  %826 = vmatpush2.bf16.msra.mxu0 0
  %827 = vmatprep.subr.bf16.mxu0 0
  %828 = vmatpush2.bf16.msra.mxu0 0
  %829 = vmatprep.subr.bf16.mxu0 0
  %830 = vmatpush2.bf16.msra.mxu0 0
  %831 = vmatprep.subr.bf16.mxu0 0
  %832 = vmatpush2.bf16.msra.mxu0 0
  %833 = vmatprep.subr.bf16.mxu0 0
  %834 = vmatpush2.bf16.msra.mxu0 0
  %835 = vmatprep.mubr.bf16.mxu0 0
  %836 = vmatmul.mubr.bf16.gmra.mxu0 %v761
  %v837 = vpop.f32.mrf.mxu0
  %v838 = vadd.f32 %v622, %v837
  %v839 = vpop.f32.mrf.mxu0
  %v840 = vpop.f32.mrf.mxu0
  %v841 = vpop.f32.mrf.mxu0
  %842 = vdwg.mxu0
  %843 = vmatprep.subr.bf16.mxu0 0
  %844 = vmatpush1.bf16.msra.mxu0 0
  %845 = vmatprep.subr.bf16.mxu0 0
  %846 = vmatpush1.bf16.msra.mxu0 0
  %847 = vmatprep.subr.bf16.mxu0 0
  %848 = vmatpush1.bf16.msra.mxu0 0
  %849 = vmatprep.subr.bf16.mxu0 0
  %850 = vmatpush1.bf16.msra.mxu0 0
  %851 = vmatprep.subr.bf16.mxu0 0
  %852 = vmatpush1.bf16.msra.mxu0 0
  %853 = vmatprep.subr.bf16.mxu0 0
  %854 = vmatpush1.bf16.msra.mxu0 0
  %855 = vmatprep.subr.bf16.mxu0 0
  %856 = vmatpush1.bf16.msra.mxu0 %v691
  %857 = vmatprep.subr.bf16.mxu0 0
  %858 = vmatpush1.bf16.msra.mxu0 %v690
  %859 = vmatprep.subr.bf16.mxu0 0
  %860 = vmatpush2.bf16.msra.mxu0 0
  %861 = vmatprep.subr.bf16.mxu0 0
  %862 = vmatpush2.bf16.msra.mxu0 0
  %863 = vmatprep.subr.bf16.mxu0 0
  %864 = vmatpush2.bf16.msra.mxu0 0
  %865 = vmatprep.subr.bf16.mxu0 0
  %866 = vmatpush2.bf16.msra.mxu0 0
  %867 = vmatprep.subr.bf16.mxu0 0
  %868 = vmatpush2.bf16.msra.mxu0 0
  %869 = vmatprep.subr.bf16.mxu0 0
  %870 = vmatpush2.bf16.msra.mxu0 0
  %871 = vmatprep.subr.bf16.mxu0 0
  %872 = vmatpush2.bf16.msra.mxu0 0
  %873 = vmatprep.subr.bf16.mxu0 0
  %874 = vmatpush2.bf16.msra.mxu0 0
  %875 = vmatprep.mubr.bf16.mxu0 0
  %876 = vmatmul.mubr.bf16.gmra.mxu0 %v761
  %v877 = vpop.f32.mrf.mxu0
  %v878 = vadd.f32 %v680, %v877
  %v879 = vpop.f32.mrf.mxu0
  %v880 = vpop.f32.mrf.mxu0
  %v881 = vpop.f32.mrf.mxu0
  %882 = vdwg.mxu0
  %s883 = scalar_lea.vmem [#allocation3], 8
  %v884 = vld [vmem:[%s883] sm:$0xff]
  %v885 = vadd.f32 %v884, %v798
  %v886 = vxor.u32 %v885, 2147483648
  %v887 = vmul.f32 %v886, 1.442695
  %v888 = vpow.pop %v887
  %v889 = vadd.f32 %v888, 1.0
  %v890 = vrcp.pop %v889
  %v891 = vmul.f32 1.0, %v890
  %s892 = scalar_lea.vmem [#allocation4], 8
  %v893 = vld [vmem:[%s892] sm:$0xff]
  %v894 = vadd.f32 %v893, %v838
  %v895 = vxor.u32 %v894, 2147483648
  %v896 = vmul.f32 %v895, 1.442695
  %v897 = vpow.pop %v896
  %v898 = vadd.f32 %v897, 1.0
  %v899 = vrcp.pop %v898
  %v900 = vmul.f32 1.0, %v899
  %s901 = scalar_lea.vmem [#allocation5], 8
  %v902 = vld [vmem:[%s901] sm:$0xff]
  %v903 = vmul.f32 %v891, %v878
  %v904 = vadd.f32 %v902, %v903
  %v905 = vtanh.pop %v904
  %v906 = vsub.f32 1.0, %v900
  %v907 = vmul.f32 %v906, %v905
  %v908 = vmul.f32 %v900, %v757
  %v909 = vadd.f32 %v907, %v908
  %s910 = scalar_lea.vmem %s5, 8
  %911 = vst.msk [vmem:[%s910] sm:$0xff] %vm122, %v909
  %v912 = vpack.c.bf16 %v909, %v909
  %v914 = vsel %vm122, %v912, 0
  %916 = vmatprep.subr.bf16.mxu0 0
  %917 = vmatpush1.bf16.msra.mxu0 0
  %918 = vmatprep.subr.bf16.mxu0 0
  %919 = vmatpush1.bf16.msra.mxu0 0
  %920 = vmatprep.subr.bf16.mxu0 0
  %921 = vmatpush1.bf16.msra.mxu0 0
  %922 = vmatprep.subr.bf16.mxu0 0
  %923 = vmatpush1.bf16.msra.mxu0 0
  %924 = vmatprep.subr.bf16.mxu0 0
  %925 = vmatpush1.bf16.msra.mxu0 0
  %926 = vmatprep.subr.bf16.mxu0 0
  %927 = vmatpush1.bf16.msra.mxu0 0
  %928 = vmatprep.subr.bf16.mxu0 0
  %929 = vmatpush1.bf16.msra.mxu0 %v572
  %930 = vmatprep.subr.bf16.mxu0 0
  %931 = vmatpush1.bf16.msra.mxu0 %v571
  %932 = vmatprep.subr.bf16.mxu0 0
  %933 = vmatpush2.bf16.msra.mxu0 0
  %934 = vmatprep.subr.bf16.mxu0 0
  %935 = vmatpush2.bf16.msra.mxu0 0
  %936 = vmatprep.subr.bf16.mxu0 0
  %937 = vmatpush2.bf16.msra.mxu0 0
  %938 = vmatprep.subr.bf16.mxu0 0
  %939 = vmatpush2.bf16.msra.mxu0 0
  %940 = vmatprep.subr.bf16.mxu0 0
  %941 = vmatpush2.bf16.msra.mxu0 0
  %942 = vmatprep.subr.bf16.mxu0 0
  %943 = vmatpush2.bf16.msra.mxu0 0
  %944 = vmatprep.subr.bf16.mxu0 0
  %945 = vmatpush2.bf16.msra.mxu0 0
  %946 = vmatprep.subr.bf16.mxu0 0
  %947 = vmatpush2.bf16.msra.mxu0 0
  %948 = vmatprep.mubr.bf16.mxu0 0
  %949 = vmatmul.mubr.bf16.gmra.mxu0 %v914
  %v950 = vpop.f32.mrf.mxu0
  %v951 = vadd.f32 %v561, %v950
  %v952 = vpop.f32.mrf.mxu0
  %v953 = vpop.f32.mrf.mxu0
  %v954 = vpop.f32.mrf.mxu0
  %955 = vdwg.mxu0
  %956 = vmatprep.subr.bf16.mxu0 0
  %957 = vmatpush1.bf16.msra.mxu0 0
  %958 = vmatprep.subr.bf16.mxu0 0
  %959 = vmatpush1.bf16.msra.mxu0 0
  %960 = vmatprep.subr.bf16.mxu0 0
  %961 = vmatpush1.bf16.msra.mxu0 0
  %962 = vmatprep.subr.bf16.mxu0 0
  %963 = vmatpush1.bf16.msra.mxu0 0
  %964 = vmatprep.subr.bf16.mxu0 0
  %965 = vmatpush1.bf16.msra.mxu0 0
  %966 = vmatprep.subr.bf16.mxu0 0
  %967 = vmatpush1.bf16.msra.mxu0 0
  %968 = vmatprep.subr.bf16.mxu0 0
  %969 = vmatpush1.bf16.msra.mxu0 %v633
  %970 = vmatprep.subr.bf16.mxu0 0
  %971 = vmatpush1.bf16.msra.mxu0 %v632
  %972 = vmatprep.subr.bf16.mxu0 0
  %973 = vmatpush2.bf16.msra.mxu0 0
  %974 = vmatprep.subr.bf16.mxu0 0
  %975 = vmatpush2.bf16.msra.mxu0 0
  %976 = vmatprep.subr.bf16.mxu0 0
  %977 = vmatpush2.bf16.msra.mxu0 0
  %978 = vmatprep.subr.bf16.mxu0 0
  %979 = vmatpush2.bf16.msra.mxu0 0
  %980 = vmatprep.subr.bf16.mxu0 0
  %981 = vmatpush2.bf16.msra.mxu0 0
  %982 = vmatprep.subr.bf16.mxu0 0
  %983 = vmatpush2.bf16.msra.mxu0 0
  %984 = vmatprep.subr.bf16.mxu0 0
  %985 = vmatpush2.bf16.msra.mxu0 0
  %986 = vmatprep.subr.bf16.mxu0 0
  %987 = vmatpush2.bf16.msra.mxu0 0
  %988 = vmatprep.mubr.bf16.mxu0 0
  %989 = vmatmul.mubr.bf16.gmra.mxu0 %v914
  %v990 = vpop.f32.mrf.mxu0
  %v991 = vadd.f32 %v622, %v990
  %v992 = vpop.f32.mrf.mxu0
  %v993 = vpop.f32.mrf.mxu0
  %v994 = vpop.f32.mrf.mxu0
  %995 = vdwg.mxu0
  %996 = vmatprep.subr.bf16.mxu0 0
  %997 = vmatpush1.bf16.msra.mxu0 0
  %998 = vmatprep.subr.bf16.mxu0 0
  %999 = vmatpush1.bf16.msra.mxu0 0
  %1000 = vmatprep.subr.bf16.mxu0 0
  %1001 = vmatpush1.bf16.msra.mxu0 0
  %1002 = vmatprep.subr.bf16.mxu0 0
  %1003 = vmatpush1.bf16.msra.mxu0 0
  %1004 = vmatprep.subr.bf16.mxu0 0
  %1005 = vmatpush1.bf16.msra.mxu0 0
  %1006 = vmatprep.subr.bf16.mxu0 0
  %1007 = vmatpush1.bf16.msra.mxu0 0
  %1008 = vmatprep.subr.bf16.mxu0 0
  %1009 = vmatpush1.bf16.msra.mxu0 %v691
  %1010 = vmatprep.subr.bf16.mxu0 0
  %1011 = vmatpush1.bf16.msra.mxu0 %v690
  %1012 = vmatprep.subr.bf16.mxu0 0
  %1013 = vmatpush2.bf16.msra.mxu0 0
  %1014 = vmatprep.subr.bf16.mxu0 0
  %1015 = vmatpush2.bf16.msra.mxu0 0
  %1016 = vmatprep.subr.bf16.mxu0 0
  %1017 = vmatpush2.bf16.msra.mxu0 0
  %1018 = vmatprep.subr.bf16.mxu0 0
  %1019 = vmatpush2.bf16.msra.mxu0 0
  %1020 = vmatprep.subr.bf16.mxu0 0
  %1021 = vmatpush2.bf16.msra.mxu0 0
  %1022 = vmatprep.subr.bf16.mxu0 0
  %1023 = vmatpush2.bf16.msra.mxu0 0
  %1024 = vmatprep.subr.bf16.mxu0 0
  %1025 = vmatpush2.bf16.msra.mxu0 0
  %1026 = vmatprep.subr.bf16.mxu0 0
  %1027 = vmatpush2.bf16.msra.mxu0 0
  %1028 = vmatprep.mubr.bf16.mxu0 0
  %1029 = vmatmul.mubr.bf16.gmra.mxu0 %v914
  %v1030 = vpop.f32.mrf.mxu0
  %v1031 = vadd.f32 %v680, %v1030
  %v1032 = vpop.f32.mrf.mxu0
  %v1033 = vpop.f32.mrf.mxu0
  %v1034 = vpop.f32.mrf.mxu0
  %1035 = vdwg.mxu0
  %s1036 = scalar_lea.vmem [#allocation3], 16
  %v1037 = vld [vmem:[%s1036] sm:$0xff]
  %v1038 = vadd.f32 %v1037, %v951
  %v1039 = vxor.u32 %v1038, 2147483648
  %v1040 = vmul.f32 %v1039, 1.442695
  %v1041 = vpow.pop %v1040
  %v1042 = vadd.f32 %v1041, 1.0
  %v1043 = vrcp.pop %v1042
  %v1044 = vmul.f32 1.0, %v1043
  %s1045 = scalar_lea.vmem [#allocation4], 16
  %v1046 = vld [vmem:[%s1045] sm:$0xff]
  %v1047 = vadd.f32 %v1046, %v991
  %v1048 = vxor.u32 %v1047, 2147483648
  %v1049 = vmul.f32 %v1048, 1.442695
  %v1050 = vpow.pop %v1049
  %v1051 = vadd.f32 %v1050, 1.0
  %v1052 = vrcp.pop %v1051
  %v1053 = vmul.f32 1.0, %v1052
  %s1054 = scalar_lea.vmem [#allocation5], 16
  %v1055 = vld [vmem:[%s1054] sm:$0xff]
  %v1056 = vmul.f32 %v1044, %v1031
  %v1057 = vadd.f32 %v1055, %v1056
  %v1058 = vtanh.pop %v1057
  %v1059 = vsub.f32 1.0, %v1053
  %v1060 = vmul.f32 %v1059, %v1058
  %v1061 = vmul.f32 %v1053, %v909
  %v1062 = vadd.f32 %v1060, %v1061
  %s1063 = scalar_lea.vmem %s5, 16
  %1064 = vst.msk [vmem:[%s1063] sm:$0xff] %vm122, %v1062
  %v1065 = vpack.c.bf16 %v1062, %v1062
  %v1067 = vsel %vm122, %v1065, 0
  %1069 = vmatprep.subr.bf16.mxu0 0
  %1070 = vmatpush1.bf16.msra.mxu0 0
  %1071 = vmatprep.subr.bf16.mxu0 0
  %1072 = vmatpush1.bf16.msra.mxu0 0
  %1073 = vmatprep.subr.bf16.mxu0 0
  %1074 = vmatpush1.bf16.msra.mxu0 0
  %1075 = vmatprep.subr.bf16.mxu0 0
  %1076 = vmatpush1.bf16.msra.mxu0 0
  %1077 = vmatprep.subr.bf16.mxu0 0
  %1078 = vmatpush1.bf16.msra.mxu0 0
  %1079 = vmatprep.subr.bf16.mxu0 0
  %1080 = vmatpush1.bf16.msra.mxu0 0
  %1081 = vmatprep.subr.bf16.mxu0 0
  %1082 = vmatpush1.bf16.msra.mxu0 %v572
  %1083 = vmatprep.subr.bf16.mxu0 0
  %1084 = vmatpush1.bf16.msra.mxu0 %v571
  %1085 = vmatprep.subr.bf16.mxu0 0
  %1086 = vmatpush2.bf16.msra.mxu0 0
  %1087 = vmatprep.subr.bf16.mxu0 0
  %1088 = vmatpush2.bf16.msra.mxu0 0
  %1089 = vmatprep.subr.bf16.mxu0 0
  %1090 = vmatpush2.bf16.msra.mxu0 0
  %1091 = vmatprep.subr.bf16.mxu0 0
  %1092 = vmatpush2.bf16.msra.mxu0 0
  %1093 = vmatprep.subr.bf16.mxu0 0
  %1094 = vmatpush2.bf16.msra.mxu0 0
  %1095 = vmatprep.subr.bf16.mxu0 0
  %1096 = vmatpush2.bf16.msra.mxu0 0
  %1097 = vmatprep.subr.bf16.mxu0 0
  %1098 = vmatpush2.bf16.msra.mxu0 0
  %1099 = vmatprep.subr.bf16.mxu0 0
  %1100 = vmatpush2.bf16.msra.mxu0 0
  %1101 = vmatprep.mubr.bf16.mxu0 0
  %1102 = vmatmul.mubr.bf16.gmra.mxu0 %v1067
  %v1103 = vpop.f32.mrf.mxu0
  %v1104 = vadd.f32 %v561, %v1103
  %v1105 = vpop.f32.mrf.mxu0
  %v1106 = vpop.f32.mrf.mxu0
  %v1107 = vpop.f32.mrf.mxu0
  %1108 = vdwg.mxu0
  %1109 = vmatprep.subr.bf16.mxu0 0
  %1110 = vmatpush1.bf16.msra.mxu0 0
  %1111 = vmatprep.subr.bf16.mxu0 0
  %1112 = vmatpush1.bf16.msra.mxu0 0
  %1113 = vmatprep.subr.bf16.mxu0 0
  %1114 = vmatpush1.bf16.msra.mxu0 0
  %1115 = vmatprep.subr.bf16.mxu0 0
  %1116 = vmatpush1.bf16.msra.mxu0 0
  %1117 = vmatprep.subr.bf16.mxu0 0
  %1118 = vmatpush1.bf16.msra.mxu0 0
  %1119 = vmatprep.subr.bf16.mxu0 0
  %1120 = vmatpush1.bf16.msra.mxu0 0
  %1121 = vmatprep.subr.bf16.mxu0 0
  %1122 = vmatpush1.bf16.msra.mxu0 %v633
  %1123 = vmatprep.subr.bf16.mxu0 0
  %1124 = vmatpush1.bf16.msra.mxu0 %v632
  %1125 = vmatprep.subr.bf16.mxu0 0
  %1126 = vmatpush2.bf16.msra.mxu0 0
  %1127 = vmatprep.subr.bf16.mxu0 0
  %1128 = vmatpush2.bf16.msra.mxu0 0
  %1129 = vmatprep.subr.bf16.mxu0 0
  %1130 = vmatpush2.bf16.msra.mxu0 0
  %1131 = vmatprep.subr.bf16.mxu0 0
  %1132 = vmatpush2.bf16.msra.mxu0 0
  %1133 = vmatprep.subr.bf16.mxu0 0
  %1134 = vmatpush2.bf16.msra.mxu0 0
  %1135 = vmatprep.subr.bf16.mxu0 0
  %1136 = vmatpush2.bf16.msra.mxu0 0
  %1137 = vmatprep.subr.bf16.mxu0 0
  %1138 = vmatpush2.bf16.msra.mxu0 0
  %1139 = vmatprep.subr.bf16.mxu0 0
  %1140 = vmatpush2.bf16.msra.mxu0 0
  %1141 = vmatprep.mubr.bf16.mxu0 0
  %1142 = vmatmul.mubr.bf16.gmra.mxu0 %v1067
  %v1143 = vpop.f32.mrf.mxu0
  %v1144 = vadd.f32 %v622, %v1143
  %v1145 = vpop.f32.mrf.mxu0
  %v1146 = vpop.f32.mrf.mxu0
  %v1147 = vpop.f32.mrf.mxu0
  %1148 = vdwg.mxu0
  %1149 = vmatprep.subr.bf16.mxu0 0
  %1150 = vmatpush1.bf16.msra.mxu0 0
  %1151 = vmatprep.subr.bf16.mxu0 0
  %1152 = vmatpush1.bf16.msra.mxu0 0
  %1153 = vmatprep.subr.bf16.mxu0 0
  %1154 = vmatpush1.bf16.msra.mxu0 0
  %1155 = vmatprep.subr.bf16.mxu0 0
  %1156 = vmatpush1.bf16.msra.mxu0 0
  %1157 = vmatprep.subr.bf16.mxu0 0
  %1158 = vmatpush1.bf16.msra.mxu0 0
  %1159 = vmatprep.subr.bf16.mxu0 0
  %1160 = vmatpush1.bf16.msra.mxu0 0
  %1161 = vmatprep.subr.bf16.mxu0 0
  %1162 = vmatpush1.bf16.msra.mxu0 %v691
  %1163 = vmatprep.subr.bf16.mxu0 0
  %1164 = vmatpush1.bf16.msra.mxu0 %v690
  %1165 = vmatprep.subr.bf16.mxu0 0
  %1166 = vmatpush2.bf16.msra.mxu0 0
  %1167 = vmatprep.subr.bf16.mxu0 0
  %1168 = vmatpush2.bf16.msra.mxu0 0
  %1169 = vmatprep.subr.bf16.mxu0 0
  %1170 = vmatpush2.bf16.msra.mxu0 0
  %1171 = vmatprep.subr.bf16.mxu0 0
  %1172 = vmatpush2.bf16.msra.mxu0 0
  %1173 = vmatprep.subr.bf16.mxu0 0
  %1174 = vmatpush2.bf16.msra.mxu0 0
  %1175 = vmatprep.subr.bf16.mxu0 0
  %1176 = vmatpush2.bf16.msra.mxu0 0
  %1177 = vmatprep.subr.bf16.mxu0 0
  %1178 = vmatpush2.bf16.msra.mxu0 0
  %1179 = vmatprep.subr.bf16.mxu0 0
  %1180 = vmatpush2.bf16.msra.mxu0 0
  %1181 = vmatprep.mubr.bf16.mxu0 0
  %1182 = vmatmul.mubr.bf16.gmra.mxu0 %v1067
  %v1183 = vpop.f32.mrf.mxu0
  %v1184 = vadd.f32 %v680, %v1183
  %v1185 = vpop.f32.mrf.mxu0
  %v1186 = vpop.f32.mrf.mxu0
  %v1187 = vpop.f32.mrf.mxu0
  %1188 = vdwg.mxu0
  %s1189 = scalar_lea.vmem [#allocation3], 24
  %v1190 = vld [vmem:[%s1189] sm:$0xff]
  %v1191 = vadd.f32 %v1190, %v1104
  %v1192 = vxor.u32 %v1191, 2147483648
  %v1193 = vmul.f32 %v1192, 1.442695
  %v1194 = vpow.pop %v1193
  %v1195 = vadd.f32 %v1194, 1.0
  %v1196 = vrcp.pop %v1195
  %v1197 = vmul.f32 1.0, %v1196
  %s1198 = scalar_lea.vmem [#allocation4], 24
  %v1199 = vld [vmem:[%s1198] sm:$0xff]
  %v1200 = vadd.f32 %v1199, %v1144
  %v1201 = vxor.u32 %v1200, 2147483648
  %v1202 = vmul.f32 %v1201, 1.442695
  %v1203 = vpow.pop %v1202
  %v1204 = vadd.f32 %v1203, 1.0
  %v1205 = vrcp.pop %v1204
  %v1206 = vmul.f32 1.0, %v1205
  %s1207 = scalar_lea.vmem [#allocation5], 24
  %v1208 = vld [vmem:[%s1207] sm:$0xff]
  %v1209 = vmul.f32 %v1197, %v1184
  %v1210 = vadd.f32 %v1208, %v1209
  %v1211 = vtanh.pop %v1210
  %v1212 = vsub.f32 1.0, %v1206
  %v1213 = vmul.f32 %v1212, %v1211
  %v1214 = vmul.f32 %v1206, %v1062
  %v1215 = vadd.f32 %v1213, %v1214
  %s1216 = scalar_lea.vmem %s5, 24
  %1217 = vst.msk [vmem:[%s1216] sm:$0xff] %vm122, %v1215
  %v1218 = vpack.c.bf16 %v1215, %v1215
  %v1220 = vsel %vm122, %v1218, 0
  %1222 = vmatprep.subr.bf16.mxu0 0
  %1223 = vmatpush1.bf16.msra.mxu0 0
  %1224 = vmatprep.subr.bf16.mxu0 0
  %1225 = vmatpush1.bf16.msra.mxu0 0
  %1226 = vmatprep.subr.bf16.mxu0 0
  %1227 = vmatpush1.bf16.msra.mxu0 0
  %1228 = vmatprep.subr.bf16.mxu0 0
  %1229 = vmatpush1.bf16.msra.mxu0 0
  %1230 = vmatprep.subr.bf16.mxu0 0
  %1231 = vmatpush1.bf16.msra.mxu0 0
  %1232 = vmatprep.subr.bf16.mxu0 0
  %1233 = vmatpush1.bf16.msra.mxu0 0
  %1234 = vmatprep.subr.bf16.mxu0 0
  %1235 = vmatpush1.bf16.msra.mxu0 %v572
  %1236 = vmatprep.subr.bf16.mxu0 0
  %1237 = vmatpush1.bf16.msra.mxu0 %v571
  %1238 = vmatprep.subr.bf16.mxu0 0
  %1239 = vmatpush2.bf16.msra.mxu0 0
  %1240 = vmatprep.subr.bf16.mxu0 0
  %1241 = vmatpush2.bf16.msra.mxu0 0
  %1242 = vmatprep.subr.bf16.mxu0 0
  %1243 = vmatpush2.bf16.msra.mxu0 0
  %1244 = vmatprep.subr.bf16.mxu0 0
  %1245 = vmatpush2.bf16.msra.mxu0 0
  %1246 = vmatprep.subr.bf16.mxu0 0
  %1247 = vmatpush2.bf16.msra.mxu0 0
  %1248 = vmatprep.subr.bf16.mxu0 0
  %1249 = vmatpush2.bf16.msra.mxu0 0
  %1250 = vmatprep.subr.bf16.mxu0 0
  %1251 = vmatpush2.bf16.msra.mxu0 0
  %1252 = vmatprep.subr.bf16.mxu0 0
  %1253 = vmatpush2.bf16.msra.mxu0 0
  %1254 = vmatprep.mubr.bf16.mxu0 0
  %1255 = vmatmul.mubr.bf16.gmra.mxu0 %v1220
  %v1256 = vpop.f32.mrf.mxu0
  %v1257 = vadd.f32 %v561, %v1256
  %v1258 = vpop.f32.mrf.mxu0
  %v1259 = vpop.f32.mrf.mxu0
  %v1260 = vpop.f32.mrf.mxu0
  %1261 = vdwg.mxu0
  %1262 = vmatprep.subr.bf16.mxu0 0
  %1263 = vmatpush1.bf16.msra.mxu0 0
  %1264 = vmatprep.subr.bf16.mxu0 0
  %1265 = vmatpush1.bf16.msra.mxu0 0
  %1266 = vmatprep.subr.bf16.mxu0 0
  %1267 = vmatpush1.bf16.msra.mxu0 0
  %1268 = vmatprep.subr.bf16.mxu0 0
  %1269 = vmatpush1.bf16.msra.mxu0 0
  %1270 = vmatprep.subr.bf16.mxu0 0
  %1271 = vmatpush1.bf16.msra.mxu0 0
  %1272 = vmatprep.subr.bf16.mxu0 0
  %1273 = vmatpush1.bf16.msra.mxu0 0
  %1274 = vmatprep.subr.bf16.mxu0 0
  %1275 = vmatpush1.bf16.msra.mxu0 %v633
  %1276 = vmatprep.subr.bf16.mxu0 0
  %1277 = vmatpush1.bf16.msra.mxu0 %v632
  %1278 = vmatprep.subr.bf16.mxu0 0
  %1279 = vmatpush2.bf16.msra.mxu0 0
  %1280 = vmatprep.subr.bf16.mxu0 0
  %1281 = vmatpush2.bf16.msra.mxu0 0
  %1282 = vmatprep.subr.bf16.mxu0 0
  %1283 = vmatpush2.bf16.msra.mxu0 0
  %1284 = vmatprep.subr.bf16.mxu0 0
  %1285 = vmatpush2.bf16.msra.mxu0 0
  %1286 = vmatprep.subr.bf16.mxu0 0
  %1287 = vmatpush2.bf16.msra.mxu0 0
  %1288 = vmatprep.subr.bf16.mxu0 0
  %1289 = vmatpush2.bf16.msra.mxu0 0
  %1290 = vmatprep.subr.bf16.mxu0 0
  %1291 = vmatpush2.bf16.msra.mxu0 0
  %1292 = vmatprep.subr.bf16.mxu0 0
  %1293 = vmatpush2.bf16.msra.mxu0 0
  %1294 = vmatprep.mubr.bf16.mxu0 0
  %1295 = vmatmul.mubr.bf16.gmra.mxu0 %v1220
  %v1296 = vpop.f32.mrf.mxu0
  %v1297 = vadd.f32 %v622, %v1296
  %v1298 = vpop.f32.mrf.mxu0
  %v1299 = vpop.f32.mrf.mxu0
  %v1300 = vpop.f32.mrf.mxu0
  %1301 = vdwg.mxu0
  %1302 = vmatprep.subr.bf16.mxu0 0
  %1303 = vmatpush1.bf16.msra.mxu0 0
  %1304 = vmatprep.subr.bf16.mxu0 0
  %1305 = vmatpush1.bf16.msra.mxu0 0
  %1306 = vmatprep.subr.bf16.mxu0 0
  %1307 = vmatpush1.bf16.msra.mxu0 0
  %1308 = vmatprep.subr.bf16.mxu0 0
  %1309 = vmatpush1.bf16.msra.mxu0 0
  %1310 = vmatprep.subr.bf16.mxu0 0
  %1311 = vmatpush1.bf16.msra.mxu0 0
  %1312 = vmatprep.subr.bf16.mxu0 0
  %1313 = vmatpush1.bf16.msra.mxu0 0
  %1314 = vmatprep.subr.bf16.mxu0 0
  %1315 = vmatpush1.bf16.msra.mxu0 %v691
  %1316 = vmatprep.subr.bf16.mxu0 0
  %1317 = vmatpush1.bf16.msra.mxu0 %v690
  %1318 = vmatprep.subr.bf16.mxu0 0
  %1319 = vmatpush2.bf16.msra.mxu0 0
  %1320 = vmatprep.subr.bf16.mxu0 0
  %1321 = vmatpush2.bf16.msra.mxu0 0
  %1322 = vmatprep.subr.bf16.mxu0 0
  %1323 = vmatpush2.bf16.msra.mxu0 0
  %1324 = vmatprep.subr.bf16.mxu0 0
  %1325 = vmatpush2.bf16.msra.mxu0 0
  %1326 = vmatprep.subr.bf16.mxu0 0
  %1327 = vmatpush2.bf16.msra.mxu0 0
  %1328 = vmatprep.subr.bf16.mxu0 0
  %1329 = vmatpush2.bf16.msra.mxu0 0
  %1330 = vmatprep.subr.bf16.mxu0 0
  %1331 = vmatpush2.bf16.msra.mxu0 0
  %1332 = vmatprep.subr.bf16.mxu0 0
  %1333 = vmatpush2.bf16.msra.mxu0 0
  %1334 = vmatprep.mubr.bf16.mxu0 0
  %1335 = vmatmul.mubr.bf16.gmra.mxu0 %v1220
  %v1336 = vpop.f32.mrf.mxu0
  %v1337 = vadd.f32 %v680, %v1336
  %v1338 = vpop.f32.mrf.mxu0
  %v1339 = vpop.f32.mrf.mxu0
  %v1340 = vpop.f32.mrf.mxu0
  %1341 = vdwg.mxu0
  %s1342 = scalar_lea.vmem [#allocation3], 32
  %v1343 = vld [vmem:[%s1342] sm:$0xff]
  %v1344 = vadd.f32 %v1343, %v1257
  %v1345 = vxor.u32 %v1344, 2147483648
  %v1346 = vmul.f32 %v1345, 1.442695
  %v1347 = vpow.pop %v1346
  %v1348 = vadd.f32 %v1347, 1.0
  %v1349 = vrcp.pop %v1348
  %v1350 = vmul.f32 1.0, %v1349
  %s1351 = scalar_lea.vmem [#allocation4], 32
  %v1352 = vld [vmem:[%s1351] sm:$0xff]
  %v1353 = vadd.f32 %v1352, %v1297
  %v1354 = vxor.u32 %v1353, 2147483648
  %v1355 = vmul.f32 %v1354, 1.442695
  %v1356 = vpow.pop %v1355
  %v1357 = vadd.f32 %v1356, 1.0
  %v1358 = vrcp.pop %v1357
  %v1359 = vmul.f32 1.0, %v1358
  %s1360 = scalar_lea.vmem [#allocation5], 32
  %v1361 = vld [vmem:[%s1360] sm:$0xff]
  %v1362 = vmul.f32 %v1350, %v1337
  %v1363 = vadd.f32 %v1361, %v1362
  %v1364 = vtanh.pop %v1363
  %v1365 = vsub.f32 1.0, %v1359
  %v1366 = vmul.f32 %v1365, %v1364
  %v1367 = vmul.f32 %v1359, %v1215
  %v1368 = vadd.f32 %v1366, %v1367
  %s1369 = scalar_lea.vmem %s5, 32
  %1370 = vst.msk [vmem:[%s1369] sm:$0xff] %vm122, %v1368
  %v1371 = vpack.c.bf16 %v1368, %v1368
  %v1373 = vsel %vm122, %v1371, 0
  %1375 = vmatprep.subr.bf16.mxu0 0
  %1376 = vmatpush1.bf16.msra.mxu0 0
  %1377 = vmatprep.subr.bf16.mxu0 0
  %1378 = vmatpush1.bf16.msra.mxu0 0
  %1379 = vmatprep.subr.bf16.mxu0 0
  %1380 = vmatpush1.bf16.msra.mxu0 0
  %1381 = vmatprep.subr.bf16.mxu0 0
  %1382 = vmatpush1.bf16.msra.mxu0 0
  %1383 = vmatprep.subr.bf16.mxu0 0
  %1384 = vmatpush1.bf16.msra.mxu0 0
  %1385 = vmatprep.subr.bf16.mxu0 0
  %1386 = vmatpush1.bf16.msra.mxu0 0
  %1387 = vmatprep.subr.bf16.mxu0 0
  %1388 = vmatpush1.bf16.msra.mxu0 %v572
  %1389 = vmatprep.subr.bf16.mxu0 0
  %1390 = vmatpush1.bf16.msra.mxu0 %v571
  %1391 = vmatprep.subr.bf16.mxu0 0
  %1392 = vmatpush2.bf16.msra.mxu0 0
  %1393 = vmatprep.subr.bf16.mxu0 0
  %1394 = vmatpush2.bf16.msra.mxu0 0
  %1395 = vmatprep.subr.bf16.mxu0 0
  %1396 = vmatpush2.bf16.msra.mxu0 0
  %1397 = vmatprep.subr.bf16.mxu0 0
  %1398 = vmatpush2.bf16.msra.mxu0 0
  %1399 = vmatprep.subr.bf16.mxu0 0
  %1400 = vmatpush2.bf16.msra.mxu0 0
  %1401 = vmatprep.subr.bf16.mxu0 0
  %1402 = vmatpush2.bf16.msra.mxu0 0
  %1403 = vmatprep.subr.bf16.mxu0 0
  %1404 = vmatpush2.bf16.msra.mxu0 0
  %1405 = vmatprep.subr.bf16.mxu0 0
  %1406 = vmatpush2.bf16.msra.mxu0 0
  %1407 = vmatprep.mubr.bf16.mxu0 0
  %1408 = vmatmul.mubr.bf16.gmra.mxu0 %v1373
  %v1409 = vpop.f32.mrf.mxu0
  %v1410 = vadd.f32 %v561, %v1409
  %v1411 = vpop.f32.mrf.mxu0
  %v1412 = vpop.f32.mrf.mxu0
  %v1413 = vpop.f32.mrf.mxu0
  %1414 = vdwg.mxu0
  %1415 = vmatprep.subr.bf16.mxu0 0
  %1416 = vmatpush1.bf16.msra.mxu0 0
  %1417 = vmatprep.subr.bf16.mxu0 0
  %1418 = vmatpush1.bf16.msra.mxu0 0
  %1419 = vmatprep.subr.bf16.mxu0 0
  %1420 = vmatpush1.bf16.msra.mxu0 0
  %1421 = vmatprep.subr.bf16.mxu0 0
  %1422 = vmatpush1.bf16.msra.mxu0 0
  %1423 = vmatprep.subr.bf16.mxu0 0
  %1424 = vmatpush1.bf16.msra.mxu0 0
  %1425 = vmatprep.subr.bf16.mxu0 0
  %1426 = vmatpush1.bf16.msra.mxu0 0
  %1427 = vmatprep.subr.bf16.mxu0 0
  %1428 = vmatpush1.bf16.msra.mxu0 %v633
  %1429 = vmatprep.subr.bf16.mxu0 0
  %1430 = vmatpush1.bf16.msra.mxu0 %v632
  %1431 = vmatprep.subr.bf16.mxu0 0
  %1432 = vmatpush2.bf16.msra.mxu0 0
  %1433 = vmatprep.subr.bf16.mxu0 0
  %1434 = vmatpush2.bf16.msra.mxu0 0
  %1435 = vmatprep.subr.bf16.mxu0 0
  %1436 = vmatpush2.bf16.msra.mxu0 0
  %1437 = vmatprep.subr.bf16.mxu0 0
  %1438 = vmatpush2.bf16.msra.mxu0 0
  %1439 = vmatprep.subr.bf16.mxu0 0
  %1440 = vmatpush2.bf16.msra.mxu0 0
  %1441 = vmatprep.subr.bf16.mxu0 0
  %1442 = vmatpush2.bf16.msra.mxu0 0
  %1443 = vmatprep.subr.bf16.mxu0 0
  %1444 = vmatpush2.bf16.msra.mxu0 0
  %1445 = vmatprep.subr.bf16.mxu0 0
  %1446 = vmatpush2.bf16.msra.mxu0 0
  %1447 = vmatprep.mubr.bf16.mxu0 0
  %1448 = vmatmul.mubr.bf16.gmra.mxu0 %v1373
  %v1449 = vpop.f32.mrf.mxu0
  %v1450 = vadd.f32 %v622, %v1449
  %v1451 = vpop.f32.mrf.mxu0
  %v1452 = vpop.f32.mrf.mxu0
  %v1453 = vpop.f32.mrf.mxu0
  %1454 = vdwg.mxu0
  %1455 = vmatprep.subr.bf16.mxu0 0
  %1456 = vmatpush1.bf16.msra.mxu0 0
  %1457 = vmatprep.subr.bf16.mxu0 0
  %1458 = vmatpush1.bf16.msra.mxu0 0
  %1459 = vmatprep.subr.bf16.mxu0 0
  %1460 = vmatpush1.bf16.msra.mxu0 0
  %1461 = vmatprep.subr.bf16.mxu0 0
  %1462 = vmatpush1.bf16.msra.mxu0 0
  %1463 = vmatprep.subr.bf16.mxu0 0
  %1464 = vmatpush1.bf16.msra.mxu0 0
  %1465 = vmatprep.subr.bf16.mxu0 0
  %1466 = vmatpush1.bf16.msra.mxu0 0
  %1467 = vmatprep.subr.bf16.mxu0 0
  %1468 = vmatpush1.bf16.msra.mxu0 %v691
  %1469 = vmatprep.subr.bf16.mxu0 0
  %1470 = vmatpush1.bf16.msra.mxu0 %v690
  %1471 = vmatprep.subr.bf16.mxu0 0
  %1472 = vmatpush2.bf16.msra.mxu0 0
  %1473 = vmatprep.subr.bf16.mxu0 0
  %1474 = vmatpush2.bf16.msra.mxu0 0
  %1475 = vmatprep.subr.bf16.mxu0 0
  %1476 = vmatpush2.bf16.msra.mxu0 0
  %1477 = vmatprep.subr.bf16.mxu0 0
  %1478 = vmatpush2.bf16.msra.mxu0 0
  %1479 = vmatprep.subr.bf16.mxu0 0
  %1480 = vmatpush2.bf16.msra.mxu0 0
  %1481 = vmatprep.subr.bf16.mxu0 0
  %1482 = vmatpush2.bf16.msra.mxu0 0
  %1483 = vmatprep.subr.bf16.mxu0 0
  %1484 = vmatpush2.bf16.msra.mxu0 0
  %1485 = vmatprep.subr.bf16.mxu0 0
  %1486 = vmatpush2.bf16.msra.mxu0 0
  %1487 = vmatprep.mubr.bf16.mxu0 0
  %1488 = vmatmul.mubr.bf16.gmra.mxu0 %v1373
  %v1489 = vpop.f32.mrf.mxu0
  %v1490 = vadd.f32 %v680, %v1489
  %v1491 = vpop.f32.mrf.mxu0
  %v1492 = vpop.f32.mrf.mxu0
  %v1493 = vpop.f32.mrf.mxu0
  %1494 = vdwg.mxu0
  %s1495 = scalar_lea.vmem [#allocation3], 40
  %v1496 = vld [vmem:[%s1495] sm:$0xff]
  %v1497 = vadd.f32 %v1496, %v1410
  %v1498 = vxor.u32 %v1497, 2147483648
  %v1499 = vmul.f32 %v1498, 1.442695
  %v1500 = vpow.pop %v1499
  %v1501 = vadd.f32 %v1500, 1.0
  %v1502 = vrcp.pop %v1501
  %v1503 = vmul.f32 1.0, %v1502
  %s1504 = scalar_lea.vmem [#allocation4], 40
  %v1505 = vld [vmem:[%s1504] sm:$0xff]
  %v1506 = vadd.f32 %v1505, %v1450
  %v1507 = vxor.u32 %v1506, 2147483648
  %v1508 = vmul.f32 %v1507, 1.442695
  %v1509 = vpow.pop %v1508
  %v1510 = vadd.f32 %v1509, 1.0
  %v1511 = vrcp.pop %v1510
  %v1512 = vmul.f32 1.0, %v1511
  %s1513 = scalar_lea.vmem [#allocation5], 40
  %v1514 = vld [vmem:[%s1513] sm:$0xff]
  %v1515 = vmul.f32 %v1503, %v1490
  %v1516 = vadd.f32 %v1514, %v1515
  %v1517 = vtanh.pop %v1516
  %v1518 = vsub.f32 1.0, %v1512
  %v1519 = vmul.f32 %v1518, %v1517
  %v1520 = vmul.f32 %v1512, %v1368
  %v1521 = vadd.f32 %v1519, %v1520
  %s1522 = scalar_lea.vmem %s5, 40
  %1523 = vst.msk [vmem:[%s1522] sm:$0xff] %vm122, %v1521
  %v1524 = vpack.c.bf16 %v1521, %v1521
  %v1526 = vsel %vm122, %v1524, 0
  %1528 = vmatprep.subr.bf16.mxu0 0
  %1529 = vmatpush1.bf16.msra.mxu0 0
  %1530 = vmatprep.subr.bf16.mxu0 0
  %1531 = vmatpush1.bf16.msra.mxu0 0
  %1532 = vmatprep.subr.bf16.mxu0 0
  %1533 = vmatpush1.bf16.msra.mxu0 0
  %1534 = vmatprep.subr.bf16.mxu0 0
  %1535 = vmatpush1.bf16.msra.mxu0 0
  %1536 = vmatprep.subr.bf16.mxu0 0
  %1537 = vmatpush1.bf16.msra.mxu0 0
  %1538 = vmatprep.subr.bf16.mxu0 0
  %1539 = vmatpush1.bf16.msra.mxu0 0
  %1540 = vmatprep.subr.bf16.mxu0 0
  %1541 = vmatpush1.bf16.msra.mxu0 %v572
  %1542 = vmatprep.subr.bf16.mxu0 0
  %1543 = vmatpush1.bf16.msra.mxu0 %v571
  %1544 = vmatprep.subr.bf16.mxu0 0
  %1545 = vmatpush2.bf16.msra.mxu0 0
  %1546 = vmatprep.subr.bf16.mxu0 0
  %1547 = vmatpush2.bf16.msra.mxu0 0
  %1548 = vmatprep.subr.bf16.mxu0 0
  %1549 = vmatpush2.bf16.msra.mxu0 0
  %1550 = vmatprep.subr.bf16.mxu0 0
  %1551 = vmatpush2.bf16.msra.mxu0 0
  %1552 = vmatprep.subr.bf16.mxu0 0
  %1553 = vmatpush2.bf16.msra.mxu0 0
  %1554 = vmatprep.subr.bf16.mxu0 0
  %1555 = vmatpush2.bf16.msra.mxu0 0
  %1556 = vmatprep.subr.bf16.mxu0 0
  %1557 = vmatpush2.bf16.msra.mxu0 0
  %1558 = vmatprep.subr.bf16.mxu0 0
  %1559 = vmatpush2.bf16.msra.mxu0 0
  %1560 = vmatprep.mubr.bf16.mxu0 0
  %1561 = vmatmul.mubr.bf16.gmra.mxu0 %v1526
  %v1562 = vpop.f32.mrf.mxu0
  %v1563 = vadd.f32 %v561, %v1562
  %v1564 = vpop.f32.mrf.mxu0
  %v1565 = vpop.f32.mrf.mxu0
  %v1566 = vpop.f32.mrf.mxu0
  %1567 = vdwg.mxu0
  %1568 = vmatprep.subr.bf16.mxu0 0
  %1569 = vmatpush1.bf16.msra.mxu0 0
  %1570 = vmatprep.subr.bf16.mxu0 0
  %1571 = vmatpush1.bf16.msra.mxu0 0
  %1572 = vmatprep.subr.bf16.mxu0 0
  %1573 = vmatpush1.bf16.msra.mxu0 0
  %1574 = vmatprep.subr.bf16.mxu0 0
  %1575 = vmatpush1.bf16.msra.mxu0 0
  %1576 = vmatprep.subr.bf16.mxu0 0
  %1577 = vmatpush1.bf16.msra.mxu0 0
  %1578 = vmatprep.subr.bf16.mxu0 0
  %1579 = vmatpush1.bf16.msra.mxu0 0
  %1580 = vmatprep.subr.bf16.mxu0 0
  %1581 = vmatpush1.bf16.msra.mxu0 %v633
  %1582 = vmatprep.subr.bf16.mxu0 0
  %1583 = vmatpush1.bf16.msra.mxu0 %v632
  %1584 = vmatprep.subr.bf16.mxu0 0
  %1585 = vmatpush2.bf16.msra.mxu0 0
  %1586 = vmatprep.subr.bf16.mxu0 0
  %1587 = vmatpush2.bf16.msra.mxu0 0
  %1588 = vmatprep.subr.bf16.mxu0 0
  %1589 = vmatpush2.bf16.msra.mxu0 0
  %1590 = vmatprep.subr.bf16.mxu0 0
  %1591 = vmatpush2.bf16.msra.mxu0 0
  %1592 = vmatprep.subr.bf16.mxu0 0
  %1593 = vmatpush2.bf16.msra.mxu0 0
  %1594 = vmatprep.subr.bf16.mxu0 0
  %1595 = vmatpush2.bf16.msra.mxu0 0
  %1596 = vmatprep.subr.bf16.mxu0 0
  %1597 = vmatpush2.bf16.msra.mxu0 0
  %1598 = vmatprep.subr.bf16.mxu0 0
  %1599 = vmatpush2.bf16.msra.mxu0 0
  %1600 = vmatprep.mubr.bf16.mxu0 0
  %1601 = vmatmul.mubr.bf16.gmra.mxu0 %v1526
  %v1602 = vpop.f32.mrf.mxu0
  %v1603 = vadd.f32 %v622, %v1602
  %v1604 = vpop.f32.mrf.mxu0
  %v1605 = vpop.f32.mrf.mxu0
  %v1606 = vpop.f32.mrf.mxu0
  %1607 = vdwg.mxu0
  %1608 = vmatprep.subr.bf16.mxu0 0
  %1609 = vmatpush1.bf16.msra.mxu0 0
  %1610 = vmatprep.subr.bf16.mxu0 0
  %1611 = vmatpush1.bf16.msra.mxu0 0
  %1612 = vmatprep.subr.bf16.mxu0 0
  %1613 = vmatpush1.bf16.msra.mxu0 0
  %1614 = vmatprep.subr.bf16.mxu0 0
  %1615 = vmatpush1.bf16.msra.mxu0 0
  %1616 = vmatprep.subr.bf16.mxu0 0
  %1617 = vmatpush1.bf16.msra.mxu0 0
  %1618 = vmatprep.subr.bf16.mxu0 0
  %1619 = vmatpush1.bf16.msra.mxu0 0
  %1620 = vmatprep.subr.bf16.mxu0 0
  %1621 = vmatpush1.bf16.msra.mxu0 %v691
  %1622 = vmatprep.subr.bf16.mxu0 0
  %1623 = vmatpush1.bf16.msra.mxu0 %v690
  %1624 = vmatprep.subr.bf16.mxu0 0
  %1625 = vmatpush2.bf16.msra.mxu0 0
  %1626 = vmatprep.subr.bf16.mxu0 0
  %1627 = vmatpush2.bf16.msra.mxu0 0
  %1628 = vmatprep.subr.bf16.mxu0 0
  %1629 = vmatpush2.bf16.msra.mxu0 0
  %1630 = vmatprep.subr.bf16.mxu0 0
  %1631 = vmatpush2.bf16.msra.mxu0 0
  %1632 = vmatprep.subr.bf16.mxu0 0
  %1633 = vmatpush2.bf16.msra.mxu0 0
  %1634 = vmatprep.subr.bf16.mxu0 0
  %1635 = vmatpush2.bf16.msra.mxu0 0
  %1636 = vmatprep.subr.bf16.mxu0 0
  %1637 = vmatpush2.bf16.msra.mxu0 0
  %1638 = vmatprep.subr.bf16.mxu0 0
  %1639 = vmatpush2.bf16.msra.mxu0 0
  %1640 = vmatprep.mubr.bf16.mxu0 0
  %1641 = vmatmul.mubr.bf16.gmra.mxu0 %v1526
  %v1642 = vpop.f32.mrf.mxu0
  %v1643 = vadd.f32 %v680, %v1642
  %v1644 = vpop.f32.mrf.mxu0
  %v1645 = vpop.f32.mrf.mxu0
  %v1646 = vpop.f32.mrf.mxu0
  %1647 = vdwg.mxu0
  %s1648 = scalar_lea.vmem [#allocation3], 48
  %v1649 = vld [vmem:[%s1648] sm:$0xff]
  %v1650 = vadd.f32 %v1649, %v1563
  %v1651 = vxor.u32 %v1650, 2147483648
  %v1652 = vmul.f32 %v1651, 1.442695
  %v1653 = vpow.pop %v1652
  %v1654 = vadd.f32 %v1653, 1.0
  %v1655 = vrcp.pop %v1654
  %v1656 = vmul.f32 1.0, %v1655
  %s1657 = scalar_lea.vmem [#allocation4], 48
  %v1658 = vld [vmem:[%s1657] sm:$0xff]
  %v1659 = vadd.f32 %v1658, %v1603
  %v1660 = vxor.u32 %v1659, 2147483648
  %v1661 = vmul.f32 %v1660, 1.442695
  %v1662 = vpow.pop %v1661
  %v1663 = vadd.f32 %v1662, 1.0
  %v1664 = vrcp.pop %v1663
  %v1665 = vmul.f32 1.0, %v1664
  %s1666 = scalar_lea.vmem [#allocation5], 48
  %v1667 = vld [vmem:[%s1666] sm:$0xff]
  %v1668 = vmul.f32 %v1656, %v1643
  %v1669 = vadd.f32 %v1667, %v1668
  %v1670 = vtanh.pop %v1669
  %v1671 = vsub.f32 1.0, %v1665
  %v1672 = vmul.f32 %v1671, %v1670
  %v1673 = vmul.f32 %v1665, %v1521
  %v1674 = vadd.f32 %v1672, %v1673
  %s1675 = scalar_lea.vmem %s5, 48
  %1676 = vst.msk [vmem:[%s1675] sm:$0xff] %vm122, %v1674
  %v1677 = vpack.c.bf16 %v1674, %v1674
  %v1679 = vsel %vm122, %v1677, 0
  %1681 = vmatprep.subr.bf16.mxu0 0
  %1682 = vmatpush1.bf16.msra.mxu0 0
  %1683 = vmatprep.subr.bf16.mxu0 0
  %1684 = vmatpush1.bf16.msra.mxu0 0
  %1685 = vmatprep.subr.bf16.mxu0 0
  %1686 = vmatpush1.bf16.msra.mxu0 0
  %1687 = vmatprep.subr.bf16.mxu0 0
  %1688 = vmatpush1.bf16.msra.mxu0 0
  %1689 = vmatprep.subr.bf16.mxu0 0
  %1690 = vmatpush1.bf16.msra.mxu0 0
  %1691 = vmatprep.subr.bf16.mxu0 0
  %1692 = vmatpush1.bf16.msra.mxu0 0
  %1693 = vmatprep.subr.bf16.mxu0 0
  %1694 = vmatpush1.bf16.msra.mxu0 %v572
  %1695 = vmatprep.subr.bf16.mxu0 0
  %1696 = vmatpush1.bf16.msra.mxu0 %v571
  %1697 = vmatprep.subr.bf16.mxu0 0
  %1698 = vmatpush2.bf16.msra.mxu0 0
  %1699 = vmatprep.subr.bf16.mxu0 0
  %1700 = vmatpush2.bf16.msra.mxu0 0
  %1701 = vmatprep.subr.bf16.mxu0 0
  %1702 = vmatpush2.bf16.msra.mxu0 0
  %1703 = vmatprep.subr.bf16.mxu0 0
  %1704 = vmatpush2.bf16.msra.mxu0 0
  %1705 = vmatprep.subr.bf16.mxu0 0
  %1706 = vmatpush2.bf16.msra.mxu0 0
  %1707 = vmatprep.subr.bf16.mxu0 0
  %1708 = vmatpush2.bf16.msra.mxu0 0
  %1709 = vmatprep.subr.bf16.mxu0 0
  %1710 = vmatpush2.bf16.msra.mxu0 0
  %1711 = vmatprep.subr.bf16.mxu0 0
  %1712 = vmatpush2.bf16.msra.mxu0 0
  %1713 = vmatprep.mubr.bf16.mxu0 0
  %1714 = vmatmul.mubr.bf16.gmra.mxu0 %v1679
  %v1715 = vpop.f32.mrf.mxu0
  %v1716 = vadd.f32 %v561, %v1715
  %v1717 = vpop.f32.mrf.mxu0
  %v1718 = vpop.f32.mrf.mxu0
  %v1719 = vpop.f32.mrf.mxu0
  %1720 = vdwg.mxu0
  %1721 = vmatprep.subr.bf16.mxu0 0
  %1722 = vmatpush1.bf16.msra.mxu0 0
  %1723 = vmatprep.subr.bf16.mxu0 0
  %1724 = vmatpush1.bf16.msra.mxu0 0
  %1725 = vmatprep.subr.bf16.mxu0 0
  %1726 = vmatpush1.bf16.msra.mxu0 0
  %1727 = vmatprep.subr.bf16.mxu0 0
  %1728 = vmatpush1.bf16.msra.mxu0 0
  %1729 = vmatprep.subr.bf16.mxu0 0
  %1730 = vmatpush1.bf16.msra.mxu0 0
  %1731 = vmatprep.subr.bf16.mxu0 0
  %1732 = vmatpush1.bf16.msra.mxu0 0
  %1733 = vmatprep.subr.bf16.mxu0 0
  %1734 = vmatpush1.bf16.msra.mxu0 %v633
  %1735 = vmatprep.subr.bf16.mxu0 0
  %1736 = vmatpush1.bf16.msra.mxu0 %v632
  %1737 = vmatprep.subr.bf16.mxu0 0
  %1738 = vmatpush2.bf16.msra.mxu0 0
  %1739 = vmatprep.subr.bf16.mxu0 0
  %1740 = vmatpush2.bf16.msra.mxu0 0
  %1741 = vmatprep.subr.bf16.mxu0 0
  %1742 = vmatpush2.bf16.msra.mxu0 0
  %1743 = vmatprep.subr.bf16.mxu0 0
  %1744 = vmatpush2.bf16.msra.mxu0 0
  %1745 = vmatprep.subr.bf16.mxu0 0
  %1746 = vmatpush2.bf16.msra.mxu0 0
  %1747 = vmatprep.subr.bf16.mxu0 0
  %1748 = vmatpush2.bf16.msra.mxu0 0
  %1749 = vmatprep.subr.bf16.mxu0 0
  %1750 = vmatpush2.bf16.msra.mxu0 0
  %1751 = vmatprep.subr.bf16.mxu0 0
  %1752 = vmatpush2.bf16.msra.mxu0 0
  %1753 = vmatprep.mubr.bf16.mxu0 0
  %1754 = vmatmul.mubr.bf16.gmra.mxu0 %v1679
  %v1755 = vpop.f32.mrf.mxu0
  %v1756 = vadd.f32 %v622, %v1755
  %v1757 = vpop.f32.mrf.mxu0
  %v1758 = vpop.f32.mrf.mxu0
  %v1759 = vpop.f32.mrf.mxu0
  %1760 = vdwg.mxu0
  %1761 = vmatprep.subr.bf16.mxu0 0
  %1762 = vmatpush1.bf16.msra.mxu0 0
  %1763 = vmatprep.subr.bf16.mxu0 0
  %1764 = vmatpush1.bf16.msra.mxu0 0
  %1765 = vmatprep.subr.bf16.mxu0 0
  %1766 = vmatpush1.bf16.msra.mxu0 0
  %1767 = vmatprep.subr.bf16.mxu0 0
  %1768 = vmatpush1.bf16.msra.mxu0 0
  %1769 = vmatprep.subr.bf16.mxu0 0
  %1770 = vmatpush1.bf16.msra.mxu0 0
  %1771 = vmatprep.subr.bf16.mxu0 0
  %1772 = vmatpush1.bf16.msra.mxu0 0
  %1773 = vmatprep.subr.bf16.mxu0 0
  %1774 = vmatpush1.bf16.msra.mxu0 %v691
  %1775 = vmatprep.subr.bf16.mxu0 0
  %1776 = vmatpush1.bf16.msra.mxu0 %v690
  %1777 = vmatprep.subr.bf16.mxu0 0
  %1778 = vmatpush2.bf16.msra.mxu0 0
  %1779 = vmatprep.subr.bf16.mxu0 0
  %1780 = vmatpush2.bf16.msra.mxu0 0
  %1781 = vmatprep.subr.bf16.mxu0 0
  %1782 = vmatpush2.bf16.msra.mxu0 0
  %1783 = vmatprep.subr.bf16.mxu0 0
  %1784 = vmatpush2.bf16.msra.mxu0 0
  %1785 = vmatprep.subr.bf16.mxu0 0
  %1786 = vmatpush2.bf16.msra.mxu0 0
  %1787 = vmatprep.subr.bf16.mxu0 0
  %1788 = vmatpush2.bf16.msra.mxu0 0
  %1789 = vmatprep.subr.bf16.mxu0 0
  %1790 = vmatpush2.bf16.msra.mxu0 0
  %1791 = vmatprep.subr.bf16.mxu0 0
  %1792 = vmatpush2.bf16.msra.mxu0 0
  %1793 = vmatprep.mubr.bf16.mxu0 0
  %1794 = vmatmul.mubr.bf16.gmra.mxu0 %v1679
  %v1795 = vpop.f32.mrf.mxu0
  %v1796 = vadd.f32 %v680, %v1795
  %v1797 = vpop.f32.mrf.mxu0
  %v1798 = vpop.f32.mrf.mxu0
  %v1799 = vpop.f32.mrf.mxu0
  %1800 = vdwg.mxu0
  %s1801 = scalar_lea.vmem [#allocation3], 56
  %v1802 = vld [vmem:[%s1801] sm:$0xff]
  %v1803 = vadd.f32 %v1802, %v1716
  %v1804 = vxor.u32 %v1803, 2147483648
  %v1805 = vmul.f32 %v1804, 1.442695
  %v1806 = vpow.pop %v1805
  %v1807 = vadd.f32 %v1806, 1.0
  %v1808 = vrcp.pop %v1807
  %v1809 = vmul.f32 1.0, %v1808
  %s1810 = scalar_lea.vmem [#allocation4], 56
  %v1811 = vld [vmem:[%s1810] sm:$0xff]
  %v1812 = vadd.f32 %v1811, %v1756
  %v1813 = vxor.u32 %v1812, 2147483648
  %v1814 = vmul.f32 %v1813, 1.442695
  %v1815 = vpow.pop %v1814
  %v1816 = vadd.f32 %v1815, 1.0
  %v1817 = vrcp.pop %v1816
  %v1818 = vmul.f32 1.0, %v1817
  %s1819 = scalar_lea.vmem [#allocation5], 56
  %v1820 = vld [vmem:[%s1819] sm:$0xff]
  %v1821 = vmul.f32 %v1809, %v1796
  %v1822 = vadd.f32 %v1820, %v1821
  %v1823 = vtanh.pop %v1822
  %v1824 = vsub.f32 1.0, %v1818
  %v1825 = vmul.f32 %v1824, %v1823
  %v1826 = vmul.f32 %v1818, %v1674
  %v1827 = vadd.f32 %v1825, %v1826
  %s1828 = scalar_lea.vmem %s5, 56
  %1829 = vst.msk [vmem:[%s1828] sm:$0xff] %vm122, %v1827
  %v1830 = vpack.c.bf16 %v1827, %v1827
  %v1832 = vsel %vm122, %v1830, 0
  %1834 = vmatprep.subr.bf16.mxu0 0
  %1835 = vmatpush1.bf16.msra.mxu0 0
  %1836 = vmatprep.subr.bf16.mxu0 0
  %1837 = vmatpush1.bf16.msra.mxu0 0
  %1838 = vmatprep.subr.bf16.mxu0 0
  %1839 = vmatpush1.bf16.msra.mxu0 0
  %1840 = vmatprep.subr.bf16.mxu0 0
  %1841 = vmatpush1.bf16.msra.mxu0 0
  %1842 = vmatprep.subr.bf16.mxu0 0
  %1843 = vmatpush1.bf16.msra.mxu0 0
  %1844 = vmatprep.subr.bf16.mxu0 0
  %1845 = vmatpush1.bf16.msra.mxu0 0
  %1846 = vmatprep.subr.bf16.mxu0 0
  %1847 = vmatpush1.bf16.msra.mxu0 %v572
  %1848 = vmatprep.subr.bf16.mxu0 0
  %1849 = vmatpush1.bf16.msra.mxu0 %v571
  %1850 = vmatprep.subr.bf16.mxu0 0
  %1851 = vmatpush2.bf16.msra.mxu0 0
  %1852 = vmatprep.subr.bf16.mxu0 0
  %1853 = vmatpush2.bf16.msra.mxu0 0
  %1854 = vmatprep.subr.bf16.mxu0 0
  %1855 = vmatpush2.bf16.msra.mxu0 0
  %1856 = vmatprep.subr.bf16.mxu0 0
  %1857 = vmatpush2.bf16.msra.mxu0 0
  %1858 = vmatprep.subr.bf16.mxu0 0
  %1859 = vmatpush2.bf16.msra.mxu0 0
  %1860 = vmatprep.subr.bf16.mxu0 0
  %1861 = vmatpush2.bf16.msra.mxu0 0
  %1862 = vmatprep.subr.bf16.mxu0 0
  %1863 = vmatpush2.bf16.msra.mxu0 0
  %1864 = vmatprep.subr.bf16.mxu0 0
  %1865 = vmatpush2.bf16.msra.mxu0 0
  %1866 = vmatprep.mubr.bf16.mxu0 0
  %1867 = vmatmul.mubr.bf16.gmra.mxu0 %v1832
  %v1868 = vpop.f32.mrf.mxu0
  %v1869 = vadd.f32 %v561, %v1868
  %v1870 = vpop.f32.mrf.mxu0
  %v1871 = vpop.f32.mrf.mxu0
  %v1872 = vpop.f32.mrf.mxu0
  %1873 = vdwg.mxu0
  %1874 = vmatprep.subr.bf16.mxu0 0
  %1875 = vmatpush1.bf16.msra.mxu0 0
  %1876 = vmatprep.subr.bf16.mxu0 0
  %1877 = vmatpush1.bf16.msra.mxu0 0
  %1878 = vmatprep.subr.bf16.mxu0 0
  %1879 = vmatpush1.bf16.msra.mxu0 0
  %1880 = vmatprep.subr.bf16.mxu0 0
  %1881 = vmatpush1.bf16.msra.mxu0 0
  %1882 = vmatprep.subr.bf16.mxu0 0
  %1883 = vmatpush1.bf16.msra.mxu0 0
  %1884 = vmatprep.subr.bf16.mxu0 0
  %1885 = vmatpush1.bf16.msra.mxu0 0
  %1886 = vmatprep.subr.bf16.mxu0 0
  %1887 = vmatpush1.bf16.msra.mxu0 %v633
  %1888 = vmatprep.subr.bf16.mxu0 0
  %1889 = vmatpush1.bf16.msra.mxu0 %v632
  %1890 = vmatprep.subr.bf16.mxu0 0
  %1891 = vmatpush2.bf16.msra.mxu0 0
  %1892 = vmatprep.subr.bf16.mxu0 0
  %1893 = vmatpush2.bf16.msra.mxu0 0
  %1894 = vmatprep.subr.bf16.mxu0 0
  %1895 = vmatpush2.bf16.msra.mxu0 0
  %1896 = vmatprep.subr.bf16.mxu0 0
  %1897 = vmatpush2.bf16.msra.mxu0 0
  %1898 = vmatprep.subr.bf16.mxu0 0
  %1899 = vmatpush2.bf16.msra.mxu0 0
  %1900 = vmatprep.subr.bf16.mxu0 0
  %1901 = vmatpush2.bf16.msra.mxu0 0
  %1902 = vmatprep.subr.bf16.mxu0 0
  %1903 = vmatpush2.bf16.msra.mxu0 0
  %1904 = vmatprep.subr.bf16.mxu0 0
  %1905 = vmatpush2.bf16.msra.mxu0 0
  %1906 = vmatprep.mubr.bf16.mxu0 0
  %1907 = vmatmul.mubr.bf16.gmra.mxu0 %v1832
  %v1908 = vpop.f32.mrf.mxu0
  %v1909 = vadd.f32 %v622, %v1908
  %v1910 = vpop.f32.mrf.mxu0
  %v1911 = vpop.f32.mrf.mxu0
  %v1912 = vpop.f32.mrf.mxu0
  %1913 = vdwg.mxu0
  %1914 = vmatprep.subr.bf16.mxu0 0
  %1915 = vmatpush1.bf16.msra.mxu0 0
  %1916 = vmatprep.subr.bf16.mxu0 0
  %1917 = vmatpush1.bf16.msra.mxu0 0
  %1918 = vmatprep.subr.bf16.mxu0 0
  %1919 = vmatpush1.bf16.msra.mxu0 0
  %1920 = vmatprep.subr.bf16.mxu0 0
  %1921 = vmatpush1.bf16.msra.mxu0 0
  %1922 = vmatprep.subr.bf16.mxu0 0
  %1923 = vmatpush1.bf16.msra.mxu0 0
  %1924 = vmatprep.subr.bf16.mxu0 0
  %1925 = vmatpush1.bf16.msra.mxu0 0
  %1926 = vmatprep.subr.bf16.mxu0 0
  %1927 = vmatpush1.bf16.msra.mxu0 %v691
  %1928 = vmatprep.subr.bf16.mxu0 0
  %1929 = vmatpush1.bf16.msra.mxu0 %v690
  %1930 = vmatprep.subr.bf16.mxu0 0
  %1931 = vmatpush2.bf16.msra.mxu0 0
  %1932 = vmatprep.subr.bf16.mxu0 0
  %1933 = vmatpush2.bf16.msra.mxu0 0
  %1934 = vmatprep.subr.bf16.mxu0 0
  %1935 = vmatpush2.bf16.msra.mxu0 0
  %1936 = vmatprep.subr.bf16.mxu0 0
  %1937 = vmatpush2.bf16.msra.mxu0 0
  %1938 = vmatprep.subr.bf16.mxu0 0
  %1939 = vmatpush2.bf16.msra.mxu0 0
  %1940 = vmatprep.subr.bf16.mxu0 0
  %1941 = vmatpush2.bf16.msra.mxu0 0
  %1942 = vmatprep.subr.bf16.mxu0 0
  %1943 = vmatpush2.bf16.msra.mxu0 0
  %1944 = vmatprep.subr.bf16.mxu0 0
  %1945 = vmatpush2.bf16.msra.mxu0 0
  %1946 = vmatprep.mubr.bf16.mxu0 0
  %1947 = vmatmul.mubr.bf16.gmra.mxu0 %v1832
  %v1948 = vpop.f32.mrf.mxu0
  %v1949 = vadd.f32 %v680, %v1948
  %v1950 = vpop.f32.mrf.mxu0
  %v1951 = vpop.f32.mrf.mxu0
  %v1952 = vpop.f32.mrf.mxu0
  %1953 = vdwg.mxu0
  %s1954 = scalar_lea.vmem [#allocation3], 64
  %v1955 = vld [vmem:[%s1954] sm:$0xff]
  %v1956 = vadd.f32 %v1955, %v1869
  %v1957 = vxor.u32 %v1956, 2147483648
  %v1958 = vmul.f32 %v1957, 1.442695
  %v1959 = vpow.pop %v1958
  %v1960 = vadd.f32 %v1959, 1.0
  %v1961 = vrcp.pop %v1960
  %v1962 = vmul.f32 1.0, %v1961
  %s1963 = scalar_lea.vmem [#allocation4], 64
  %v1964 = vld [vmem:[%s1963] sm:$0xff]
  %v1965 = vadd.f32 %v1964, %v1909
  %v1966 = vxor.u32 %v1965, 2147483648
  %v1967 = vmul.f32 %v1966, 1.442695
  %v1968 = vpow.pop %v1967
  %v1969 = vadd.f32 %v1968, 1.0
  %v1970 = vrcp.pop %v1969
  %v1971 = vmul.f32 1.0, %v1970
  %s1972 = scalar_lea.vmem [#allocation5], 64
  %v1973 = vld [vmem:[%s1972] sm:$0xff]
  %v1974 = vmul.f32 %v1962, %v1949
  %v1975 = vadd.f32 %v1973, %v1974
  %v1976 = vtanh.pop %v1975
  %v1977 = vsub.f32 1.0, %v1971
  %v1978 = vmul.f32 %v1977, %v1976
  %v1979 = vmul.f32 %v1971, %v1827
  %v1980 = vadd.f32 %v1978, %v1979
  %s1981 = scalar_lea.vmem %s5, 64
  %1982 = vst.msk [vmem:[%s1981] sm:$0xff] %vm122, %v1980
  %v1983 = vpack.c.bf16 %v1980, %v1980
  %v1985 = vsel %vm122, %v1983, 0
  %1987 = vmatprep.subr.bf16.mxu0 0
  %1988 = vmatpush1.bf16.msra.mxu0 0
  %1989 = vmatprep.subr.bf16.mxu0 0
  %1990 = vmatpush1.bf16.msra.mxu0 0
  %1991 = vmatprep.subr.bf16.mxu0 0
  %1992 = vmatpush1.bf16.msra.mxu0 0
  %1993 = vmatprep.subr.bf16.mxu0 0
  %1994 = vmatpush1.bf16.msra.mxu0 0
  %1995 = vmatprep.subr.bf16.mxu0 0
  %1996 = vmatpush1.bf16.msra.mxu0 0
  %1997 = vmatprep.subr.bf16.mxu0 0
  %1998 = vmatpush1.bf16.msra.mxu0 0
  %1999 = vmatprep.subr.bf16.mxu0 0
  %2000 = vmatpush1.bf16.msra.mxu0 %v572
  %2001 = vmatprep.subr.bf16.mxu0 0
  %2002 = vmatpush1.bf16.msra.mxu0 %v571
  %2003 = vmatprep.subr.bf16.mxu0 0
  %2004 = vmatpush2.bf16.msra.mxu0 0
  %2005 = vmatprep.subr.bf16.mxu0 0
  %2006 = vmatpush2.bf16.msra.mxu0 0
  %2007 = vmatprep.subr.bf16.mxu0 0
  %2008 = vmatpush2.bf16.msra.mxu0 0
  %2009 = vmatprep.subr.bf16.mxu0 0
  %2010 = vmatpush2.bf16.msra.mxu0 0
  %2011 = vmatprep.subr.bf16.mxu0 0
  %2012 = vmatpush2.bf16.msra.mxu0 0
  %2013 = vmatprep.subr.bf16.mxu0 0
  %2014 = vmatpush2.bf16.msra.mxu0 0
  %2015 = vmatprep.subr.bf16.mxu0 0
  %2016 = vmatpush2.bf16.msra.mxu0 0
  %2017 = vmatprep.subr.bf16.mxu0 0
  %2018 = vmatpush2.bf16.msra.mxu0 0
  %2019 = vmatprep.mubr.bf16.mxu0 0
  %2020 = vmatmul.mubr.bf16.gmra.mxu0 %v1985
  %v2021 = vpop.f32.mrf.mxu0
  %v2022 = vadd.f32 %v561, %v2021
  %v2023 = vpop.f32.mrf.mxu0
  %v2024 = vpop.f32.mrf.mxu0
  %v2025 = vpop.f32.mrf.mxu0
  %2026 = vdwg.mxu0
  %2027 = vmatprep.subr.bf16.mxu0 0
  %2028 = vmatpush1.bf16.msra.mxu0 0
  %2029 = vmatprep.subr.bf16.mxu0 0
  %2030 = vmatpush1.bf16.msra.mxu0 0
  %2031 = vmatprep.subr.bf16.mxu0 0
  %2032 = vmatpush1.bf16.msra.mxu0 0
  %2033 = vmatprep.subr.bf16.mxu0 0
  %2034 = vmatpush1.bf16.msra.mxu0 0
  %2035 = vmatprep.subr.bf16.mxu0 0
  %2036 = vmatpush1.bf16.msra.mxu0 0
  %2037 = vmatprep.subr.bf16.mxu0 0
  %2038 = vmatpush1.bf16.msra.mxu0 0
  %2039 = vmatprep.subr.bf16.mxu0 0
  %2040 = vmatpush1.bf16.msra.mxu0 %v633
  %2041 = vmatprep.subr.bf16.mxu0 0
  %2042 = vmatpush1.bf16.msra.mxu0 %v632
  %2043 = vmatprep.subr.bf16.mxu0 0
  %2044 = vmatpush2.bf16.msra.mxu0 0
  %2045 = vmatprep.subr.bf16.mxu0 0
  %2046 = vmatpush2.bf16.msra.mxu0 0
  %2047 = vmatprep.subr.bf16.mxu0 0
  %2048 = vmatpush2.bf16.msra.mxu0 0
  %2049 = vmatprep.subr.bf16.mxu0 0
  %2050 = vmatpush2.bf16.msra.mxu0 0
  %2051 = vmatprep.subr.bf16.mxu0 0
  %2052 = vmatpush2.bf16.msra.mxu0 0
  %2053 = vmatprep.subr.bf16.mxu0 0
  %2054 = vmatpush2.bf16.msra.mxu0 0
  %2055 = vmatprep.subr.bf16.mxu0 0
  %2056 = vmatpush2.bf16.msra.mxu0 0
  %2057 = vmatprep.subr.bf16.mxu0 0
  %2058 = vmatpush2.bf16.msra.mxu0 0
  %2059 = vmatprep.mubr.bf16.mxu0 0
  %2060 = vmatmul.mubr.bf16.gmra.mxu0 %v1985
  %v2061 = vpop.f32.mrf.mxu0
  %v2062 = vadd.f32 %v622, %v2061
  %v2063 = vpop.f32.mrf.mxu0
  %v2064 = vpop.f32.mrf.mxu0
  %v2065 = vpop.f32.mrf.mxu0
  %2066 = vdwg.mxu0
  %2067 = vmatprep.subr.bf16.mxu0 0
  %2068 = vmatpush1.bf16.msra.mxu0 0
  %2069 = vmatprep.subr.bf16.mxu0 0
  %2070 = vmatpush1.bf16.msra.mxu0 0
  %2071 = vmatprep.subr.bf16.mxu0 0
  %2072 = vmatpush1.bf16.msra.mxu0 0
  %2073 = vmatprep.subr.bf16.mxu0 0
  %2074 = vmatpush1.bf16.msra.mxu0 0
  %2075 = vmatprep.subr.bf16.mxu0 0
  %2076 = vmatpush1.bf16.msra.mxu0 0
  %2077 = vmatprep.subr.bf16.mxu0 0
  %2078 = vmatpush1.bf16.msra.mxu0 0
  %2079 = vmatprep.subr.bf16.mxu0 0
  %2080 = vmatpush1.bf16.msra.mxu0 %v691
  %2081 = vmatprep.subr.bf16.mxu0 0
  %2082 = vmatpush1.bf16.msra.mxu0 %v690
  %2083 = vmatprep.subr.bf16.mxu0 0
  %2084 = vmatpush2.bf16.msra.mxu0 0
  %2085 = vmatprep.subr.bf16.mxu0 0
  %2086 = vmatpush2.bf16.msra.mxu0 0
  %2087 = vmatprep.subr.bf16.mxu0 0
  %2088 = vmatpush2.bf16.msra.mxu0 0
  %2089 = vmatprep.subr.bf16.mxu0 0
  %2090 = vmatpush2.bf16.msra.mxu0 0
  %2091 = vmatprep.subr.bf16.mxu0 0
  %2092 = vmatpush2.bf16.msra.mxu0 0
  %2093 = vmatprep.subr.bf16.mxu0 0
  %2094 = vmatpush2.bf16.msra.mxu0 0
  %2095 = vmatprep.subr.bf16.mxu0 0
  %2096 = vmatpush2.bf16.msra.mxu0 0
  %2097 = vmatprep.subr.bf16.mxu0 0
  %2098 = vmatpush2.bf16.msra.mxu0 0
  %2099 = vmatprep.mubr.bf16.mxu0 0
  %2100 = vmatmul.mubr.bf16.gmra.mxu0 %v1985
  %v2101 = vpop.f32.mrf.mxu0
  %v2102 = vadd.f32 %v680, %v2101
  %v2103 = vpop.f32.mrf.mxu0
  %v2104 = vpop.f32.mrf.mxu0
  %v2105 = vpop.f32.mrf.mxu0
  %2106 = vdwg.mxu0
  %s2107 = scalar_lea.vmem [#allocation3], 72
  %v2108 = vld [vmem:[%s2107] sm:$0xff]
  %v2109 = vadd.f32 %v2108, %v2022
  %v2110 = vxor.u32 %v2109, 2147483648
  %v2111 = vmul.f32 %v2110, 1.442695
  %v2112 = vpow.pop %v2111
  %v2113 = vadd.f32 %v2112, 1.0
  %v2114 = vrcp.pop %v2113
  %v2115 = vmul.f32 1.0, %v2114
  %s2116 = scalar_lea.vmem [#allocation4], 72
  %v2117 = vld [vmem:[%s2116] sm:$0xff]
  %v2118 = vadd.f32 %v2117, %v2062
  %v2119 = vxor.u32 %v2118, 2147483648
  %v2120 = vmul.f32 %v2119, 1.442695
  %v2121 = vpow.pop %v2120
  %v2122 = vadd.f32 %v2121, 1.0
  %v2123 = vrcp.pop %v2122
  %v2124 = vmul.f32 1.0, %v2123
  %s2125 = scalar_lea.vmem [#allocation5], 72
  %v2126 = vld [vmem:[%s2125] sm:$0xff]
  %v2127 = vmul.f32 %v2115, %v2102
  %v2128 = vadd.f32 %v2126, %v2127
  %v2129 = vtanh.pop %v2128
  %v2130 = vsub.f32 1.0, %v2124
  %v2131 = vmul.f32 %v2130, %v2129
  %v2132 = vmul.f32 %v2124, %v1980
  %v2133 = vadd.f32 %v2131, %v2132
  %s2134 = scalar_lea.vmem %s5, 72
  %2135 = vst.msk [vmem:[%s2134] sm:$0xff] %vm122, %v2133
  %v2136 = vpack.c.bf16 %v2133, %v2133
  %v2138 = vsel %vm122, %v2136, 0
  %2140 = vmatprep.subr.bf16.mxu0 0
  %2141 = vmatpush1.bf16.msra.mxu0 0
  %2142 = vmatprep.subr.bf16.mxu0 0
  %2143 = vmatpush1.bf16.msra.mxu0 0
  %2144 = vmatprep.subr.bf16.mxu0 0
  %2145 = vmatpush1.bf16.msra.mxu0 0
  %2146 = vmatprep.subr.bf16.mxu0 0
  %2147 = vmatpush1.bf16.msra.mxu0 0
  %2148 = vmatprep.subr.bf16.mxu0 0
  %2149 = vmatpush1.bf16.msra.mxu0 0
  %2150 = vmatprep.subr.bf16.mxu0 0
  %2151 = vmatpush1.bf16.msra.mxu0 0
  %2152 = vmatprep.subr.bf16.mxu0 0
  %2153 = vmatpush1.bf16.msra.mxu0 %v572
  %2154 = vmatprep.subr.bf16.mxu0 0
  %2155 = vmatpush1.bf16.msra.mxu0 %v571
  %2156 = vmatprep.subr.bf16.mxu0 0
  %2157 = vmatpush2.bf16.msra.mxu0 0
  %2158 = vmatprep.subr.bf16.mxu0 0
  %2159 = vmatpush2.bf16.msra.mxu0 0
  %2160 = vmatprep.subr.bf16.mxu0 0
  %2161 = vmatpush2.bf16.msra.mxu0 0
  %2162 = vmatprep.subr.bf16.mxu0 0
  %2163 = vmatpush2.bf16.msra.mxu0 0
  %2164 = vmatprep.subr.bf16.mxu0 0
  %2165 = vmatpush2.bf16.msra.mxu0 0
  %2166 = vmatprep.subr.bf16.mxu0 0
  %2167 = vmatpush2.bf16.msra.mxu0 0
  %2168 = vmatprep.subr.bf16.mxu0 0
  %2169 = vmatpush2.bf16.msra.mxu0 0
  %2170 = vmatprep.subr.bf16.mxu0 0
  %2171 = vmatpush2.bf16.msra.mxu0 0
  %2172 = vmatprep.mubr.bf16.mxu0 0
  %2173 = vmatmul.mubr.bf16.gmra.mxu0 %v2138
  %v2174 = vpop.f32.mrf.mxu0
  %v2175 = vadd.f32 %v561, %v2174
  %v2176 = vpop.f32.mrf.mxu0
  %v2177 = vpop.f32.mrf.mxu0
  %v2178 = vpop.f32.mrf.mxu0
  %2179 = vdwg.mxu0
  %2180 = vmatprep.subr.bf16.mxu0 0
  %2181 = vmatpush1.bf16.msra.mxu0 0
  %2182 = vmatprep.subr.bf16.mxu0 0
  %2183 = vmatpush1.bf16.msra.mxu0 0
  %2184 = vmatprep.subr.bf16.mxu0 0
  %2185 = vmatpush1.bf16.msra.mxu0 0
  %2186 = vmatprep.subr.bf16.mxu0 0
  %2187 = vmatpush1.bf16.msra.mxu0 0
  %2188 = vmatprep.subr.bf16.mxu0 0
  %2189 = vmatpush1.bf16.msra.mxu0 0
  %2190 = vmatprep.subr.bf16.mxu0 0
  %2191 = vmatpush1.bf16.msra.mxu0 0
  %2192 = vmatprep.subr.bf16.mxu0 0
  %2193 = vmatpush1.bf16.msra.mxu0 %v633
  %2194 = vmatprep.subr.bf16.mxu0 0
  %2195 = vmatpush1.bf16.msra.mxu0 %v632
  %2196 = vmatprep.subr.bf16.mxu0 0
  %2197 = vmatpush2.bf16.msra.mxu0 0
  %2198 = vmatprep.subr.bf16.mxu0 0
  %2199 = vmatpush2.bf16.msra.mxu0 0
  %2200 = vmatprep.subr.bf16.mxu0 0
  %2201 = vmatpush2.bf16.msra.mxu0 0
  %2202 = vmatprep.subr.bf16.mxu0 0
  %2203 = vmatpush2.bf16.msra.mxu0 0
  %2204 = vmatprep.subr.bf16.mxu0 0
  %2205 = vmatpush2.bf16.msra.mxu0 0
  %2206 = vmatprep.subr.bf16.mxu0 0
  %2207 = vmatpush2.bf16.msra.mxu0 0
  %2208 = vmatprep.subr.bf16.mxu0 0
  %2209 = vmatpush2.bf16.msra.mxu0 0
  %2210 = vmatprep.subr.bf16.mxu0 0
  %2211 = vmatpush2.bf16.msra.mxu0 0
  %2212 = vmatprep.mubr.bf16.mxu0 0
  %2213 = vmatmul.mubr.bf16.gmra.mxu0 %v2138
  %v2214 = vpop.f32.mrf.mxu0
  %v2215 = vadd.f32 %v622, %v2214
  %v2216 = vpop.f32.mrf.mxu0
  %v2217 = vpop.f32.mrf.mxu0
  %v2218 = vpop.f32.mrf.mxu0
  %2219 = vdwg.mxu0
  %2220 = vmatprep.subr.bf16.mxu0 0
  %2221 = vmatpush1.bf16.msra.mxu0 0
  %2222 = vmatprep.subr.bf16.mxu0 0
  %2223 = vmatpush1.bf16.msra.mxu0 0
  %2224 = vmatprep.subr.bf16.mxu0 0
  %2225 = vmatpush1.bf16.msra.mxu0 0
  %2226 = vmatprep.subr.bf16.mxu0 0
  %2227 = vmatpush1.bf16.msra.mxu0 0
  %2228 = vmatprep.subr.bf16.mxu0 0
  %2229 = vmatpush1.bf16.msra.mxu0 0
  %2230 = vmatprep.subr.bf16.mxu0 0
  %2231 = vmatpush1.bf16.msra.mxu0 0
  %2232 = vmatprep.subr.bf16.mxu0 0
  %2233 = vmatpush1.bf16.msra.mxu0 %v691
  %2234 = vmatprep.subr.bf16.mxu0 0
  %2235 = vmatpush1.bf16.msra.mxu0 %v690
  %2236 = vmatprep.subr.bf16.mxu0 0
  %2237 = vmatpush2.bf16.msra.mxu0 0
  %2238 = vmatprep.subr.bf16.mxu0 0
  %2239 = vmatpush2.bf16.msra.mxu0 0
  %2240 = vmatprep.subr.bf16.mxu0 0
  %2241 = vmatpush2.bf16.msra.mxu0 0
  %2242 = vmatprep.subr.bf16.mxu0 0
  %2243 = vmatpush2.bf16.msra.mxu0 0
  %2244 = vmatprep.subr.bf16.mxu0 0
  %2245 = vmatpush2.bf16.msra.mxu0 0
  %2246 = vmatprep.subr.bf16.mxu0 0
  %2247 = vmatpush2.bf16.msra.mxu0 0
  %2248 = vmatprep.subr.bf16.mxu0 0
  %2249 = vmatpush2.bf16.msra.mxu0 0
  %2250 = vmatprep.subr.bf16.mxu0 0
  %2251 = vmatpush2.bf16.msra.mxu0 0
  %2252 = vmatprep.mubr.bf16.mxu0 0
  %2253 = vmatmul.mubr.bf16.gmra.mxu0 %v2138
  %v2254 = vpop.f32.mrf.mxu0
  %v2255 = vadd.f32 %v680, %v2254
  %v2256 = vpop.f32.mrf.mxu0
  %v2257 = vpop.f32.mrf.mxu0
  %v2258 = vpop.f32.mrf.mxu0
  %2259 = vdwg.mxu0
  %s2260 = scalar_lea.vmem [#allocation3], 80
  %v2261 = vld [vmem:[%s2260] sm:$0xff]
  %v2262 = vadd.f32 %v2261, %v2175
  %v2263 = vxor.u32 %v2262, 2147483648
  %v2264 = vmul.f32 %v2263, 1.442695
  %v2265 = vpow.pop %v2264
  %v2266 = vadd.f32 %v2265, 1.0
  %v2267 = vrcp.pop %v2266
  %v2268 = vmul.f32 1.0, %v2267
  %s2269 = scalar_lea.vmem [#allocation4], 80
  %v2270 = vld [vmem:[%s2269] sm:$0xff]
  %v2271 = vadd.f32 %v2270, %v2215
  %v2272 = vxor.u32 %v2271, 2147483648
  %v2273 = vmul.f32 %v2272, 1.442695
  %v2274 = vpow.pop %v2273
  %v2275 = vadd.f32 %v2274, 1.0
  %v2276 = vrcp.pop %v2275
  %v2277 = vmul.f32 1.0, %v2276
  %s2278 = scalar_lea.vmem [#allocation5], 80
  %v2279 = vld [vmem:[%s2278] sm:$0xff]
  %v2280 = vmul.f32 %v2268, %v2255
  %v2281 = vadd.f32 %v2279, %v2280
  %v2282 = vtanh.pop %v2281
  %v2283 = vsub.f32 1.0, %v2277
  %v2284 = vmul.f32 %v2283, %v2282
  %v2285 = vmul.f32 %v2277, %v2133
  %v2286 = vadd.f32 %v2284, %v2285
  %s2287 = scalar_lea.vmem %s5, 80
  %2288 = vst.msk [vmem:[%s2287] sm:$0xff] %vm122, %v2286
  %v2289 = vpack.c.bf16 %v2286, %v2286
  %v2291 = vsel %vm122, %v2289, 0
  %2293 = vmatprep.subr.bf16.mxu0 0
  %2294 = vmatpush1.bf16.msra.mxu0 0
  %2295 = vmatprep.subr.bf16.mxu0 0
  %2296 = vmatpush1.bf16.msra.mxu0 0
  %2297 = vmatprep.subr.bf16.mxu0 0
  %2298 = vmatpush1.bf16.msra.mxu0 0
  %2299 = vmatprep.subr.bf16.mxu0 0
  %2300 = vmatpush1.bf16.msra.mxu0 0
  %2301 = vmatprep.subr.bf16.mxu0 0
  %2302 = vmatpush1.bf16.msra.mxu0 0
  %2303 = vmatprep.subr.bf16.mxu0 0
  %2304 = vmatpush1.bf16.msra.mxu0 0
  %2305 = vmatprep.subr.bf16.mxu0 0
  %2306 = vmatpush1.bf16.msra.mxu0 %v572
  %2307 = vmatprep.subr.bf16.mxu0 0
  %2308 = vmatpush1.bf16.msra.mxu0 %v571
  %2309 = vmatprep.subr.bf16.mxu0 0
  %2310 = vmatpush2.bf16.msra.mxu0 0
  %2311 = vmatprep.subr.bf16.mxu0 0
  %2312 = vmatpush2.bf16.msra.mxu0 0
  %2313 = vmatprep.subr.bf16.mxu0 0
  %2314 = vmatpush2.bf16.msra.mxu0 0
  %2315 = vmatprep.subr.bf16.mxu0 0
  %2316 = vmatpush2.bf16.msra.mxu0 0
  %2317 = vmatprep.subr.bf16.mxu0 0
  %2318 = vmatpush2.bf16.msra.mxu0 0
  %2319 = vmatprep.subr.bf16.mxu0 0
  %2320 = vmatpush2.bf16.msra.mxu0 0
  %2321 = vmatprep.subr.bf16.mxu0 0
  %2322 = vmatpush2.bf16.msra.mxu0 0
  %2323 = vmatprep.subr.bf16.mxu0 0
  %2324 = vmatpush2.bf16.msra.mxu0 0
  %2325 = vmatprep.mubr.bf16.mxu0 0
  %2326 = vmatmul.mubr.bf16.gmra.mxu0 %v2291
  %v2327 = vpop.f32.mrf.mxu0
  %v2328 = vadd.f32 %v561, %v2327
  %v2329 = vpop.f32.mrf.mxu0
  %v2330 = vpop.f32.mrf.mxu0
  %v2331 = vpop.f32.mrf.mxu0
  %2332 = vdwg.mxu0
  %2333 = vmatprep.subr.bf16.mxu0 0
  %2334 = vmatpush1.bf16.msra.mxu0 0
  %2335 = vmatprep.subr.bf16.mxu0 0
  %2336 = vmatpush1.bf16.msra.mxu0 0
  %2337 = vmatprep.subr.bf16.mxu0 0
  %2338 = vmatpush1.bf16.msra.mxu0 0
  %2339 = vmatprep.subr.bf16.mxu0 0
  %2340 = vmatpush1.bf16.msra.mxu0 0
  %2341 = vmatprep.subr.bf16.mxu0 0
  %2342 = vmatpush1.bf16.msra.mxu0 0
  %2343 = vmatprep.subr.bf16.mxu0 0
  %2344 = vmatpush1.bf16.msra.mxu0 0
  %2345 = vmatprep.subr.bf16.mxu0 0
  %2346 = vmatpush1.bf16.msra.mxu0 %v633
  %2347 = vmatprep.subr.bf16.mxu0 0
  %2348 = vmatpush1.bf16.msra.mxu0 %v632
  %2349 = vmatprep.subr.bf16.mxu0 0
  %2350 = vmatpush2.bf16.msra.mxu0 0
  %2351 = vmatprep.subr.bf16.mxu0 0
  %2352 = vmatpush2.bf16.msra.mxu0 0
  %2353 = vmatprep.subr.bf16.mxu0 0
  %2354 = vmatpush2.bf16.msra.mxu0 0
  %2355 = vmatprep.subr.bf16.mxu0 0
  %2356 = vmatpush2.bf16.msra.mxu0 0
  %2357 = vmatprep.subr.bf16.mxu0 0
  %2358 = vmatpush2.bf16.msra.mxu0 0
  %2359 = vmatprep.subr.bf16.mxu0 0
  %2360 = vmatpush2.bf16.msra.mxu0 0
  %2361 = vmatprep.subr.bf16.mxu0 0
  %2362 = vmatpush2.bf16.msra.mxu0 0
  %2363 = vmatprep.subr.bf16.mxu0 0
  %2364 = vmatpush2.bf16.msra.mxu0 0
  %2365 = vmatprep.mubr.bf16.mxu0 0
  %2366 = vmatmul.mubr.bf16.gmra.mxu0 %v2291
  %v2367 = vpop.f32.mrf.mxu0
  %v2368 = vadd.f32 %v622, %v2367
  %v2369 = vpop.f32.mrf.mxu0
  %v2370 = vpop.f32.mrf.mxu0
  %v2371 = vpop.f32.mrf.mxu0
  %2372 = vdwg.mxu0
  %2373 = vmatprep.subr.bf16.mxu0 0
  %2374 = vmatpush1.bf16.msra.mxu0 0
  %2375 = vmatprep.subr.bf16.mxu0 0
  %2376 = vmatpush1.bf16.msra.mxu0 0
  %2377 = vmatprep.subr.bf16.mxu0 0
  %2378 = vmatpush1.bf16.msra.mxu0 0
  %2379 = vmatprep.subr.bf16.mxu0 0
  %2380 = vmatpush1.bf16.msra.mxu0 0
  %2381 = vmatprep.subr.bf16.mxu0 0
  %2382 = vmatpush1.bf16.msra.mxu0 0
  %2383 = vmatprep.subr.bf16.mxu0 0
  %2384 = vmatpush1.bf16.msra.mxu0 0
  %2385 = vmatprep.subr.bf16.mxu0 0
  %2386 = vmatpush1.bf16.msra.mxu0 %v691
  %2387 = vmatprep.subr.bf16.mxu0 0
  %2388 = vmatpush1.bf16.msra.mxu0 %v690
  %2389 = vmatprep.subr.bf16.mxu0 0
  %2390 = vmatpush2.bf16.msra.mxu0 0
  %2391 = vmatprep.subr.bf16.mxu0 0
  %2392 = vmatpush2.bf16.msra.mxu0 0
  %2393 = vmatprep.subr.bf16.mxu0 0
  %2394 = vmatpush2.bf16.msra.mxu0 0
  %2395 = vmatprep.subr.bf16.mxu0 0
  %2396 = vmatpush2.bf16.msra.mxu0 0
  %2397 = vmatprep.subr.bf16.mxu0 0
  %2398 = vmatpush2.bf16.msra.mxu0 0
  %2399 = vmatprep.subr.bf16.mxu0 0
  %2400 = vmatpush2.bf16.msra.mxu0 0
  %2401 = vmatprep.subr.bf16.mxu0 0
  %2402 = vmatpush2.bf16.msra.mxu0 0
  %2403 = vmatprep.subr.bf16.mxu0 0
  %2404 = vmatpush2.bf16.msra.mxu0 0
  %2405 = vmatprep.mubr.bf16.mxu0 0
  %2406 = vmatmul.mubr.bf16.gmra.mxu0 %v2291
  %v2407 = vpop.f32.mrf.mxu0
  %v2408 = vadd.f32 %v680, %v2407
  %v2409 = vpop.f32.mrf.mxu0
  %v2410 = vpop.f32.mrf.mxu0
  %v2411 = vpop.f32.mrf.mxu0
  %2412 = vdwg.mxu0
  %s2413 = scalar_lea.vmem [#allocation3], 88
  %v2414 = vld [vmem:[%s2413] sm:$0xff]
  %v2415 = vadd.f32 %v2414, %v2328
  %v2416 = vxor.u32 %v2415, 2147483648
  %v2417 = vmul.f32 %v2416, 1.442695
  %v2418 = vpow.pop %v2417
  %v2419 = vadd.f32 %v2418, 1.0
  %v2420 = vrcp.pop %v2419
  %v2421 = vmul.f32 1.0, %v2420
  %s2422 = scalar_lea.vmem [#allocation4], 88
  %v2423 = vld [vmem:[%s2422] sm:$0xff]
  %v2424 = vadd.f32 %v2423, %v2368
  %v2425 = vxor.u32 %v2424, 2147483648
  %v2426 = vmul.f32 %v2425, 1.442695
  %v2427 = vpow.pop %v2426
  %v2428 = vadd.f32 %v2427, 1.0
  %v2429 = vrcp.pop %v2428
  %v2430 = vmul.f32 1.0, %v2429
  %s2431 = scalar_lea.vmem [#allocation5], 88
  %v2432 = vld [vmem:[%s2431] sm:$0xff]
  %v2433 = vmul.f32 %v2421, %v2408
  %v2434 = vadd.f32 %v2432, %v2433
  %v2435 = vtanh.pop %v2434
  %v2436 = vsub.f32 1.0, %v2430
  %v2437 = vmul.f32 %v2436, %v2435
  %v2438 = vmul.f32 %v2430, %v2286
  %v2439 = vadd.f32 %v2437, %v2438
  %s2440 = scalar_lea.vmem %s5, 88
  %2441 = vst.msk [vmem:[%s2440] sm:$0xff] %vm122, %v2439
  %v2442 = vpack.c.bf16 %v2439, %v2439
  %v2444 = vsel %vm122, %v2442, 0
  %2446 = vmatprep.subr.bf16.mxu0 0
  %2447 = vmatpush1.bf16.msra.mxu0 0
  %2448 = vmatprep.subr.bf16.mxu0 0
  %2449 = vmatpush1.bf16.msra.mxu0 0
  %2450 = vmatprep.subr.bf16.mxu0 0
  %2451 = vmatpush1.bf16.msra.mxu0 0
  %2452 = vmatprep.subr.bf16.mxu0 0
  %2453 = vmatpush1.bf16.msra.mxu0 0
  %2454 = vmatprep.subr.bf16.mxu0 0
  %2455 = vmatpush1.bf16.msra.mxu0 0
  %2456 = vmatprep.subr.bf16.mxu0 0
  %2457 = vmatpush1.bf16.msra.mxu0 0
  %2458 = vmatprep.subr.bf16.mxu0 0
  %2459 = vmatpush1.bf16.msra.mxu0 %v572
  %2460 = vmatprep.subr.bf16.mxu0 0
  %2461 = vmatpush1.bf16.msra.mxu0 %v571
  %2462 = vmatprep.subr.bf16.mxu0 0
  %2463 = vmatpush2.bf16.msra.mxu0 0
  %2464 = vmatprep.subr.bf16.mxu0 0
  %2465 = vmatpush2.bf16.msra.mxu0 0
  %2466 = vmatprep.subr.bf16.mxu0 0
  %2467 = vmatpush2.bf16.msra.mxu0 0
  %2468 = vmatprep.subr.bf16.mxu0 0
  %2469 = vmatpush2.bf16.msra.mxu0 0
  %2470 = vmatprep.subr.bf16.mxu0 0
  %2471 = vmatpush2.bf16.msra.mxu0 0
  %2472 = vmatprep.subr.bf16.mxu0 0
  %2473 = vmatpush2.bf16.msra.mxu0 0
  %2474 = vmatprep.subr.bf16.mxu0 0
  %2475 = vmatpush2.bf16.msra.mxu0 0
  %2476 = vmatprep.subr.bf16.mxu0 0
  %2477 = vmatpush2.bf16.msra.mxu0 0
  %2478 = vmatprep.mubr.bf16.mxu0 0
  %2479 = vmatmul.mubr.bf16.gmra.mxu0 %v2444
  %v2480 = vpop.f32.mrf.mxu0
  %v2481 = vadd.f32 %v561, %v2480
  %v2482 = vpop.f32.mrf.mxu0
  %v2483 = vpop.f32.mrf.mxu0
  %v2484 = vpop.f32.mrf.mxu0
  %2485 = vdwg.mxu0
  %2486 = vmatprep.subr.bf16.mxu0 0
  %2487 = vmatpush1.bf16.msra.mxu0 0
  %2488 = vmatprep.subr.bf16.mxu0 0
  %2489 = vmatpush1.bf16.msra.mxu0 0
  %2490 = vmatprep.subr.bf16.mxu0 0
  %2491 = vmatpush1.bf16.msra.mxu0 0
  %2492 = vmatprep.subr.bf16.mxu0 0
  %2493 = vmatpush1.bf16.msra.mxu0 0
  %2494 = vmatprep.subr.bf16.mxu0 0
  %2495 = vmatpush1.bf16.msra.mxu0 0
  %2496 = vmatprep.subr.bf16.mxu0 0
  %2497 = vmatpush1.bf16.msra.mxu0 0
  %2498 = vmatprep.subr.bf16.mxu0 0
  %2499 = vmatpush1.bf16.msra.mxu0 %v633
  %2500 = vmatprep.subr.bf16.mxu0 0
  %2501 = vmatpush1.bf16.msra.mxu0 %v632
  %2502 = vmatprep.subr.bf16.mxu0 0
  %2503 = vmatpush2.bf16.msra.mxu0 0
  %2504 = vmatprep.subr.bf16.mxu0 0
  %2505 = vmatpush2.bf16.msra.mxu0 0
  %2506 = vmatprep.subr.bf16.mxu0 0
  %2507 = vmatpush2.bf16.msra.mxu0 0
  %2508 = vmatprep.subr.bf16.mxu0 0
  %2509 = vmatpush2.bf16.msra.mxu0 0
  %2510 = vmatprep.subr.bf16.mxu0 0
  %2511 = vmatpush2.bf16.msra.mxu0 0
  %2512 = vmatprep.subr.bf16.mxu0 0
  %2513 = vmatpush2.bf16.msra.mxu0 0
  %2514 = vmatprep.subr.bf16.mxu0 0
  %2515 = vmatpush2.bf16.msra.mxu0 0
  %2516 = vmatprep.subr.bf16.mxu0 0
  %2517 = vmatpush2.bf16.msra.mxu0 0
  %2518 = vmatprep.mubr.bf16.mxu0 0
  %2519 = vmatmul.mubr.bf16.gmra.mxu0 %v2444
  %v2520 = vpop.f32.mrf.mxu0
  %v2521 = vadd.f32 %v622, %v2520
  %v2522 = vpop.f32.mrf.mxu0
  %v2523 = vpop.f32.mrf.mxu0
  %v2524 = vpop.f32.mrf.mxu0
  %2525 = vdwg.mxu0
  %2526 = vmatprep.subr.bf16.mxu0 0
  %2527 = vmatpush1.bf16.msra.mxu0 0
  %2528 = vmatprep.subr.bf16.mxu0 0
  %2529 = vmatpush1.bf16.msra.mxu0 0
  %2530 = vmatprep.subr.bf16.mxu0 0
  %2531 = vmatpush1.bf16.msra.mxu0 0
  %2532 = vmatprep.subr.bf16.mxu0 0
  %2533 = vmatpush1.bf16.msra.mxu0 0
  %2534 = vmatprep.subr.bf16.mxu0 0
  %2535 = vmatpush1.bf16.msra.mxu0 0
  %2536 = vmatprep.subr.bf16.mxu0 0
  %2537 = vmatpush1.bf16.msra.mxu0 0
  %2538 = vmatprep.subr.bf16.mxu0 0
  %2539 = vmatpush1.bf16.msra.mxu0 %v691
  %2540 = vmatprep.subr.bf16.mxu0 0
  %2541 = vmatpush1.bf16.msra.mxu0 %v690
  %2542 = vmatprep.subr.bf16.mxu0 0
  %2543 = vmatpush2.bf16.msra.mxu0 0
  %2544 = vmatprep.subr.bf16.mxu0 0
  %2545 = vmatpush2.bf16.msra.mxu0 0
  %2546 = vmatprep.subr.bf16.mxu0 0
  %2547 = vmatpush2.bf16.msra.mxu0 0
  %2548 = vmatprep.subr.bf16.mxu0 0
  %2549 = vmatpush2.bf16.msra.mxu0 0
  %2550 = vmatprep.subr.bf16.mxu0 0
  %2551 = vmatpush2.bf16.msra.mxu0 0
  %2552 = vmatprep.subr.bf16.mxu0 0
  %2553 = vmatpush2.bf16.msra.mxu0 0
  %2554 = vmatprep.subr.bf16.mxu0 0
  %2555 = vmatpush2.bf16.msra.mxu0 0
  %2556 = vmatprep.subr.bf16.mxu0 0
  %2557 = vmatpush2.bf16.msra.mxu0 0
  %2558 = vmatprep.mubr.bf16.mxu0 0
  %2559 = vmatmul.mubr.bf16.gmra.mxu0 %v2444
  %v2560 = vpop.f32.mrf.mxu0
  %v2561 = vadd.f32 %v680, %v2560
  %v2562 = vpop.f32.mrf.mxu0
  %v2563 = vpop.f32.mrf.mxu0
  %v2564 = vpop.f32.mrf.mxu0
  %2565 = vdwg.mxu0
  %s2566 = scalar_lea.vmem [#allocation3], 96
  %v2567 = vld [vmem:[%s2566] sm:$0xff]
  %v2568 = vadd.f32 %v2567, %v2481
  %v2569 = vxor.u32 %v2568, 2147483648
  %v2570 = vmul.f32 %v2569, 1.442695
  %v2571 = vpow.pop %v2570
  %v2572 = vadd.f32 %v2571, 1.0
  %v2573 = vrcp.pop %v2572
  %v2574 = vmul.f32 1.0, %v2573
  %s2575 = scalar_lea.vmem [#allocation4], 96
  %v2576 = vld [vmem:[%s2575] sm:$0xff]
  %v2577 = vadd.f32 %v2576, %v2521
  %v2578 = vxor.u32 %v2577, 2147483648
  %v2579 = vmul.f32 %v2578, 1.442695
  %v2580 = vpow.pop %v2579
  %v2581 = vadd.f32 %v2580, 1.0
  %v2582 = vrcp.pop %v2581
  %v2583 = vmul.f32 1.0, %v2582
  %s2584 = scalar_lea.vmem [#allocation5], 96
  %v2585 = vld [vmem:[%s2584] sm:$0xff]
  %v2586 = vmul.f32 %v2574, %v2561
  %v2587 = vadd.f32 %v2585, %v2586
  %v2588 = vtanh.pop %v2587
  %v2589 = vsub.f32 1.0, %v2583
  %v2590 = vmul.f32 %v2589, %v2588
  %v2591 = vmul.f32 %v2583, %v2439
  %v2592 = vadd.f32 %v2590, %v2591
  %s2593 = scalar_lea.vmem %s5, 96
  %2594 = vst.msk [vmem:[%s2593] sm:$0xff] %vm122, %v2592
  %v2595 = vpack.c.bf16 %v2592, %v2592
  %v2597 = vsel %vm122, %v2595, 0
  %2599 = vmatprep.subr.bf16.mxu0 0
  %2600 = vmatpush1.bf16.msra.mxu0 0
  %2601 = vmatprep.subr.bf16.mxu0 0
  %2602 = vmatpush1.bf16.msra.mxu0 0
  %2603 = vmatprep.subr.bf16.mxu0 0
  %2604 = vmatpush1.bf16.msra.mxu0 0
  %2605 = vmatprep.subr.bf16.mxu0 0
  %2606 = vmatpush1.bf16.msra.mxu0 0
  %2607 = vmatprep.subr.bf16.mxu0 0
  %2608 = vmatpush1.bf16.msra.mxu0 0
  %2609 = vmatprep.subr.bf16.mxu0 0
  %2610 = vmatpush1.bf16.msra.mxu0 0
  %2611 = vmatprep.subr.bf16.mxu0 0
  %2612 = vmatpush1.bf16.msra.mxu0 %v572
  %2613 = vmatprep.subr.bf16.mxu0 0
  %2614 = vmatpush1.bf16.msra.mxu0 %v571
  %2615 = vmatprep.subr.bf16.mxu0 0
  %2616 = vmatpush2.bf16.msra.mxu0 0
  %2617 = vmatprep.subr.bf16.mxu0 0
  %2618 = vmatpush2.bf16.msra.mxu0 0
  %2619 = vmatprep.subr.bf16.mxu0 0
  %2620 = vmatpush2.bf16.msra.mxu0 0
  %2621 = vmatprep.subr.bf16.mxu0 0
  %2622 = vmatpush2.bf16.msra.mxu0 0
  %2623 = vmatprep.subr.bf16.mxu0 0
  %2624 = vmatpush2.bf16.msra.mxu0 0
  %2625 = vmatprep.subr.bf16.mxu0 0
  %2626 = vmatpush2.bf16.msra.mxu0 0
  %2627 = vmatprep.subr.bf16.mxu0 0
  %2628 = vmatpush2.bf16.msra.mxu0 0
  %2629 = vmatprep.subr.bf16.mxu0 0
  %2630 = vmatpush2.bf16.msra.mxu0 0
  %2631 = vmatprep.mubr.bf16.mxu0 0
  %2632 = vmatmul.mubr.bf16.gmra.mxu0 %v2597
  %v2633 = vpop.f32.mrf.mxu0
  %v2634 = vadd.f32 %v561, %v2633
  %v2635 = vpop.f32.mrf.mxu0
  %v2636 = vpop.f32.mrf.mxu0
  %v2637 = vpop.f32.mrf.mxu0
  %2638 = vdwg.mxu0
  %2639 = vmatprep.subr.bf16.mxu0 0
  %2640 = vmatpush1.bf16.msra.mxu0 0
  %2641 = vmatprep.subr.bf16.mxu0 0
  %2642 = vmatpush1.bf16.msra.mxu0 0
  %2643 = vmatprep.subr.bf16.mxu0 0
  %2644 = vmatpush1.bf16.msra.mxu0 0
  %2645 = vmatprep.subr.bf16.mxu0 0
  %2646 = vmatpush1.bf16.msra.mxu0 0
  %2647 = vmatprep.subr.bf16.mxu0 0
  %2648 = vmatpush1.bf16.msra.mxu0 0
  %2649 = vmatprep.subr.bf16.mxu0 0
  %2650 = vmatpush1.bf16.msra.mxu0 0
  %2651 = vmatprep.subr.bf16.mxu0 0
  %2652 = vmatpush1.bf16.msra.mxu0 %v633
  %2653 = vmatprep.subr.bf16.mxu0 0
  %2654 = vmatpush1.bf16.msra.mxu0 %v632
  %2655 = vmatprep.subr.bf16.mxu0 0
  %2656 = vmatpush2.bf16.msra.mxu0 0
  %2657 = vmatprep.subr.bf16.mxu0 0
  %2658 = vmatpush2.bf16.msra.mxu0 0
  %2659 = vmatprep.subr.bf16.mxu0 0
  %2660 = vmatpush2.bf16.msra.mxu0 0
  %2661 = vmatprep.subr.bf16.mxu0 0
  %2662 = vmatpush2.bf16.msra.mxu0 0
  %2663 = vmatprep.subr.bf16.mxu0 0
  %2664 = vmatpush2.bf16.msra.mxu0 0
  %2665 = vmatprep.subr.bf16.mxu0 0
  %2666 = vmatpush2.bf16.msra.mxu0 0
  %2667 = vmatprep.subr.bf16.mxu0 0
  %2668 = vmatpush2.bf16.msra.mxu0 0
  %2669 = vmatprep.subr.bf16.mxu0 0
  %2670 = vmatpush2.bf16.msra.mxu0 0
  %2671 = vmatprep.mubr.bf16.mxu0 0
  %2672 = vmatmul.mubr.bf16.gmra.mxu0 %v2597
  %v2673 = vpop.f32.mrf.mxu0
  %v2674 = vadd.f32 %v622, %v2673
  %v2675 = vpop.f32.mrf.mxu0
  %v2676 = vpop.f32.mrf.mxu0
  %v2677 = vpop.f32.mrf.mxu0
  %2678 = vdwg.mxu0
  %2679 = vmatprep.subr.bf16.mxu0 0
  %2680 = vmatpush1.bf16.msra.mxu0 0
  %2681 = vmatprep.subr.bf16.mxu0 0
  %2682 = vmatpush1.bf16.msra.mxu0 0
  %2683 = vmatprep.subr.bf16.mxu0 0
  %2684 = vmatpush1.bf16.msra.mxu0 0
  %2685 = vmatprep.subr.bf16.mxu0 0
  %2686 = vmatpush1.bf16.msra.mxu0 0
  %2687 = vmatprep.subr.bf16.mxu0 0
  %2688 = vmatpush1.bf16.msra.mxu0 0
  %2689 = vmatprep.subr.bf16.mxu0 0
  %2690 = vmatpush1.bf16.msra.mxu0 0
  %2691 = vmatprep.subr.bf16.mxu0 0
  %2692 = vmatpush1.bf16.msra.mxu0 %v691
  %2693 = vmatprep.subr.bf16.mxu0 0
  %2694 = vmatpush1.bf16.msra.mxu0 %v690
  %2695 = vmatprep.subr.bf16.mxu0 0
  %2696 = vmatpush2.bf16.msra.mxu0 0
  %2697 = vmatprep.subr.bf16.mxu0 0
  %2698 = vmatpush2.bf16.msra.mxu0 0
  %2699 = vmatprep.subr.bf16.mxu0 0
  %2700 = vmatpush2.bf16.msra.mxu0 0
  %2701 = vmatprep.subr.bf16.mxu0 0
  %2702 = vmatpush2.bf16.msra.mxu0 0
  %2703 = vmatprep.subr.bf16.mxu0 0
  %2704 = vmatpush2.bf16.msra.mxu0 0
  %2705 = vmatprep.subr.bf16.mxu0 0
  %2706 = vmatpush2.bf16.msra.mxu0 0
  %2707 = vmatprep.subr.bf16.mxu0 0
  %2708 = vmatpush2.bf16.msra.mxu0 0
  %2709 = vmatprep.subr.bf16.mxu0 0
  %2710 = vmatpush2.bf16.msra.mxu0 0
  %2711 = vmatprep.mubr.bf16.mxu0 0
  %2712 = vmatmul.mubr.bf16.gmra.mxu0 %v2597
  %v2713 = vpop.f32.mrf.mxu0
  %v2714 = vadd.f32 %v680, %v2713
  %v2715 = vpop.f32.mrf.mxu0
  %v2716 = vpop.f32.mrf.mxu0
  %v2717 = vpop.f32.mrf.mxu0
  %2718 = vdwg.mxu0
  %s2719 = scalar_lea.vmem [#allocation3], 104
  %v2720 = vld [vmem:[%s2719] sm:$0xff]
  %v2721 = vadd.f32 %v2720, %v2634
  %v2722 = vxor.u32 %v2721, 2147483648
  %v2723 = vmul.f32 %v2722, 1.442695
  %v2724 = vpow.pop %v2723
  %v2725 = vadd.f32 %v2724, 1.0
  %v2726 = vrcp.pop %v2725
  %v2727 = vmul.f32 1.0, %v2726
  %s2728 = scalar_lea.vmem [#allocation4], 104
  %v2729 = vld [vmem:[%s2728] sm:$0xff]
  %v2730 = vadd.f32 %v2729, %v2674
  %v2731 = vxor.u32 %v2730, 2147483648
  %v2732 = vmul.f32 %v2731, 1.442695
  %v2733 = vpow.pop %v2732
  %v2734 = vadd.f32 %v2733, 1.0
  %v2735 = vrcp.pop %v2734
  %v2736 = vmul.f32 1.0, %v2735
  %s2737 = scalar_lea.vmem [#allocation5], 104
  %v2738 = vld [vmem:[%s2737] sm:$0xff]
  %v2739 = vmul.f32 %v2727, %v2714
  %v2740 = vadd.f32 %v2738, %v2739
  %v2741 = vtanh.pop %v2740
  %v2742 = vsub.f32 1.0, %v2736
  %v2743 = vmul.f32 %v2742, %v2741
  %v2744 = vmul.f32 %v2736, %v2592
  %v2745 = vadd.f32 %v2743, %v2744
  %s2746 = scalar_lea.vmem %s5, 104
  %2747 = vst.msk [vmem:[%s2746] sm:$0xff] %vm122, %v2745
  %v2748 = vpack.c.bf16 %v2745, %v2745
  %v2750 = vsel %vm122, %v2748, 0
  %2752 = vmatprep.subr.bf16.mxu0 0
  %2753 = vmatpush1.bf16.msra.mxu0 0
  %2754 = vmatprep.subr.bf16.mxu0 0
  %2755 = vmatpush1.bf16.msra.mxu0 0
  %2756 = vmatprep.subr.bf16.mxu0 0
  %2757 = vmatpush1.bf16.msra.mxu0 0
  %2758 = vmatprep.subr.bf16.mxu0 0
  %2759 = vmatpush1.bf16.msra.mxu0 0
  %2760 = vmatprep.subr.bf16.mxu0 0
  %2761 = vmatpush1.bf16.msra.mxu0 0
  %2762 = vmatprep.subr.bf16.mxu0 0
  %2763 = vmatpush1.bf16.msra.mxu0 0
  %2764 = vmatprep.subr.bf16.mxu0 0
  %2765 = vmatpush1.bf16.msra.mxu0 %v572
  %2766 = vmatprep.subr.bf16.mxu0 0
  %2767 = vmatpush1.bf16.msra.mxu0 %v571
  %2768 = vmatprep.subr.bf16.mxu0 0
  %2769 = vmatpush2.bf16.msra.mxu0 0
  %2770 = vmatprep.subr.bf16.mxu0 0
  %2771 = vmatpush2.bf16.msra.mxu0 0
  %2772 = vmatprep.subr.bf16.mxu0 0
  %2773 = vmatpush2.bf16.msra.mxu0 0
  %2774 = vmatprep.subr.bf16.mxu0 0
  %2775 = vmatpush2.bf16.msra.mxu0 0
  %2776 = vmatprep.subr.bf16.mxu0 0
  %2777 = vmatpush2.bf16.msra.mxu0 0
  %2778 = vmatprep.subr.bf16.mxu0 0
  %2779 = vmatpush2.bf16.msra.mxu0 0
  %2780 = vmatprep.subr.bf16.mxu0 0
  %2781 = vmatpush2.bf16.msra.mxu0 0
  %2782 = vmatprep.subr.bf16.mxu0 0
  %2783 = vmatpush2.bf16.msra.mxu0 0
  %2784 = vmatprep.mubr.bf16.mxu0 0
  %2785 = vmatmul.mubr.bf16.gmra.mxu0 %v2750
  %v2786 = vpop.f32.mrf.mxu0
  %v2787 = vadd.f32 %v561, %v2786
  %v2788 = vpop.f32.mrf.mxu0
  %v2789 = vpop.f32.mrf.mxu0
  %v2790 = vpop.f32.mrf.mxu0
  %2791 = vdwg.mxu0
  %2792 = vmatprep.subr.bf16.mxu0 0
  %2793 = vmatpush1.bf16.msra.mxu0 0
  %2794 = vmatprep.subr.bf16.mxu0 0
  %2795 = vmatpush1.bf16.msra.mxu0 0
  %2796 = vmatprep.subr.bf16.mxu0 0
  %2797 = vmatpush1.bf16.msra.mxu0 0
  %2798 = vmatprep.subr.bf16.mxu0 0
  %2799 = vmatpush1.bf16.msra.mxu0 0
  %2800 = vmatprep.subr.bf16.mxu0 0
  %2801 = vmatpush1.bf16.msra.mxu0 0
  %2802 = vmatprep.subr.bf16.mxu0 0
  %2803 = vmatpush1.bf16.msra.mxu0 0
  %2804 = vmatprep.subr.bf16.mxu0 0
  %2805 = vmatpush1.bf16.msra.mxu0 %v633
  %2806 = vmatprep.subr.bf16.mxu0 0
  %2807 = vmatpush1.bf16.msra.mxu0 %v632
  %2808 = vmatprep.subr.bf16.mxu0 0
  %2809 = vmatpush2.bf16.msra.mxu0 0
  %2810 = vmatprep.subr.bf16.mxu0 0
  %2811 = vmatpush2.bf16.msra.mxu0 0
  %2812 = vmatprep.subr.bf16.mxu0 0
  %2813 = vmatpush2.bf16.msra.mxu0 0
  %2814 = vmatprep.subr.bf16.mxu0 0
  %2815 = vmatpush2.bf16.msra.mxu0 0
  %2816 = vmatprep.subr.bf16.mxu0 0
  %2817 = vmatpush2.bf16.msra.mxu0 0
  %2818 = vmatprep.subr.bf16.mxu0 0
  %2819 = vmatpush2.bf16.msra.mxu0 0
  %2820 = vmatprep.subr.bf16.mxu0 0
  %2821 = vmatpush2.bf16.msra.mxu0 0
  %2822 = vmatprep.subr.bf16.mxu0 0
  %2823 = vmatpush2.bf16.msra.mxu0 0
  %2824 = vmatprep.mubr.bf16.mxu0 0
  %2825 = vmatmul.mubr.bf16.gmra.mxu0 %v2750
  %v2826 = vpop.f32.mrf.mxu0
  %v2827 = vadd.f32 %v622, %v2826
  %v2828 = vpop.f32.mrf.mxu0
  %v2829 = vpop.f32.mrf.mxu0
  %v2830 = vpop.f32.mrf.mxu0
  %2831 = vdwg.mxu0
  %2832 = vmatprep.subr.bf16.mxu0 0
  %2833 = vmatpush1.bf16.msra.mxu0 0
  %2834 = vmatprep.subr.bf16.mxu0 0
  %2835 = vmatpush1.bf16.msra.mxu0 0
  %2836 = vmatprep.subr.bf16.mxu0 0
  %2837 = vmatpush1.bf16.msra.mxu0 0
  %2838 = vmatprep.subr.bf16.mxu0 0
  %2839 = vmatpush1.bf16.msra.mxu0 0
  %2840 = vmatprep.subr.bf16.mxu0 0
  %2841 = vmatpush1.bf16.msra.mxu0 0
  %2842 = vmatprep.subr.bf16.mxu0 0
  %2843 = vmatpush1.bf16.msra.mxu0 0
  %2844 = vmatprep.subr.bf16.mxu0 0
  %2845 = vmatpush1.bf16.msra.mxu0 %v691
  %2846 = vmatprep.subr.bf16.mxu0 0
  %2847 = vmatpush1.bf16.msra.mxu0 %v690
  %2848 = vmatprep.subr.bf16.mxu0 0
  %2849 = vmatpush2.bf16.msra.mxu0 0
  %2850 = vmatprep.subr.bf16.mxu0 0
  %2851 = vmatpush2.bf16.msra.mxu0 0
  %2852 = vmatprep.subr.bf16.mxu0 0
  %2853 = vmatpush2.bf16.msra.mxu0 0
  %2854 = vmatprep.subr.bf16.mxu0 0
  %2855 = vmatpush2.bf16.msra.mxu0 0
  %2856 = vmatprep.subr.bf16.mxu0 0
  %2857 = vmatpush2.bf16.msra.mxu0 0
  %2858 = vmatprep.subr.bf16.mxu0 0
  %2859 = vmatpush2.bf16.msra.mxu0 0
  %2860 = vmatprep.subr.bf16.mxu0 0
  %2861 = vmatpush2.bf16.msra.mxu0 0
  %2862 = vmatprep.subr.bf16.mxu0 0
  %2863 = vmatpush2.bf16.msra.mxu0 0
  %2864 = vmatprep.mubr.bf16.mxu0 0
  %2865 = vmatmul.mubr.bf16.gmra.mxu0 %v2750
  %v2866 = vpop.f32.mrf.mxu0
  %v2867 = vadd.f32 %v680, %v2866
  %v2868 = vpop.f32.mrf.mxu0
  %v2869 = vpop.f32.mrf.mxu0
  %v2870 = vpop.f32.mrf.mxu0
  %2871 = vdwg.mxu0
  %s2872 = scalar_lea.vmem [#allocation3], 112
  %v2873 = vld [vmem:[%s2872] sm:$0xff]
  %v2874 = vadd.f32 %v2873, %v2787
  %v2875 = vxor.u32 %v2874, 2147483648
  %v2876 = vmul.f32 %v2875, 1.442695
  %v2877 = vpow.pop %v2876
  %v2878 = vadd.f32 %v2877, 1.0
  %v2879 = vrcp.pop %v2878
  %v2880 = vmul.f32 1.0, %v2879
  %s2881 = scalar_lea.vmem [#allocation4], 112
  %v2882 = vld [vmem:[%s2881] sm:$0xff]
  %v2883 = vadd.f32 %v2882, %v2827
  %v2884 = vxor.u32 %v2883, 2147483648
  %v2885 = vmul.f32 %v2884, 1.442695
  %v2886 = vpow.pop %v2885
  %v2887 = vadd.f32 %v2886, 1.0
  %v2888 = vrcp.pop %v2887
  %v2889 = vmul.f32 1.0, %v2888
  %s2890 = scalar_lea.vmem [#allocation5], 112
  %v2891 = vld [vmem:[%s2890] sm:$0xff]
  %v2892 = vmul.f32 %v2880, %v2867
  %v2893 = vadd.f32 %v2891, %v2892
  %v2894 = vtanh.pop %v2893
  %v2895 = vsub.f32 1.0, %v2889
  %v2896 = vmul.f32 %v2895, %v2894
  %v2897 = vmul.f32 %v2889, %v2745
  %v2898 = vadd.f32 %v2896, %v2897
  %s2899 = scalar_lea.vmem %s5, 112
  %2900 = vst.msk [vmem:[%s2899] sm:$0xff] %vm122, %v2898
  %v2901 = vpack.c.bf16 %v2898, %v2898
  %v2903 = vsel %vm122, %v2901, 0
  %2905 = vmatprep.subr.bf16.mxu0 0
  %2906 = vmatpush1.bf16.msra.mxu0 0
  %2907 = vmatprep.subr.bf16.mxu0 0
  %2908 = vmatpush1.bf16.msra.mxu0 0
  %2909 = vmatprep.subr.bf16.mxu0 0
  %2910 = vmatpush1.bf16.msra.mxu0 0
  %2911 = vmatprep.subr.bf16.mxu0 0
  %2912 = vmatpush1.bf16.msra.mxu0 0
  %2913 = vmatprep.subr.bf16.mxu0 0
  %2914 = vmatpush1.bf16.msra.mxu0 0
  %2915 = vmatprep.subr.bf16.mxu0 0
  %2916 = vmatpush1.bf16.msra.mxu0 0
  %2917 = vmatprep.subr.bf16.mxu0 0
  %2918 = vmatpush1.bf16.msra.mxu0 %v572
  %2919 = vmatprep.subr.bf16.mxu0 0
  %2920 = vmatpush1.bf16.msra.mxu0 %v571
  %2921 = vmatprep.subr.bf16.mxu0 0
  %2922 = vmatpush2.bf16.msra.mxu0 0
  %2923 = vmatprep.subr.bf16.mxu0 0
  %2924 = vmatpush2.bf16.msra.mxu0 0
  %2925 = vmatprep.subr.bf16.mxu0 0
  %2926 = vmatpush2.bf16.msra.mxu0 0
  %2927 = vmatprep.subr.bf16.mxu0 0
  %2928 = vmatpush2.bf16.msra.mxu0 0
  %2929 = vmatprep.subr.bf16.mxu0 0
  %2930 = vmatpush2.bf16.msra.mxu0 0
  %2931 = vmatprep.subr.bf16.mxu0 0
  %2932 = vmatpush2.bf16.msra.mxu0 0
  %2933 = vmatprep.subr.bf16.mxu0 0
  %2934 = vmatpush2.bf16.msra.mxu0 0
  %2935 = vmatprep.subr.bf16.mxu0 0
  %2936 = vmatpush2.bf16.msra.mxu0 0
  %2937 = vmatprep.mubr.bf16.mxu0 0
  %2938 = vmatmul.mubr.bf16.gmra.mxu0 %v2903
  %v2939 = vpop.f32.mrf.mxu0
  %v2940 = vadd.f32 %v561, %v2939
  %v2941 = vpop.f32.mrf.mxu0
  %v2942 = vpop.f32.mrf.mxu0
  %v2943 = vpop.f32.mrf.mxu0
  %2944 = vdwg.mxu0
  %2945 = vmatprep.subr.bf16.mxu0 0
  %2946 = vmatpush1.bf16.msra.mxu0 0
  %2947 = vmatprep.subr.bf16.mxu0 0
  %2948 = vmatpush1.bf16.msra.mxu0 0
  %2949 = vmatprep.subr.bf16.mxu0 0
  %2950 = vmatpush1.bf16.msra.mxu0 0
  %2951 = vmatprep.subr.bf16.mxu0 0
  %2952 = vmatpush1.bf16.msra.mxu0 0
  %2953 = vmatprep.subr.bf16.mxu0 0
  %2954 = vmatpush1.bf16.msra.mxu0 0
  %2955 = vmatprep.subr.bf16.mxu0 0
  %2956 = vmatpush1.bf16.msra.mxu0 0
  %2957 = vmatprep.subr.bf16.mxu0 0
  %2958 = vmatpush1.bf16.msra.mxu0 %v633
  %2959 = vmatprep.subr.bf16.mxu0 0
  %2960 = vmatpush1.bf16.msra.mxu0 %v632
  %2961 = vmatprep.subr.bf16.mxu0 0
  %2962 = vmatpush2.bf16.msra.mxu0 0
  %2963 = vmatprep.subr.bf16.mxu0 0
  %2964 = vmatpush2.bf16.msra.mxu0 0
  %2965 = vmatprep.subr.bf16.mxu0 0
  %2966 = vmatpush2.bf16.msra.mxu0 0
  %2967 = vmatprep.subr.bf16.mxu0 0
  %2968 = vmatpush2.bf16.msra.mxu0 0
  %2969 = vmatprep.subr.bf16.mxu0 0
  %2970 = vmatpush2.bf16.msra.mxu0 0
  %2971 = vmatprep.subr.bf16.mxu0 0
  %2972 = vmatpush2.bf16.msra.mxu0 0
  %2973 = vmatprep.subr.bf16.mxu0 0
  %2974 = vmatpush2.bf16.msra.mxu0 0
  %2975 = vmatprep.subr.bf16.mxu0 0
  %2976 = vmatpush2.bf16.msra.mxu0 0
  %2977 = vmatprep.mubr.bf16.mxu0 0
  %2978 = vmatmul.mubr.bf16.gmra.mxu0 %v2903
  %v2979 = vpop.f32.mrf.mxu0
  %v2980 = vadd.f32 %v622, %v2979
  %v2981 = vpop.f32.mrf.mxu0
  %v2982 = vpop.f32.mrf.mxu0
  %v2983 = vpop.f32.mrf.mxu0
  %2984 = vdwg.mxu0
  %2985 = vmatprep.subr.bf16.mxu0 0
  %2986 = vmatpush1.bf16.msra.mxu0 0
  %2987 = vmatprep.subr.bf16.mxu0 0
  %2988 = vmatpush1.bf16.msra.mxu0 0
  %2989 = vmatprep.subr.bf16.mxu0 0
  %2990 = vmatpush1.bf16.msra.mxu0 0
  %2991 = vmatprep.subr.bf16.mxu0 0
  %2992 = vmatpush1.bf16.msra.mxu0 0
  %2993 = vmatprep.subr.bf16.mxu0 0
  %2994 = vmatpush1.bf16.msra.mxu0 0
  %2995 = vmatprep.subr.bf16.mxu0 0
  %2996 = vmatpush1.bf16.msra.mxu0 0
  %2997 = vmatprep.subr.bf16.mxu0 0
  %2998 = vmatpush1.bf16.msra.mxu0 %v691
  %2999 = vmatprep.subr.bf16.mxu0 0
  %3000 = vmatpush1.bf16.msra.mxu0 %v690
  %3001 = vmatprep.subr.bf16.mxu0 0
  %3002 = vmatpush2.bf16.msra.mxu0 0
  %3003 = vmatprep.subr.bf16.mxu0 0
  %3004 = vmatpush2.bf16.msra.mxu0 0
  %3005 = vmatprep.subr.bf16.mxu0 0
  %3006 = vmatpush2.bf16.msra.mxu0 0
  %3007 = vmatprep.subr.bf16.mxu0 0
  %3008 = vmatpush2.bf16.msra.mxu0 0
  %3009 = vmatprep.subr.bf16.mxu0 0
  %3010 = vmatpush2.bf16.msra.mxu0 0
  %3011 = vmatprep.subr.bf16.mxu0 0
  %3012 = vmatpush2.bf16.msra.mxu0 0
  %3013 = vmatprep.subr.bf16.mxu0 0
  %3014 = vmatpush2.bf16.msra.mxu0 0
  %3015 = vmatprep.subr.bf16.mxu0 0
  %3016 = vmatpush2.bf16.msra.mxu0 0
  %3017 = vmatprep.mubr.bf16.mxu0 0
  %3018 = vmatmul.mubr.bf16.gmra.mxu0 %v2903
  %v3019 = vpop.f32.mrf.mxu0
  %v3020 = vadd.f32 %v680, %v3019
  %v3021 = vpop.f32.mrf.mxu0
  %v3022 = vpop.f32.mrf.mxu0
  %v3023 = vpop.f32.mrf.mxu0
  %3024 = vdwg.mxu0
  %s3025 = scalar_lea.vmem [#allocation3], 120
  %v3026 = vld [vmem:[%s3025] sm:$0xff]
  %v3027 = vadd.f32 %v3026, %v2940
  %v3028 = vxor.u32 %v3027, 2147483648
  %v3029 = vmul.f32 %v3028, 1.442695
  %v3030 = vpow.pop %v3029
  %v3031 = vadd.f32 %v3030, 1.0
  %v3032 = vrcp.pop %v3031
  %v3033 = vmul.f32 1.0, %v3032
  %s3034 = scalar_lea.vmem [#allocation4], 120
  %v3035 = vld [vmem:[%s3034] sm:$0xff]
  %v3036 = vadd.f32 %v3035, %v2980
  %v3037 = vxor.u32 %v3036, 2147483648
  %v3038 = vmul.f32 %v3037, 1.442695
  %v3039 = vpow.pop %v3038
  %v3040 = vadd.f32 %v3039, 1.0
  %v3041 = vrcp.pop %v3040
  %v3042 = vmul.f32 1.0, %v3041
  %s3043 = scalar_lea.vmem [#allocation5], 120
  %v3044 = vld [vmem:[%s3043] sm:$0xff]
  %v3045 = vmul.f32 %v3033, %v3020
  %v3046 = vadd.f32 %v3044, %v3045
  %v3047 = vtanh.pop %v3046
  %v3048 = vsub.f32 1.0, %v3042
  %v3049 = vmul.f32 %v3048, %v3047
  %v3050 = vmul.f32 %v3042, %v2898
  %v3051 = vadd.f32 %v3049, %v3050
  %s3052 = scalar_lea.vmem %s5, 120
  %3053 = vst.msk [vmem:[%s3052] sm:$0xff] %vm122, %v3051
  %3054 = vst.msk [vmem:[#allocation2] sm:$0xff] %vm122, %v3051
  // Predicated region
  $region26: #{bidaf_forward.3} parent=0 // pred_check
    _
  $region27: #{bidaf_forward.3} parent=0 // pred_check_branch
    %3056 = sbr.rel (0) target = $region29
  $region28: #{bidaf_forward.3} parent=0 // pred_region
    _
  $region29: #{bidaf_forward.3} parent=0 // pred_fallthru
    _
  // Predicated region
  $region30: #{bidaf_forward.3} parent=0 // pred_check
    _
  $region31: #{bidaf_forward.3} parent=0 // pred_check_branch
    %3058 = sbr.rel (0) target = $region33
  $region32: #{bidaf_forward.3} parent=0 // pred_region
    _
  $region33: #{bidaf_forward.3} parent=0 // pred_fallthru
    _

// kernel: bidaf_forward.5
$region0: #{bidaf_forward.5}
  #allocation0 [shape = 'u32[]', space=smem, size = 0x4, offset = 0x4, fixed_abs, tag = 'smem constant byte address 0x4 - core index']
  #allocation1 [shape = 'u32[144,128]{1,0:T(1,128)}', space=vmem, size = 0x12000, scoped, tag = 'internal scratch']
  #allocation2 [shape = 'f32[8,32]{1,0:T(8,128)}', space=vmem, size = 0x1000, scoped, tag = 'scratch operand']
  #allocation3 [shape = 'f32[8,32]{1,0:T(8,128)}', space=vmem, size = 0x1000, scoped, tag = 'scratch operand']
  #allocation4 [shape = 'f32[8,128]{1,0:T(8,128)}', space=vmem, size = 0x1000, scoped, tag = 'scratch operand']
  #allocation5 [shape = 'f32[16,8,32]{2,1,0:T(8,128)}', space=vmem, size = 0x10000, scoped, tag = 'scratch operand']
  #allocation6 [shape = 'f32[16,8,32]{2,1,0:T(8,128)}', space=vmem, size = 0x10000, scoped, tag = 'scratch operand']
  #allocation7 [shape = 'f32[16,8,32]{2,1,0:T(8,128)}', space=vmem, size = 0x10000, scoped, tag = 'scratch operand']
  %s0 = inlined_call_operand.vmem [shape: f32[16,8,128], index: 0, kind: input, shape index: {}]
  %s1 = inlined_call_operand.vmem [shape: f32[16,8,1], index: 1, kind: input, shape index: {}]
  %s2 = inlined_call_operand.vmem [shape: bf16[3,128,32], index: 2, kind: input, shape index: {}]
  %s3 = inlined_call_operand.vmem [shape: bf16[3,32,32], index: 3, kind: input, shape index: {}]
  %s4 = inlined_call_operand.vmem [shape: f32[3,1,32], index: 4, kind: input, shape index: {}]
  %s5 = inlined_call_operand.vmem [shape: f32[3,1,32], index: 5, kind: input, shape index: {}]
  %s6 = inlined_call_operand.vmem [shape: f32[128,2], index: 6, kind: input, shape index: {}]
  %s7 = inlined_call_operand.vmem [shape: f32[32,2], index: 7, kind: input, shape index: {}]
  %s8 = inlined_call_operand.vmem [shape: f32[8,2], index: 8, kind: output, shape index: {}]
  %s9 = sld [smem:[#allocation0]]
  $region50: #{bidaf_forward.5} parent=0
    _
  %s11 = ssub.s32 1, %s9
  %s12 = scalar_select 0, %s11, %s9
  // Predicated region
  $region2: #{bidaf_forward.5} parent=0 // pred_check
    _
  $region3: #{bidaf_forward.5} parent=0 // pred_check_branch
    %14 = sbr.rel (0) target = $region5
  $region4: #{bidaf_forward.5} parent=0 // pred_region
    _
  $region5: #{bidaf_forward.5} parent=0 // pred_fallthru
    _
  // Predicated region
  $region6: #{bidaf_forward.5} parent=0 // pred_check
    _
  $region7: #{bidaf_forward.5} parent=0 // pred_check_branch
    %16 = sbr.rel (0) target = $region9
  $region8: #{bidaf_forward.5} parent=0 // pred_region
    _
  $region9: #{bidaf_forward.5} parent=0 // pred_fallthru
    _
  // Predicated region
  $region10: #{bidaf_forward.5} parent=0 // pred_check
    _
  $region11: #{bidaf_forward.5} parent=0 // pred_check_branch
    %18 = sbr.rel (0) target = $region13
  $region12: #{bidaf_forward.5} parent=0 // pred_region
    _
  $region13: #{bidaf_forward.5} parent=0 // pred_fallthru
    _
  // Predicated region
  $region14: #{bidaf_forward.5} parent=0 // pred_check
    _
  $region15: #{bidaf_forward.5} parent=0 // pred_check_branch
    %20 = sbr.rel (0) target = $region17
  $region16: #{bidaf_forward.5} parent=0 // pred_region
    _
  $region17: #{bidaf_forward.5} parent=0 // pred_fallthru
    _
  // Predicated region
  $region18: #{bidaf_forward.5} parent=0 // pred_check
    _
  $region19: #{bidaf_forward.5} parent=0 // pred_check_branch
    %22 = sbr.rel (0) target = $region21
  $region20: #{bidaf_forward.5} parent=0 // pred_region
    _
  $region21: #{bidaf_forward.5} parent=0 // pred_fallthru
    _
  // Predicated region
  $region22: #{bidaf_forward.5} parent=0 // pred_check
    _
  $region23: #{bidaf_forward.5} parent=0 // pred_check_branch
    %24 = sbr.rel (0) target = $region25
  $region24: #{bidaf_forward.5} parent=0 // pred_region
    _
  $region25: #{bidaf_forward.5} parent=0 // pred_fallthru
    _
  // Predicated region
  $region26: #{bidaf_forward.5} parent=0 // pred_check
    _
  $region27: #{bidaf_forward.5} parent=0 // pred_check_branch
    %26 = sbr.rel (0) target = $region29
  $region28: #{bidaf_forward.5} parent=0 // pred_region
    _
  $region29: #{bidaf_forward.5} parent=0 // pred_fallthru
    _
  // Predicated region
  $region30: #{bidaf_forward.5} parent=0 // pred_check
    _
  $region31: #{bidaf_forward.5} parent=0 // pred_check_branch
    %28 = sbr.rel (0) target = $region33
  $region32: #{bidaf_forward.5} parent=0 // pred_region
    _
  $region33: #{bidaf_forward.5} parent=0 // pred_fallthru
    _
  %p30 = scmp.eq.s32.totalorder 0, 0
  // Predicated region
  $region34: #{bidaf_forward.5} parent=0 // pred_check
    %p31 = pneg %p30
  $region35: #{bidaf_forward.5} parent=0 // pred_check_branch
    %33 = sbr.rel (%p31) target = $region37
  $region36: #{bidaf_forward.5} parent=0 // pred_region
    %vm34 = vcmask 261120
    %35 = vst.msk [vmem:[#allocation2] sm:$0xff] %vm34, 0.0
    %36 = vst.msk [vmem:[#allocation3] sm:$0xff] %vm34, -1e+12
    %37 = vst [vmem:[#allocation4] sm:$0xff] -1e+12
  $region37: #{bidaf_forward.5} parent=0 // pred_fallthru
    _
  %v38 = vld [vmem:[%s0] sm:$0xff]
  %v39 = vld [vmem:[%s0 + $0x8] sm:$0xff]
  %v40 = vld [vmem:[%s0 + $0x10] sm:$0xff]
  %v41 = vld [vmem:[%s0 + $0x18] sm:$0xff]
  %v42 = vld [vmem:[%s0 + $0x20] sm:$0xff]
  %v43 = vld [vmem:[%s0 + $0x28] sm:$0xff]
  %v44 = vld [vmem:[%s0 + $0x30] sm:$0xff]
  %v45 = vld [vmem:[%s0 + $0x38] sm:$0xff]
  %v46 = vld [vmem:[%s0 + $0x40] sm:$0xff]
  %v47 = vld [vmem:[%s0 + $0x48] sm:$0xff]
  %v48 = vld [vmem:[%s0 + $0x50] sm:$0xff]
  %v49 = vld [vmem:[%s0 + $0x58] sm:$0xff]
  %v50 = vld [vmem:[%s0 + $0x60] sm:$0xff]
  %v51 = vld [vmem:[%s0 + $0x68] sm:$0xff]
  %v52 = vld [vmem:[%s0 + $0x70] sm:$0xff]
  %v53 = vld [vmem:[%s0 + $0x78] sm:$0xff]
  %v54 = vld [vmem:[%s1] sm:$0xff]
  %v55 = vld [vmem:[%s1 + $0x8] sm:$0xff]
  %v56 = vld [vmem:[%s1 + $0x10] sm:$0xff]
  %v57 = vld [vmem:[%s1 + $0x18] sm:$0xff]
  %v58 = vld [vmem:[%s1 + $0x20] sm:$0xff]
  %v59 = vld [vmem:[%s1 + $0x28] sm:$0xff]
  %v60 = vld [vmem:[%s1 + $0x30] sm:$0xff]
  %v61 = vld [vmem:[%s1 + $0x38] sm:$0xff]
  %v62 = vld [vmem:[%s1 + $0x40] sm:$0xff]
  %v63 = vld [vmem:[%s1 + $0x48] sm:$0xff]
  %v64 = vld [vmem:[%s1 + $0x50] sm:$0xff]
  %v65 = vld [vmem:[%s1 + $0x58] sm:$0xff]
  %v66 = vld [vmem:[%s1 + $0x60] sm:$0xff]
  %v67 = vld [vmem:[%s1 + $0x68] sm:$0xff]
  %v68 = vld [vmem:[%s1 + $0x70] sm:$0xff]
  %v69 = vld [vmem:[%s1 + $0x78] sm:$0xff]
  %vm70 = vcmp.gt.f32.partialorder %v54, 0.5
  %vm71 = vcmp.gt.f32.partialorder %v55, 0.5
  %vm72 = vcmp.gt.f32.partialorder %v56, 0.5
  %vm73 = vcmp.gt.f32.partialorder %v57, 0.5
  %vm74 = vcmp.gt.f32.partialorder %v58, 0.5
  %vm75 = vcmp.gt.f32.partialorder %v59, 0.5
  %vm76 = vcmp.gt.f32.partialorder %v60, 0.5
  %vm77 = vcmp.gt.f32.partialorder %v61, 0.5
  %vm78 = vcmp.gt.f32.partialorder %v62, 0.5
  %vm79 = vcmp.gt.f32.partialorder %v63, 0.5
  %vm80 = vcmp.gt.f32.partialorder %v64, 0.5
  %vm81 = vcmp.gt.f32.partialorder %v65, 0.5
  %vm82 = vcmp.gt.f32.partialorder %v66, 0.5
  %vm83 = vcmp.gt.f32.partialorder %v67, 0.5
  %vm84 = vcmp.gt.f32.partialorder %v68, 0.5
  %vm85 = vcmp.gt.f32.partialorder %v69, 0.5
  %v86 = vsel %vm70, 1, 0
  %v87 = vsel %vm71, 1, 0
  %v88 = vsel %vm72, 1, 0
  %v89 = vsel %vm73, 1, 0
  %v90 = vsel %vm74, 1, 0
  %v91 = vsel %vm75, 1, 0
  %v92 = vsel %vm76, 1, 0
  %v93 = vsel %vm77, 1, 0
  %v94 = vsel %vm78, 1, 0
  %v95 = vsel %vm79, 1, 0
  %v96 = vsel %vm80, 1, 0
  %v97 = vsel %vm81, 1, 0
  %v98 = vsel %vm82, 1, 0
  %v99 = vsel %vm83, 1, 0
  %v100 = vsel %vm84, 1, 0
  %v101 = vsel %vm85, 1, 0
  %102 = vset.pattern.permute.xlu0 0
  %103 = vperm.xlu0 %102, %v86
  %v104 = vpop.permute.xlu0 %103
  %105 = vset.pattern.permute.xlu0 0
  %106 = vperm.xlu0 %105, %v87
  %v107 = vpop.permute.xlu0 %106
  %108 = vset.pattern.permute.xlu0 0
  %109 = vperm.xlu0 %108, %v88
  %v110 = vpop.permute.xlu0 %109
  %111 = vset.pattern.permute.xlu0 0
  %112 = vperm.xlu0 %111, %v89
  %v113 = vpop.permute.xlu0 %112
  %114 = vset.pattern.permute.xlu0 0
  %115 = vperm.xlu0 %114, %v90
  %v116 = vpop.permute.xlu0 %115
  %117 = vset.pattern.permute.xlu0 0
  %118 = vperm.xlu0 %117, %v91
  %v119 = vpop.permute.xlu0 %118
  %120 = vset.pattern.permute.xlu0 0
  %121 = vperm.xlu0 %120, %v92
  %v122 = vpop.permute.xlu0 %121
  %123 = vset.pattern.permute.xlu0 0
  %124 = vperm.xlu0 %123, %v93
  %v125 = vpop.permute.xlu0 %124
  %126 = vset.pattern.permute.xlu0 0
  %127 = vperm.xlu0 %126, %v94
  %v128 = vpop.permute.xlu0 %127
  %129 = vset.pattern.permute.xlu0 0
  %130 = vperm.xlu0 %129, %v95
  %v131 = vpop.permute.xlu0 %130
  %132 = vset.pattern.permute.xlu0 0
  %133 = vperm.xlu0 %132, %v96
  %v134 = vpop.permute.xlu0 %133
  %135 = vset.pattern.permute.xlu0 0
  %136 = vperm.xlu0 %135, %v97
  %v137 = vpop.permute.xlu0 %136
  %138 = vset.pattern.permute.xlu0 0
  %139 = vperm.xlu0 %138, %v98
  %v140 = vpop.permute.xlu0 %139
  %141 = vset.pattern.permute.xlu0 0
  %142 = vperm.xlu0 %141, %v99
  %v143 = vpop.permute.xlu0 %142
  %144 = vset.pattern.permute.xlu0 0
  %145 = vperm.xlu0 %144, %v100
  %v146 = vpop.permute.xlu0 %145
  %147 = vset.pattern.permute.xlu0 0
  %148 = vperm.xlu0 %147, %v101
  %v149 = vpop.permute.xlu0 %148
  %vm150 = vcmp.eq.s32.totalorder %v104, 1
  %vm151 = vcmp.eq.s32.totalorder %v107, 1
  %vm152 = vcmp.eq.s32.totalorder %v110, 1
  %vm153 = vcmp.eq.s32.totalorder %v113, 1
  %vm154 = vcmp.eq.s32.totalorder %v116, 1
  %vm155 = vcmp.eq.s32.totalorder %v119, 1
  %vm156 = vcmp.eq.s32.totalorder %v122, 1
  %vm157 = vcmp.eq.s32.totalorder %v125, 1
  %vm158 = vcmp.eq.s32.totalorder %v128, 1
  %vm159 = vcmp.eq.s32.totalorder %v131, 1
  %vm160 = vcmp.eq.s32.totalorder %v134, 1
  %vm161 = vcmp.eq.s32.totalorder %v137, 1
  %vm162 = vcmp.eq.s32.totalorder %v140, 1
  %vm163 = vcmp.eq.s32.totalorder %v143, 1
  %vm164 = vcmp.eq.s32.totalorder %v146, 1
  %vm165 = vcmp.eq.s32.totalorder %v149, 1
  %v166 = vsel %vm150, -1e+12, %v38
  %v167 = vsel %vm151, -1e+12, %v39
  %v168 = vsel %vm152, -1e+12, %v40
  %v169 = vsel %vm153, -1e+12, %v41
  %v170 = vsel %vm154, -1e+12, %v42
  %v171 = vsel %vm155, -1e+12, %v43
  %v172 = vsel %vm156, -1e+12, %v44
  %v173 = vsel %vm157, -1e+12, %v45
  %v174 = vsel %vm158, -1e+12, %v46
  %v175 = vsel %vm159, -1e+12, %v47
  %v176 = vsel %vm160, -1e+12, %v48
  %v177 = vsel %vm161, -1e+12, %v49
  %v178 = vsel %vm162, -1e+12, %v50
  %v179 = vsel %vm163, -1e+12, %v51
  %v180 = vsel %vm164, -1e+12, %v52
  %v181 = vsel %vm165, -1e+12, %v53
  %v182 = vld [vmem:[#allocation4] sm:$0xff]
  %v183 = vmax.f32 %v166, %v170
  %v184 = vmax.f32 %v167, %v171
  %v185 = vmax.f32 %v168, %v172
  %v186 = vmax.f32 %v169, %v173
  %v187 = vmax.f32 %v183, %v174
  %v188 = vmax.f32 %v184, %v175
  %v189 = vmax.f32 %v185, %v176
  %v190 = vmax.f32 %v186, %v177
  %v191 = vmax.f32 %v187, %v178
  %v192 = vmax.f32 %v188, %v179
  %v193 = vmax.f32 %v189, %v180
  %v194 = vmax.f32 %v190, %v181
  %v195 = vmax.f32 %v191, %v192
  %v196 = vmax.f32 %v193, %v194
  %v197 = vmax.f32 %v195, %v196
  %v198 = vmax.f32 %v182, %v197
  %199 = vst [vmem:[#allocation4] sm:$0xff] %v198
  %v200 = vpack.c.bf16 %v38, %v38
  %v201 = vpack.c.bf16 %v39, %v39
  %v202 = vpack.c.bf16 %v40, %v40
  %v203 = vpack.c.bf16 %v41, %v41
  %v204 = vpack.c.bf16 %v42, %v42
  %v205 = vpack.c.bf16 %v43, %v43
  %v206 = vpack.c.bf16 %v44, %v44
  %v207 = vpack.c.bf16 %v45, %v45
  %v208 = vpack.c.bf16 %v46, %v46
  %v209 = vpack.c.bf16 %v47, %v47
  %v210 = vpack.c.bf16 %v48, %v48
  %v211 = vpack.c.bf16 %v49, %v49
  %v212 = vpack.c.bf16 %v50, %v50
  %v213 = vpack.c.bf16 %v51, %v51
  %v214 = vpack.c.bf16 %v52, %v52
  %v215 = vpack.c.bf16 %v53, %v53
  %v216 = vld [vmem:[%s2] sm:$0xf]
  %v217 = vld [vmem:[%s2 + $0x4] sm:$0xf]
  %v218 = vld [vmem:[%s2 + $0x8] sm:$0xf]
  %v219 = vld [vmem:[%s2 + $0xc] sm:$0xf]
  %v220 = vld [vmem:[%s2 + $0x10] sm:$0xf]
  %v221 = vld [vmem:[%s2 + $0x14] sm:$0xf]
  %v222 = vld [vmem:[%s2 + $0x18] sm:$0xf]
  %v223 = vld [vmem:[%s2 + $0x1c] sm:$0xf]
  %v224 = vld [vmem:[%s2 + $0x20] sm:$0xf]
  %v225 = vld [vmem:[%s2 + $0x24] sm:$0xf]
  %v226 = vld [vmem:[%s2 + $0x28] sm:$0xf]
  %v227 = vld [vmem:[%s2 + $0x2c] sm:$0xf]
  %v228 = vld [vmem:[%s2 + $0x30] sm:$0xf]
  %v229 = vld [vmem:[%s2 + $0x34] sm:$0xf]
  %v230 = vld [vmem:[%s2 + $0x38] sm:$0xf]
  %v231 = vld [vmem:[%s2 + $0x3c] sm:$0xf]
  %v232 = vld [vmem:[%s4] sm:$0x1]
  %v234 = vlaneseq
  %v235 = vshrl.u32 %v234, 7
  %v236 = vsub.s32 0, %v235
  %v237 = vrot.slane %v232, %v236
  %v255 = vunpack.c.l.b16 %v200
  %v256 = vunpack.c.l.b16 %v201
  %v257 = vunpack.c.l.b16 %v202
  %v258 = vunpack.c.l.b16 %v203
  %v259 = vunpack.c.l.b16 %v204
  %v260 = vunpack.c.l.b16 %v205
  %v261 = vunpack.c.l.b16 %v206
  %v262 = vunpack.c.l.b16 %v207
  %v263 = vunpack.c.l.b16 %v208
  %v264 = vunpack.c.l.b16 %v209
  %v265 = vunpack.c.l.b16 %v210
  %v266 = vunpack.c.l.b16 %v211
  %v267 = vunpack.c.l.b16 %v212
  %v268 = vunpack.c.l.b16 %v213
  %v269 = vunpack.c.l.b16 %v214
  %v270 = vunpack.c.l.b16 %v215
  %v271 = vpack.c.b16 %v256, %v255
  %v272 = vpack.c.b16 %v258, %v257
  %v273 = vpack.c.b16 %v260, %v259
  %v274 = vpack.c.b16 %v262, %v261
  %v275 = vpack.c.b16 %v264, %v263
  %v276 = vpack.c.b16 %v266, %v265
  %v277 = vpack.c.b16 %v268, %v267
  %v278 = vpack.c.b16 %v270, %v269
  %v303 = vunpack.c.l.b16 %v216
  %v304 = vunpack.c.l.b16 %v217
  %v305 = vunpack.c.l.b16 %v218
  %v306 = vunpack.c.l.b16 %v219
  %v307 = vunpack.c.l.b16 %v220
  %v308 = vunpack.c.l.b16 %v221
  %v309 = vunpack.c.l.b16 %v222
  %v310 = vunpack.c.l.b16 %v223
  %v311 = vunpack.c.l.b16 %v224
  %v312 = vunpack.c.l.b16 %v225
  %v313 = vunpack.c.l.b16 %v226
  %v314 = vunpack.c.l.b16 %v227
  %v315 = vunpack.c.l.b16 %v228
  %v316 = vunpack.c.l.b16 %v229
  %v317 = vunpack.c.l.b16 %v230
  %v318 = vunpack.c.l.b16 %v231
  %v319 = vpack.c.b16 %v304, %v303
  %v320 = vpack.c.b16 %v306, %v305
  %v321 = vpack.c.b16 %v308, %v307
  %v322 = vpack.c.b16 %v310, %v309
  %v323 = vpack.c.b16 %v312, %v311
  %v324 = vpack.c.b16 %v314, %v313
  %v325 = vpack.c.b16 %v316, %v315
  %v326 = vpack.c.b16 %v318, %v317
  %335 = vmatprep.subr.bf16.mxu0 0
  %336 = vmatpush1.bf16.msra.mxu0 %v326
  %337 = vmatprep.subr.bf16.mxu0 0
  %338 = vmatpush1.bf16.msra.mxu0 %v325
  %339 = vmatprep.subr.bf16.mxu0 0
  %340 = vmatpush1.bf16.msra.mxu0 %v324
  %341 = vmatprep.subr.bf16.mxu0 0
  %342 = vmatpush1.bf16.msra.mxu0 %v323
  %343 = vmatprep.subr.bf16.mxu0 0
  %344 = vmatpush1.bf16.msra.mxu0 %v322
  %345 = vmatprep.subr.bf16.mxu0 0
  %346 = vmatpush1.bf16.msra.mxu0 %v321
  %347 = vmatprep.subr.bf16.mxu0 0
  %348 = vmatpush1.bf16.msra.mxu0 %v320
  %349 = vmatprep.subr.bf16.mxu0 0
  %350 = vmatpush1.bf16.msra.mxu0 %v319
  %351 = vmatprep.subr.bf16.mxu0 0
  %352 = vmatpush2.bf16.msra.mxu0 0
  %353 = vmatprep.subr.bf16.mxu0 0
  %354 = vmatpush2.bf16.msra.mxu0 0
  %355 = vmatprep.subr.bf16.mxu0 0
  %356 = vmatpush2.bf16.msra.mxu0 0
  %357 = vmatprep.subr.bf16.mxu0 0
  %358 = vmatpush2.bf16.msra.mxu0 0
  %359 = vmatprep.subr.bf16.mxu0 0
  %360 = vmatpush2.bf16.msra.mxu0 0
  %361 = vmatprep.subr.bf16.mxu0 0
  %362 = vmatpush2.bf16.msra.mxu0 0
  %363 = vmatprep.subr.bf16.mxu0 0
  %364 = vmatpush2.bf16.msra.mxu0 0
  %365 = vmatprep.subr.bf16.mxu0 0
  %366 = vmatpush2.bf16.msra.mxu0 0
  %367 = vmatprep.mubr.bf16.mxu0 0
  %368 = vmatmul.mubr.bf16.gmra.mxu0 %v271
  %v369 = vpop.f32.mrf.mxu0
  %v370 = vadd.f32 %v237, %v369
  %v371 = vpop.f32.mrf.mxu0
  %v372 = vpop.f32.mrf.mxu0
  %v373 = vadd.f32 %v237, %v372
  %v374 = vpop.f32.mrf.mxu0
  %375 = vmatprep.mubr.bf16.mxu0 0
  %376 = vmatmul.mubr.bf16.gmra.mxu0 %v272
  %v377 = vpop.f32.mrf.mxu0
  %v378 = vadd.f32 %v237, %v377
  %v379 = vpop.f32.mrf.mxu0
  %v380 = vpop.f32.mrf.mxu0
  %v381 = vadd.f32 %v237, %v380
  %v382 = vpop.f32.mrf.mxu0
  %383 = vmatprep.mubr.bf16.mxu0 0
  %384 = vmatmul.mubr.bf16.gmra.mxu0 %v273
  %v385 = vpop.f32.mrf.mxu0
  %v386 = vadd.f32 %v237, %v385
  %v387 = vpop.f32.mrf.mxu0
  %v388 = vpop.f32.mrf.mxu0
  %v389 = vadd.f32 %v237, %v388
  %v390 = vpop.f32.mrf.mxu0
  %391 = vmatprep.mubr.bf16.mxu0 0
  %392 = vmatmul.mubr.bf16.gmra.mxu0 %v274
  %v393 = vpop.f32.mrf.mxu0
  %v394 = vadd.f32 %v237, %v393
  %v395 = vpop.f32.mrf.mxu0
  %v396 = vpop.f32.mrf.mxu0
  %v397 = vadd.f32 %v237, %v396
  %v398 = vpop.f32.mrf.mxu0
  %399 = vmatprep.mubr.bf16.mxu0 0
  %400 = vmatmul.mubr.bf16.gmra.mxu0 %v275
  %v401 = vpop.f32.mrf.mxu0
  %v402 = vadd.f32 %v237, %v401
  %v403 = vpop.f32.mrf.mxu0
  %v404 = vpop.f32.mrf.mxu0
  %v405 = vadd.f32 %v237, %v404
  %v406 = vpop.f32.mrf.mxu0
  %407 = vmatprep.mubr.bf16.mxu0 0
  %408 = vmatmul.mubr.bf16.gmra.mxu0 %v276
  %v409 = vpop.f32.mrf.mxu0
  %v410 = vadd.f32 %v237, %v409
  %v411 = vpop.f32.mrf.mxu0
  %v412 = vpop.f32.mrf.mxu0
  %v413 = vadd.f32 %v237, %v412
  %v414 = vpop.f32.mrf.mxu0
  %415 = vmatprep.mubr.bf16.mxu0 0
  %416 = vmatmul.mubr.bf16.gmra.mxu0 %v277
  %v417 = vpop.f32.mrf.mxu0
  %v418 = vadd.f32 %v237, %v417
  %v419 = vpop.f32.mrf.mxu0
  %v420 = vpop.f32.mrf.mxu0
  %v421 = vadd.f32 %v237, %v420
  %v422 = vpop.f32.mrf.mxu0
  %423 = vmatprep.mubr.bf16.mxu0 0
  %424 = vmatmul.mubr.bf16.gmra.mxu0 %v278
  %v425 = vpop.f32.mrf.mxu0
  %v426 = vadd.f32 %v237, %v425
  %v427 = vpop.f32.mrf.mxu0
  %v428 = vpop.f32.mrf.mxu0
  %v429 = vadd.f32 %v237, %v428
  %v430 = vpop.f32.mrf.mxu0
  %431 = vdwg.mxu0
  %vm432 = vcmask 261120
  %433 = vst.msk [vmem:[#allocation5] sm:$0xff] %vm432, %v370
  %434 = vst.msk [vmem:[#allocation5 + $0x8] sm:$0xff] %vm432, %v373
  %435 = vst.msk [vmem:[#allocation5 + $0x10] sm:$0xff] %vm432, %v378
  %436 = vst.msk [vmem:[#allocation5 + $0x18] sm:$0xff] %vm432, %v381
  %437 = vst.msk [vmem:[#allocation5 + $0x20] sm:$0xff] %vm432, %v386
  %438 = vst.msk [vmem:[#allocation5 + $0x28] sm:$0xff] %vm432, %v389
  %439 = vst.msk [vmem:[#allocation5 + $0x30] sm:$0xff] %vm432, %v394
  %440 = vst.msk [vmem:[#allocation5 + $0x38] sm:$0xff] %vm432, %v397
  %441 = vst.msk [vmem:[#allocation5 + $0x40] sm:$0xff] %vm432, %v402
  %442 = vst.msk [vmem:[#allocation5 + $0x48] sm:$0xff] %vm432, %v405
  %443 = vst.msk [vmem:[#allocation5 + $0x50] sm:$0xff] %vm432, %v410
  %444 = vst.msk [vmem:[#allocation5 + $0x58] sm:$0xff] %vm432, %v413
  %445 = vst.msk [vmem:[#allocation5 + $0x60] sm:$0xff] %vm432, %v418
  %446 = vst.msk [vmem:[#allocation5 + $0x68] sm:$0xff] %vm432, %v421
  %447 = vst.msk [vmem:[#allocation5 + $0x70] sm:$0xff] %vm432, %v426
  %448 = vst.msk [vmem:[#allocation5 + $0x78] sm:$0xff] %vm432, %v429
  %s449 = scalar_lea.vmem %s2, 64
  %v450 = vld [vmem:[%s449] sm:$0xf]
  %v451 = vld [vmem:[%s449 + $0x4] sm:$0xf]
  %v452 = vld [vmem:[%s449 + $0x8] sm:$0xf]
  %v453 = vld [vmem:[%s449 + $0xc] sm:$0xf]
  %v454 = vld [vmem:[%s449 + $0x10] sm:$0xf]
  %v455 = vld [vmem:[%s449 + $0x14] sm:$0xf]
  %v456 = vld [vmem:[%s449 + $0x18] sm:$0xf]
  %v457 = vld [vmem:[%s449 + $0x1c] sm:$0xf]
  %v458 = vld [vmem:[%s449 + $0x20] sm:$0xf]
  %v459 = vld [vmem:[%s449 + $0x24] sm:$0xf]
  %v460 = vld [vmem:[%s449 + $0x28] sm:$0xf]
  %v461 = vld [vmem:[%s449 + $0x2c] sm:$0xf]
  %v462 = vld [vmem:[%s449 + $0x30] sm:$0xf]
  %v463 = vld [vmem:[%s449 + $0x34] sm:$0xf]
  %v464 = vld [vmem:[%s449 + $0x38] sm:$0xf]
  %v465 = vld [vmem:[%s449 + $0x3c] sm:$0xf]
  %s466 = scalar_lea.vmem %s4, 1
  %v467 = vld [vmem:[%s466] sm:$0x1]
  %v469 = vlaneseq
  %v470 = vshrl.u32 %v469, 7
  %v471 = vsub.s32 0, %v470
  %v472 = vrot.slane %v467, %v471
  %v490 = vunpack.c.l.b16 %v450
  %v491 = vunpack.c.l.b16 %v451
  %v492 = vunpack.c.l.b16 %v452
  %v493 = vunpack.c.l.b16 %v453
  %v494 = vunpack.c.l.b16 %v454
  %v495 = vunpack.c.l.b16 %v455
  %v496 = vunpack.c.l.b16 %v456
  %v497 = vunpack.c.l.b16 %v457
  %v498 = vunpack.c.l.b16 %v458
  %v499 = vunpack.c.l.b16 %v459
  %v500 = vunpack.c.l.b16 %v460
  %v501 = vunpack.c.l.b16 %v461
  %v502 = vunpack.c.l.b16 %v462
  %v503 = vunpack.c.l.b16 %v463
  %v504 = vunpack.c.l.b16 %v464
  %v505 = vunpack.c.l.b16 %v465
  %v506 = vpack.c.b16 %v491, %v490
  %v507 = vpack.c.b16 %v493, %v492
  %v508 = vpack.c.b16 %v495, %v494
  %v509 = vpack.c.b16 %v497, %v496
  %v510 = vpack.c.b16 %v499, %v498
  %v511 = vpack.c.b16 %v501, %v500
  %v512 = vpack.c.b16 %v503, %v502
  %v513 = vpack.c.b16 %v505, %v504
  %522 = vmatprep.subr.bf16.mxu0 0
  %523 = vmatpush1.bf16.msra.mxu0 %v513
  %524 = vmatprep.subr.bf16.mxu0 0
  %525 = vmatpush1.bf16.msra.mxu0 %v512
  %526 = vmatprep.subr.bf16.mxu0 0
  %527 = vmatpush1.bf16.msra.mxu0 %v511
  %528 = vmatprep.subr.bf16.mxu0 0
  %529 = vmatpush1.bf16.msra.mxu0 %v510
  %530 = vmatprep.subr.bf16.mxu0 0
  %531 = vmatpush1.bf16.msra.mxu0 %v509
  %532 = vmatprep.subr.bf16.mxu0 0
  %533 = vmatpush1.bf16.msra.mxu0 %v508
  %534 = vmatprep.subr.bf16.mxu0 0
  %535 = vmatpush1.bf16.msra.mxu0 %v507
  %536 = vmatprep.subr.bf16.mxu0 0
  %537 = vmatpush1.bf16.msra.mxu0 %v506
  %538 = vmatprep.subr.bf16.mxu0 0
  %539 = vmatpush2.bf16.msra.mxu0 0
  %540 = vmatprep.subr.bf16.mxu0 0
  %541 = vmatpush2.bf16.msra.mxu0 0
  %542 = vmatprep.subr.bf16.mxu0 0
  %543 = vmatpush2.bf16.msra.mxu0 0
  %544 = vmatprep.subr.bf16.mxu0 0
  %545 = vmatpush2.bf16.msra.mxu0 0
  %546 = vmatprep.subr.bf16.mxu0 0
  %547 = vmatpush2.bf16.msra.mxu0 0
  %548 = vmatprep.subr.bf16.mxu0 0
  %549 = vmatpush2.bf16.msra.mxu0 0
  %550 = vmatprep.subr.bf16.mxu0 0
  %551 = vmatpush2.bf16.msra.mxu0 0
  %552 = vmatprep.subr.bf16.mxu0 0
  %553 = vmatpush2.bf16.msra.mxu0 0
  %554 = vmatprep.mubr.bf16.mxu0 0
  %555 = vmatmul.mubr.bf16.gmra.mxu0 %v271
  %v556 = vpop.f32.mrf.mxu0
  %v557 = vadd.f32 %v472, %v556
  %v558 = vpop.f32.mrf.mxu0
  %v559 = vpop.f32.mrf.mxu0
  %v560 = vadd.f32 %v472, %v559
  %v561 = vpop.f32.mrf.mxu0
  %562 = vmatprep.mubr.bf16.mxu0 0
  %563 = vmatmul.mubr.bf16.gmra.mxu0 %v272
  %v564 = vpop.f32.mrf.mxu0
  %v565 = vadd.f32 %v472, %v564
  %v566 = vpop.f32.mrf.mxu0
  %v567 = vpop.f32.mrf.mxu0
  %v568 = vadd.f32 %v472, %v567
  %v569 = vpop.f32.mrf.mxu0
  %570 = vmatprep.mubr.bf16.mxu0 0
  %571 = vmatmul.mubr.bf16.gmra.mxu0 %v273
  %v572 = vpop.f32.mrf.mxu0
  %v573 = vadd.f32 %v472, %v572
  %v574 = vpop.f32.mrf.mxu0
  %v575 = vpop.f32.mrf.mxu0
  %v576 = vadd.f32 %v472, %v575
  %v577 = vpop.f32.mrf.mxu0
  %578 = vmatprep.mubr.bf16.mxu0 0
  %579 = vmatmul.mubr.bf16.gmra.mxu0 %v274
  %v580 = vpop.f32.mrf.mxu0
  %v581 = vadd.f32 %v472, %v580
  %v582 = vpop.f32.mrf.mxu0
  %v583 = vpop.f32.mrf.mxu0
  %v584 = vadd.f32 %v472, %v583
  %v585 = vpop.f32.mrf.mxu0
  %586 = vmatprep.mubr.bf16.mxu0 0
  %587 = vmatmul.mubr.bf16.gmra.mxu0 %v275
  %v588 = vpop.f32.mrf.mxu0
  %v589 = vadd.f32 %v472, %v588
  %v590 = vpop.f32.mrf.mxu0
  %v591 = vpop.f32.mrf.mxu0
  %v592 = vadd.f32 %v472, %v591
  %v593 = vpop.f32.mrf.mxu0
  %594 = vmatprep.mubr.bf16.mxu0 0
  %595 = vmatmul.mubr.bf16.gmra.mxu0 %v276
  %v596 = vpop.f32.mrf.mxu0
  %v597 = vadd.f32 %v472, %v596
  %v598 = vpop.f32.mrf.mxu0
  %v599 = vpop.f32.mrf.mxu0
  %v600 = vadd.f32 %v472, %v599
  %v601 = vpop.f32.mrf.mxu0
  %602 = vmatprep.mubr.bf16.mxu0 0
  %603 = vmatmul.mubr.bf16.gmra.mxu0 %v277
  %v604 = vpop.f32.mrf.mxu0
  %v605 = vadd.f32 %v472, %v604
  %v606 = vpop.f32.mrf.mxu0
  %v607 = vpop.f32.mrf.mxu0
  %v608 = vadd.f32 %v472, %v607
  %v609 = vpop.f32.mrf.mxu0
  %610 = vmatprep.mubr.bf16.mxu0 0
  %611 = vmatmul.mubr.bf16.gmra.mxu0 %v278
  %v612 = vpop.f32.mrf.mxu0
  %v613 = vadd.f32 %v472, %v612
  %v614 = vpop.f32.mrf.mxu0
  %v615 = vpop.f32.mrf.mxu0
  %v616 = vadd.f32 %v472, %v615
  %v617 = vpop.f32.mrf.mxu0
  %618 = vdwg.mxu0
  %619 = vst.msk [vmem:[#allocation6] sm:$0xff] %vm432, %v557
  %620 = vst.msk [vmem:[#allocation6 + $0x8] sm:$0xff] %vm432, %v560
  %621 = vst.msk [vmem:[#allocation6 + $0x10] sm:$0xff] %vm432, %v565
  %622 = vst.msk [vmem:[#allocation6 + $0x18] sm:$0xff] %vm432, %v568
  %623 = vst.msk [vmem:[#allocation6 + $0x20] sm:$0xff] %vm432, %v573
  %624 = vst.msk [vmem:[#allocation6 + $0x28] sm:$0xff] %vm432, %v576
  %625 = vst.msk [vmem:[#allocation6 + $0x30] sm:$0xff] %vm432, %v581
  %626 = vst.msk [vmem:[#allocation6 + $0x38] sm:$0xff] %vm432, %v584
  %627 = vst.msk [vmem:[#allocation6 + $0x40] sm:$0xff] %vm432, %v589
  %628 = vst.msk [vmem:[#allocation6 + $0x48] sm:$0xff] %vm432, %v592
  %629 = vst.msk [vmem:[#allocation6 + $0x50] sm:$0xff] %vm432, %v597
  %630 = vst.msk [vmem:[#allocation6 + $0x58] sm:$0xff] %vm432, %v600
  %631 = vst.msk [vmem:[#allocation6 + $0x60] sm:$0xff] %vm432, %v605
  %632 = vst.msk [vmem:[#allocation6 + $0x68] sm:$0xff] %vm432, %v608
  %633 = vst.msk [vmem:[#allocation6 + $0x70] sm:$0xff] %vm432, %v613
  %634 = vst.msk [vmem:[#allocation6 + $0x78] sm:$0xff] %vm432, %v616
  %s635 = scalar_lea.vmem %s2, 128
  %v636 = vld [vmem:[%s635] sm:$0xf]
  %v637 = vld [vmem:[%s635 + $0x4] sm:$0xf]
  %v638 = vld [vmem:[%s635 + $0x8] sm:$0xf]
  %v639 = vld [vmem:[%s635 + $0xc] sm:$0xf]
  %v640 = vld [vmem:[%s635 + $0x10] sm:$0xf]
  %v641 = vld [vmem:[%s635 + $0x14] sm:$0xf]
  %v642 = vld [vmem:[%s635 + $0x18] sm:$0xf]
  %v643 = vld [vmem:[%s635 + $0x1c] sm:$0xf]
  %v644 = vld [vmem:[%s635 + $0x20] sm:$0xf]
  %v645 = vld [vmem:[%s635 + $0x24] sm:$0xf]
  %v646 = vld [vmem:[%s635 + $0x28] sm:$0xf]
  %v647 = vld [vmem:[%s635 + $0x2c] sm:$0xf]
  %v648 = vld [vmem:[%s635 + $0x30] sm:$0xf]
  %v649 = vld [vmem:[%s635 + $0x34] sm:$0xf]
  %v650 = vld [vmem:[%s635 + $0x38] sm:$0xf]
  %v651 = vld [vmem:[%s635 + $0x3c] sm:$0xf]
  %s652 = scalar_lea.vmem %s4, 2
  %v653 = vld [vmem:[%s652] sm:$0x1]
  %v655 = vlaneseq
  %v656 = vshrl.u32 %v655, 7
  %v657 = vsub.s32 0, %v656
  %v658 = vrot.slane %v653, %v657
  %v676 = vunpack.c.l.b16 %v636
  %v677 = vunpack.c.l.b16 %v637
  %v678 = vunpack.c.l.b16 %v638
  %v679 = vunpack.c.l.b16 %v639
  %v680 = vunpack.c.l.b16 %v640
  %v681 = vunpack.c.l.b16 %v641
  %v682 = vunpack.c.l.b16 %v642
  %v683 = vunpack.c.l.b16 %v643
  %v684 = vunpack.c.l.b16 %v644
  %v685 = vunpack.c.l.b16 %v645
  %v686 = vunpack.c.l.b16 %v646
  %v687 = vunpack.c.l.b16 %v647
  %v688 = vunpack.c.l.b16 %v648
  %v689 = vunpack.c.l.b16 %v649
  %v690 = vunpack.c.l.b16 %v650
  %v691 = vunpack.c.l.b16 %v651
  %v692 = vpack.c.b16 %v677, %v676
  %v693 = vpack.c.b16 %v679, %v678
  %v694 = vpack.c.b16 %v681, %v680
  %v695 = vpack.c.b16 %v683, %v682
  %v696 = vpack.c.b16 %v685, %v684
  %v697 = vpack.c.b16 %v687, %v686
  %v698 = vpack.c.b16 %v689, %v688
  %v699 = vpack.c.b16 %v691, %v690
  %708 = vmatprep.subr.bf16.mxu0 0
  %709 = vmatpush1.bf16.msra.mxu0 %v699
  %710 = vmatprep.subr.bf16.mxu0 0
  %711 = vmatpush1.bf16.msra.mxu0 %v698
  %712 = vmatprep.subr.bf16.mxu0 0
  %713 = vmatpush1.bf16.msra.mxu0 %v697
  %714 = vmatprep.subr.bf16.mxu0 0
  %715 = vmatpush1.bf16.msra.mxu0 %v696
  %716 = vmatprep.subr.bf16.mxu0 0
  %717 = vmatpush1.bf16.msra.mxu0 %v695
  %718 = vmatprep.subr.bf16.mxu0 0
  %719 = vmatpush1.bf16.msra.mxu0 %v694
  %720 = vmatprep.subr.bf16.mxu0 0
  %721 = vmatpush1.bf16.msra.mxu0 %v693
  %722 = vmatprep.subr.bf16.mxu0 0
  %723 = vmatpush1.bf16.msra.mxu0 %v692
  %724 = vmatprep.subr.bf16.mxu0 0
  %725 = vmatpush2.bf16.msra.mxu0 0
  %726 = vmatprep.subr.bf16.mxu0 0
  %727 = vmatpush2.bf16.msra.mxu0 0
  %728 = vmatprep.subr.bf16.mxu0 0
  %729 = vmatpush2.bf16.msra.mxu0 0
  %730 = vmatprep.subr.bf16.mxu0 0
  %731 = vmatpush2.bf16.msra.mxu0 0
  %732 = vmatprep.subr.bf16.mxu0 0
  %733 = vmatpush2.bf16.msra.mxu0 0
  %734 = vmatprep.subr.bf16.mxu0 0
  %735 = vmatpush2.bf16.msra.mxu0 0
  %736 = vmatprep.subr.bf16.mxu0 0
  %737 = vmatpush2.bf16.msra.mxu0 0
  %738 = vmatprep.subr.bf16.mxu0 0
  %739 = vmatpush2.bf16.msra.mxu0 0
  %740 = vmatprep.mubr.bf16.mxu0 0
  %741 = vmatmul.mubr.bf16.gmra.mxu0 %v271
  %v742 = vpop.f32.mrf.mxu0
  %v743 = vadd.f32 %v658, %v742
  %v744 = vpop.f32.mrf.mxu0
  %v745 = vpop.f32.mrf.mxu0
  %v746 = vadd.f32 %v658, %v745
  %v747 = vpop.f32.mrf.mxu0
  %748 = vmatprep.mubr.bf16.mxu0 0
  %749 = vmatmul.mubr.bf16.gmra.mxu0 %v272
  %v750 = vpop.f32.mrf.mxu0
  %v751 = vadd.f32 %v658, %v750
  %v752 = vpop.f32.mrf.mxu0
  %v753 = vpop.f32.mrf.mxu0
  %v754 = vadd.f32 %v658, %v753
  %v755 = vpop.f32.mrf.mxu0
  %756 = vmatprep.mubr.bf16.mxu0 0
  %757 = vmatmul.mubr.bf16.gmra.mxu0 %v273
  %v758 = vpop.f32.mrf.mxu0
  %v759 = vadd.f32 %v658, %v758
  %v760 = vpop.f32.mrf.mxu0
  %v761 = vpop.f32.mrf.mxu0
  %v762 = vadd.f32 %v658, %v761
  %v763 = vpop.f32.mrf.mxu0
  %764 = vmatprep.mubr.bf16.mxu0 0
  %765 = vmatmul.mubr.bf16.gmra.mxu0 %v274
  %v766 = vpop.f32.mrf.mxu0
  %v767 = vadd.f32 %v658, %v766
  %v768 = vpop.f32.mrf.mxu0
  %v769 = vpop.f32.mrf.mxu0
  %v770 = vadd.f32 %v658, %v769
  %v771 = vpop.f32.mrf.mxu0
  %772 = vmatprep.mubr.bf16.mxu0 0
  %773 = vmatmul.mubr.bf16.gmra.mxu0 %v275
  %v774 = vpop.f32.mrf.mxu0
  %v775 = vadd.f32 %v658, %v774
  %v776 = vpop.f32.mrf.mxu0
  %v777 = vpop.f32.mrf.mxu0
  %v778 = vadd.f32 %v658, %v777
  %v779 = vpop.f32.mrf.mxu0
  %780 = vmatprep.mubr.bf16.mxu0 0
  %781 = vmatmul.mubr.bf16.gmra.mxu0 %v276
  %v782 = vpop.f32.mrf.mxu0
  %v783 = vadd.f32 %v658, %v782
  %v784 = vpop.f32.mrf.mxu0
  %v785 = vpop.f32.mrf.mxu0
  %v786 = vadd.f32 %v658, %v785
  %v787 = vpop.f32.mrf.mxu0
  %788 = vmatprep.mubr.bf16.mxu0 0
  %789 = vmatmul.mubr.bf16.gmra.mxu0 %v277
  %v790 = vpop.f32.mrf.mxu0
  %v791 = vadd.f32 %v658, %v790
  %v792 = vpop.f32.mrf.mxu0
  %v793 = vpop.f32.mrf.mxu0
  %v794 = vadd.f32 %v658, %v793
  %v795 = vpop.f32.mrf.mxu0
  %796 = vmatprep.mubr.bf16.mxu0 0
  %797 = vmatmul.mubr.bf16.gmra.mxu0 %v278
  %v798 = vpop.f32.mrf.mxu0
  %v799 = vadd.f32 %v658, %v798
  %v800 = vpop.f32.mrf.mxu0
  %v801 = vpop.f32.mrf.mxu0
  %v802 = vadd.f32 %v658, %v801
  %v803 = vpop.f32.mrf.mxu0
  %804 = vdwg.mxu0
  %805 = vst.msk [vmem:[#allocation7] sm:$0xff] %vm432, %v743
  %806 = vst.msk [vmem:[#allocation7 + $0x8] sm:$0xff] %vm432, %v746
  %807 = vst.msk [vmem:[#allocation7 + $0x10] sm:$0xff] %vm432, %v751
  %808 = vst.msk [vmem:[#allocation7 + $0x18] sm:$0xff] %vm432, %v754
  %809 = vst.msk [vmem:[#allocation7 + $0x20] sm:$0xff] %vm432, %v759
  %810 = vst.msk [vmem:[#allocation7 + $0x28] sm:$0xff] %vm432, %v762
  %811 = vst.msk [vmem:[#allocation7 + $0x30] sm:$0xff] %vm432, %v767
  %812 = vst.msk [vmem:[#allocation7 + $0x38] sm:$0xff] %vm432, %v770
  %813 = vst.msk [vmem:[#allocation7 + $0x40] sm:$0xff] %vm432, %v775
  %814 = vst.msk [vmem:[#allocation7 + $0x48] sm:$0xff] %vm432, %v778
  %815 = vst.msk [vmem:[#allocation7 + $0x50] sm:$0xff] %vm432, %v783
  %816 = vst.msk [vmem:[#allocation7 + $0x58] sm:$0xff] %vm432, %v786
  %817 = vst.msk [vmem:[#allocation7 + $0x60] sm:$0xff] %vm432, %v791
  %818 = vst.msk [vmem:[#allocation7 + $0x68] sm:$0xff] %vm432, %v794
  %819 = vst.msk [vmem:[#allocation7 + $0x70] sm:$0xff] %vm432, %v799
  %820 = vst.msk [vmem:[#allocation7 + $0x78] sm:$0xff] %vm432, %v802
  %v821 = vld [vmem:[%s3] sm:$0xf]
  %v822 = vld [vmem:[%s3 + $0x4] sm:$0xf]
  %v823 = vld [vmem:[%s3 + $0x8] sm:$0xf]
  %v824 = vld [vmem:[%s3 + $0xc] sm:$0xf]
  %s825 = scalar_lea.vmem %s3, 16
  %v826 = vld [vmem:[%s825] sm:$0xf]
  %v827 = vld [vmem:[%s825 + $0x4] sm:$0xf]
  %v828 = vld [vmem:[%s825 + $0x8] sm:$0xf]
  %v829 = vld [vmem:[%s825 + $0xc] sm:$0xf]
  %s830 = scalar_lea.vmem %s3, 32
  %v831 = vld [vmem:[%s830] sm:$0xf]
  %v832 = vld [vmem:[%s830 + $0x4] sm:$0xf]
  %v833 = vld [vmem:[%s830 + $0x8] sm:$0xf]
  %v834 = vld [vmem:[%s830 + $0xc] sm:$0xf]
  %v835 = vld [vmem:[%s5] sm:$0x1]
  %s836 = scalar_lea.vmem %s5, 1
  %v837 = vld [vmem:[%s836] sm:$0x1]
  %s838 = scalar_lea.vmem %s5, 2
  %v839 = vld [vmem:[%s838] sm:$0x1]
  %v840 = vld [vmem:[#allocation2] sm:$0xff]
  %v841 = vld [vmem:[#allocation3] sm:$0xff]
  %v842 = vpack.c.bf16 %v840, %v840
  %v844 = vlaneseq
  %v845 = vshrl.u32 %v844, 7
  %v846 = vsub.s32 0, %v845
  %v847 = vrot.slane %v835, %v846
  %v853 = vunpack.c.l.b16 %v821
  %v854 = vunpack.c.l.b16 %v822
  %v855 = vunpack.c.l.b16 %v823
  %v856 = vunpack.c.l.b16 %v824
  %v857 = vpack.c.b16 %v854, %v853
  %v858 = vpack.c.b16 %v856, %v855
  %v862 = vsel %vm432, %v842, 0
  %864 = vmatprep.subr.bf16.mxu0 0
  %865 = vmatpush1.bf16.msra.mxu0 0
  %866 = vmatprep.subr.bf16.mxu0 0
  %867 = vmatpush1.bf16.msra.mxu0 0
  %868 = vmatprep.subr.bf16.mxu0 0
  %869 = vmatpush1.bf16.msra.mxu0 0
  %870 = vmatprep.subr.bf16.mxu0 0
  %871 = vmatpush1.bf16.msra.mxu0 0
  %872 = vmatprep.subr.bf16.mxu0 0
  %873 = vmatpush1.bf16.msra.mxu0 0
  %874 = vmatprep.subr.bf16.mxu0 0
  %875 = vmatpush1.bf16.msra.mxu0 0
  %876 = vmatprep.subr.bf16.mxu0 0
  %877 = vmatpush1.bf16.msra.mxu0 %v858
  %878 = vmatprep.subr.bf16.mxu0 0
  %879 = vmatpush1.bf16.msra.mxu0 %v857
  %880 = vmatprep.subr.bf16.mxu0 0
  %881 = vmatpush2.bf16.msra.mxu0 0
  %882 = vmatprep.subr.bf16.mxu0 0
  %883 = vmatpush2.bf16.msra.mxu0 0
  %884 = vmatprep.subr.bf16.mxu0 0
  %885 = vmatpush2.bf16.msra.mxu0 0
  %886 = vmatprep.subr.bf16.mxu0 0
  %887 = vmatpush2.bf16.msra.mxu0 0
  %888 = vmatprep.subr.bf16.mxu0 0
  %889 = vmatpush2.bf16.msra.mxu0 0
  %890 = vmatprep.subr.bf16.mxu0 0
  %891 = vmatpush2.bf16.msra.mxu0 0
  %892 = vmatprep.subr.bf16.mxu0 0
  %893 = vmatpush2.bf16.msra.mxu0 0
  %894 = vmatprep.subr.bf16.mxu0 0
  %895 = vmatpush2.bf16.msra.mxu0 0
  %896 = vmatprep.mubr.bf16.mxu0 0
  %897 = vmatmul.mubr.bf16.gmra.mxu0 %v862
  %v898 = vpop.f32.mrf.mxu0
  %v899 = vadd.f32 %v847, %v898
  %v900 = vpop.f32.mrf.mxu0
  %v901 = vpop.f32.mrf.mxu0
  %v902 = vpop.f32.mrf.mxu0
  %903 = vdwg.mxu0
  %v905 = vlaneseq
  %v906 = vshrl.u32 %v905, 7
  %v907 = vsub.s32 0, %v906
  %v908 = vrot.slane %v837, %v907
  %v914 = vunpack.c.l.b16 %v826
  %v915 = vunpack.c.l.b16 %v827
  %v916 = vunpack.c.l.b16 %v828
  %v917 = vunpack.c.l.b16 %v829
  %v918 = vpack.c.b16 %v915, %v914
  %v919 = vpack.c.b16 %v917, %v916
  %922 = vmatprep.subr.bf16.mxu0 0
  %923 = vmatpush1.bf16.msra.mxu0 0
  %924 = vmatprep.subr.bf16.mxu0 0
  %925 = vmatpush1.bf16.msra.mxu0 0
  %926 = vmatprep.subr.bf16.mxu0 0
  %927 = vmatpush1.bf16.msra.mxu0 0
  %928 = vmatprep.subr.bf16.mxu0 0
  %929 = vmatpush1.bf16.msra.mxu0 0
  %930 = vmatprep.subr.bf16.mxu0 0
  %931 = vmatpush1.bf16.msra.mxu0 0
  %932 = vmatprep.subr.bf16.mxu0 0
  %933 = vmatpush1.bf16.msra.mxu0 0
  %934 = vmatprep.subr.bf16.mxu0 0
  %935 = vmatpush1.bf16.msra.mxu0 %v919
  %936 = vmatprep.subr.bf16.mxu0 0
  %937 = vmatpush1.bf16.msra.mxu0 %v918
  %938 = vmatprep.subr.bf16.mxu0 0
  %939 = vmatpush2.bf16.msra.mxu0 0
  %940 = vmatprep.subr.bf16.mxu0 0
  %941 = vmatpush2.bf16.msra.mxu0 0
  %942 = vmatprep.subr.bf16.mxu0 0
  %943 = vmatpush2.bf16.msra.mxu0 0
  %944 = vmatprep.subr.bf16.mxu0 0
  %945 = vmatpush2.bf16.msra.mxu0 0
  %946 = vmatprep.subr.bf16.mxu0 0
  %947 = vmatpush2.bf16.msra.mxu0 0
  %948 = vmatprep.subr.bf16.mxu0 0
  %949 = vmatpush2.bf16.msra.mxu0 0
  %950 = vmatprep.subr.bf16.mxu0 0
  %951 = vmatpush2.bf16.msra.mxu0 0
  %952 = vmatprep.subr.bf16.mxu0 0
  %953 = vmatpush2.bf16.msra.mxu0 0
  %954 = vmatprep.mubr.bf16.mxu0 0
  %955 = vmatmul.mubr.bf16.gmra.mxu0 %v862
  %v956 = vpop.f32.mrf.mxu0
  %v957 = vadd.f32 %v908, %v956
  %v958 = vpop.f32.mrf.mxu0
  %v959 = vpop.f32.mrf.mxu0
  %v960 = vpop.f32.mrf.mxu0
  %961 = vdwg.mxu0
  %v963 = vlaneseq
  %v964 = vshrl.u32 %v963, 7
  %v965 = vsub.s32 0, %v964
  %v966 = vrot.slane %v839, %v965
  %v972 = vunpack.c.l.b16 %v831
  %v973 = vunpack.c.l.b16 %v832
  %v974 = vunpack.c.l.b16 %v833
  %v975 = vunpack.c.l.b16 %v834
  %v976 = vpack.c.b16 %v973, %v972
  %v977 = vpack.c.b16 %v975, %v974
  %980 = vmatprep.subr.bf16.mxu0 0
  %981 = vmatpush1.bf16.msra.mxu0 0
  %982 = vmatprep.subr.bf16.mxu0 0
  %983 = vmatpush1.bf16.msra.mxu0 0
  %984 = vmatprep.subr.bf16.mxu0 0
  %985 = vmatpush1.bf16.msra.mxu0 0
  %986 = vmatprep.subr.bf16.mxu0 0
  %987 = vmatpush1.bf16.msra.mxu0 0
  %988 = vmatprep.subr.bf16.mxu0 0
  %989 = vmatpush1.bf16.msra.mxu0 0
  %990 = vmatprep.subr.bf16.mxu0 0
  %991 = vmatpush1.bf16.msra.mxu0 0
  %992 = vmatprep.subr.bf16.mxu0 0
  %993 = vmatpush1.bf16.msra.mxu0 %v977
  %994 = vmatprep.subr.bf16.mxu0 0
  %995 = vmatpush1.bf16.msra.mxu0 %v976
  %996 = vmatprep.subr.bf16.mxu0 0
  %997 = vmatpush2.bf16.msra.mxu0 0
  %998 = vmatprep.subr.bf16.mxu0 0
  %999 = vmatpush2.bf16.msra.mxu0 0
  %1000 = vmatprep.subr.bf16.mxu0 0
  %1001 = vmatpush2.bf16.msra.mxu0 0
  %1002 = vmatprep.subr.bf16.mxu0 0
  %1003 = vmatpush2.bf16.msra.mxu0 0
  %1004 = vmatprep.subr.bf16.mxu0 0
  %1005 = vmatpush2.bf16.msra.mxu0 0
  %1006 = vmatprep.subr.bf16.mxu0 0
  %1007 = vmatpush2.bf16.msra.mxu0 0
  %1008 = vmatprep.subr.bf16.mxu0 0
  %1009 = vmatpush2.bf16.msra.mxu0 0
  %1010 = vmatprep.subr.bf16.mxu0 0
  %1011 = vmatpush2.bf16.msra.mxu0 0
  %1012 = vmatprep.mubr.bf16.mxu0 0
  %1013 = vmatmul.mubr.bf16.gmra.mxu0 %v862
  %v1014 = vpop.f32.mrf.mxu0
  %v1015 = vadd.f32 %v966, %v1014
  %v1016 = vpop.f32.mrf.mxu0
  %v1017 = vpop.f32.mrf.mxu0
  %v1018 = vpop.f32.mrf.mxu0
  %1019 = vdwg.mxu0
  %v1020 = vld [vmem:[#allocation5] sm:$0xff]
  %v1021 = vadd.f32 %v1020, %v899
  %v1022 = vxor.u32 %v1021, 2147483648
  %v1023 = vmul.f32 %v1022, 1.442695
  %v1024 = vpow.pop %v1023
  %v1025 = vadd.f32 %v1024, 1.0
  %v1026 = vrcp.pop %v1025
  %v1027 = vmul.f32 1.0, %v1026
  %v1028 = vld [vmem:[#allocation6] sm:$0xff]
  %v1029 = vadd.f32 %v1028, %v957
  %v1030 = vxor.u32 %v1029, 2147483648
  %v1031 = vmul.f32 %v1030, 1.442695
  %v1032 = vpow.pop %v1031
  %v1033 = vadd.f32 %v1032, 1.0
  %v1034 = vrcp.pop %v1033
  %v1035 = vmul.f32 1.0, %v1034
  %v1036 = vld [vmem:[#allocation7] sm:$0xff]
  %v1037 = vmul.f32 %v1027, %v1015
  %v1038 = vadd.f32 %v1036, %v1037
  %v1039 = vtanh.pop %v1038
  %v1040 = vsub.f32 1.0, %v1035
  %v1041 = vmul.f32 %v1040, %v1039
  %v1042 = vmul.f32 %v1035, %v840
  %v1043 = vadd.f32 %v1041, %v1042
  %v1044 = vld [vmem:[%s1] sm:$0xff]
  %vm1045 = vcmp.gt.f32.partialorder %v1044, 0.5
  %v1046 = vsel %vm1045, 1, 0
  %1047 = vset.pattern.permute.xlu0 0
  %1048 = vperm.xlu0 %1047, %v1046
  %v1049 = vpop.permute.xlu0 %1048
  %vm1050 = vcmp.eq.s32.totalorder %v1049, 1
  %v1051 = vsel %vm1050, -1e+12, %v1043
  %v1052 = vmax.f32 %v841, %v1051
  %v1053 = vpack.c.bf16 %v1043, %v1043
  %v1055 = vsel %vm432, %v1053, 0
  %1057 = vmatprep.subr.bf16.mxu0 0
  %1058 = vmatpush1.bf16.msra.mxu0 0
  %1059 = vmatprep.subr.bf16.mxu0 0
  %1060 = vmatpush1.bf16.msra.mxu0 0
  %1061 = vmatprep.subr.bf16.mxu0 0
  %1062 = vmatpush1.bf16.msra.mxu0 0
  %1063 = vmatprep.subr.bf16.mxu0 0
  %1064 = vmatpush1.bf16.msra.mxu0 0
  %1065 = vmatprep.subr.bf16.mxu0 0
  %1066 = vmatpush1.bf16.msra.mxu0 0
  %1067 = vmatprep.subr.bf16.mxu0 0
  %1068 = vmatpush1.bf16.msra.mxu0 0
  %1069 = vmatprep.subr.bf16.mxu0 0
  %1070 = vmatpush1.bf16.msra.mxu0 %v858
  %1071 = vmatprep.subr.bf16.mxu0 0
  %1072 = vmatpush1.bf16.msra.mxu0 %v857
  %1073 = vmatprep.subr.bf16.mxu0 0
  %1074 = vmatpush2.bf16.msra.mxu0 0
  %1075 = vmatprep.subr.bf16.mxu0 0
  %1076 = vmatpush2.bf16.msra.mxu0 0
  %1077 = vmatprep.subr.bf16.mxu0 0
  %1078 = vmatpush2.bf16.msra.mxu0 0
  %1079 = vmatprep.subr.bf16.mxu0 0
  %1080 = vmatpush2.bf16.msra.mxu0 0
  %1081 = vmatprep.subr.bf16.mxu0 0
  %1082 = vmatpush2.bf16.msra.mxu0 0
  %1083 = vmatprep.subr.bf16.mxu0 0
  %1084 = vmatpush2.bf16.msra.mxu0 0
  %1085 = vmatprep.subr.bf16.mxu0 0
  %1086 = vmatpush2.bf16.msra.mxu0 0
  %1087 = vmatprep.subr.bf16.mxu0 0
  %1088 = vmatpush2.bf16.msra.mxu0 0
  %1089 = vmatprep.mubr.bf16.mxu0 0
  %1090 = vmatmul.mubr.bf16.gmra.mxu0 %v1055
  %v1091 = vpop.f32.mrf.mxu0
  %v1092 = vadd.f32 %v847, %v1091
  %v1093 = vpop.f32.mrf.mxu0
  %v1094 = vpop.f32.mrf.mxu0
  %v1095 = vpop.f32.mrf.mxu0
  %1096 = vdwg.mxu0
  %1097 = vmatprep.subr.bf16.mxu0 0
  %1098 = vmatpush1.bf16.msra.mxu0 0
  %1099 = vmatprep.subr.bf16.mxu0 0
  %1100 = vmatpush1.bf16.msra.mxu0 0
  %1101 = vmatprep.subr.bf16.mxu0 0
  %1102 = vmatpush1.bf16.msra.mxu0 0
  %1103 = vmatprep.subr.bf16.mxu0 0
  %1104 = vmatpush1.bf16.msra.mxu0 0
  %1105 = vmatprep.subr.bf16.mxu0 0
  %1106 = vmatpush1.bf16.msra.mxu0 0
  %1107 = vmatprep.subr.bf16.mxu0 0
  %1108 = vmatpush1.bf16.msra.mxu0 0
  %1109 = vmatprep.subr.bf16.mxu0 0
  %1110 = vmatpush1.bf16.msra.mxu0 %v919
  %1111 = vmatprep.subr.bf16.mxu0 0
  %1112 = vmatpush1.bf16.msra.mxu0 %v918
  %1113 = vmatprep.subr.bf16.mxu0 0
  %1114 = vmatpush2.bf16.msra.mxu0 0
  %1115 = vmatprep.subr.bf16.mxu0 0
  %1116 = vmatpush2.bf16.msra.mxu0 0
  %1117 = vmatprep.subr.bf16.mxu0 0
  %1118 = vmatpush2.bf16.msra.mxu0 0
  %1119 = vmatprep.subr.bf16.mxu0 0
  %1120 = vmatpush2.bf16.msra.mxu0 0
  %1121 = vmatprep.subr.bf16.mxu0 0
  %1122 = vmatpush2.bf16.msra.mxu0 0
  %1123 = vmatprep.subr.bf16.mxu0 0
  %1124 = vmatpush2.bf16.msra.mxu0 0
  %1125 = vmatprep.subr.bf16.mxu0 0
  %1126 = vmatpush2.bf16.msra.mxu0 0
  %1127 = vmatprep.subr.bf16.mxu0 0
  %1128 = vmatpush2.bf16.msra.mxu0 0
  %1129 = vmatprep.mubr.bf16.mxu0 0
  %1130 = vmatmul.mubr.bf16.gmra.mxu0 %v1055
  %v1131 = vpop.f32.mrf.mxu0
  %v1132 = vadd.f32 %v908, %v1131
  %v1133 = vpop.f32.mrf.mxu0
  %v1134 = vpop.f32.mrf.mxu0
  %v1135 = vpop.f32.mrf.mxu0
  %1136 = vdwg.mxu0
  %1137 = vmatprep.subr.bf16.mxu0 0
  %1138 = vmatpush1.bf16.msra.mxu0 0
  %1139 = vmatprep.subr.bf16.mxu0 0
  %1140 = vmatpush1.bf16.msra.mxu0 0
  %1141 = vmatprep.subr.bf16.mxu0 0
  %1142 = vmatpush1.bf16.msra.mxu0 0
  %1143 = vmatprep.subr.bf16.mxu0 0
  %1144 = vmatpush1.bf16.msra.mxu0 0
  %1145 = vmatprep.subr.bf16.mxu0 0
  %1146 = vmatpush1.bf16.msra.mxu0 0
  %1147 = vmatprep.subr.bf16.mxu0 0
  %1148 = vmatpush1.bf16.msra.mxu0 0
  %1149 = vmatprep.subr.bf16.mxu0 0
  %1150 = vmatpush1.bf16.msra.mxu0 %v977
  %1151 = vmatprep.subr.bf16.mxu0 0
  %1152 = vmatpush1.bf16.msra.mxu0 %v976
  %1153 = vmatprep.subr.bf16.mxu0 0
  %1154 = vmatpush2.bf16.msra.mxu0 0
  %1155 = vmatprep.subr.bf16.mxu0 0
  %1156 = vmatpush2.bf16.msra.mxu0 0
  %1157 = vmatprep.subr.bf16.mxu0 0
  %1158 = vmatpush2.bf16.msra.mxu0 0
  %1159 = vmatprep.subr.bf16.mxu0 0
  %1160 = vmatpush2.bf16.msra.mxu0 0
  %1161 = vmatprep.subr.bf16.mxu0 0
  %1162 = vmatpush2.bf16.msra.mxu0 0
  %1163 = vmatprep.subr.bf16.mxu0 0
  %1164 = vmatpush2.bf16.msra.mxu0 0
  %1165 = vmatprep.subr.bf16.mxu0 0
  %1166 = vmatpush2.bf16.msra.mxu0 0
  %1167 = vmatprep.subr.bf16.mxu0 0
  %1168 = vmatpush2.bf16.msra.mxu0 0
  %1169 = vmatprep.mubr.bf16.mxu0 0
  %1170 = vmatmul.mubr.bf16.gmra.mxu0 %v1055
  %v1171 = vpop.f32.mrf.mxu0
  %v1172 = vadd.f32 %v966, %v1171
  %v1173 = vpop.f32.mrf.mxu0
  %v1174 = vpop.f32.mrf.mxu0
  %v1175 = vpop.f32.mrf.mxu0
  %1176 = vdwg.mxu0
  %s1177 = scalar_lea.vmem [#allocation5], 8
  %v1178 = vld [vmem:[%s1177] sm:$0xff]
  %v1179 = vadd.f32 %v1178, %v1092
  %v1180 = vxor.u32 %v1179, 2147483648
  %v1181 = vmul.f32 %v1180, 1.442695
  %v1182 = vpow.pop %v1181
  %v1183 = vadd.f32 %v1182, 1.0
  %v1184 = vrcp.pop %v1183
  %v1185 = vmul.f32 1.0, %v1184
  %s1186 = scalar_lea.vmem [#allocation6], 8
  %v1187 = vld [vmem:[%s1186] sm:$0xff]
  %v1188 = vadd.f32 %v1187, %v1132
  %v1189 = vxor.u32 %v1188, 2147483648
  %v1190 = vmul.f32 %v1189, 1.442695
  %v1191 = vpow.pop %v1190
  %v1192 = vadd.f32 %v1191, 1.0
  %v1193 = vrcp.pop %v1192
  %v1194 = vmul.f32 1.0, %v1193
  %s1195 = scalar_lea.vmem [#allocation7], 8
  %v1196 = vld [vmem:[%s1195] sm:$0xff]
  %v1197 = vmul.f32 %v1185, %v1172
  %v1198 = vadd.f32 %v1196, %v1197
  %v1199 = vtanh.pop %v1198
  %v1200 = vsub.f32 1.0, %v1194
  %v1201 = vmul.f32 %v1200, %v1199
  %v1202 = vmul.f32 %v1194, %v1043
  %v1203 = vadd.f32 %v1201, %v1202
  %s1204 = scalar_lea.vmem %s1, 8
  %v1205 = vld [vmem:[%s1204] sm:$0xff]
  %vm1206 = vcmp.gt.f32.partialorder %v1205, 0.5
  %v1207 = vsel %vm1206, 1, 0
  %1208 = vset.pattern.permute.xlu0 0
  %1209 = vperm.xlu0 %1208, %v1207
  %v1210 = vpop.permute.xlu0 %1209
  %vm1211 = vcmp.eq.s32.totalorder %v1210, 1
  %v1212 = vsel %vm1211, -1e+12, %v1203
  %v1213 = vmax.f32 %v1052, %v1212
  %v1214 = vpack.c.bf16 %v1203, %v1203
  %v1216 = vsel %vm432, %v1214, 0
  %1218 = vmatprep.subr.bf16.mxu0 0
  %1219 = vmatpush1.bf16.msra.mxu0 0
  %1220 = vmatprep.subr.bf16.mxu0 0
  %1221 = vmatpush1.bf16.msra.mxu0 0
  %1222 = vmatprep.subr.bf16.mxu0 0
  %1223 = vmatpush1.bf16.msra.mxu0 0
  %1224 = vmatprep.subr.bf16.mxu0 0
  %1225 = vmatpush1.bf16.msra.mxu0 0
  %1226 = vmatprep.subr.bf16.mxu0 0
  %1227 = vmatpush1.bf16.msra.mxu0 0
  %1228 = vmatprep.subr.bf16.mxu0 0
  %1229 = vmatpush1.bf16.msra.mxu0 0
  %1230 = vmatprep.subr.bf16.mxu0 0
  %1231 = vmatpush1.bf16.msra.mxu0 %v858
  %1232 = vmatprep.subr.bf16.mxu0 0
  %1233 = vmatpush1.bf16.msra.mxu0 %v857
  %1234 = vmatprep.subr.bf16.mxu0 0
  %1235 = vmatpush2.bf16.msra.mxu0 0
  %1236 = vmatprep.subr.bf16.mxu0 0
  %1237 = vmatpush2.bf16.msra.mxu0 0
  %1238 = vmatprep.subr.bf16.mxu0 0
  %1239 = vmatpush2.bf16.msra.mxu0 0
  %1240 = vmatprep.subr.bf16.mxu0 0
  %1241 = vmatpush2.bf16.msra.mxu0 0
  %1242 = vmatprep.subr.bf16.mxu0 0
  %1243 = vmatpush2.bf16.msra.mxu0 0
  %1244 = vmatprep.subr.bf16.mxu0 0
  %1245 = vmatpush2.bf16.msra.mxu0 0
  %1246 = vmatprep.subr.bf16.mxu0 0
  %1247 = vmatpush2.bf16.msra.mxu0 0
  %1248 = vmatprep.subr.bf16.mxu0 0
  %1249 = vmatpush2.bf16.msra.mxu0 0
  %1250 = vmatprep.mubr.bf16.mxu0 0
  %1251 = vmatmul.mubr.bf16.gmra.mxu0 %v1216
  %v1252 = vpop.f32.mrf.mxu0
  %v1253 = vadd.f32 %v847, %v1252
  %v1254 = vpop.f32.mrf.mxu0
  %v1255 = vpop.f32.mrf.mxu0
  %v1256 = vpop.f32.mrf.mxu0
  %1257 = vdwg.mxu0
  %1258 = vmatprep.subr.bf16.mxu0 0
  %1259 = vmatpush1.bf16.msra.mxu0 0
  %1260 = vmatprep.subr.bf16.mxu0 0
  %1261 = vmatpush1.bf16.msra.mxu0 0
  %1262 = vmatprep.subr.bf16.mxu0 0
  %1263 = vmatpush1.bf16.msra.mxu0 0
  %1264 = vmatprep.subr.bf16.mxu0 0
  %1265 = vmatpush1.bf16.msra.mxu0 0
  %1266 = vmatprep.subr.bf16.mxu0 0
  %1267 = vmatpush1.bf16.msra.mxu0 0
  %1268 = vmatprep.subr.bf16.mxu0 0
  %1269 = vmatpush1.bf16.msra.mxu0 0
  %1270 = vmatprep.subr.bf16.mxu0 0
  %1271 = vmatpush1.bf16.msra.mxu0 %v919
  %1272 = vmatprep.subr.bf16.mxu0 0
  %1273 = vmatpush1.bf16.msra.mxu0 %v918
  %1274 = vmatprep.subr.bf16.mxu0 0
  %1275 = vmatpush2.bf16.msra.mxu0 0
  %1276 = vmatprep.subr.bf16.mxu0 0
  %1277 = vmatpush2.bf16.msra.mxu0 0
  %1278 = vmatprep.subr.bf16.mxu0 0
  %1279 = vmatpush2.bf16.msra.mxu0 0
  %1280 = vmatprep.subr.bf16.mxu0 0
  %1281 = vmatpush2.bf16.msra.mxu0 0
  %1282 = vmatprep.subr.bf16.mxu0 0
  %1283 = vmatpush2.bf16.msra.mxu0 0
  %1284 = vmatprep.subr.bf16.mxu0 0
  %1285 = vmatpush2.bf16.msra.mxu0 0
  %1286 = vmatprep.subr.bf16.mxu0 0
  %1287 = vmatpush2.bf16.msra.mxu0 0
  %1288 = vmatprep.subr.bf16.mxu0 0
  %1289 = vmatpush2.bf16.msra.mxu0 0
  %1290 = vmatprep.mubr.bf16.mxu0 0
  %1291 = vmatmul.mubr.bf16.gmra.mxu0 %v1216
  %v1292 = vpop.f32.mrf.mxu0
  %v1293 = vadd.f32 %v908, %v1292
  %v1294 = vpop.f32.mrf.mxu0
  %v1295 = vpop.f32.mrf.mxu0
  %v1296 = vpop.f32.mrf.mxu0
  %1297 = vdwg.mxu0
  %1298 = vmatprep.subr.bf16.mxu0 0
  %1299 = vmatpush1.bf16.msra.mxu0 0
  %1300 = vmatprep.subr.bf16.mxu0 0
  %1301 = vmatpush1.bf16.msra.mxu0 0
  %1302 = vmatprep.subr.bf16.mxu0 0
  %1303 = vmatpush1.bf16.msra.mxu0 0
  %1304 = vmatprep.subr.bf16.mxu0 0
  %1305 = vmatpush1.bf16.msra.mxu0 0
  %1306 = vmatprep.subr.bf16.mxu0 0
  %1307 = vmatpush1.bf16.msra.mxu0 0
  %1308 = vmatprep.subr.bf16.mxu0 0
  %1309 = vmatpush1.bf16.msra.mxu0 0
  %1310 = vmatprep.subr.bf16.mxu0 0
  %1311 = vmatpush1.bf16.msra.mxu0 %v977
  %1312 = vmatprep.subr.bf16.mxu0 0
  %1313 = vmatpush1.bf16.msra.mxu0 %v976
  %1314 = vmatprep.subr.bf16.mxu0 0
  %1315 = vmatpush2.bf16.msra.mxu0 0
  %1316 = vmatprep.subr.bf16.mxu0 0
  %1317 = vmatpush2.bf16.msra.mxu0 0
  %1318 = vmatprep.subr.bf16.mxu0 0
  %1319 = vmatpush2.bf16.msra.mxu0 0
  %1320 = vmatprep.subr.bf16.mxu0 0
  %1321 = vmatpush2.bf16.msra.mxu0 0
  %1322 = vmatprep.subr.bf16.mxu0 0
  %1323 = vmatpush2.bf16.msra.mxu0 0
  %1324 = vmatprep.subr.bf16.mxu0 0
  %1325 = vmatpush2.bf16.msra.mxu0 0
  %1326 = vmatprep.subr.bf16.mxu0 0
  %1327 = vmatpush2.bf16.msra.mxu0 0
  %1328 = vmatprep.subr.bf16.mxu0 0
  %1329 = vmatpush2.bf16.msra.mxu0 0
  %1330 = vmatprep.mubr.bf16.mxu0 0
  %1331 = vmatmul.mubr.bf16.gmra.mxu0 %v1216
  %v1332 = vpop.f32.mrf.mxu0
  %v1333 = vadd.f32 %v966, %v1332
  %v1334 = vpop.f32.mrf.mxu0
  %v1335 = vpop.f32.mrf.mxu0
  %v1336 = vpop.f32.mrf.mxu0
  %1337 = vdwg.mxu0
  %s1338 = scalar_lea.vmem [#allocation5], 16
  %v1339 = vld [vmem:[%s1338] sm:$0xff]
  %v1340 = vadd.f32 %v1339, %v1253
  %v1341 = vxor.u32 %v1340, 2147483648
  %v1342 = vmul.f32 %v1341, 1.442695
  %v1343 = vpow.pop %v1342
  %v1344 = vadd.f32 %v1343, 1.0
  %v1345 = vrcp.pop %v1344
  %v1346 = vmul.f32 1.0, %v1345
  %s1347 = scalar_lea.vmem [#allocation6], 16
  %v1348 = vld [vmem:[%s1347] sm:$0xff]
  %v1349 = vadd.f32 %v1348, %v1293
  %v1350 = vxor.u32 %v1349, 2147483648
  %v1351 = vmul.f32 %v1350, 1.442695
  %v1352 = vpow.pop %v1351
  %v1353 = vadd.f32 %v1352, 1.0
  %v1354 = vrcp.pop %v1353
  %v1355 = vmul.f32 1.0, %v1354
  %s1356 = scalar_lea.vmem [#allocation7], 16
  %v1357 = vld [vmem:[%s1356] sm:$0xff]
  %v1358 = vmul.f32 %v1346, %v1333
  %v1359 = vadd.f32 %v1357, %v1358
  %v1360 = vtanh.pop %v1359
  %v1361 = vsub.f32 1.0, %v1355
  %v1362 = vmul.f32 %v1361, %v1360
  %v1363 = vmul.f32 %v1355, %v1203
  %v1364 = vadd.f32 %v1362, %v1363
  %s1365 = scalar_lea.vmem %s1, 16
  %v1366 = vld [vmem:[%s1365] sm:$0xff]
  %vm1367 = vcmp.gt.f32.partialorder %v1366, 0.5
  %v1368 = vsel %vm1367, 1, 0
  %1369 = vset.pattern.permute.xlu0 0
  %1370 = vperm.xlu0 %1369, %v1368
  %v1371 = vpop.permute.xlu0 %1370
  %vm1372 = vcmp.eq.s32.totalorder %v1371, 1
  %v1373 = vsel %vm1372, -1e+12, %v1364
  %v1374 = vmax.f32 %v1213, %v1373
  %v1375 = vpack.c.bf16 %v1364, %v1364
  %v1377 = vsel %vm432, %v1375, 0
  %1379 = vmatprep.subr.bf16.mxu0 0
  %1380 = vmatpush1.bf16.msra.mxu0 0
  %1381 = vmatprep.subr.bf16.mxu0 0
  %1382 = vmatpush1.bf16.msra.mxu0 0
  %1383 = vmatprep.subr.bf16.mxu0 0
  %1384 = vmatpush1.bf16.msra.mxu0 0
  %1385 = vmatprep.subr.bf16.mxu0 0
  %1386 = vmatpush1.bf16.msra.mxu0 0
  %1387 = vmatprep.subr.bf16.mxu0 0
  %1388 = vmatpush1.bf16.msra.mxu0 0
  %1389 = vmatprep.subr.bf16.mxu0 0
  %1390 = vmatpush1.bf16.msra.mxu0 0
  %1391 = vmatprep.subr.bf16.mxu0 0
  %1392 = vmatpush1.bf16.msra.mxu0 %v858
  %1393 = vmatprep.subr.bf16.mxu0 0
  %1394 = vmatpush1.bf16.msra.mxu0 %v857
  %1395 = vmatprep.subr.bf16.mxu0 0
  %1396 = vmatpush2.bf16.msra.mxu0 0
  %1397 = vmatprep.subr.bf16.mxu0 0
  %1398 = vmatpush2.bf16.msra.mxu0 0
  %1399 = vmatprep.subr.bf16.mxu0 0
  %1400 = vmatpush2.bf16.msra.mxu0 0
  %1401 = vmatprep.subr.bf16.mxu0 0
  %1402 = vmatpush2.bf16.msra.mxu0 0
  %1403 = vmatprep.subr.bf16.mxu0 0
  %1404 = vmatpush2.bf16.msra.mxu0 0
  %1405 = vmatprep.subr.bf16.mxu0 0
  %1406 = vmatpush2.bf16.msra.mxu0 0
  %1407 = vmatprep.subr.bf16.mxu0 0
  %1408 = vmatpush2.bf16.msra.mxu0 0
  %1409 = vmatprep.subr.bf16.mxu0 0
  %1410 = vmatpush2.bf16.msra.mxu0 0
  %1411 = vmatprep.mubr.bf16.mxu0 0
  %1412 = vmatmul.mubr.bf16.gmra.mxu0 %v1377
  %v1413 = vpop.f32.mrf.mxu0
  %v1414 = vadd.f32 %v847, %v1413
  %v1415 = vpop.f32.mrf.mxu0
  %v1416 = vpop.f32.mrf.mxu0
  %v1417 = vpop.f32.mrf.mxu0
  %1418 = vdwg.mxu0
  %1419 = vmatprep.subr.bf16.mxu0 0
  %1420 = vmatpush1.bf16.msra.mxu0 0
  %1421 = vmatprep.subr.bf16.mxu0 0
  %1422 = vmatpush1.bf16.msra.mxu0 0
  %1423 = vmatprep.subr.bf16.mxu0 0
  %1424 = vmatpush1.bf16.msra.mxu0 0
  %1425 = vmatprep.subr.bf16.mxu0 0
  %1426 = vmatpush1.bf16.msra.mxu0 0
  %1427 = vmatprep.subr.bf16.mxu0 0
  %1428 = vmatpush1.bf16.msra.mxu0 0
  %1429 = vmatprep.subr.bf16.mxu0 0
  %1430 = vmatpush1.bf16.msra.mxu0 0
  %1431 = vmatprep.subr.bf16.mxu0 0
  %1432 = vmatpush1.bf16.msra.mxu0 %v919
  %1433 = vmatprep.subr.bf16.mxu0 0
  %1434 = vmatpush1.bf16.msra.mxu0 %v918
  %1435 = vmatprep.subr.bf16.mxu0 0
  %1436 = vmatpush2.bf16.msra.mxu0 0
  %1437 = vmatprep.subr.bf16.mxu0 0
  %1438 = vmatpush2.bf16.msra.mxu0 0
  %1439 = vmatprep.subr.bf16.mxu0 0
  %1440 = vmatpush2.bf16.msra.mxu0 0
  %1441 = vmatprep.subr.bf16.mxu0 0
  %1442 = vmatpush2.bf16.msra.mxu0 0
  %1443 = vmatprep.subr.bf16.mxu0 0
  %1444 = vmatpush2.bf16.msra.mxu0 0
  %1445 = vmatprep.subr.bf16.mxu0 0
  %1446 = vmatpush2.bf16.msra.mxu0 0
  %1447 = vmatprep.subr.bf16.mxu0 0
  %1448 = vmatpush2.bf16.msra.mxu0 0
  %1449 = vmatprep.subr.bf16.mxu0 0
  %1450 = vmatpush2.bf16.msra.mxu0 0
  %1451 = vmatprep.mubr.bf16.mxu0 0
  %1452 = vmatmul.mubr.bf16.gmra.mxu0 %v1377
  %v1453 = vpop.f32.mrf.mxu0
  %v1454 = vadd.f32 %v908, %v1453
  %v1455 = vpop.f32.mrf.mxu0
  %v1456 = vpop.f32.mrf.mxu0
  %v1457 = vpop.f32.mrf.mxu0
  %1458 = vdwg.mxu0
  %1459 = vmatprep.subr.bf16.mxu0 0
  %1460 = vmatpush1.bf16.msra.mxu0 0
  %1461 = vmatprep.subr.bf16.mxu0 0
  %1462 = vmatpush1.bf16.msra.mxu0 0
  %1463 = vmatprep.subr.bf16.mxu0 0
  %1464 = vmatpush1.bf16.msra.mxu0 0
  %1465 = vmatprep.subr.bf16.mxu0 0
  %1466 = vmatpush1.bf16.msra.mxu0 0
  %1467 = vmatprep.subr.bf16.mxu0 0
  %1468 = vmatpush1.bf16.msra.mxu0 0
  %1469 = vmatprep.subr.bf16.mxu0 0
  %1470 = vmatpush1.bf16.msra.mxu0 0
  %1471 = vmatprep.subr.bf16.mxu0 0
  %1472 = vmatpush1.bf16.msra.mxu0 %v977
  %1473 = vmatprep.subr.bf16.mxu0 0
  %1474 = vmatpush1.bf16.msra.mxu0 %v976
  %1475 = vmatprep.subr.bf16.mxu0 0
  %1476 = vmatpush2.bf16.msra.mxu0 0
  %1477 = vmatprep.subr.bf16.mxu0 0
  %1478 = vmatpush2.bf16.msra.mxu0 0
  %1479 = vmatprep.subr.bf16.mxu0 0
  %1480 = vmatpush2.bf16.msra.mxu0 0
  %1481 = vmatprep.subr.bf16.mxu0 0
  %1482 = vmatpush2.bf16.msra.mxu0 0
  %1483 = vmatprep.subr.bf16.mxu0 0
  %1484 = vmatpush2.bf16.msra.mxu0 0
  %1485 = vmatprep.subr.bf16.mxu0 0
  %1486 = vmatpush2.bf16.msra.mxu0 0
  %1487 = vmatprep.subr.bf16.mxu0 0
  %1488 = vmatpush2.bf16.msra.mxu0 0
  %1489 = vmatprep.subr.bf16.mxu0 0
  %1490 = vmatpush2.bf16.msra.mxu0 0
  %1491 = vmatprep.mubr.bf16.mxu0 0
  %1492 = vmatmul.mubr.bf16.gmra.mxu0 %v1377
  %v1493 = vpop.f32.mrf.mxu0
  %v1494 = vadd.f32 %v966, %v1493
  %v1495 = vpop.f32.mrf.mxu0
  %v1496 = vpop.f32.mrf.mxu0
  %v1497 = vpop.f32.mrf.mxu0
  %1498 = vdwg.mxu0
  %s1499 = scalar_lea.vmem [#allocation5], 24
  %v1500 = vld [vmem:[%s1499] sm:$0xff]
  %v1501 = vadd.f32 %v1500, %v1414
  %v1502 = vxor.u32 %v1501, 2147483648
  %v1503 = vmul.f32 %v1502, 1.442695
  %v1504 = vpow.pop %v1503
  %v1505 = vadd.f32 %v1504, 1.0
  %v1506 = vrcp.pop %v1505
  %v1507 = vmul.f32 1.0, %v1506
  %s1508 = scalar_lea.vmem [#allocation6], 24
  %v1509 = vld [vmem:[%s1508] sm:$0xff]
  %v1510 = vadd.f32 %v1509, %v1454
  %v1511 = vxor.u32 %v1510, 2147483648
  %v1512 = vmul.f32 %v1511, 1.442695
  %v1513 = vpow.pop %v1512
  %v1514 = vadd.f32 %v1513, 1.0
  %v1515 = vrcp.pop %v1514
  %v1516 = vmul.f32 1.0, %v1515
  %s1517 = scalar_lea.vmem [#allocation7], 24
  %v1518 = vld [vmem:[%s1517] sm:$0xff]
  %v1519 = vmul.f32 %v1507, %v1494
  %v1520 = vadd.f32 %v1518, %v1519
  %v1521 = vtanh.pop %v1520
  %v1522 = vsub.f32 1.0, %v1516
  %v1523 = vmul.f32 %v1522, %v1521
  %v1524 = vmul.f32 %v1516, %v1364
  %v1525 = vadd.f32 %v1523, %v1524
  %s1526 = scalar_lea.vmem %s1, 24
  %v1527 = vld [vmem:[%s1526] sm:$0xff]
  %vm1528 = vcmp.gt.f32.partialorder %v1527, 0.5
  %v1529 = vsel %vm1528, 1, 0
  %1530 = vset.pattern.permute.xlu0 0
  %1531 = vperm.xlu0 %1530, %v1529
  %v1532 = vpop.permute.xlu0 %1531
  %vm1533 = vcmp.eq.s32.totalorder %v1532, 1
  %v1534 = vsel %vm1533, -1e+12, %v1525
  %v1535 = vmax.f32 %v1374, %v1534
  %v1536 = vpack.c.bf16 %v1525, %v1525
  %v1538 = vsel %vm432, %v1536, 0
  %1540 = vmatprep.subr.bf16.mxu0 0
  %1541 = vmatpush1.bf16.msra.mxu0 0
  %1542 = vmatprep.subr.bf16.mxu0 0
  %1543 = vmatpush1.bf16.msra.mxu0 0
  %1544 = vmatprep.subr.bf16.mxu0 0
  %1545 = vmatpush1.bf16.msra.mxu0 0
  %1546 = vmatprep.subr.bf16.mxu0 0
  %1547 = vmatpush1.bf16.msra.mxu0 0
  %1548 = vmatprep.subr.bf16.mxu0 0
  %1549 = vmatpush1.bf16.msra.mxu0 0
  %1550 = vmatprep.subr.bf16.mxu0 0
  %1551 = vmatpush1.bf16.msra.mxu0 0
  %1552 = vmatprep.subr.bf16.mxu0 0
  %1553 = vmatpush1.bf16.msra.mxu0 %v858
  %1554 = vmatprep.subr.bf16.mxu0 0
  %1555 = vmatpush1.bf16.msra.mxu0 %v857
  %1556 = vmatprep.subr.bf16.mxu0 0
  %1557 = vmatpush2.bf16.msra.mxu0 0
  %1558 = vmatprep.subr.bf16.mxu0 0
  %1559 = vmatpush2.bf16.msra.mxu0 0
  %1560 = vmatprep.subr.bf16.mxu0 0
  %1561 = vmatpush2.bf16.msra.mxu0 0
  %1562 = vmatprep.subr.bf16.mxu0 0
  %1563 = vmatpush2.bf16.msra.mxu0 0
  %1564 = vmatprep.subr.bf16.mxu0 0
  %1565 = vmatpush2.bf16.msra.mxu0 0
  %1566 = vmatprep.subr.bf16.mxu0 0
  %1567 = vmatpush2.bf16.msra.mxu0 0
  %1568 = vmatprep.subr.bf16.mxu0 0
  %1569 = vmatpush2.bf16.msra.mxu0 0
  %1570 = vmatprep.subr.bf16.mxu0 0
  %1571 = vmatpush2.bf16.msra.mxu0 0
  %1572 = vmatprep.mubr.bf16.mxu0 0
  %1573 = vmatmul.mubr.bf16.gmra.mxu0 %v1538
  %v1574 = vpop.f32.mrf.mxu0
  %v1575 = vadd.f32 %v847, %v1574
  %v1576 = vpop.f32.mrf.mxu0
  %v1577 = vpop.f32.mrf.mxu0
  %v1578 = vpop.f32.mrf.mxu0
  %1579 = vdwg.mxu0
  %1580 = vmatprep.subr.bf16.mxu0 0
  %1581 = vmatpush1.bf16.msra.mxu0 0
  %1582 = vmatprep.subr.bf16.mxu0 0
  %1583 = vmatpush1.bf16.msra.mxu0 0
  %1584 = vmatprep.subr.bf16.mxu0 0
  %1585 = vmatpush1.bf16.msra.mxu0 0
  %1586 = vmatprep.subr.bf16.mxu0 0
  %1587 = vmatpush1.bf16.msra.mxu0 0
  %1588 = vmatprep.subr.bf16.mxu0 0
  %1589 = vmatpush1.bf16.msra.mxu0 0
  %1590 = vmatprep.subr.bf16.mxu0 0
  %1591 = vmatpush1.bf16.msra.mxu0 0
  %1592 = vmatprep.subr.bf16.mxu0 0
  %1593 = vmatpush1.bf16.msra.mxu0 %v919
  %1594 = vmatprep.subr.bf16.mxu0 0
  %1595 = vmatpush1.bf16.msra.mxu0 %v918
  %1596 = vmatprep.subr.bf16.mxu0 0
  %1597 = vmatpush2.bf16.msra.mxu0 0
  %1598 = vmatprep.subr.bf16.mxu0 0
  %1599 = vmatpush2.bf16.msra.mxu0 0
  %1600 = vmatprep.subr.bf16.mxu0 0
  %1601 = vmatpush2.bf16.msra.mxu0 0
  %1602 = vmatprep.subr.bf16.mxu0 0
  %1603 = vmatpush2.bf16.msra.mxu0 0
  %1604 = vmatprep.subr.bf16.mxu0 0
  %1605 = vmatpush2.bf16.msra.mxu0 0
  %1606 = vmatprep.subr.bf16.mxu0 0
  %1607 = vmatpush2.bf16.msra.mxu0 0
  %1608 = vmatprep.subr.bf16.mxu0 0
  %1609 = vmatpush2.bf16.msra.mxu0 0
  %1610 = vmatprep.subr.bf16.mxu0 0
  %1611 = vmatpush2.bf16.msra.mxu0 0
  %1612 = vmatprep.mubr.bf16.mxu0 0
  %1613 = vmatmul.mubr.bf16.gmra.mxu0 %v1538
  %v1614 = vpop.f32.mrf.mxu0
  %v1615 = vadd.f32 %v908, %v1614
  %v1616 = vpop.f32.mrf.mxu0
  %v1617 = vpop.f32.mrf.mxu0
  %v1618 = vpop.f32.mrf.mxu0
  %1619 = vdwg.mxu0
  %1620 = vmatprep.subr.bf16.mxu0 0
  %1621 = vmatpush1.bf16.msra.mxu0 0
  %1622 = vmatprep.subr.bf16.mxu0 0
  %1623 = vmatpush1.bf16.msra.mxu0 0
  %1624 = vmatprep.subr.bf16.mxu0 0
  %1625 = vmatpush1.bf16.msra.mxu0 0
  %1626 = vmatprep.subr.bf16.mxu0 0
  %1627 = vmatpush1.bf16.msra.mxu0 0
  %1628 = vmatprep.subr.bf16.mxu0 0
  %1629 = vmatpush1.bf16.msra.mxu0 0
  %1630 = vmatprep.subr.bf16.mxu0 0
  %1631 = vmatpush1.bf16.msra.mxu0 0
  %1632 = vmatprep.subr.bf16.mxu0 0
  %1633 = vmatpush1.bf16.msra.mxu0 %v977
  %1634 = vmatprep.subr.bf16.mxu0 0
  %1635 = vmatpush1.bf16.msra.mxu0 %v976
  %1636 = vmatprep.subr.bf16.mxu0 0
  %1637 = vmatpush2.bf16.msra.mxu0 0
  %1638 = vmatprep.subr.bf16.mxu0 0
  %1639 = vmatpush2.bf16.msra.mxu0 0
  %1640 = vmatprep.subr.bf16.mxu0 0
  %1641 = vmatpush2.bf16.msra.mxu0 0
  %1642 = vmatprep.subr.bf16.mxu0 0
  %1643 = vmatpush2.bf16.msra.mxu0 0
  %1644 = vmatprep.subr.bf16.mxu0 0
  %1645 = vmatpush2.bf16.msra.mxu0 0
  %1646 = vmatprep.subr.bf16.mxu0 0
  %1647 = vmatpush2.bf16.msra.mxu0 0
  %1648 = vmatprep.subr.bf16.mxu0 0
  %1649 = vmatpush2.bf16.msra.mxu0 0
  %1650 = vmatprep.subr.bf16.mxu0 0
  %1651 = vmatpush2.bf16.msra.mxu0 0
  %1652 = vmatprep.mubr.bf16.mxu0 0
  %1653 = vmatmul.mubr.bf16.gmra.mxu0 %v1538
  %v1654 = vpop.f32.mrf.mxu0
  %v1655 = vadd.f32 %v966, %v1654
  %v1656 = vpop.f32.mrf.mxu0
  %v1657 = vpop.f32.mrf.mxu0
  %v1658 = vpop.f32.mrf.mxu0
  %1659 = vdwg.mxu0
  %s1660 = scalar_lea.vmem [#allocation5], 32
  %v1661 = vld [vmem:[%s1660] sm:$0xff]
  %v1662 = vadd.f32 %v1661, %v1575
  %v1663 = vxor.u32 %v1662, 2147483648
  %v1664 = vmul.f32 %v1663, 1.442695
  %v1665 = vpow.pop %v1664
  %v1666 = vadd.f32 %v1665, 1.0
  %v1667 = vrcp.pop %v1666
  %v1668 = vmul.f32 1.0, %v1667
  %s1669 = scalar_lea.vmem [#allocation6], 32
  %v1670 = vld [vmem:[%s1669] sm:$0xff]
  %v1671 = vadd.f32 %v1670, %v1615
  %v1672 = vxor.u32 %v1671, 2147483648
  %v1673 = vmul.f32 %v1672, 1.442695
  %v1674 = vpow.pop %v1673
  %v1675 = vadd.f32 %v1674, 1.0
  %v1676 = vrcp.pop %v1675
  %v1677 = vmul.f32 1.0, %v1676
  %s1678 = scalar_lea.vmem [#allocation7], 32
  %v1679 = vld [vmem:[%s1678] sm:$0xff]
  %v1680 = vmul.f32 %v1668, %v1655
  %v1681 = vadd.f32 %v1679, %v1680
  %v1682 = vtanh.pop %v1681
  %v1683 = vsub.f32 1.0, %v1677
  %v1684 = vmul.f32 %v1683, %v1682
  %v1685 = vmul.f32 %v1677, %v1525
  %v1686 = vadd.f32 %v1684, %v1685
  %s1687 = scalar_lea.vmem %s1, 32
  %v1688 = vld [vmem:[%s1687] sm:$0xff]
  %vm1689 = vcmp.gt.f32.partialorder %v1688, 0.5
  %v1690 = vsel %vm1689, 1, 0
  %1691 = vset.pattern.permute.xlu0 0
  %1692 = vperm.xlu0 %1691, %v1690
  %v1693 = vpop.permute.xlu0 %1692
  %vm1694 = vcmp.eq.s32.totalorder %v1693, 1
  %v1695 = vsel %vm1694, -1e+12, %v1686
  %v1696 = vmax.f32 %v1535, %v1695
  %v1697 = vpack.c.bf16 %v1686, %v1686
  %v1699 = vsel %vm432, %v1697, 0
  %1701 = vmatprep.subr.bf16.mxu0 0
  %1702 = vmatpush1.bf16.msra.mxu0 0
  %1703 = vmatprep.subr.bf16.mxu0 0
  %1704 = vmatpush1.bf16.msra.mxu0 0
  %1705 = vmatprep.subr.bf16.mxu0 0
  %1706 = vmatpush1.bf16.msra.mxu0 0
  %1707 = vmatprep.subr.bf16.mxu0 0
  %1708 = vmatpush1.bf16.msra.mxu0 0
  %1709 = vmatprep.subr.bf16.mxu0 0
  %1710 = vmatpush1.bf16.msra.mxu0 0
  %1711 = vmatprep.subr.bf16.mxu0 0
  %1712 = vmatpush1.bf16.msra.mxu0 0
  %1713 = vmatprep.subr.bf16.mxu0 0
  %1714 = vmatpush1.bf16.msra.mxu0 %v858
  %1715 = vmatprep.subr.bf16.mxu0 0
  %1716 = vmatpush1.bf16.msra.mxu0 %v857
  %1717 = vmatprep.subr.bf16.mxu0 0
  %1718 = vmatpush2.bf16.msra.mxu0 0
  %1719 = vmatprep.subr.bf16.mxu0 0
  %1720 = vmatpush2.bf16.msra.mxu0 0
  %1721 = vmatprep.subr.bf16.mxu0 0
  %1722 = vmatpush2.bf16.msra.mxu0 0
  %1723 = vmatprep.subr.bf16.mxu0 0
  %1724 = vmatpush2.bf16.msra.mxu0 0
  %1725 = vmatprep.subr.bf16.mxu0 0
  %1726 = vmatpush2.bf16.msra.mxu0 0
  %1727 = vmatprep.subr.bf16.mxu0 0
  %1728 = vmatpush2.bf16.msra.mxu0 0
  %1729 = vmatprep.subr.bf16.mxu0 0
  %1730 = vmatpush2.bf16.msra.mxu0 0
  %1731 = vmatprep.subr.bf16.mxu0 0
  %1732 = vmatpush2.bf16.msra.mxu0 0
  %1733 = vmatprep.mubr.bf16.mxu0 0
  %1734 = vmatmul.mubr.bf16.gmra.mxu0 %v1699
  %v1735 = vpop.f32.mrf.mxu0
  %v1736 = vadd.f32 %v847, %v1735
  %v1737 = vpop.f32.mrf.mxu0
  %v1738 = vpop.f32.mrf.mxu0
  %v1739 = vpop.f32.mrf.mxu0
  %1740 = vdwg.mxu0
  %1741 = vmatprep.subr.bf16.mxu0 0
  %1742 = vmatpush1.bf16.msra.mxu0 0
  %1743 = vmatprep.subr.bf16.mxu0 0
  %1744 = vmatpush1.bf16.msra.mxu0 0
  %1745 = vmatprep.subr.bf16.mxu0 0
  %1746 = vmatpush1.bf16.msra.mxu0 0
  %1747 = vmatprep.subr.bf16.mxu0 0
  %1748 = vmatpush1.bf16.msra.mxu0 0
  %1749 = vmatprep.subr.bf16.mxu0 0
  %1750 = vmatpush1.bf16.msra.mxu0 0
  %1751 = vmatprep.subr.bf16.mxu0 0
  %1752 = vmatpush1.bf16.msra.mxu0 0
  %1753 = vmatprep.subr.bf16.mxu0 0
  %1754 = vmatpush1.bf16.msra.mxu0 %v919
  %1755 = vmatprep.subr.bf16.mxu0 0
  %1756 = vmatpush1.bf16.msra.mxu0 %v918
  %1757 = vmatprep.subr.bf16.mxu0 0
  %1758 = vmatpush2.bf16.msra.mxu0 0
  %1759 = vmatprep.subr.bf16.mxu0 0
  %1760 = vmatpush2.bf16.msra.mxu0 0
  %1761 = vmatprep.subr.bf16.mxu0 0
  %1762 = vmatpush2.bf16.msra.mxu0 0
  %1763 = vmatprep.subr.bf16.mxu0 0
  %1764 = vmatpush2.bf16.msra.mxu0 0
  %1765 = vmatprep.subr.bf16.mxu0 0
  %1766 = vmatpush2.bf16.msra.mxu0 0
  %1767 = vmatprep.subr.bf16.mxu0 0
  %1768 = vmatpush2.bf16.msra.mxu0 0
  %1769 = vmatprep.subr.bf16.mxu0 0
  %1770 = vmatpush2.bf16.msra.mxu0 0
  %1771 = vmatprep.subr.bf16.mxu0 0
  %1772 = vmatpush2.bf16.msra.mxu0 0
  %1773 = vmatprep.mubr.bf16.mxu0 0
  %1774 = vmatmul.mubr.bf16.gmra.mxu0 %v1699
  %v1775 = vpop.f32.mrf.mxu0
  %v1776 = vadd.f32 %v908, %v1775
  %v1777 = vpop.f32.mrf.mxu0
  %v1778 = vpop.f32.mrf.mxu0
  %v1779 = vpop.f32.mrf.mxu0
  %1780 = vdwg.mxu0
  %1781 = vmatprep.subr.bf16.mxu0 0
  %1782 = vmatpush1.bf16.msra.mxu0 0
  %1783 = vmatprep.subr.bf16.mxu0 0
  %1784 = vmatpush1.bf16.msra.mxu0 0
  %1785 = vmatprep.subr.bf16.mxu0 0
  %1786 = vmatpush1.bf16.msra.mxu0 0
  %1787 = vmatprep.subr.bf16.mxu0 0
  %1788 = vmatpush1.bf16.msra.mxu0 0
  %1789 = vmatprep.subr.bf16.mxu0 0
  %1790 = vmatpush1.bf16.msra.mxu0 0
  %1791 = vmatprep.subr.bf16.mxu0 0
  %1792 = vmatpush1.bf16.msra.mxu0 0
  %1793 = vmatprep.subr.bf16.mxu0 0
  %1794 = vmatpush1.bf16.msra.mxu0 %v977
  %1795 = vmatprep.subr.bf16.mxu0 0
  %1796 = vmatpush1.bf16.msra.mxu0 %v976
  %1797 = vmatprep.subr.bf16.mxu0 0
  %1798 = vmatpush2.bf16.msra.mxu0 0
  %1799 = vmatprep.subr.bf16.mxu0 0
  %1800 = vmatpush2.bf16.msra.mxu0 0
  %1801 = vmatprep.subr.bf16.mxu0 0
  %1802 = vmatpush2.bf16.msra.mxu0 0
  %1803 = vmatprep.subr.bf16.mxu0 0
  %1804 = vmatpush2.bf16.msra.mxu0 0
  %1805 = vmatprep.subr.bf16.mxu0 0
  %1806 = vmatpush2.bf16.msra.mxu0 0
  %1807 = vmatprep.subr.bf16.mxu0 0
  %1808 = vmatpush2.bf16.msra.mxu0 0
  %1809 = vmatprep.subr.bf16.mxu0 0
  %1810 = vmatpush2.bf16.msra.mxu0 0
  %1811 = vmatprep.subr.bf16.mxu0 0
  %1812 = vmatpush2.bf16.msra.mxu0 0
  %1813 = vmatprep.mubr.bf16.mxu0 0
  %1814 = vmatmul.mubr.bf16.gmra.mxu0 %v1699
  %v1815 = vpop.f32.mrf.mxu0
  %v1816 = vadd.f32 %v966, %v1815
  %v1817 = vpop.f32.mrf.mxu0
  %v1818 = vpop.f32.mrf.mxu0
  %v1819 = vpop.f32.mrf.mxu0
  %1820 = vdwg.mxu0
  %s1821 = scalar_lea.vmem [#allocation5], 40
  %v1822 = vld [vmem:[%s1821] sm:$0xff]
  %v1823 = vadd.f32 %v1822, %v1736
  %v1824 = vxor.u32 %v1823, 2147483648
  %v1825 = vmul.f32 %v1824, 1.442695
  %v1826 = vpow.pop %v1825
  %v1827 = vadd.f32 %v1826, 1.0
  %v1828 = vrcp.pop %v1827
  %v1829 = vmul.f32 1.0, %v1828
  %s1830 = scalar_lea.vmem [#allocation6], 40
  %v1831 = vld [vmem:[%s1830] sm:$0xff]
  %v1832 = vadd.f32 %v1831, %v1776
  %v1833 = vxor.u32 %v1832, 2147483648
  %v1834 = vmul.f32 %v1833, 1.442695
  %v1835 = vpow.pop %v1834
  %v1836 = vadd.f32 %v1835, 1.0
  %v1837 = vrcp.pop %v1836
  %v1838 = vmul.f32 1.0, %v1837
  %s1839 = scalar_lea.vmem [#allocation7], 40
  %v1840 = vld [vmem:[%s1839] sm:$0xff]
  %v1841 = vmul.f32 %v1829, %v1816
  %v1842 = vadd.f32 %v1840, %v1841
  %v1843 = vtanh.pop %v1842
  %v1844 = vsub.f32 1.0, %v1838
  %v1845 = vmul.f32 %v1844, %v1843
  %v1846 = vmul.f32 %v1838, %v1686
  %v1847 = vadd.f32 %v1845, %v1846
  %s1848 = scalar_lea.vmem %s1, 40
  %v1849 = vld [vmem:[%s1848] sm:$0xff]
  %vm1850 = vcmp.gt.f32.partialorder %v1849, 0.5
  %v1851 = vsel %vm1850, 1, 0
  %1852 = vset.pattern.permute.xlu0 0
  %1853 = vperm.xlu0 %1852, %v1851
  %v1854 = vpop.permute.xlu0 %1853
  %vm1855 = vcmp.eq.s32.totalorder %v1854, 1
  %v1856 = vsel %vm1855, -1e+12, %v1847
  %v1857 = vmax.f32 %v1696, %v1856
  %v1858 = vpack.c.bf16 %v1847, %v1847
  %v1860 = vsel %vm432, %v1858, 0
  %1862 = vmatprep.subr.bf16.mxu0 0
  %1863 = vmatpush1.bf16.msra.mxu0 0
  %1864 = vmatprep.subr.bf16.mxu0 0
  %1865 = vmatpush1.bf16.msra.mxu0 0
  %1866 = vmatprep.subr.bf16.mxu0 0
  %1867 = vmatpush1.bf16.msra.mxu0 0
  %1868 = vmatprep.subr.bf16.mxu0 0
  %1869 = vmatpush1.bf16.msra.mxu0 0
  %1870 = vmatprep.subr.bf16.mxu0 0
  %1871 = vmatpush1.bf16.msra.mxu0 0
  %1872 = vmatprep.subr.bf16.mxu0 0
  %1873 = vmatpush1.bf16.msra.mxu0 0
  %1874 = vmatprep.subr.bf16.mxu0 0
  %1875 = vmatpush1.bf16.msra.mxu0 %v858
  %1876 = vmatprep.subr.bf16.mxu0 0
  %1877 = vmatpush1.bf16.msra.mxu0 %v857
  %1878 = vmatprep.subr.bf16.mxu0 0
  %1879 = vmatpush2.bf16.msra.mxu0 0
  %1880 = vmatprep.subr.bf16.mxu0 0
  %1881 = vmatpush2.bf16.msra.mxu0 0
  %1882 = vmatprep.subr.bf16.mxu0 0
  %1883 = vmatpush2.bf16.msra.mxu0 0
  %1884 = vmatprep.subr.bf16.mxu0 0
  %1885 = vmatpush2.bf16.msra.mxu0 0
  %1886 = vmatprep.subr.bf16.mxu0 0
  %1887 = vmatpush2.bf16.msra.mxu0 0
  %1888 = vmatprep.subr.bf16.mxu0 0
  %1889 = vmatpush2.bf16.msra.mxu0 0
  %1890 = vmatprep.subr.bf16.mxu0 0
  %1891 = vmatpush2.bf16.msra.mxu0 0
  %1892 = vmatprep.subr.bf16.mxu0 0
  %1893 = vmatpush2.bf16.msra.mxu0 0
  %1894 = vmatprep.mubr.bf16.mxu0 0
  %1895 = vmatmul.mubr.bf16.gmra.mxu0 %v1860
  %v1896 = vpop.f32.mrf.mxu0
  %v1897 = vadd.f32 %v847, %v1896
  %v1898 = vpop.f32.mrf.mxu0
  %v1899 = vpop.f32.mrf.mxu0
  %v1900 = vpop.f32.mrf.mxu0
  %1901 = vdwg.mxu0
  %1902 = vmatprep.subr.bf16.mxu0 0
  %1903 = vmatpush1.bf16.msra.mxu0 0
  %1904 = vmatprep.subr.bf16.mxu0 0
  %1905 = vmatpush1.bf16.msra.mxu0 0
  %1906 = vmatprep.subr.bf16.mxu0 0
  %1907 = vmatpush1.bf16.msra.mxu0 0
  %1908 = vmatprep.subr.bf16.mxu0 0
  %1909 = vmatpush1.bf16.msra.mxu0 0
  %1910 = vmatprep.subr.bf16.mxu0 0
  %1911 = vmatpush1.bf16.msra.mxu0 0
  %1912 = vmatprep.subr.bf16.mxu0 0
  %1913 = vmatpush1.bf16.msra.mxu0 0
  %1914 = vmatprep.subr.bf16.mxu0 0
  %1915 = vmatpush1.bf16.msra.mxu0 %v919
  %1916 = vmatprep.subr.bf16.mxu0 0
  %1917 = vmatpush1.bf16.msra.mxu0 %v918
  %1918 = vmatprep.subr.bf16.mxu0 0
  %1919 = vmatpush2.bf16.msra.mxu0 0
  %1920 = vmatprep.subr.bf16.mxu0 0
  %1921 = vmatpush2.bf16.msra.mxu0 0
  %1922 = vmatprep.subr.bf16.mxu0 0
  %1923 = vmatpush2.bf16.msra.mxu0 0
  %1924 = vmatprep.subr.bf16.mxu0 0
  %1925 = vmatpush2.bf16.msra.mxu0 0
  %1926 = vmatprep.subr.bf16.mxu0 0
  %1927 = vmatpush2.bf16.msra.mxu0 0
  %1928 = vmatprep.subr.bf16.mxu0 0
  %1929 = vmatpush2.bf16.msra.mxu0 0
  %1930 = vmatprep.subr.bf16.mxu0 0
  %1931 = vmatpush2.bf16.msra.mxu0 0
  %1932 = vmatprep.subr.bf16.mxu0 0
  %1933 = vmatpush2.bf16.msra.mxu0 0
  %1934 = vmatprep.mubr.bf16.mxu0 0
  %1935 = vmatmul.mubr.bf16.gmra.mxu0 %v1860
  %v1936 = vpop.f32.mrf.mxu0
  %v1937 = vadd.f32 %v908, %v1936
  %v1938 = vpop.f32.mrf.mxu0
  %v1939 = vpop.f32.mrf.mxu0
  %v1940 = vpop.f32.mrf.mxu0
  %1941 = vdwg.mxu0
  %1942 = vmatprep.subr.bf16.mxu0 0
  %1943 = vmatpush1.bf16.msra.mxu0 0
  %1944 = vmatprep.subr.bf16.mxu0 0
  %1945 = vmatpush1.bf16.msra.mxu0 0
  %1946 = vmatprep.subr.bf16.mxu0 0
  %1947 = vmatpush1.bf16.msra.mxu0 0
  %1948 = vmatprep.subr.bf16.mxu0 0
  %1949 = vmatpush1.bf16.msra.mxu0 0
  %1950 = vmatprep.subr.bf16.mxu0 0
  %1951 = vmatpush1.bf16.msra.mxu0 0
  %1952 = vmatprep.subr.bf16.mxu0 0
  %1953 = vmatpush1.bf16.msra.mxu0 0
  %1954 = vmatprep.subr.bf16.mxu0 0
  %1955 = vmatpush1.bf16.msra.mxu0 %v977
  %1956 = vmatprep.subr.bf16.mxu0 0
  %1957 = vmatpush1.bf16.msra.mxu0 %v976
  %1958 = vmatprep.subr.bf16.mxu0 0
  %1959 = vmatpush2.bf16.msra.mxu0 0
  %1960 = vmatprep.subr.bf16.mxu0 0
  %1961 = vmatpush2.bf16.msra.mxu0 0
  %1962 = vmatprep.subr.bf16.mxu0 0
  %1963 = vmatpush2.bf16.msra.mxu0 0
  %1964 = vmatprep.subr.bf16.mxu0 0
  %1965 = vmatpush2.bf16.msra.mxu0 0
  %1966 = vmatprep.subr.bf16.mxu0 0
  %1967 = vmatpush2.bf16.msra.mxu0 0
  %1968 = vmatprep.subr.bf16.mxu0 0
  %1969 = vmatpush2.bf16.msra.mxu0 0
  %1970 = vmatprep.subr.bf16.mxu0 0
  %1971 = vmatpush2.bf16.msra.mxu0 0
  %1972 = vmatprep.subr.bf16.mxu0 0
  %1973 = vmatpush2.bf16.msra.mxu0 0
  %1974 = vmatprep.mubr.bf16.mxu0 0
  %1975 = vmatmul.mubr.bf16.gmra.mxu0 %v1860
  %v1976 = vpop.f32.mrf.mxu0
  %v1977 = vadd.f32 %v966, %v1976
  %v1978 = vpop.f32.mrf.mxu0
  %v1979 = vpop.f32.mrf.mxu0
  %v1980 = vpop.f32.mrf.mxu0
  %1981 = vdwg.mxu0
  %s1982 = scalar_lea.vmem [#allocation5], 48
  %v1983 = vld [vmem:[%s1982] sm:$0xff]
  %v1984 = vadd.f32 %v1983, %v1897
  %v1985 = vxor.u32 %v1984, 2147483648
  %v1986 = vmul.f32 %v1985, 1.442695
  %v1987 = vpow.pop %v1986
  %v1988 = vadd.f32 %v1987, 1.0
  %v1989 = vrcp.pop %v1988
  %v1990 = vmul.f32 1.0, %v1989
  %s1991 = scalar_lea.vmem [#allocation6], 48
  %v1992 = vld [vmem:[%s1991] sm:$0xff]
  %v1993 = vadd.f32 %v1992, %v1937
  %v1994 = vxor.u32 %v1993, 2147483648
  %v1995 = vmul.f32 %v1994, 1.442695
  %v1996 = vpow.pop %v1995
  %v1997 = vadd.f32 %v1996, 1.0
  %v1998 = vrcp.pop %v1997
  %v1999 = vmul.f32 1.0, %v1998
  %s2000 = scalar_lea.vmem [#allocation7], 48
  %v2001 = vld [vmem:[%s2000] sm:$0xff]
  %v2002 = vmul.f32 %v1990, %v1977
  %v2003 = vadd.f32 %v2001, %v2002
  %v2004 = vtanh.pop %v2003
  %v2005 = vsub.f32 1.0, %v1999
  %v2006 = vmul.f32 %v2005, %v2004
  %v2007 = vmul.f32 %v1999, %v1847
  %v2008 = vadd.f32 %v2006, %v2007
  %s2009 = scalar_lea.vmem %s1, 48
  %v2010 = vld [vmem:[%s2009] sm:$0xff]
  %vm2011 = vcmp.gt.f32.partialorder %v2010, 0.5
  %v2012 = vsel %vm2011, 1, 0
  %2013 = vset.pattern.permute.xlu0 0
  %2014 = vperm.xlu0 %2013, %v2012
  %v2015 = vpop.permute.xlu0 %2014
  %vm2016 = vcmp.eq.s32.totalorder %v2015, 1
  %v2017 = vsel %vm2016, -1e+12, %v2008
  %v2018 = vmax.f32 %v1857, %v2017
  %v2019 = vpack.c.bf16 %v2008, %v2008
  %v2021 = vsel %vm432, %v2019, 0
  %2023 = vmatprep.subr.bf16.mxu0 0
  %2024 = vmatpush1.bf16.msra.mxu0 0
  %2025 = vmatprep.subr.bf16.mxu0 0
  %2026 = vmatpush1.bf16.msra.mxu0 0
  %2027 = vmatprep.subr.bf16.mxu0 0
  %2028 = vmatpush1.bf16.msra.mxu0 0
  %2029 = vmatprep.subr.bf16.mxu0 0
  %2030 = vmatpush1.bf16.msra.mxu0 0
  %2031 = vmatprep.subr.bf16.mxu0 0
  %2032 = vmatpush1.bf16.msra.mxu0 0
  %2033 = vmatprep.subr.bf16.mxu0 0
  %2034 = vmatpush1.bf16.msra.mxu0 0
  %2035 = vmatprep.subr.bf16.mxu0 0
  %2036 = vmatpush1.bf16.msra.mxu0 %v858
  %2037 = vmatprep.subr.bf16.mxu0 0
  %2038 = vmatpush1.bf16.msra.mxu0 %v857
  %2039 = vmatprep.subr.bf16.mxu0 0
  %2040 = vmatpush2.bf16.msra.mxu0 0
  %2041 = vmatprep.subr.bf16.mxu0 0
  %2042 = vmatpush2.bf16.msra.mxu0 0
  %2043 = vmatprep.subr.bf16.mxu0 0
  %2044 = vmatpush2.bf16.msra.mxu0 0
  %2045 = vmatprep.subr.bf16.mxu0 0
  %2046 = vmatpush2.bf16.msra.mxu0 0
  %2047 = vmatprep.subr.bf16.mxu0 0
  %2048 = vmatpush2.bf16.msra.mxu0 0
  %2049 = vmatprep.subr.bf16.mxu0 0
  %2050 = vmatpush2.bf16.msra.mxu0 0
  %2051 = vmatprep.subr.bf16.mxu0 0
  %2052 = vmatpush2.bf16.msra.mxu0 0
  %2053 = vmatprep.subr.bf16.mxu0 0
  %2054 = vmatpush2.bf16.msra.mxu0 0
  %2055 = vmatprep.mubr.bf16.mxu0 0
  %2056 = vmatmul.mubr.bf16.gmra.mxu0 %v2021
  %v2057 = vpop.f32.mrf.mxu0
  %v2058 = vadd.f32 %v847, %v2057
  %v2059 = vpop.f32.mrf.mxu0
  %v2060 = vpop.f32.mrf.mxu0
  %v2061 = vpop.f32.mrf.mxu0
  %2062 = vdwg.mxu0
  %2063 = vmatprep.subr.bf16.mxu0 0
  %2064 = vmatpush1.bf16.msra.mxu0 0
  %2065 = vmatprep.subr.bf16.mxu0 0
  %2066 = vmatpush1.bf16.msra.mxu0 0
  %2067 = vmatprep.subr.bf16.mxu0 0
  %2068 = vmatpush1.bf16.msra.mxu0 0
  %2069 = vmatprep.subr.bf16.mxu0 0
  %2070 = vmatpush1.bf16.msra.mxu0 0
  %2071 = vmatprep.subr.bf16.mxu0 0
  %2072 = vmatpush1.bf16.msra.mxu0 0
  %2073 = vmatprep.subr.bf16.mxu0 0
  %2074 = vmatpush1.bf16.msra.mxu0 0
  %2075 = vmatprep.subr.bf16.mxu0 0
  %2076 = vmatpush1.bf16.msra.mxu0 %v919
  %2077 = vmatprep.subr.bf16.mxu0 0
  %2078 = vmatpush1.bf16.msra.mxu0 %v918
  %2079 = vmatprep.subr.bf16.mxu0 0
  %2080 = vmatpush2.bf16.msra.mxu0 0
  %2081 = vmatprep.subr.bf16.mxu0 0
  %2082 = vmatpush2.bf16.msra.mxu0 0
  %2083 = vmatprep.subr.bf16.mxu0 0
  %2084 = vmatpush2.bf16.msra.mxu0 0
  %2085 = vmatprep.subr.bf16.mxu0 0
  %2086 = vmatpush2.bf16.msra.mxu0 0
  %2087 = vmatprep.subr.bf16.mxu0 0
  %2088 = vmatpush2.bf16.msra.mxu0 0
  %2089 = vmatprep.subr.bf16.mxu0 0
  %2090 = vmatpush2.bf16.msra.mxu0 0
  %2091 = vmatprep.subr.bf16.mxu0 0
  %2092 = vmatpush2.bf16.msra.mxu0 0
  %2093 = vmatprep.subr.bf16.mxu0 0
  %2094 = vmatpush2.bf16.msra.mxu0 0
  %2095 = vmatprep.mubr.bf16.mxu0 0
  %2096 = vmatmul.mubr.bf16.gmra.mxu0 %v2021
  %v2097 = vpop.f32.mrf.mxu0
  %v2098 = vadd.f32 %v908, %v2097
  %v2099 = vpop.f32.mrf.mxu0
  %v2100 = vpop.f32.mrf.mxu0
  %v2101 = vpop.f32.mrf.mxu0
  %2102 = vdwg.mxu0
  %2103 = vmatprep.subr.bf16.mxu0 0
  %2104 = vmatpush1.bf16.msra.mxu0 0
  %2105 = vmatprep.subr.bf16.mxu0 0
  %2106 = vmatpush1.bf16.msra.mxu0 0
  %2107 = vmatprep.subr.bf16.mxu0 0
  %2108 = vmatpush1.bf16.msra.mxu0 0
  %2109 = vmatprep.subr.bf16.mxu0 0
  %2110 = vmatpush1.bf16.msra.mxu0 0
  %2111 = vmatprep.subr.bf16.mxu0 0
  %2112 = vmatpush1.bf16.msra.mxu0 0
  %2113 = vmatprep.subr.bf16.mxu0 0
  %2114 = vmatpush1.bf16.msra.mxu0 0
  %2115 = vmatprep.subr.bf16.mxu0 0
  %2116 = vmatpush1.bf16.msra.mxu0 %v977
  %2117 = vmatprep.subr.bf16.mxu0 0
  %2118 = vmatpush1.bf16.msra.mxu0 %v976
  %2119 = vmatprep.subr.bf16.mxu0 0
  %2120 = vmatpush2.bf16.msra.mxu0 0
  %2121 = vmatprep.subr.bf16.mxu0 0
  %2122 = vmatpush2.bf16.msra.mxu0 0
  %2123 = vmatprep.subr.bf16.mxu0 0
  %2124 = vmatpush2.bf16.msra.mxu0 0
  %2125 = vmatprep.subr.bf16.mxu0 0
  %2126 = vmatpush2.bf16.msra.mxu0 0
  %2127 = vmatprep.subr.bf16.mxu0 0
  %2128 = vmatpush2.bf16.msra.mxu0 0
  %2129 = vmatprep.subr.bf16.mxu0 0
  %2130 = vmatpush2.bf16.msra.mxu0 0
  %2131 = vmatprep.subr.bf16.mxu0 0
  %2132 = vmatpush2.bf16.msra.mxu0 0
  %2133 = vmatprep.subr.bf16.mxu0 0
  %2134 = vmatpush2.bf16.msra.mxu0 0
  %2135 = vmatprep.mubr.bf16.mxu0 0
  %2136 = vmatmul.mubr.bf16.gmra.mxu0 %v2021
  %v2137 = vpop.f32.mrf.mxu0
  %v2138 = vadd.f32 %v966, %v2137
  %v2139 = vpop.f32.mrf.mxu0
  %v2140 = vpop.f32.mrf.mxu0
  %v2141 = vpop.f32.mrf.mxu0
  %2142 = vdwg.mxu0
  %s2143 = scalar_lea.vmem [#allocation5], 56
  %v2144 = vld [vmem:[%s2143] sm:$0xff]
  %v2145 = vadd.f32 %v2144, %v2058
  %v2146 = vxor.u32 %v2145, 2147483648
  %v2147 = vmul.f32 %v2146, 1.442695
  %v2148 = vpow.pop %v2147
  %v2149 = vadd.f32 %v2148, 1.0
  %v2150 = vrcp.pop %v2149
  %v2151 = vmul.f32 1.0, %v2150
  %s2152 = scalar_lea.vmem [#allocation6], 56
  %v2153 = vld [vmem:[%s2152] sm:$0xff]
  %v2154 = vadd.f32 %v2153, %v2098
  %v2155 = vxor.u32 %v2154, 2147483648
  %v2156 = vmul.f32 %v2155, 1.442695
  %v2157 = vpow.pop %v2156
  %v2158 = vadd.f32 %v2157, 1.0
  %v2159 = vrcp.pop %v2158
  %v2160 = vmul.f32 1.0, %v2159
  %s2161 = scalar_lea.vmem [#allocation7], 56
  %v2162 = vld [vmem:[%s2161] sm:$0xff]
  %v2163 = vmul.f32 %v2151, %v2138
  %v2164 = vadd.f32 %v2162, %v2163
  %v2165 = vtanh.pop %v2164
  %v2166 = vsub.f32 1.0, %v2160
  %v2167 = vmul.f32 %v2166, %v2165
  %v2168 = vmul.f32 %v2160, %v2008
  %v2169 = vadd.f32 %v2167, %v2168
  %s2170 = scalar_lea.vmem %s1, 56
  %v2171 = vld [vmem:[%s2170] sm:$0xff]
  %vm2172 = vcmp.gt.f32.partialorder %v2171, 0.5
  %v2173 = vsel %vm2172, 1, 0
  %2174 = vset.pattern.permute.xlu0 0
  %2175 = vperm.xlu0 %2174, %v2173
  %v2176 = vpop.permute.xlu0 %2175
  %vm2177 = vcmp.eq.s32.totalorder %v2176, 1
  %v2178 = vsel %vm2177, -1e+12, %v2169
  %v2179 = vmax.f32 %v2018, %v2178
  %v2180 = vpack.c.bf16 %v2169, %v2169
  %v2182 = vsel %vm432, %v2180, 0
  %2184 = vmatprep.subr.bf16.mxu0 0
  %2185 = vmatpush1.bf16.msra.mxu0 0
  %2186 = vmatprep.subr.bf16.mxu0 0
  %2187 = vmatpush1.bf16.msra.mxu0 0
  %2188 = vmatprep.subr.bf16.mxu0 0
  %2189 = vmatpush1.bf16.msra.mxu0 0
  %2190 = vmatprep.subr.bf16.mxu0 0
  %2191 = vmatpush1.bf16.msra.mxu0 0
  %2192 = vmatprep.subr.bf16.mxu0 0
  %2193 = vmatpush1.bf16.msra.mxu0 0
  %2194 = vmatprep.subr.bf16.mxu0 0
  %2195 = vmatpush1.bf16.msra.mxu0 0
  %2196 = vmatprep.subr.bf16.mxu0 0
  %2197 = vmatpush1.bf16.msra.mxu0 %v858
  %2198 = vmatprep.subr.bf16.mxu0 0
  %2199 = vmatpush1.bf16.msra.mxu0 %v857
  %2200 = vmatprep.subr.bf16.mxu0 0
  %2201 = vmatpush2.bf16.msra.mxu0 0
  %2202 = vmatprep.subr.bf16.mxu0 0
  %2203 = vmatpush2.bf16.msra.mxu0 0
  %2204 = vmatprep.subr.bf16.mxu0 0
  %2205 = vmatpush2.bf16.msra.mxu0 0
  %2206 = vmatprep.subr.bf16.mxu0 0
  %2207 = vmatpush2.bf16.msra.mxu0 0
  %2208 = vmatprep.subr.bf16.mxu0 0
  %2209 = vmatpush2.bf16.msra.mxu0 0
  %2210 = vmatprep.subr.bf16.mxu0 0
  %2211 = vmatpush2.bf16.msra.mxu0 0
  %2212 = vmatprep.subr.bf16.mxu0 0
  %2213 = vmatpush2.bf16.msra.mxu0 0
  %2214 = vmatprep.subr.bf16.mxu0 0
  %2215 = vmatpush2.bf16.msra.mxu0 0
  %2216 = vmatprep.mubr.bf16.mxu0 0
  %2217 = vmatmul.mubr.bf16.gmra.mxu0 %v2182
  %v2218 = vpop.f32.mrf.mxu0
  %v2219 = vadd.f32 %v847, %v2218
  %v2220 = vpop.f32.mrf.mxu0
  %v2221 = vpop.f32.mrf.mxu0
  %v2222 = vpop.f32.mrf.mxu0
  %2223 = vdwg.mxu0
  %2224 = vmatprep.subr.bf16.mxu0 0
  %2225 = vmatpush1.bf16.msra.mxu0 0
  %2226 = vmatprep.subr.bf16.mxu0 0
  %2227 = vmatpush1.bf16.msra.mxu0 0
  %2228 = vmatprep.subr.bf16.mxu0 0
  %2229 = vmatpush1.bf16.msra.mxu0 0
  %2230 = vmatprep.subr.bf16.mxu0 0
  %2231 = vmatpush1.bf16.msra.mxu0 0
  %2232 = vmatprep.subr.bf16.mxu0 0
  %2233 = vmatpush1.bf16.msra.mxu0 0
  %2234 = vmatprep.subr.bf16.mxu0 0
  %2235 = vmatpush1.bf16.msra.mxu0 0
  %2236 = vmatprep.subr.bf16.mxu0 0
  %2237 = vmatpush1.bf16.msra.mxu0 %v919
  %2238 = vmatprep.subr.bf16.mxu0 0
  %2239 = vmatpush1.bf16.msra.mxu0 %v918
  %2240 = vmatprep.subr.bf16.mxu0 0
  %2241 = vmatpush2.bf16.msra.mxu0 0
  %2242 = vmatprep.subr.bf16.mxu0 0
  %2243 = vmatpush2.bf16.msra.mxu0 0
  %2244 = vmatprep.subr.bf16.mxu0 0
  %2245 = vmatpush2.bf16.msra.mxu0 0
  %2246 = vmatprep.subr.bf16.mxu0 0
  %2247 = vmatpush2.bf16.msra.mxu0 0
  %2248 = vmatprep.subr.bf16.mxu0 0
  %2249 = vmatpush2.bf16.msra.mxu0 0
  %2250 = vmatprep.subr.bf16.mxu0 0
  %2251 = vmatpush2.bf16.msra.mxu0 0
  %2252 = vmatprep.subr.bf16.mxu0 0
  %2253 = vmatpush2.bf16.msra.mxu0 0
  %2254 = vmatprep.subr.bf16.mxu0 0
  %2255 = vmatpush2.bf16.msra.mxu0 0
  %2256 = vmatprep.mubr.bf16.mxu0 0
  %2257 = vmatmul.mubr.bf16.gmra.mxu0 %v2182
  %v2258 = vpop.f32.mrf.mxu0
  %v2259 = vadd.f32 %v908, %v2258
  %v2260 = vpop.f32.mrf.mxu0
  %v2261 = vpop.f32.mrf.mxu0
  %v2262 = vpop.f32.mrf.mxu0
  %2263 = vdwg.mxu0
  %2264 = vmatprep.subr.bf16.mxu0 0
  %2265 = vmatpush1.bf16.msra.mxu0 0
  %2266 = vmatprep.subr.bf16.mxu0 0
  %2267 = vmatpush1.bf16.msra.mxu0 0
  %2268 = vmatprep.subr.bf16.mxu0 0
  %2269 = vmatpush1.bf16.msra.mxu0 0
  %2270 = vmatprep.subr.bf16.mxu0 0
  %2271 = vmatpush1.bf16.msra.mxu0 0
  %2272 = vmatprep.subr.bf16.mxu0 0
  %2273 = vmatpush1.bf16.msra.mxu0 0
  %2274 = vmatprep.subr.bf16.mxu0 0
  %2275 = vmatpush1.bf16.msra.mxu0 0
  %2276 = vmatprep.subr.bf16.mxu0 0
  %2277 = vmatpush1.bf16.msra.mxu0 %v977
  %2278 = vmatprep.subr.bf16.mxu0 0
  %2279 = vmatpush1.bf16.msra.mxu0 %v976
  %2280 = vmatprep.subr.bf16.mxu0 0
  %2281 = vmatpush2.bf16.msra.mxu0 0
  %2282 = vmatprep.subr.bf16.mxu0 0
  %2283 = vmatpush2.bf16.msra.mxu0 0
  %2284 = vmatprep.subr.bf16.mxu0 0
  %2285 = vmatpush2.bf16.msra.mxu0 0
  %2286 = vmatprep.subr.bf16.mxu0 0
  %2287 = vmatpush2.bf16.msra.mxu0 0
  %2288 = vmatprep.subr.bf16.mxu0 0
  %2289 = vmatpush2.bf16.msra.mxu0 0
  %2290 = vmatprep.subr.bf16.mxu0 0
  %2291 = vmatpush2.bf16.msra.mxu0 0
  %2292 = vmatprep.subr.bf16.mxu0 0
  %2293 = vmatpush2.bf16.msra.mxu0 0
  %2294 = vmatprep.subr.bf16.mxu0 0
  %2295 = vmatpush2.bf16.msra.mxu0 0
  %2296 = vmatprep.mubr.bf16.mxu0 0
  %2297 = vmatmul.mubr.bf16.gmra.mxu0 %v2182
  %v2298 = vpop.f32.mrf.mxu0
  %v2299 = vadd.f32 %v966, %v2298
  %v2300 = vpop.f32.mrf.mxu0
  %v2301 = vpop.f32.mrf.mxu0
  %v2302 = vpop.f32.mrf.mxu0
  %2303 = vdwg.mxu0
  %s2304 = scalar_lea.vmem [#allocation5], 64
  %v2305 = vld [vmem:[%s2304] sm:$0xff]
  %v2306 = vadd.f32 %v2305, %v2219
  %v2307 = vxor.u32 %v2306, 2147483648
  %v2308 = vmul.f32 %v2307, 1.442695
  %v2309 = vpow.pop %v2308
  %v2310 = vadd.f32 %v2309, 1.0
  %v2311 = vrcp.pop %v2310
  %v2312 = vmul.f32 1.0, %v2311
  %s2313 = scalar_lea.vmem [#allocation6], 64
  %v2314 = vld [vmem:[%s2313] sm:$0xff]
  %v2315 = vadd.f32 %v2314, %v2259
  %v2316 = vxor.u32 %v2315, 2147483648
  %v2317 = vmul.f32 %v2316, 1.442695
  %v2318 = vpow.pop %v2317
  %v2319 = vadd.f32 %v2318, 1.0
  %v2320 = vrcp.pop %v2319
  %v2321 = vmul.f32 1.0, %v2320
  %s2322 = scalar_lea.vmem [#allocation7], 64
  %v2323 = vld [vmem:[%s2322] sm:$0xff]
  %v2324 = vmul.f32 %v2312, %v2299
  %v2325 = vadd.f32 %v2323, %v2324
  %v2326 = vtanh.pop %v2325
  %v2327 = vsub.f32 1.0, %v2321
  %v2328 = vmul.f32 %v2327, %v2326
  %v2329 = vmul.f32 %v2321, %v2169
  %v2330 = vadd.f32 %v2328, %v2329
  %s2331 = scalar_lea.vmem %s1, 64
  %v2332 = vld [vmem:[%s2331] sm:$0xff]
  %vm2333 = vcmp.gt.f32.partialorder %v2332, 0.5
  %v2334 = vsel %vm2333, 1, 0
  %2335 = vset.pattern.permute.xlu0 0
  %2336 = vperm.xlu0 %2335, %v2334
  %v2337 = vpop.permute.xlu0 %2336
  %vm2338 = vcmp.eq.s32.totalorder %v2337, 1
  %v2339 = vsel %vm2338, -1e+12, %v2330
  %v2340 = vmax.f32 %v2179, %v2339
  %v2341 = vpack.c.bf16 %v2330, %v2330
  %v2343 = vsel %vm432, %v2341, 0
  %2345 = vmatprep.subr.bf16.mxu0 0
  %2346 = vmatpush1.bf16.msra.mxu0 0
  %2347 = vmatprep.subr.bf16.mxu0 0
  %2348 = vmatpush1.bf16.msra.mxu0 0
  %2349 = vmatprep.subr.bf16.mxu0 0
  %2350 = vmatpush1.bf16.msra.mxu0 0
  %2351 = vmatprep.subr.bf16.mxu0 0
  %2352 = vmatpush1.bf16.msra.mxu0 0
  %2353 = vmatprep.subr.bf16.mxu0 0
  %2354 = vmatpush1.bf16.msra.mxu0 0
  %2355 = vmatprep.subr.bf16.mxu0 0
  %2356 = vmatpush1.bf16.msra.mxu0 0
  %2357 = vmatprep.subr.bf16.mxu0 0
  %2358 = vmatpush1.bf16.msra.mxu0 %v858
  %2359 = vmatprep.subr.bf16.mxu0 0
  %2360 = vmatpush1.bf16.msra.mxu0 %v857
  %2361 = vmatprep.subr.bf16.mxu0 0
  %2362 = vmatpush2.bf16.msra.mxu0 0
  %2363 = vmatprep.subr.bf16.mxu0 0
  %2364 = vmatpush2.bf16.msra.mxu0 0
  %2365 = vmatprep.subr.bf16.mxu0 0
  %2366 = vmatpush2.bf16.msra.mxu0 0
  %2367 = vmatprep.subr.bf16.mxu0 0
  %2368 = vmatpush2.bf16.msra.mxu0 0
  %2369 = vmatprep.subr.bf16.mxu0 0
  %2370 = vmatpush2.bf16.msra.mxu0 0
  %2371 = vmatprep.subr.bf16.mxu0 0
  %2372 = vmatpush2.bf16.msra.mxu0 0
  %2373 = vmatprep.subr.bf16.mxu0 0
  %2374 = vmatpush2.bf16.msra.mxu0 0
  %2375 = vmatprep.subr.bf16.mxu0 0
  %2376 = vmatpush2.bf16.msra.mxu0 0
  %2377 = vmatprep.mubr.bf16.mxu0 0
  %2378 = vmatmul.mubr.bf16.gmra.mxu0 %v2343
  %v2379 = vpop.f32.mrf.mxu0
  %v2380 = vadd.f32 %v847, %v2379
  %v2381 = vpop.f32.mrf.mxu0
  %v2382 = vpop.f32.mrf.mxu0
  %v2383 = vpop.f32.mrf.mxu0
  %2384 = vdwg.mxu0
  %2385 = vmatprep.subr.bf16.mxu0 0
  %2386 = vmatpush1.bf16.msra.mxu0 0
  %2387 = vmatprep.subr.bf16.mxu0 0
  %2388 = vmatpush1.bf16.msra.mxu0 0
  %2389 = vmatprep.subr.bf16.mxu0 0
  %2390 = vmatpush1.bf16.msra.mxu0 0
  %2391 = vmatprep.subr.bf16.mxu0 0
  %2392 = vmatpush1.bf16.msra.mxu0 0
  %2393 = vmatprep.subr.bf16.mxu0 0
  %2394 = vmatpush1.bf16.msra.mxu0 0
  %2395 = vmatprep.subr.bf16.mxu0 0
  %2396 = vmatpush1.bf16.msra.mxu0 0
  %2397 = vmatprep.subr.bf16.mxu0 0
  %2398 = vmatpush1.bf16.msra.mxu0 %v919
  %2399 = vmatprep.subr.bf16.mxu0 0
  %2400 = vmatpush1.bf16.msra.mxu0 %v918
  %2401 = vmatprep.subr.bf16.mxu0 0
  %2402 = vmatpush2.bf16.msra.mxu0 0
  %2403 = vmatprep.subr.bf16.mxu0 0
  %2404 = vmatpush2.bf16.msra.mxu0 0
  %2405 = vmatprep.subr.bf16.mxu0 0
  %2406 = vmatpush2.bf16.msra.mxu0 0
  %2407 = vmatprep.subr.bf16.mxu0 0
  %2408 = vmatpush2.bf16.msra.mxu0 0
  %2409 = vmatprep.subr.bf16.mxu0 0
  %2410 = vmatpush2.bf16.msra.mxu0 0
  %2411 = vmatprep.subr.bf16.mxu0 0
  %2412 = vmatpush2.bf16.msra.mxu0 0
  %2413 = vmatprep.subr.bf16.mxu0 0
  %2414 = vmatpush2.bf16.msra.mxu0 0
  %2415 = vmatprep.subr.bf16.mxu0 0
  %2416 = vmatpush2.bf16.msra.mxu0 0
  %2417 = vmatprep.mubr.bf16.mxu0 0
  %2418 = vmatmul.mubr.bf16.gmra.mxu0 %v2343
  %v2419 = vpop.f32.mrf.mxu0
  %v2420 = vadd.f32 %v908, %v2419
  %v2421 = vpop.f32.mrf.mxu0
  %v2422 = vpop.f32.mrf.mxu0
  %v2423 = vpop.f32.mrf.mxu0
  %2424 = vdwg.mxu0
  %2425 = vmatprep.subr.bf16.mxu0 0
  %2426 = vmatpush1.bf16.msra.mxu0 0
  %2427 = vmatprep.subr.bf16.mxu0 0
  %2428 = vmatpush1.bf16.msra.mxu0 0
  %2429 = vmatprep.subr.bf16.mxu0 0
  %2430 = vmatpush1.bf16.msra.mxu0 0
  %2431 = vmatprep.subr.bf16.mxu0 0
  %2432 = vmatpush1.bf16.msra.mxu0 0
  %2433 = vmatprep.subr.bf16.mxu0 0
  %2434 = vmatpush1.bf16.msra.mxu0 0
  %2435 = vmatprep.subr.bf16.mxu0 0
  %2436 = vmatpush1.bf16.msra.mxu0 0
  %2437 = vmatprep.subr.bf16.mxu0 0
  %2438 = vmatpush1.bf16.msra.mxu0 %v977
  %2439 = vmatprep.subr.bf16.mxu0 0
  %2440 = vmatpush1.bf16.msra.mxu0 %v976
  %2441 = vmatprep.subr.bf16.mxu0 0
  %2442 = vmatpush2.bf16.msra.mxu0 0
  %2443 = vmatprep.subr.bf16.mxu0 0
  %2444 = vmatpush2.bf16.msra.mxu0 0
  %2445 = vmatprep.subr.bf16.mxu0 0
  %2446 = vmatpush2.bf16.msra.mxu0 0
  %2447 = vmatprep.subr.bf16.mxu0 0
  %2448 = vmatpush2.bf16.msra.mxu0 0
  %2449 = vmatprep.subr.bf16.mxu0 0
  %2450 = vmatpush2.bf16.msra.mxu0 0
  %2451 = vmatprep.subr.bf16.mxu0 0
  %2452 = vmatpush2.bf16.msra.mxu0 0
  %2453 = vmatprep.subr.bf16.mxu0 0
  %2454 = vmatpush2.bf16.msra.mxu0 0
  %2455 = vmatprep.subr.bf16.mxu0 0
  %2456 = vmatpush2.bf16.msra.mxu0 0
  %2457 = vmatprep.mubr.bf16.mxu0 0
  %2458 = vmatmul.mubr.bf16.gmra.mxu0 %v2343
  %v2459 = vpop.f32.mrf.mxu0
  %v2460 = vadd.f32 %v966, %v2459
  %v2461 = vpop.f32.mrf.mxu0
  %v2462 = vpop.f32.mrf.mxu0
  %v2463 = vpop.f32.mrf.mxu0
  %2464 = vdwg.mxu0
  %s2465 = scalar_lea.vmem [#allocation5], 72
  %v2466 = vld [vmem:[%s2465] sm:$0xff]
  %v2467 = vadd.f32 %v2466, %v2380
  %v2468 = vxor.u32 %v2467, 2147483648
  %v2469 = vmul.f32 %v2468, 1.442695
  %v2470 = vpow.pop %v2469
  %v2471 = vadd.f32 %v2470, 1.0
  %v2472 = vrcp.pop %v2471
  %v2473 = vmul.f32 1.0, %v2472
  %s2474 = scalar_lea.vmem [#allocation6], 72
  %v2475 = vld [vmem:[%s2474] sm:$0xff]
  %v2476 = vadd.f32 %v2475, %v2420
  %v2477 = vxor.u32 %v2476, 2147483648
  %v2478 = vmul.f32 %v2477, 1.442695
  %v2479 = vpow.pop %v2478
  %v2480 = vadd.f32 %v2479, 1.0
  %v2481 = vrcp.pop %v2480
  %v2482 = vmul.f32 1.0, %v2481
  %s2483 = scalar_lea.vmem [#allocation7], 72
  %v2484 = vld [vmem:[%s2483] sm:$0xff]
  %v2485 = vmul.f32 %v2473, %v2460
  %v2486 = vadd.f32 %v2484, %v2485
  %v2487 = vtanh.pop %v2486
  %v2488 = vsub.f32 1.0, %v2482
  %v2489 = vmul.f32 %v2488, %v2487
  %v2490 = vmul.f32 %v2482, %v2330
  %v2491 = vadd.f32 %v2489, %v2490
  %s2492 = scalar_lea.vmem %s1, 72
  %v2493 = vld [vmem:[%s2492] sm:$0xff]
  %vm2494 = vcmp.gt.f32.partialorder %v2493, 0.5
  %v2495 = vsel %vm2494, 1, 0
  %2496 = vset.pattern.permute.xlu0 0
  %2497 = vperm.xlu0 %2496, %v2495
  %v2498 = vpop.permute.xlu0 %2497
  %vm2499 = vcmp.eq.s32.totalorder %v2498, 1
  %v2500 = vsel %vm2499, -1e+12, %v2491
  %v2501 = vmax.f32 %v2340, %v2500
  %v2502 = vpack.c.bf16 %v2491, %v2491
  %v2504 = vsel %vm432, %v2502, 0
  %2506 = vmatprep.subr.bf16.mxu0 0
  %2507 = vmatpush1.bf16.msra.mxu0 0
  %2508 = vmatprep.subr.bf16.mxu0 0
  %2509 = vmatpush1.bf16.msra.mxu0 0
  %2510 = vmatprep.subr.bf16.mxu0 0
  %2511 = vmatpush1.bf16.msra.mxu0 0
  %2512 = vmatprep.subr.bf16.mxu0 0
  %2513 = vmatpush1.bf16.msra.mxu0 0
  %2514 = vmatprep.subr.bf16.mxu0 0
  %2515 = vmatpush1.bf16.msra.mxu0 0
  %2516 = vmatprep.subr.bf16.mxu0 0
  %2517 = vmatpush1.bf16.msra.mxu0 0
  %2518 = vmatprep.subr.bf16.mxu0 0
  %2519 = vmatpush1.bf16.msra.mxu0 %v858
  %2520 = vmatprep.subr.bf16.mxu0 0
  %2521 = vmatpush1.bf16.msra.mxu0 %v857
  %2522 = vmatprep.subr.bf16.mxu0 0
  %2523 = vmatpush2.bf16.msra.mxu0 0
  %2524 = vmatprep.subr.bf16.mxu0 0
  %2525 = vmatpush2.bf16.msra.mxu0 0
  %2526 = vmatprep.subr.bf16.mxu0 0
  %2527 = vmatpush2.bf16.msra.mxu0 0
  %2528 = vmatprep.subr.bf16.mxu0 0
  %2529 = vmatpush2.bf16.msra.mxu0 0
  %2530 = vmatprep.subr.bf16.mxu0 0
  %2531 = vmatpush2.bf16.msra.mxu0 0
  %2532 = vmatprep.subr.bf16.mxu0 0
  %2533 = vmatpush2.bf16.msra.mxu0 0
  %2534 = vmatprep.subr.bf16.mxu0 0
  %2535 = vmatpush2.bf16.msra.mxu0 0
  %2536 = vmatprep.subr.bf16.mxu0 0
  %2537 = vmatpush2.bf16.msra.mxu0 0
  %2538 = vmatprep.mubr.bf16.mxu0 0
  %2539 = vmatmul.mubr.bf16.gmra.mxu0 %v2504
  %v2540 = vpop.f32.mrf.mxu0
  %v2541 = vadd.f32 %v847, %v2540
  %v2542 = vpop.f32.mrf.mxu0
  %v2543 = vpop.f32.mrf.mxu0
  %v2544 = vpop.f32.mrf.mxu0
  %2545 = vdwg.mxu0
  %2546 = vmatprep.subr.bf16.mxu0 0
  %2547 = vmatpush1.bf16.msra.mxu0 0
  %2548 = vmatprep.subr.bf16.mxu0 0
  %2549 = vmatpush1.bf16.msra.mxu0 0
  %2550 = vmatprep.subr.bf16.mxu0 0
  %2551 = vmatpush1.bf16.msra.mxu0 0
  %2552 = vmatprep.subr.bf16.mxu0 0
  %2553 = vmatpush1.bf16.msra.mxu0 0
  %2554 = vmatprep.subr.bf16.mxu0 0
  %2555 = vmatpush1.bf16.msra.mxu0 0
  %2556 = vmatprep.subr.bf16.mxu0 0
  %2557 = vmatpush1.bf16.msra.mxu0 0
  %2558 = vmatprep.subr.bf16.mxu0 0
  %2559 = vmatpush1.bf16.msra.mxu0 %v919
  %2560 = vmatprep.subr.bf16.mxu0 0
  %2561 = vmatpush1.bf16.msra.mxu0 %v918
  %2562 = vmatprep.subr.bf16.mxu0 0
  %2563 = vmatpush2.bf16.msra.mxu0 0
  %2564 = vmatprep.subr.bf16.mxu0 0
  %2565 = vmatpush2.bf16.msra.mxu0 0
  %2566 = vmatprep.subr.bf16.mxu0 0
  %2567 = vmatpush2.bf16.msra.mxu0 0
  %2568 = vmatprep.subr.bf16.mxu0 0
  %2569 = vmatpush2.bf16.msra.mxu0 0
  %2570 = vmatprep.subr.bf16.mxu0 0
  %2571 = vmatpush2.bf16.msra.mxu0 0
  %2572 = vmatprep.subr.bf16.mxu0 0
  %2573 = vmatpush2.bf16.msra.mxu0 0
  %2574 = vmatprep.subr.bf16.mxu0 0
  %2575 = vmatpush2.bf16.msra.mxu0 0
  %2576 = vmatprep.subr.bf16.mxu0 0
  %2577 = vmatpush2.bf16.msra.mxu0 0
  %2578 = vmatprep.mubr.bf16.mxu0 0
  %2579 = vmatmul.mubr.bf16.gmra.mxu0 %v2504
  %v2580 = vpop.f32.mrf.mxu0
  %v2581 = vadd.f32 %v908, %v2580
  %v2582 = vpop.f32.mrf.mxu0
  %v2583 = vpop.f32.mrf.mxu0
  %v2584 = vpop.f32.mrf.mxu0
  %2585 = vdwg.mxu0
  %2586 = vmatprep.subr.bf16.mxu0 0
  %2587 = vmatpush1.bf16.msra.mxu0 0
  %2588 = vmatprep.subr.bf16.mxu0 0
  %2589 = vmatpush1.bf16.msra.mxu0 0
  %2590 = vmatprep.subr.bf16.mxu0 0
  %2591 = vmatpush1.bf16.msra.mxu0 0
  %2592 = vmatprep.subr.bf16.mxu0 0
  %2593 = vmatpush1.bf16.msra.mxu0 0
  %2594 = vmatprep.subr.bf16.mxu0 0
  %2595 = vmatpush1.bf16.msra.mxu0 0
  %2596 = vmatprep.subr.bf16.mxu0 0
  %2597 = vmatpush1.bf16.msra.mxu0 0
  %2598 = vmatprep.subr.bf16.mxu0 0
  %2599 = vmatpush1.bf16.msra.mxu0 %v977
  %2600 = vmatprep.subr.bf16.mxu0 0
  %2601 = vmatpush1.bf16.msra.mxu0 %v976
  %2602 = vmatprep.subr.bf16.mxu0 0
  %2603 = vmatpush2.bf16.msra.mxu0 0
  %2604 = vmatprep.subr.bf16.mxu0 0
  %2605 = vmatpush2.bf16.msra.mxu0 0
  %2606 = vmatprep.subr.bf16.mxu0 0
  %2607 = vmatpush2.bf16.msra.mxu0 0
  %2608 = vmatprep.subr.bf16.mxu0 0
  %2609 = vmatpush2.bf16.msra.mxu0 0
  %2610 = vmatprep.subr.bf16.mxu0 0
  %2611 = vmatpush2.bf16.msra.mxu0 0
  %2612 = vmatprep.subr.bf16.mxu0 0
  %2613 = vmatpush2.bf16.msra.mxu0 0
  %2614 = vmatprep.subr.bf16.mxu0 0
  %2615 = vmatpush2.bf16.msra.mxu0 0
  %2616 = vmatprep.subr.bf16.mxu0 0
  %2617 = vmatpush2.bf16.msra.mxu0 0
  %2618 = vmatprep.mubr.bf16.mxu0 0
  %2619 = vmatmul.mubr.bf16.gmra.mxu0 %v2504
  %v2620 = vpop.f32.mrf.mxu0
  %v2621 = vadd.f32 %v966, %v2620
  %v2622 = vpop.f32.mrf.mxu0
  %v2623 = vpop.f32.mrf.mxu0
  %v2624 = vpop.f32.mrf.mxu0
  %2625 = vdwg.mxu0
  %s2626 = scalar_lea.vmem [#allocation5], 80
  %v2627 = vld [vmem:[%s2626] sm:$0xff]
  %v2628 = vadd.f32 %v2627, %v2541
  %v2629 = vxor.u32 %v2628, 2147483648
  %v2630 = vmul.f32 %v2629, 1.442695
  %v2631 = vpow.pop %v2630
  %v2632 = vadd.f32 %v2631, 1.0
  %v2633 = vrcp.pop %v2632
  %v2634 = vmul.f32 1.0, %v2633
  %s2635 = scalar_lea.vmem [#allocation6], 80
  %v2636 = vld [vmem:[%s2635] sm:$0xff]
  %v2637 = vadd.f32 %v2636, %v2581
  %v2638 = vxor.u32 %v2637, 2147483648
  %v2639 = vmul.f32 %v2638, 1.442695
  %v2640 = vpow.pop %v2639
  %v2641 = vadd.f32 %v2640, 1.0
  %v2642 = vrcp.pop %v2641
  %v2643 = vmul.f32 1.0, %v2642
  %s2644 = scalar_lea.vmem [#allocation7], 80
  %v2645 = vld [vmem:[%s2644] sm:$0xff]
  %v2646 = vmul.f32 %v2634, %v2621
  %v2647 = vadd.f32 %v2645, %v2646
  %v2648 = vtanh.pop %v2647
  %v2649 = vsub.f32 1.0, %v2643
  %v2650 = vmul.f32 %v2649, %v2648
  %v2651 = vmul.f32 %v2643, %v2491
  %v2652 = vadd.f32 %v2650, %v2651
  %s2653 = scalar_lea.vmem %s1, 80
  %v2654 = vld [vmem:[%s2653] sm:$0xff]
  %vm2655 = vcmp.gt.f32.partialorder %v2654, 0.5
  %v2656 = vsel %vm2655, 1, 0
  %2657 = vset.pattern.permute.xlu0 0
  %2658 = vperm.xlu0 %2657, %v2656
  %v2659 = vpop.permute.xlu0 %2658
  %vm2660 = vcmp.eq.s32.totalorder %v2659, 1
  %v2661 = vsel %vm2660, -1e+12, %v2652
  %v2662 = vmax.f32 %v2501, %v2661
  %v2663 = vpack.c.bf16 %v2652, %v2652
  %v2665 = vsel %vm432, %v2663, 0
  %2667 = vmatprep.subr.bf16.mxu0 0
  %2668 = vmatpush1.bf16.msra.mxu0 0
  %2669 = vmatprep.subr.bf16.mxu0 0
  %2670 = vmatpush1.bf16.msra.mxu0 0
  %2671 = vmatprep.subr.bf16.mxu0 0
  %2672 = vmatpush1.bf16.msra.mxu0 0
  %2673 = vmatprep.subr.bf16.mxu0 0
  %2674 = vmatpush1.bf16.msra.mxu0 0
  %2675 = vmatprep.subr.bf16.mxu0 0
  %2676 = vmatpush1.bf16.msra.mxu0 0
  %2677 = vmatprep.subr.bf16.mxu0 0
  %2678 = vmatpush1.bf16.msra.mxu0 0
  %2679 = vmatprep.subr.bf16.mxu0 0
  %2680 = vmatpush1.bf16.msra.mxu0 %v858
  %2681 = vmatprep.subr.bf16.mxu0 0
  %2682 = vmatpush1.bf16.msra.mxu0 %v857
  %2683 = vmatprep.subr.bf16.mxu0 0
  %2684 = vmatpush2.bf16.msra.mxu0 0
  %2685 = vmatprep.subr.bf16.mxu0 0
  %2686 = vmatpush2.bf16.msra.mxu0 0
  %2687 = vmatprep.subr.bf16.mxu0 0
  %2688 = vmatpush2.bf16.msra.mxu0 0
  %2689 = vmatprep.subr.bf16.mxu0 0
  %2690 = vmatpush2.bf16.msra.mxu0 0
  %2691 = vmatprep.subr.bf16.mxu0 0
  %2692 = vmatpush2.bf16.msra.mxu0 0
  %2693 = vmatprep.subr.bf16.mxu0 0
  %2694 = vmatpush2.bf16.msra.mxu0 0
  %2695 = vmatprep.subr.bf16.mxu0 0
  %2696 = vmatpush2.bf16.msra.mxu0 0
  %2697 = vmatprep.subr.bf16.mxu0 0
  %2698 = vmatpush2.bf16.msra.mxu0 0
  %2699 = vmatprep.mubr.bf16.mxu0 0
  %2700 = vmatmul.mubr.bf16.gmra.mxu0 %v2665
  %v2701 = vpop.f32.mrf.mxu0
  %v2702 = vadd.f32 %v847, %v2701
  %v2703 = vpop.f32.mrf.mxu0
  %v2704 = vpop.f32.mrf.mxu0
  %v2705 = vpop.f32.mrf.mxu0
  %2706 = vdwg.mxu0
  %2707 = vmatprep.subr.bf16.mxu0 0
  %2708 = vmatpush1.bf16.msra.mxu0 0
  %2709 = vmatprep.subr.bf16.mxu0 0
  %2710 = vmatpush1.bf16.msra.mxu0 0
  %2711 = vmatprep.subr.bf16.mxu0 0
  %2712 = vmatpush1.bf16.msra.mxu0 0
  %2713 = vmatprep.subr.bf16.mxu0 0
  %2714 = vmatpush1.bf16.msra.mxu0 0
  %2715 = vmatprep.subr.bf16.mxu0 0
  %2716 = vmatpush1.bf16.msra.mxu0 0
  %2717 = vmatprep.subr.bf16.mxu0 0
  %2718 = vmatpush1.bf16.msra.mxu0 0
  %2719 = vmatprep.subr.bf16.mxu0 0
  %2720 = vmatpush1.bf16.msra.mxu0 %v919
  %2721 = vmatprep.subr.bf16.mxu0 0
  %2722 = vmatpush1.bf16.msra.mxu0 %v918
  %2723 = vmatprep.subr.bf16.mxu0 0
  %2724 = vmatpush2.bf16.msra.mxu0 0
  %2725 = vmatprep.subr.bf16.mxu0 0
  %2726 = vmatpush2.bf16.msra.mxu0 0
  %2727 = vmatprep.subr.bf16.mxu0 0
  %2728 = vmatpush2.bf16.msra.mxu0 0
  %2729 = vmatprep.subr.bf16.mxu0 0
  %2730 = vmatpush2.bf16.msra.mxu0 0
  %2731 = vmatprep.subr.bf16.mxu0 0
  %2732 = vmatpush2.bf16.msra.mxu0 0
  %2733 = vmatprep.subr.bf16.mxu0 0
  %2734 = vmatpush2.bf16.msra.mxu0 0
  %2735 = vmatprep.subr.bf16.mxu0 0
  %2736 = vmatpush2.bf16.msra.mxu0 0
  %2737 = vmatprep.subr.bf16.mxu0 0
  %2738 = vmatpush2.bf16.msra.mxu0 0
  %2739 = vmatprep.mubr.bf16.mxu0 0
  %2740 = vmatmul.mubr.bf16.gmra.mxu0 %v2665
  %v2741 = vpop.f32.mrf.mxu0
  %v2742 = vadd.f32 %v908, %v2741
  %v2743 = vpop.f32.mrf.mxu0
  %v2744 = vpop.f32.mrf.mxu0
  %v2745 = vpop.f32.mrf.mxu0
  %2746 = vdwg.mxu0
  %2747 = vmatprep.subr.bf16.mxu0 0
  %2748 = vmatpush1.bf16.msra.mxu0 0
  %2749 = vmatprep.subr.bf16.mxu0 0
  %2750 = vmatpush1.bf16.msra.mxu0 0
  %2751 = vmatprep.subr.bf16.mxu0 0
  %2752 = vmatpush1.bf16.msra.mxu0 0
  %2753 = vmatprep.subr.bf16.mxu0 0
  %2754 = vmatpush1.bf16.msra.mxu0 0
  %2755 = vmatprep.subr.bf16.mxu0 0
  %2756 = vmatpush1.bf16.msra.mxu0 0
  %2757 = vmatprep.subr.bf16.mxu0 0
  %2758 = vmatpush1.bf16.msra.mxu0 0
  %2759 = vmatprep.subr.bf16.mxu0 0
  %2760 = vmatpush1.bf16.msra.mxu0 %v977
  %2761 = vmatprep.subr.bf16.mxu0 0
  %2762 = vmatpush1.bf16.msra.mxu0 %v976
  %2763 = vmatprep.subr.bf16.mxu0 0
  %2764 = vmatpush2.bf16.msra.mxu0 0
  %2765 = vmatprep.subr.bf16.mxu0 0
  %2766 = vmatpush2.bf16.msra.mxu0 0
  %2767 = vmatprep.subr.bf16.mxu0 0
  %2768 = vmatpush2.bf16.msra.mxu0 0
  %2769 = vmatprep.subr.bf16.mxu0 0
  %2770 = vmatpush2.bf16.msra.mxu0 0
  %2771 = vmatprep.subr.bf16.mxu0 0
  %2772 = vmatpush2.bf16.msra.mxu0 0
  %2773 = vmatprep.subr.bf16.mxu0 0
  %2774 = vmatpush2.bf16.msra.mxu0 0
  %2775 = vmatprep.subr.bf16.mxu0 0
  %2776 = vmatpush2.bf16.msra.mxu0 0
  %2777 = vmatprep.subr.bf16.mxu0 0
  %2778 = vmatpush2.bf16.msra.mxu0 0
  %2779 = vmatprep.mubr.bf16.mxu0 0
  %2780 = vmatmul.mubr.bf16.gmra.mxu0 %v2665
  %v2781 = vpop.f32.mrf.mxu0
  %v2782 = vadd.f32 %v966, %v2781
  %v2783 = vpop.f32.mrf.mxu0
  %v2784 = vpop.f32.mrf.mxu0
  %v2785 = vpop.f32.mrf.mxu0
  %2786 = vdwg.mxu0
  %s2787 = scalar_lea.vmem [#allocation5], 88
  %v2788 = vld [vmem:[%s2787] sm:$0xff]
  %v2789 = vadd.f32 %v2788, %v2702
  %v2790 = vxor.u32 %v2789, 2147483648
  %v2791 = vmul.f32 %v2790, 1.442695
  %v2792 = vpow.pop %v2791
  %v2793 = vadd.f32 %v2792, 1.0
  %v2794 = vrcp.pop %v2793
  %v2795 = vmul.f32 1.0, %v2794
  %s2796 = scalar_lea.vmem [#allocation6], 88
  %v2797 = vld [vmem:[%s2796] sm:$0xff]
  %v2798 = vadd.f32 %v2797, %v2742
  %v2799 = vxor.u32 %v2798, 2147483648
  %v2800 = vmul.f32 %v2799, 1.442695
  %v2801 = vpow.pop %v2800
  %v2802 = vadd.f32 %v2801, 1.0
  %v2803 = vrcp.pop %v2802
  %v2804 = vmul.f32 1.0, %v2803
  %s2805 = scalar_lea.vmem [#allocation7], 88
  %v2806 = vld [vmem:[%s2805] sm:$0xff]
  %v2807 = vmul.f32 %v2795, %v2782
  %v2808 = vadd.f32 %v2806, %v2807
  %v2809 = vtanh.pop %v2808
  %v2810 = vsub.f32 1.0, %v2804
  %v2811 = vmul.f32 %v2810, %v2809
  %v2812 = vmul.f32 %v2804, %v2652
  %v2813 = vadd.f32 %v2811, %v2812
  %s2814 = scalar_lea.vmem %s1, 88
  %v2815 = vld [vmem:[%s2814] sm:$0xff]
  %vm2816 = vcmp.gt.f32.partialorder %v2815, 0.5
  %v2817 = vsel %vm2816, 1, 0
  %2818 = vset.pattern.permute.xlu0 0
  %2819 = vperm.xlu0 %2818, %v2817
  %v2820 = vpop.permute.xlu0 %2819
  %vm2821 = vcmp.eq.s32.totalorder %v2820, 1
  %v2822 = vsel %vm2821, -1e+12, %v2813
  %v2823 = vmax.f32 %v2662, %v2822
  %v2824 = vpack.c.bf16 %v2813, %v2813
  %v2826 = vsel %vm432, %v2824, 0
  %2828 = vmatprep.subr.bf16.mxu0 0
  %2829 = vmatpush1.bf16.msra.mxu0 0
  %2830 = vmatprep.subr.bf16.mxu0 0
  %2831 = vmatpush1.bf16.msra.mxu0 0
  %2832 = vmatprep.subr.bf16.mxu0 0
  %2833 = vmatpush1.bf16.msra.mxu0 0
  %2834 = vmatprep.subr.bf16.mxu0 0
  %2835 = vmatpush1.bf16.msra.mxu0 0
  %2836 = vmatprep.subr.bf16.mxu0 0
  %2837 = vmatpush1.bf16.msra.mxu0 0
  %2838 = vmatprep.subr.bf16.mxu0 0
  %2839 = vmatpush1.bf16.msra.mxu0 0
  %2840 = vmatprep.subr.bf16.mxu0 0
  %2841 = vmatpush1.bf16.msra.mxu0 %v858
  %2842 = vmatprep.subr.bf16.mxu0 0
  %2843 = vmatpush1.bf16.msra.mxu0 %v857
  %2844 = vmatprep.subr.bf16.mxu0 0
  %2845 = vmatpush2.bf16.msra.mxu0 0
  %2846 = vmatprep.subr.bf16.mxu0 0
  %2847 = vmatpush2.bf16.msra.mxu0 0
  %2848 = vmatprep.subr.bf16.mxu0 0
  %2849 = vmatpush2.bf16.msra.mxu0 0
  %2850 = vmatprep.subr.bf16.mxu0 0
  %2851 = vmatpush2.bf16.msra.mxu0 0
  %2852 = vmatprep.subr.bf16.mxu0 0
  %2853 = vmatpush2.bf16.msra.mxu0 0
  %2854 = vmatprep.subr.bf16.mxu0 0
  %2855 = vmatpush2.bf16.msra.mxu0 0
  %2856 = vmatprep.subr.bf16.mxu0 0
  %2857 = vmatpush2.bf16.msra.mxu0 0
  %2858 = vmatprep.subr.bf16.mxu0 0
  %2859 = vmatpush2.bf16.msra.mxu0 0
  %2860 = vmatprep.mubr.bf16.mxu0 0
  %2861 = vmatmul.mubr.bf16.gmra.mxu0 %v2826
  %v2862 = vpop.f32.mrf.mxu0
  %v2863 = vadd.f32 %v847, %v2862
  %v2864 = vpop.f32.mrf.mxu0
  %v2865 = vpop.f32.mrf.mxu0
  %v2866 = vpop.f32.mrf.mxu0
  %2867 = vdwg.mxu0
  %2868 = vmatprep.subr.bf16.mxu0 0
  %2869 = vmatpush1.bf16.msra.mxu0 0
  %2870 = vmatprep.subr.bf16.mxu0 0
  %2871 = vmatpush1.bf16.msra.mxu0 0
  %2872 = vmatprep.subr.bf16.mxu0 0
  %2873 = vmatpush1.bf16.msra.mxu0 0
  %2874 = vmatprep.subr.bf16.mxu0 0
  %2875 = vmatpush1.bf16.msra.mxu0 0
  %2876 = vmatprep.subr.bf16.mxu0 0
  %2877 = vmatpush1.bf16.msra.mxu0 0
  %2878 = vmatprep.subr.bf16.mxu0 0
  %2879 = vmatpush1.bf16.msra.mxu0 0
  %2880 = vmatprep.subr.bf16.mxu0 0
  %2881 = vmatpush1.bf16.msra.mxu0 %v919
  %2882 = vmatprep.subr.bf16.mxu0 0
  %2883 = vmatpush1.bf16.msra.mxu0 %v918
  %2884 = vmatprep.subr.bf16.mxu0 0
  %2885 = vmatpush2.bf16.msra.mxu0 0
  %2886 = vmatprep.subr.bf16.mxu0 0
  %2887 = vmatpush2.bf16.msra.mxu0 0
  %2888 = vmatprep.subr.bf16.mxu0 0
  %2889 = vmatpush2.bf16.msra.mxu0 0
  %2890 = vmatprep.subr.bf16.mxu0 0
  %2891 = vmatpush2.bf16.msra.mxu0 0
  %2892 = vmatprep.subr.bf16.mxu0 0
  %2893 = vmatpush2.bf16.msra.mxu0 0
  %2894 = vmatprep.subr.bf16.mxu0 0
  %2895 = vmatpush2.bf16.msra.mxu0 0
  %2896 = vmatprep.subr.bf16.mxu0 0
  %2897 = vmatpush2.bf16.msra.mxu0 0
  %2898 = vmatprep.subr.bf16.mxu0 0
  %2899 = vmatpush2.bf16.msra.mxu0 0
  %2900 = vmatprep.mubr.bf16.mxu0 0
  %2901 = vmatmul.mubr.bf16.gmra.mxu0 %v2826
  %v2902 = vpop.f32.mrf.mxu0
  %v2903 = vadd.f32 %v908, %v2902
  %v2904 = vpop.f32.mrf.mxu0
  %v2905 = vpop.f32.mrf.mxu0
  %v2906 = vpop.f32.mrf.mxu0
  %2907 = vdwg.mxu0
  %2908 = vmatprep.subr.bf16.mxu0 0
  %2909 = vmatpush1.bf16.msra.mxu0 0
  %2910 = vmatprep.subr.bf16.mxu0 0
  %2911 = vmatpush1.bf16.msra.mxu0 0
  %2912 = vmatprep.subr.bf16.mxu0 0
  %2913 = vmatpush1.bf16.msra.mxu0 0
  %2914 = vmatprep.subr.bf16.mxu0 0
  %2915 = vmatpush1.bf16.msra.mxu0 0
  %2916 = vmatprep.subr.bf16.mxu0 0
  %2917 = vmatpush1.bf16.msra.mxu0 0
  %2918 = vmatprep.subr.bf16.mxu0 0
  %2919 = vmatpush1.bf16.msra.mxu0 0
  %2920 = vmatprep.subr.bf16.mxu0 0
  %2921 = vmatpush1.bf16.msra.mxu0 %v977
  %2922 = vmatprep.subr.bf16.mxu0 0
  %2923 = vmatpush1.bf16.msra.mxu0 %v976
  %2924 = vmatprep.subr.bf16.mxu0 0
  %2925 = vmatpush2.bf16.msra.mxu0 0
  %2926 = vmatprep.subr.bf16.mxu0 0
  %2927 = vmatpush2.bf16.msra.mxu0 0
  %2928 = vmatprep.subr.bf16.mxu0 0
  %2929 = vmatpush2.bf16.msra.mxu0 0
  %2930 = vmatprep.subr.bf16.mxu0 0
  %2931 = vmatpush2.bf16.msra.mxu0 0
  %2932 = vmatprep.subr.bf16.mxu0 0
  %2933 = vmatpush2.bf16.msra.mxu0 0
  %2934 = vmatprep.subr.bf16.mxu0 0
  %2935 = vmatpush2.bf16.msra.mxu0 0
  %2936 = vmatprep.subr.bf16.mxu0 0
  %2937 = vmatpush2.bf16.msra.mxu0 0
  %2938 = vmatprep.subr.bf16.mxu0 0
  %2939 = vmatpush2.bf16.msra.mxu0 0
  %2940 = vmatprep.mubr.bf16.mxu0 0
  %2941 = vmatmul.mubr.bf16.gmra.mxu0 %v2826
  %v2942 = vpop.f32.mrf.mxu0
  %v2943 = vadd.f32 %v966, %v2942
  %v2944 = vpop.f32.mrf.mxu0
  %v2945 = vpop.f32.mrf.mxu0
  %v2946 = vpop.f32.mrf.mxu0
  %2947 = vdwg.mxu0
  %s2948 = scalar_lea.vmem [#allocation5], 96
  %v2949 = vld [vmem:[%s2948] sm:$0xff]
  %v2950 = vadd.f32 %v2949, %v2863
  %v2951 = vxor.u32 %v2950, 2147483648
  %v2952 = vmul.f32 %v2951, 1.442695
  %v2953 = vpow.pop %v2952
  %v2954 = vadd.f32 %v2953, 1.0
  %v2955 = vrcp.pop %v2954
  %v2956 = vmul.f32 1.0, %v2955
  %s2957 = scalar_lea.vmem [#allocation6], 96
  %v2958 = vld [vmem:[%s2957] sm:$0xff]
  %v2959 = vadd.f32 %v2958, %v2903
  %v2960 = vxor.u32 %v2959, 2147483648
  %v2961 = vmul.f32 %v2960, 1.442695
  %v2962 = vpow.pop %v2961
  %v2963 = vadd.f32 %v2962, 1.0
  %v2964 = vrcp.pop %v2963
  %v2965 = vmul.f32 1.0, %v2964
  %s2966 = scalar_lea.vmem [#allocation7], 96
  %v2967 = vld [vmem:[%s2966] sm:$0xff]
  %v2968 = vmul.f32 %v2956, %v2943
  %v2969 = vadd.f32 %v2967, %v2968
  %v2970 = vtanh.pop %v2969
  %v2971 = vsub.f32 1.0, %v2965
  %v2972 = vmul.f32 %v2971, %v2970
  %v2973 = vmul.f32 %v2965, %v2813
  %v2974 = vadd.f32 %v2972, %v2973
  %s2975 = scalar_lea.vmem %s1, 96
  %v2976 = vld [vmem:[%s2975] sm:$0xff]
  %vm2977 = vcmp.gt.f32.partialorder %v2976, 0.5
  %v2978 = vsel %vm2977, 1, 0
  %2979 = vset.pattern.permute.xlu0 0
  %2980 = vperm.xlu0 %2979, %v2978
  %v2981 = vpop.permute.xlu0 %2980
  %vm2982 = vcmp.eq.s32.totalorder %v2981, 1
  %v2983 = vsel %vm2982, -1e+12, %v2974
  %v2984 = vmax.f32 %v2823, %v2983
  %v2985 = vpack.c.bf16 %v2974, %v2974
  %v2987 = vsel %vm432, %v2985, 0
  %2989 = vmatprep.subr.bf16.mxu0 0
  %2990 = vmatpush1.bf16.msra.mxu0 0
  %2991 = vmatprep.subr.bf16.mxu0 0
  %2992 = vmatpush1.bf16.msra.mxu0 0
  %2993 = vmatprep.subr.bf16.mxu0 0
  %2994 = vmatpush1.bf16.msra.mxu0 0
  %2995 = vmatprep.subr.bf16.mxu0 0
  %2996 = vmatpush1.bf16.msra.mxu0 0
  %2997 = vmatprep.subr.bf16.mxu0 0
  %2998 = vmatpush1.bf16.msra.mxu0 0
  %2999 = vmatprep.subr.bf16.mxu0 0
  %3000 = vmatpush1.bf16.msra.mxu0 0
  %3001 = vmatprep.subr.bf16.mxu0 0
  %3002 = vmatpush1.bf16.msra.mxu0 %v858
  %3003 = vmatprep.subr.bf16.mxu0 0
  %3004 = vmatpush1.bf16.msra.mxu0 %v857
  %3005 = vmatprep.subr.bf16.mxu0 0
  %3006 = vmatpush2.bf16.msra.mxu0 0
  %3007 = vmatprep.subr.bf16.mxu0 0
  %3008 = vmatpush2.bf16.msra.mxu0 0
  %3009 = vmatprep.subr.bf16.mxu0 0
  %3010 = vmatpush2.bf16.msra.mxu0 0
  %3011 = vmatprep.subr.bf16.mxu0 0
  %3012 = vmatpush2.bf16.msra.mxu0 0
  %3013 = vmatprep.subr.bf16.mxu0 0
  %3014 = vmatpush2.bf16.msra.mxu0 0
  %3015 = vmatprep.subr.bf16.mxu0 0
  %3016 = vmatpush2.bf16.msra.mxu0 0
  %3017 = vmatprep.subr.bf16.mxu0 0
  %3018 = vmatpush2.bf16.msra.mxu0 0
  %3019 = vmatprep.subr.bf16.mxu0 0
  %3020 = vmatpush2.bf16.msra.mxu0 0
  %3021 = vmatprep.mubr.bf16.mxu0 0
  %3022 = vmatmul.mubr.bf16.gmra.mxu0 %v2987
  %v3023 = vpop.f32.mrf.mxu0
  %v3024 = vadd.f32 %v847, %v3023
  %v3025 = vpop.f32.mrf.mxu0
  %v3026 = vpop.f32.mrf.mxu0
  %v3027 = vpop.f32.mrf.mxu0
  %3028 = vdwg.mxu0
  %3029 = vmatprep.subr.bf16.mxu0 0
  %3030 = vmatpush1.bf16.msra.mxu0 0
  %3031 = vmatprep.subr.bf16.mxu0 0
  %3032 = vmatpush1.bf16.msra.mxu0 0
  %3033 = vmatprep.subr.bf16.mxu0 0
  %3034 = vmatpush1.bf16.msra.mxu0 0
  %3035 = vmatprep.subr.bf16.mxu0 0
  %3036 = vmatpush1.bf16.msra.mxu0 0
  %3037 = vmatprep.subr.bf16.mxu0 0
  %3038 = vmatpush1.bf16.msra.mxu0 0
  %3039 = vmatprep.subr.bf16.mxu0 0
  %3040 = vmatpush1.bf16.msra.mxu0 0
  %3041 = vmatprep.subr.bf16.mxu0 0
  %3042 = vmatpush1.bf16.msra.mxu0 %v919
  %3043 = vmatprep.subr.bf16.mxu0 0
  %3044 = vmatpush1.bf16.msra.mxu0 %v918
  %3045 = vmatprep.subr.bf16.mxu0 0
  %3046 = vmatpush2.bf16.msra.mxu0 0
  %3047 = vmatprep.subr.bf16.mxu0 0
  %3048 = vmatpush2.bf16.msra.mxu0 0
  %3049 = vmatprep.subr.bf16.mxu0 0
  %3050 = vmatpush2.bf16.msra.mxu0 0
  %3051 = vmatprep.subr.bf16.mxu0 0
  %3052 = vmatpush2.bf16.msra.mxu0 0
  %3053 = vmatprep.subr.bf16.mxu0 0
  %3054 = vmatpush2.bf16.msra.mxu0 0
  %3055 = vmatprep.subr.bf16.mxu0 0
  %3056 = vmatpush2.bf16.msra.mxu0 0
  %3057 = vmatprep.subr.bf16.mxu0 0
  %3058 = vmatpush2.bf16.msra.mxu0 0
  %3059 = vmatprep.subr.bf16.mxu0 0
  %3060 = vmatpush2.bf16.msra.mxu0 0
  %3061 = vmatprep.mubr.bf16.mxu0 0
  %3062 = vmatmul.mubr.bf16.gmra.mxu0 %v2987
  %v3063 = vpop.f32.mrf.mxu0
  %v3064 = vadd.f32 %v908, %v3063
  %v3065 = vpop.f32.mrf.mxu0
  %v3066 = vpop.f32.mrf.mxu0
  %v3067 = vpop.f32.mrf.mxu0
  %3068 = vdwg.mxu0
  %3069 = vmatprep.subr.bf16.mxu0 0
  %3070 = vmatpush1.bf16.msra.mxu0 0
  %3071 = vmatprep.subr.bf16.mxu0 0
  %3072 = vmatpush1.bf16.msra.mxu0 0
  %3073 = vmatprep.subr.bf16.mxu0 0
  %3074 = vmatpush1.bf16.msra.mxu0 0
  %3075 = vmatprep.subr.bf16.mxu0 0
  %3076 = vmatpush1.bf16.msra.mxu0 0
  %3077 = vmatprep.subr.bf16.mxu0 0
  %3078 = vmatpush1.bf16.msra.mxu0 0
  %3079 = vmatprep.subr.bf16.mxu0 0
  %3080 = vmatpush1.bf16.msra.mxu0 0
  %3081 = vmatprep.subr.bf16.mxu0 0
  %3082 = vmatpush1.bf16.msra.mxu0 %v977
  %3083 = vmatprep.subr.bf16.mxu0 0
  %3084 = vmatpush1.bf16.msra.mxu0 %v976
  %3085 = vmatprep.subr.bf16.mxu0 0
  %3086 = vmatpush2.bf16.msra.mxu0 0
  %3087 = vmatprep.subr.bf16.mxu0 0
  %3088 = vmatpush2.bf16.msra.mxu0 0
  %3089 = vmatprep.subr.bf16.mxu0 0
  %3090 = vmatpush2.bf16.msra.mxu0 0
  %3091 = vmatprep.subr.bf16.mxu0 0
  %3092 = vmatpush2.bf16.msra.mxu0 0
  %3093 = vmatprep.subr.bf16.mxu0 0
  %3094 = vmatpush2.bf16.msra.mxu0 0
  %3095 = vmatprep.subr.bf16.mxu0 0
  %3096 = vmatpush2.bf16.msra.mxu0 0
  %3097 = vmatprep.subr.bf16.mxu0 0
  %3098 = vmatpush2.bf16.msra.mxu0 0
  %3099 = vmatprep.subr.bf16.mxu0 0
  %3100 = vmatpush2.bf16.msra.mxu0 0
  %3101 = vmatprep.mubr.bf16.mxu0 0
  %3102 = vmatmul.mubr.bf16.gmra.mxu0 %v2987
  %v3103 = vpop.f32.mrf.mxu0
  %v3104 = vadd.f32 %v966, %v3103
  %v3105 = vpop.f32.mrf.mxu0
  %v3106 = vpop.f32.mrf.mxu0
  %v3107 = vpop.f32.mrf.mxu0
  %3108 = vdwg.mxu0
  %s3109 = scalar_lea.vmem [#allocation5], 104
  %v3110 = vld [vmem:[%s3109] sm:$0xff]
  %v3111 = vadd.f32 %v3110, %v3024
  %v3112 = vxor.u32 %v3111, 2147483648
  %v3113 = vmul.f32 %v3112, 1.442695
  %v3114 = vpow.pop %v3113
  %v3115 = vadd.f32 %v3114, 1.0
  %v3116 = vrcp.pop %v3115
  %v3117 = vmul.f32 1.0, %v3116
  %s3118 = scalar_lea.vmem [#allocation6], 104
  %v3119 = vld [vmem:[%s3118] sm:$0xff]
  %v3120 = vadd.f32 %v3119, %v3064
  %v3121 = vxor.u32 %v3120, 2147483648
  %v3122 = vmul.f32 %v3121, 1.442695
  %v3123 = vpow.pop %v3122
  %v3124 = vadd.f32 %v3123, 1.0
  %v3125 = vrcp.pop %v3124
  %v3126 = vmul.f32 1.0, %v3125
  %s3127 = scalar_lea.vmem [#allocation7], 104
  %v3128 = vld [vmem:[%s3127] sm:$0xff]
  %v3129 = vmul.f32 %v3117, %v3104
  %v3130 = vadd.f32 %v3128, %v3129
  %v3131 = vtanh.pop %v3130
  %v3132 = vsub.f32 1.0, %v3126
  %v3133 = vmul.f32 %v3132, %v3131
  %v3134 = vmul.f32 %v3126, %v2974
  %v3135 = vadd.f32 %v3133, %v3134
  %s3136 = scalar_lea.vmem %s1, 104
  %v3137 = vld [vmem:[%s3136] sm:$0xff]
  %vm3138 = vcmp.gt.f32.partialorder %v3137, 0.5
  %v3139 = vsel %vm3138, 1, 0
  %3140 = vset.pattern.permute.xlu0 0
  %3141 = vperm.xlu0 %3140, %v3139
  %v3142 = vpop.permute.xlu0 %3141
  %vm3143 = vcmp.eq.s32.totalorder %v3142, 1
  %v3144 = vsel %vm3143, -1e+12, %v3135
  %v3145 = vmax.f32 %v2984, %v3144
  %v3146 = vpack.c.bf16 %v3135, %v3135
  %v3148 = vsel %vm432, %v3146, 0
  %3150 = vmatprep.subr.bf16.mxu0 0
  %3151 = vmatpush1.bf16.msra.mxu0 0
  %3152 = vmatprep.subr.bf16.mxu0 0
  %3153 = vmatpush1.bf16.msra.mxu0 0
  %3154 = vmatprep.subr.bf16.mxu0 0
  %3155 = vmatpush1.bf16.msra.mxu0 0
  %3156 = vmatprep.subr.bf16.mxu0 0
  %3157 = vmatpush1.bf16.msra.mxu0 0
  %3158 = vmatprep.subr.bf16.mxu0 0
  %3159 = vmatpush1.bf16.msra.mxu0 0
  %3160 = vmatprep.subr.bf16.mxu0 0
  %3161 = vmatpush1.bf16.msra.mxu0 0
  %3162 = vmatprep.subr.bf16.mxu0 0
  %3163 = vmatpush1.bf16.msra.mxu0 %v858
  %3164 = vmatprep.subr.bf16.mxu0 0
  %3165 = vmatpush1.bf16.msra.mxu0 %v857
  %3166 = vmatprep.subr.bf16.mxu0 0
  %3167 = vmatpush2.bf16.msra.mxu0 0
  %3168 = vmatprep.subr.bf16.mxu0 0
  %3169 = vmatpush2.bf16.msra.mxu0 0
  %3170 = vmatprep.subr.bf16.mxu0 0
  %3171 = vmatpush2.bf16.msra.mxu0 0
  %3172 = vmatprep.subr.bf16.mxu0 0
  %3173 = vmatpush2.bf16.msra.mxu0 0
  %3174 = vmatprep.subr.bf16.mxu0 0
  %3175 = vmatpush2.bf16.msra.mxu0 0
  %3176 = vmatprep.subr.bf16.mxu0 0
  %3177 = vmatpush2.bf16.msra.mxu0 0
  %3178 = vmatprep.subr.bf16.mxu0 0
  %3179 = vmatpush2.bf16.msra.mxu0 0
  %3180 = vmatprep.subr.bf16.mxu0 0
  %3181 = vmatpush2.bf16.msra.mxu0 0
  %3182 = vmatprep.mubr.bf16.mxu0 0
  %3183 = vmatmul.mubr.bf16.gmra.mxu0 %v3148
  %v3184 = vpop.f32.mrf.mxu0
  %v3185 = vadd.f32 %v847, %v3184
  %v3186 = vpop.f32.mrf.mxu0
  %v3187 = vpop.f32.mrf.mxu0
  %v3188 = vpop.f32.mrf.mxu0
  %3189 = vdwg.mxu0
  %3190 = vmatprep.subr.bf16.mxu0 0
  %3191 = vmatpush1.bf16.msra.mxu0 0
  %3192 = vmatprep.subr.bf16.mxu0 0
  %3193 = vmatpush1.bf16.msra.mxu0 0
  %3194 = vmatprep.subr.bf16.mxu0 0
  %3195 = vmatpush1.bf16.msra.mxu0 0
  %3196 = vmatprep.subr.bf16.mxu0 0
  %3197 = vmatpush1.bf16.msra.mxu0 0
  %3198 = vmatprep.subr.bf16.mxu0 0
  %3199 = vmatpush1.bf16.msra.mxu0 0
  %3200 = vmatprep.subr.bf16.mxu0 0
  %3201 = vmatpush1.bf16.msra.mxu0 0
  %3202 = vmatprep.subr.bf16.mxu0 0
  %3203 = vmatpush1.bf16.msra.mxu0 %v919
  %3204 = vmatprep.subr.bf16.mxu0 0
  %3205 = vmatpush1.bf16.msra.mxu0 %v918
  %3206 = vmatprep.subr.bf16.mxu0 0
  %3207 = vmatpush2.bf16.msra.mxu0 0
  %3208 = vmatprep.subr.bf16.mxu0 0
  %3209 = vmatpush2.bf16.msra.mxu0 0
  %3210 = vmatprep.subr.bf16.mxu0 0
  %3211 = vmatpush2.bf16.msra.mxu0 0
  %3212 = vmatprep.subr.bf16.mxu0 0
  %3213 = vmatpush2.bf16.msra.mxu0 0
  %3214 = vmatprep.subr.bf16.mxu0 0
  %3215 = vmatpush2.bf16.msra.mxu0 0
  %3216 = vmatprep.subr.bf16.mxu0 0
  %3217 = vmatpush2.bf16.msra.mxu0 0
  %3218 = vmatprep.subr.bf16.mxu0 0
  %3219 = vmatpush2.bf16.msra.mxu0 0
  %3220 = vmatprep.subr.bf16.mxu0 0
  %3221 = vmatpush2.bf16.msra.mxu0 0
  %3222 = vmatprep.mubr.bf16.mxu0 0
  %3223 = vmatmul.mubr.bf16.gmra.mxu0 %v3148
  %v3224 = vpop.f32.mrf.mxu0
  %v3225 = vadd.f32 %v908, %v3224
  %v3226 = vpop.f32.mrf.mxu0
  %v3227 = vpop.f32.mrf.mxu0
  %v3228 = vpop.f32.mrf.mxu0
  %3229 = vdwg.mxu0
  %3230 = vmatprep.subr.bf16.mxu0 0
  %3231 = vmatpush1.bf16.msra.mxu0 0
  %3232 = vmatprep.subr.bf16.mxu0 0
  %3233 = vmatpush1.bf16.msra.mxu0 0
  %3234 = vmatprep.subr.bf16.mxu0 0
  %3235 = vmatpush1.bf16.msra.mxu0 0
  %3236 = vmatprep.subr.bf16.mxu0 0
  %3237 = vmatpush1.bf16.msra.mxu0 0
  %3238 = vmatprep.subr.bf16.mxu0 0
  %3239 = vmatpush1.bf16.msra.mxu0 0
  %3240 = vmatprep.subr.bf16.mxu0 0
  %3241 = vmatpush1.bf16.msra.mxu0 0
  %3242 = vmatprep.subr.bf16.mxu0 0
  %3243 = vmatpush1.bf16.msra.mxu0 %v977
  %3244 = vmatprep.subr.bf16.mxu0 0
  %3245 = vmatpush1.bf16.msra.mxu0 %v976
  %3246 = vmatprep.subr.bf16.mxu0 0
  %3247 = vmatpush2.bf16.msra.mxu0 0
  %3248 = vmatprep.subr.bf16.mxu0 0
  %3249 = vmatpush2.bf16.msra.mxu0 0
  %3250 = vmatprep.subr.bf16.mxu0 0
  %3251 = vmatpush2.bf16.msra.mxu0 0
  %3252 = vmatprep.subr.bf16.mxu0 0
  %3253 = vmatpush2.bf16.msra.mxu0 0
  %3254 = vmatprep.subr.bf16.mxu0 0
  %3255 = vmatpush2.bf16.msra.mxu0 0
  %3256 = vmatprep.subr.bf16.mxu0 0
  %3257 = vmatpush2.bf16.msra.mxu0 0
  %3258 = vmatprep.subr.bf16.mxu0 0
  %3259 = vmatpush2.bf16.msra.mxu0 0
  %3260 = vmatprep.subr.bf16.mxu0 0
  %3261 = vmatpush2.bf16.msra.mxu0 0
  %3262 = vmatprep.mubr.bf16.mxu0 0
  %3263 = vmatmul.mubr.bf16.gmra.mxu0 %v3148
  %v3264 = vpop.f32.mrf.mxu0
  %v3265 = vadd.f32 %v966, %v3264
  %v3266 = vpop.f32.mrf.mxu0
  %v3267 = vpop.f32.mrf.mxu0
  %v3268 = vpop.f32.mrf.mxu0
  %3269 = vdwg.mxu0
  %s3270 = scalar_lea.vmem [#allocation5], 112
  %v3271 = vld [vmem:[%s3270] sm:$0xff]
  %v3272 = vadd.f32 %v3271, %v3185
  %v3273 = vxor.u32 %v3272, 2147483648
  %v3274 = vmul.f32 %v3273, 1.442695
  %v3275 = vpow.pop %v3274
  %v3276 = vadd.f32 %v3275, 1.0
  %v3277 = vrcp.pop %v3276
  %v3278 = vmul.f32 1.0, %v3277
  %s3279 = scalar_lea.vmem [#allocation6], 112
  %v3280 = vld [vmem:[%s3279] sm:$0xff]
  %v3281 = vadd.f32 %v3280, %v3225
  %v3282 = vxor.u32 %v3281, 2147483648
  %v3283 = vmul.f32 %v3282, 1.442695
  %v3284 = vpow.pop %v3283
  %v3285 = vadd.f32 %v3284, 1.0
  %v3286 = vrcp.pop %v3285
  %v3287 = vmul.f32 1.0, %v3286
  %s3288 = scalar_lea.vmem [#allocation7], 112
  %v3289 = vld [vmem:[%s3288] sm:$0xff]
  %v3290 = vmul.f32 %v3278, %v3265
  %v3291 = vadd.f32 %v3289, %v3290
  %v3292 = vtanh.pop %v3291
  %v3293 = vsub.f32 1.0, %v3287
  %v3294 = vmul.f32 %v3293, %v3292
  %v3295 = vmul.f32 %v3287, %v3135
  %v3296 = vadd.f32 %v3294, %v3295
  %s3297 = scalar_lea.vmem %s1, 112
  %v3298 = vld [vmem:[%s3297] sm:$0xff]
  %vm3299 = vcmp.gt.f32.partialorder %v3298, 0.5
  %v3300 = vsel %vm3299, 1, 0
  %3301 = vset.pattern.permute.xlu0 0
  %3302 = vperm.xlu0 %3301, %v3300
  %v3303 = vpop.permute.xlu0 %3302
  %vm3304 = vcmp.eq.s32.totalorder %v3303, 1
  %v3305 = vsel %vm3304, -1e+12, %v3296
  %v3306 = vmax.f32 %v3145, %v3305
  %v3307 = vpack.c.bf16 %v3296, %v3296
  %v3309 = vsel %vm432, %v3307, 0
  %3311 = vmatprep.subr.bf16.mxu0 0
  %3312 = vmatpush1.bf16.msra.mxu0 0
  %3313 = vmatprep.subr.bf16.mxu0 0
  %3314 = vmatpush1.bf16.msra.mxu0 0
  %3315 = vmatprep.subr.bf16.mxu0 0
  %3316 = vmatpush1.bf16.msra.mxu0 0
  %3317 = vmatprep.subr.bf16.mxu0 0
  %3318 = vmatpush1.bf16.msra.mxu0 0
  %3319 = vmatprep.subr.bf16.mxu0 0
  %3320 = vmatpush1.bf16.msra.mxu0 0
  %3321 = vmatprep.subr.bf16.mxu0 0
  %3322 = vmatpush1.bf16.msra.mxu0 0
  %3323 = vmatprep.subr.bf16.mxu0 0
  %3324 = vmatpush1.bf16.msra.mxu0 %v858
  %3325 = vmatprep.subr.bf16.mxu0 0
  %3326 = vmatpush1.bf16.msra.mxu0 %v857
  %3327 = vmatprep.subr.bf16.mxu0 0
  %3328 = vmatpush2.bf16.msra.mxu0 0
  %3329 = vmatprep.subr.bf16.mxu0 0
  %3330 = vmatpush2.bf16.msra.mxu0 0
  %3331 = vmatprep.subr.bf16.mxu0 0
  %3332 = vmatpush2.bf16.msra.mxu0 0
  %3333 = vmatprep.subr.bf16.mxu0 0
  %3334 = vmatpush2.bf16.msra.mxu0 0
  %3335 = vmatprep.subr.bf16.mxu0 0
  %3336 = vmatpush2.bf16.msra.mxu0 0
  %3337 = vmatprep.subr.bf16.mxu0 0
  %3338 = vmatpush2.bf16.msra.mxu0 0
  %3339 = vmatprep.subr.bf16.mxu0 0
  %3340 = vmatpush2.bf16.msra.mxu0 0
  %3341 = vmatprep.subr.bf16.mxu0 0
  %3342 = vmatpush2.bf16.msra.mxu0 0
  %3343 = vmatprep.mubr.bf16.mxu0 0
  %3344 = vmatmul.mubr.bf16.gmra.mxu0 %v3309
  %v3345 = vpop.f32.mrf.mxu0
  %v3346 = vadd.f32 %v847, %v3345
  %v3347 = vpop.f32.mrf.mxu0
  %v3348 = vpop.f32.mrf.mxu0
  %v3349 = vpop.f32.mrf.mxu0
  %3350 = vdwg.mxu0
  %3351 = vmatprep.subr.bf16.mxu0 0
  %3352 = vmatpush1.bf16.msra.mxu0 0
  %3353 = vmatprep.subr.bf16.mxu0 0
  %3354 = vmatpush1.bf16.msra.mxu0 0
  %3355 = vmatprep.subr.bf16.mxu0 0
  %3356 = vmatpush1.bf16.msra.mxu0 0
  %3357 = vmatprep.subr.bf16.mxu0 0
  %3358 = vmatpush1.bf16.msra.mxu0 0
  %3359 = vmatprep.subr.bf16.mxu0 0
  %3360 = vmatpush1.bf16.msra.mxu0 0
  %3361 = vmatprep.subr.bf16.mxu0 0
  %3362 = vmatpush1.bf16.msra.mxu0 0
  %3363 = vmatprep.subr.bf16.mxu0 0
  %3364 = vmatpush1.bf16.msra.mxu0 %v919
  %3365 = vmatprep.subr.bf16.mxu0 0
  %3366 = vmatpush1.bf16.msra.mxu0 %v918
  %3367 = vmatprep.subr.bf16.mxu0 0
  %3368 = vmatpush2.bf16.msra.mxu0 0
  %3369 = vmatprep.subr.bf16.mxu0 0
  %3370 = vmatpush2.bf16.msra.mxu0 0
  %3371 = vmatprep.subr.bf16.mxu0 0
  %3372 = vmatpush2.bf16.msra.mxu0 0
  %3373 = vmatprep.subr.bf16.mxu0 0
  %3374 = vmatpush2.bf16.msra.mxu0 0
  %3375 = vmatprep.subr.bf16.mxu0 0
  %3376 = vmatpush2.bf16.msra.mxu0 0
  %3377 = vmatprep.subr.bf16.mxu0 0
  %3378 = vmatpush2.bf16.msra.mxu0 0
  %3379 = vmatprep.subr.bf16.mxu0 0
  %3380 = vmatpush2.bf16.msra.mxu0 0
  %3381 = vmatprep.subr.bf16.mxu0 0
  %3382 = vmatpush2.bf16.msra.mxu0 0
  %3383 = vmatprep.mubr.bf16.mxu0 0
  %3384 = vmatmul.mubr.bf16.gmra.mxu0 %v3309
  %v3385 = vpop.f32.mrf.mxu0
  %v3386 = vadd.f32 %v908, %v3385
  %v3387 = vpop.f32.mrf.mxu0
  %v3388 = vpop.f32.mrf.mxu0
  %v3389 = vpop.f32.mrf.mxu0
  %3390 = vdwg.mxu0
  %3391 = vmatprep.subr.bf16.mxu0 0
  %3392 = vmatpush1.bf16.msra.mxu0 0
  %3393 = vmatprep.subr.bf16.mxu0 0
  %3394 = vmatpush1.bf16.msra.mxu0 0
  %3395 = vmatprep.subr.bf16.mxu0 0
  %3396 = vmatpush1.bf16.msra.mxu0 0
  %3397 = vmatprep.subr.bf16.mxu0 0
  %3398 = vmatpush1.bf16.msra.mxu0 0
  %3399 = vmatprep.subr.bf16.mxu0 0
  %3400 = vmatpush1.bf16.msra.mxu0 0
  %3401 = vmatprep.subr.bf16.mxu0 0
  %3402 = vmatpush1.bf16.msra.mxu0 0
  %3403 = vmatprep.subr.bf16.mxu0 0
  %3404 = vmatpush1.bf16.msra.mxu0 %v977
  %3405 = vmatprep.subr.bf16.mxu0 0
  %3406 = vmatpush1.bf16.msra.mxu0 %v976
  %3407 = vmatprep.subr.bf16.mxu0 0
  %3408 = vmatpush2.bf16.msra.mxu0 0
  %3409 = vmatprep.subr.bf16.mxu0 0
  %3410 = vmatpush2.bf16.msra.mxu0 0
  %3411 = vmatprep.subr.bf16.mxu0 0
  %3412 = vmatpush2.bf16.msra.mxu0 0
  %3413 = vmatprep.subr.bf16.mxu0 0
  %3414 = vmatpush2.bf16.msra.mxu0 0
  %3415 = vmatprep.subr.bf16.mxu0 0
  %3416 = vmatpush2.bf16.msra.mxu0 0
  %3417 = vmatprep.subr.bf16.mxu0 0
  %3418 = vmatpush2.bf16.msra.mxu0 0
  %3419 = vmatprep.subr.bf16.mxu0 0
  %3420 = vmatpush2.bf16.msra.mxu0 0
  %3421 = vmatprep.subr.bf16.mxu0 0
  %3422 = vmatpush2.bf16.msra.mxu0 0
  %3423 = vmatprep.mubr.bf16.mxu0 0
  %3424 = vmatmul.mubr.bf16.gmra.mxu0 %v3309
  %v3425 = vpop.f32.mrf.mxu0
  %v3426 = vadd.f32 %v966, %v3425
  %v3427 = vpop.f32.mrf.mxu0
  %v3428 = vpop.f32.mrf.mxu0
  %v3429 = vpop.f32.mrf.mxu0
  %3430 = vdwg.mxu0
  %s3431 = scalar_lea.vmem [#allocation5], 120
  %v3432 = vld [vmem:[%s3431] sm:$0xff]
  %v3433 = vadd.f32 %v3432, %v3346
  %v3434 = vxor.u32 %v3433, 2147483648
  %v3435 = vmul.f32 %v3434, 1.442695
  %v3436 = vpow.pop %v3435
  %v3437 = vadd.f32 %v3436, 1.0
  %v3438 = vrcp.pop %v3437
  %v3439 = vmul.f32 1.0, %v3438
  %s3440 = scalar_lea.vmem [#allocation6], 120
  %v3441 = vld [vmem:[%s3440] sm:$0xff]
  %v3442 = vadd.f32 %v3441, %v3386
  %v3443 = vxor.u32 %v3442, 2147483648
  %v3444 = vmul.f32 %v3443, 1.442695
  %v3445 = vpow.pop %v3444
  %v3446 = vadd.f32 %v3445, 1.0
  %v3447 = vrcp.pop %v3446
  %v3448 = vmul.f32 1.0, %v3447
  %s3449 = scalar_lea.vmem [#allocation7], 120
  %v3450 = vld [vmem:[%s3449] sm:$0xff]
  %v3451 = vmul.f32 %v3439, %v3426
  %v3452 = vadd.f32 %v3450, %v3451
  %v3453 = vtanh.pop %v3452
  %v3454 = vsub.f32 1.0, %v3448
  %v3455 = vmul.f32 %v3454, %v3453
  %v3456 = vmul.f32 %v3448, %v3296
  %v3457 = vadd.f32 %v3455, %v3456
  %s3458 = scalar_lea.vmem %s1, 120
  %v3459 = vld [vmem:[%s3458] sm:$0xff]
  %vm3460 = vcmp.gt.f32.partialorder %v3459, 0.5
  %v3461 = vsel %vm3460, 1, 0
  %3462 = vset.pattern.permute.xlu0 0
  %3463 = vperm.xlu0 %3462, %v3461
  %v3464 = vpop.permute.xlu0 %3463
  %vm3465 = vcmp.eq.s32.totalorder %v3464, 1
  %v3466 = vsel %vm3465, -1e+12, %v3457
  %v3467 = vmax.f32 %v3306, %v3466
  %3468 = vst.msk [vmem:[#allocation2] sm:$0xff] %vm432, %v3457
  %3469 = vst.msk [vmem:[#allocation3] sm:$0xff] %vm432, %v3467
  // Predicated region
  $region38: #{bidaf_forward.5} parent=0 // pred_check
    %p3470 = pneg %p30
  $region39: #{bidaf_forward.5} parent=0 // pred_check_branch
    %3472 = sbr.rel (%p3470) target = $region41
  $region40: #{bidaf_forward.5} parent=0 // pred_region
    %v3473 = vld [vmem:[#allocation4] sm:$0xff]
    %v3474 = vld [vmem:[%s6] sm:$0xff]
    %v3475 = vld [vmem:[%s6 + $0x8] sm:$0xff]
    %v3476 = vld [vmem:[%s6 + $0x10] sm:$0xff]
    %v3477 = vld [vmem:[%s6 + $0x18] sm:$0xff]
    %v3478 = vld [vmem:[%s6 + $0x20] sm:$0xff]
    %v3479 = vld [vmem:[%s6 + $0x28] sm:$0xff]
    %v3480 = vld [vmem:[%s6 + $0x30] sm:$0xff]
    %v3481 = vld [vmem:[%s6 + $0x38] sm:$0xff]
    %v3482 = vld [vmem:[%s6 + $0x40] sm:$0xff]
    %v3483 = vld [vmem:[%s6 + $0x48] sm:$0xff]
    %v3484 = vld [vmem:[%s6 + $0x50] sm:$0xff]
    %v3485 = vld [vmem:[%s6 + $0x58] sm:$0xff]
    %v3486 = vld [vmem:[%s6 + $0x60] sm:$0xff]
    %v3487 = vld [vmem:[%s6 + $0x68] sm:$0xff]
    %v3488 = vld [vmem:[%s6 + $0x70] sm:$0xff]
    %v3489 = vld [vmem:[%s6 + $0x78] sm:$0xff]
    %v3490 = vld [vmem:[#allocation3] sm:$0xff]
    %v3491 = vld [vmem:[%s7] sm:$0xff]
    %v3492 = vld [vmem:[%s7 + $0x8] sm:$0xff]
    %v3493 = vld [vmem:[%s7 + $0x10] sm:$0xff]
    %v3494 = vld [vmem:[%s7 + $0x18] sm:$0xff]
    %v3496 = vsel %vm432, %v3490, 0
    %3498 = vmatprep.subr.mxu0 0.0
    %3499 = vmatpush1.msra.mxu0 0.0
    %3500 = vmatprep.subr.mxu0 0.0
    %3501 = vmatpush1.msra.mxu0 0.0
    %3502 = vmatprep.subr.mxu0 0.0
    %3503 = vmatpush1.msra.mxu0 0.0
    %3504 = vmatprep.subr.mxu0 0.0
    %3505 = vmatpush1.msra.mxu0 0.0
    %3506 = vmatprep.subr.mxu0 0.0
    %3507 = vmatpush1.msra.mxu0 0.0
    %3508 = vmatprep.subr.mxu0 0.0
    %3509 = vmatpush1.msra.mxu0 0.0
    %3510 = vmatprep.subr.mxu0 0.0
    %3511 = vmatpush1.msra.mxu0 0.0
    %3512 = vmatprep.subr.mxu0 0.0
    %3513 = vmatpush1.msra.mxu0 0.0
    %3514 = vmatprep.subr.mxu0 0.0
    %3515 = vmatpush1.msra.mxu0 0.0
    %3516 = vmatprep.subr.mxu0 0.0
    %3517 = vmatpush1.msra.mxu0 0.0
    %3518 = vmatprep.subr.mxu0 0.0
    %3519 = vmatpush1.msra.mxu0 0.0
    %3520 = vmatprep.subr.mxu0 0.0
    %3521 = vmatpush1.msra.mxu0 0.0
    %3522 = vmatprep.subr.mxu0 0.0
    %3523 = vmatpush1.msra.mxu0 %v3494
    %3524 = vmatprep.subr.mxu0 0.0
    %3525 = vmatpush1.msra.mxu0 %v3493
    %3526 = vmatprep.subr.mxu0 0.0
    %3527 = vmatpush1.msra.mxu0 %v3492
    %3528 = vmatprep.subr.mxu0 0.0
    %3529 = vmatpush1.msra.mxu0 %v3491
    %3530 = vmatprep.subr.mxu0 0.0
    %3531 = vmatpush2.msra.mxu0 0.0
    %3532 = vmatprep.subr.mxu0 0.0
    %3533 = vmatpush2.msra.mxu0 0.0
    %3534 = vmatprep.subr.mxu0 0.0
    %3535 = vmatpush2.msra.mxu0 0.0
    %3536 = vmatprep.subr.mxu0 0.0
    %3537 = vmatpush2.msra.mxu0 0.0
    %3538 = vmatprep.subr.mxu0 0.0
    %3539 = vmatpush2.msra.mxu0 0.0
    %3540 = vmatprep.subr.mxu0 0.0
    %3541 = vmatpush2.msra.mxu0 0.0
    %3542 = vmatprep.subr.mxu0 0.0
    %3543 = vmatpush2.msra.mxu0 0.0
    %3544 = vmatprep.subr.mxu0 0.0
    %3545 = vmatpush2.msra.mxu0 0.0
    %3546 = vmatprep.subr.mxu0 0.0
    %3547 = vmatpush2.msra.mxu0 0.0
    %3548 = vmatprep.subr.mxu0 0.0
    %3549 = vmatpush2.msra.mxu0 0.0
    %3550 = vmatprep.subr.mxu0 0.0
    %3551 = vmatpush2.msra.mxu0 0.0
    %3552 = vmatprep.subr.mxu0 0.0
    %3553 = vmatpush2.msra.mxu0 0.0
    %3554 = vmatprep.subr.mxu0 0.0
    %3555 = vmatpush2.msra.mxu0 0.0
    %3556 = vmatprep.subr.mxu0 0.0
    %3557 = vmatpush2.msra.mxu0 0.0
    %3558 = vmatprep.subr.mxu0 0.0
    %3559 = vmatpush2.msra.mxu0 0.0
    %3560 = vmatprep.subr.mxu0 0.0
    %3561 = vmatpush2.msra.mxu0 0.0
    %3562 = vmatprep.mubr.f32.mxu0 0.0
    %3563 = vmatmul.mubr.f32.gmra.mxu0 %v3496
    %v3564 = vpop.f32.mrf.mxu0
    %v3565 = vadd.f32 0.0, %v3564
    %v3566 = vpop.f32.mrf.mxu0
    %3567 = vdwg.mxu0
    %3568 = vmatprep.subr.mxu0 0.0
    %3569 = vmatpush1.msra.mxu0 %v3489
    %3570 = vmatprep.subr.mxu0 0.0
    %3571 = vmatpush1.msra.mxu0 %v3488
    %3572 = vmatprep.subr.mxu0 0.0
    %3573 = vmatpush1.msra.mxu0 %v3487
    %3574 = vmatprep.subr.mxu0 0.0
    %3575 = vmatpush1.msra.mxu0 %v3486
    %3576 = vmatprep.subr.mxu0 0.0
    %3577 = vmatpush1.msra.mxu0 %v3485
    %3578 = vmatprep.subr.mxu0 0.0
    %3579 = vmatpush1.msra.mxu0 %v3484
    %3580 = vmatprep.subr.mxu0 0.0
    %3581 = vmatpush1.msra.mxu0 %v3483
    %3582 = vmatprep.subr.mxu0 0.0
    %3583 = vmatpush1.msra.mxu0 %v3482
    %3584 = vmatprep.subr.mxu0 0.0
    %3585 = vmatpush1.msra.mxu0 %v3481
    %3586 = vmatprep.subr.mxu0 0.0
    %3587 = vmatpush1.msra.mxu0 %v3480
    %3588 = vmatprep.subr.mxu0 0.0
    %3589 = vmatpush1.msra.mxu0 %v3479
    %3590 = vmatprep.subr.mxu0 0.0
    %3591 = vmatpush1.msra.mxu0 %v3478
    %3592 = vmatprep.subr.mxu0 0.0
    %3593 = vmatpush1.msra.mxu0 %v3477
    %3594 = vmatprep.subr.mxu0 0.0
    %3595 = vmatpush1.msra.mxu0 %v3476
    %3596 = vmatprep.subr.mxu0 0.0
    %3597 = vmatpush1.msra.mxu0 %v3475
    %3598 = vmatprep.subr.mxu0 0.0
    %3599 = vmatpush1.msra.mxu0 %v3474
    %3600 = vmatprep.subr.mxu0 0.0
    %3601 = vmatpush2.msra.mxu0 0.0
    %3602 = vmatprep.subr.mxu0 0.0
    %3603 = vmatpush2.msra.mxu0 0.0
    %3604 = vmatprep.subr.mxu0 0.0
    %3605 = vmatpush2.msra.mxu0 0.0
    %3606 = vmatprep.subr.mxu0 0.0
    %3607 = vmatpush2.msra.mxu0 0.0
    %3608 = vmatprep.subr.mxu0 0.0
    %3609 = vmatpush2.msra.mxu0 0.0
    %3610 = vmatprep.subr.mxu0 0.0
    %3611 = vmatpush2.msra.mxu0 0.0
    %3612 = vmatprep.subr.mxu0 0.0
    %3613 = vmatpush2.msra.mxu0 0.0
    %3614 = vmatprep.subr.mxu0 0.0
    %3615 = vmatpush2.msra.mxu0 0.0
    %3616 = vmatprep.subr.mxu0 0.0
    %3617 = vmatpush2.msra.mxu0 0.0
    %3618 = vmatprep.subr.mxu0 0.0
    %3619 = vmatpush2.msra.mxu0 0.0
    %3620 = vmatprep.subr.mxu0 0.0
    %3621 = vmatpush2.msra.mxu0 0.0
    %3622 = vmatprep.subr.mxu0 0.0
    %3623 = vmatpush2.msra.mxu0 0.0
    %3624 = vmatprep.subr.mxu0 0.0
    %3625 = vmatpush2.msra.mxu0 0.0
    %3626 = vmatprep.subr.mxu0 0.0
    %3627 = vmatpush2.msra.mxu0 0.0
    %3628 = vmatprep.subr.mxu0 0.0
    %3629 = vmatpush2.msra.mxu0 0.0
    %3630 = vmatprep.subr.mxu0 0.0
    %3631 = vmatpush2.msra.mxu0 0.0
    %3632 = vmatprep.mubr.f32.mxu0 0.0
    %3633 = vmatmul.mubr.f32.gmra.mxu0 %v3473
    %v3634 = vpop.f32.mrf.mxu0
    %v3635 = vadd.f32 %v3565, %v3634
    %v3636 = vpop.f32.mrf.mxu0
    %3637 = vdwg.mxu0
    %vm3638 = vcmask 15360
    %3639 = vst.msk [vmem:[%s8] sm:$0xff] %vm3638, %v3635
  $region41: #{bidaf_forward.5} parent=0 // pred_fallthru
    _
  // Predicated region
  $region42: #{bidaf_forward.5} parent=0 // pred_check
    _
  $region43: #{bidaf_forward.5} parent=0 // pred_check_branch
    %3641 = sbr.rel (0) target = $region45
  $region44: #{bidaf_forward.5} parent=0 // pred_region
    _
  $region45: #{bidaf_forward.5} parent=0 // pred_fallthru
    _
  // Predicated region
  $region46: #{bidaf_forward.5} parent=0 // pred_check
    _
  $region47: #{bidaf_forward.5} parent=0 // pred_check_branch
    %3643 = sbr.rel (0) target = $region49
  $region48: #{bidaf_forward.5} parent=0 // pred_region
    _
  $region49: #{bidaf_forward.5} parent=0 // pred_fallthru
    _

</llo_original>
